<compile_context>
chip_gen: v7x
topology: tpu7x:2x2x1
jax: 0.10.0
libtpu: 0.0.40
codegen_flags: <defaults>
</compile_context>

<pallas_src>
import functools
import math

import numpy as np
import jax
import jax.numpy as jnp
from jax.experimental import pallas as pl
from jax.experimental.pallas import tpu as pltpu


# Static model structure (mirrors X_vector.__init__); kept OUT of the params
# pytree so all layer geometry is resolved to Python ints at trace time.
CONTEXTS = ((-2, 2), (-2, 1, 2), (-3, 1, 3), (1,), (1,))
C5, C5_PAD = 1500, 1536          # layer-5 channels, padded to 12*128 lanes


def tdnn_geometry(context, t_in):
    """Mirror TDNN_cpu.{get_kernel_width, get_valid_steps} (full_context=True).

    Output valid step t reads input steps offset + t + k, k in [0, K).
    Returns static Python ints (K, offset, t_out).
    """
    c0, cl = context[0], context[-1]
    K = cl - c0 + 1
    start = 0 if c0 >= 0 else -c0
    end = t_in if cl <= 0 else t_in - cl
    return K, start + c0, end - start


def _geometry(B, S):
    """Static per-layer (K, offset, rows_out) in the batch-folded row layout."""
    geoms, t_cur, rows_cur = [], S, B * S
    for ctx in CONTEXTS:
        K, offset, t_out = tdnn_geometry(ctx, t_cur)
        rows_out = rows_cur - (offset + K - 1)
        geoms.append((K, offset, rows_out))
        t_cur, rows_cur = t_out, rows_out
    return tuple(geoms), t_cur, rows_cur


# ----------------------------------------------------------------------------
# Fused kernel: 5x TDNN (+ReLU) -> StatsPooling -> FC(relu) x2 -> Linear
# ----------------------------------------------------------------------------
def _xvector_kernel(x_ref, sel_ref,
                    tw1, tb1, tw2, tb2, tw3, tb3, tw4, tb4, tw5, tb5,
                    w1q_hbm, w1scale_ref, hb1_ref, hw2_ref, hb2_ref,
                    hw3_ref, hb3_ref,
                    emb_ref, prob_ref,
                    w1q_vmem, dma_sem,
                    *, geoms, t5):
    """x_ref: (B*S, D) f32 rows (batch folded).  sel_ref: (B, R5) f32 with 1/T5
    at every valid layer-5 row.  tw_i: (K_i, D_i, O_i) f32, tb_i: (1, O_i) f32.
    w1q_hbm: (2, 1536, 512) int8 head-W1 halves [mean; std] left in HBM.
    w1scale_ref: (1, 512) f32 per-output-column dequant scale.
    Outputs: emb_ref (B, E) f32, prob_ref (B, NC) f32.
    """
    # Kick off the only big DMA immediately so it overlaps the TDNN stack; we
    # only wait for it right before the first head matmul.
    w1_copy = pltpu.make_async_copy(w1q_hbm, w1q_vmem, dma_sem)
    w1_copy.start()

    tdnn = ((tw1, tb1), (tw2, tb2), (tw3, tb3), (tw4, tb4), (tw5, tb5))

    # ---- TDNN stack: per layer, K accumulating (rows,D)x(D,O) dots ----------
    h = x_ref[...]                                        # (B*S, D) f32
    for (w_ref, b_ref), (K, offset, rows_out) in zip(tdnn, geoms):
        d_in = h.shape[1]
        acc = jnp.dot(jax.lax.slice(h, (offset, 0), (offset + rows_out, d_in)),
                      w_ref[0], preferred_element_type=jnp.float32)
        for k in range(1, K):
            win = jax.lax.slice(h, (offset + k, 0),
                                (offset + k + rows_out, d_in))
            acc = acc + jnp.dot(win, w_ref[k],
                                preferred_element_type=jnp.float32)
        h = jnp.maximum(acc + b_ref[...], 0.0)            # (rows_out, O_i)

    # ---- StatsPooling, one pass: mean / unbiased std over the valid rows ----
    sel = sel_ref[...]                                    # (B, R5)
    mean = jnp.dot(sel, h, preferred_element_type=jnp.float32)        # (B,1536)
    meansq = jnp.dot(sel, h * h, preferred_element_type=jnp.float32)  # (B,1536)
    var = (meansq - mean * mean) * (t5 / (t5 - 1.0))      # torch.std: unbiased
    std = jnp.sqrt(jnp.maximum(var, 0.0))

    # ---- Head: first Linear split into mean/std halves (no [mean|std] cat) --
    w1_copy.wait()                                        # int8 W1 now in VMEM
    w1m = w1q_vmem[0].astype(jnp.float32).astype(jnp.bfloat16)        # (1536,512)
    h1 = jnp.dot(mean.astype(jnp.bfloat16), w1m,
                 preferred_element_type=jnp.float32)
    w1s = w1q_vmem[1].astype(jnp.float32).astype(jnp.bfloat16)
    h1 = h1 + jnp.dot(std.astype(jnp.bfloat16), w1s,
                      preferred_element_type=jnp.float32)
    h1 = jnp.maximum(h1 * w1scale_ref[...] + hb1_ref[...], 0.0)       # (B, 512)

    emb = jnp.dot(h1, hw2_ref[...], preferred_element_type=jnp.float32)
    emb = jnp.maximum(emb + hb2_ref[...], 0.0)                        # (B, E)
    prob = jnp.dot(emb, hw3_ref[...],
                   preferred_element_type=jnp.float32) + hb3_ref[...]  # (B, NC)

    emb_ref[...] = emb.astype(emb_ref.dtype)
    prob_ref[...] = prob.astype(prob_ref.dtype)


# ----------------------------------------------------------------------------
# Wrapper: one pallas_call for the whole forward pass
# ----------------------------------------------------------------------------
def x_vector_forward(packed, x):
    """x: [B, C_in, S] (PyTorch NCW).  Returns (embedding [B, E], logits [B, NC])."""
    B, D, S = x.shape
    h2d = jnp.transpose(x, (0, 2, 1)).reshape(B * S, D)   # batch folded into rows

    geoms, T5, R5 = _geometry(B, S)
    assert T5 >= 2, "StatsPooling unbiased std needs >= 2 valid steps"

    # Static mean-selection matrix: sel[b, b*S + t] = 1/T5 for t < T5, else 0.
    r = np.arange(R5)[None, :]
    base = (np.arange(B) * S)[:, None]
    sel = jnp.asarray(
        np.where((r >= base) & (r < base + T5), 1.0 / T5, 0.0).astype(np.float32))

    E = packed["hw2"].shape[1]
    NC = packed["hw3"].shape[1]

    def vspec(a):
        nd = a.ndim
        return pl.BlockSpec(a.shape, lambda i, nd=nd: (0,) * nd)

    inputs, in_specs = [h2d, sel], [vspec(h2d), vspec(sel)]
    for w, b in zip(packed["tdnn_w"], packed["tdnn_b"]):
        inputs += [w, b]
        in_specs += [vspec(w), vspec(b)]

    head_small = [packed["hw1_scale"], packed["hb1"], packed["hw2"],
                  packed["hb2"], packed["hw3"], packed["hb3"]]
    inputs += [packed["hw1_q"]] + head_small
    in_specs += [pl.BlockSpec(memory_space=pl.ANY)]       # head W1 stays in HBM
    in_specs += [vspec(a) for a in head_small]

    emb, prob = pl.pallas_call(
        functools.partial(_xvector_kernel, geoms=geoms, t5=float(T5)),
        out_shape=(jax.ShapeDtypeStruct((B, E), jnp.float32),
                   jax.ShapeDtypeStruct((B, NC), jnp.float32)),
        grid=(1,),
        in_specs=in_specs,
        out_specs=(pl.BlockSpec((B, E), lambda i: (0, 0)),
                   pl.BlockSpec((B, NC), lambda i: (0, 0))),
        scratch_shapes=[
            pltpu.VMEM(packed["hw1_q"].shape, jnp.int8),  # prefetched head W1
            pltpu.SemaphoreType.DMA,
        ],
        compiler_params=pltpu.CompilerParams(
            dimension_semantics=("arbitrary",),
            vmem_limit_bytes=32 * 1024 * 1024,            # ~13 MiB worst case; v7x-safe
        ),
    )(*inputs)
    return emb, prob


# ----------------------------------------------------------------------------
# Parameter init (same distributions as the PyTorch module) + kernel packing
# ----------------------------------------------------------------------------
def init_params(key, input_dim, output_dim, num_classes):
    dims = [(input_dim, output_dim), (output_dim, output_dim),
            (output_dim, output_dim), (output_dim, output_dim),
            (output_dim, C5)]
    keys = jax.random.split(key, 13)

    tdnn_w, tdnn_b = [], []
    for li, (ctx, (d_in, d_out)) in enumerate(zip(CONTEXTS, dims)):
        K = ctx[-1] - ctx[0] + 1
        stdv = 1.0 / math.sqrt(d_in)
        # (K, d_in, d_out) == torch kernel (d_out, d_in, K) transposed; iid normal.
        w = stdv * jax.random.normal(keys[2 * li], (K, d_in, d_out), jnp.float32)
        b = stdv * jax.random.normal(keys[2 * li + 1], (d_out,), jnp.float32)
        tdnn_w.append(w)
        tdnn_b.append(b)

    def linear(k, fin, fout):
        kw, kb = jax.random.split(k)
        bound = 1.0 / math.sqrt(fin)
        w = jax.random.uniform(kw, (fin, fout), jnp.float32, -bound, bound)
        b = jax.random.uniform(kb, (fout,), jnp.float32, -bound, bound)
        return w, b

    hw1, hb1 = linear(keys[10], 2 * C5, 512)              # FullyConnected.hidden1
    hw2, hb2 = linear(keys[11], 512, output_dim)          # FullyConnected.hidden2
    hw3, hb3 = linear(keys[12], output_dim, num_classes)  # last_layer
    return {"tdnn_w": tdnn_w, "tdnn_b": tdnn_b, "hw1": hw1, "hb1": hb1,
            "hw2": hw2, "hb2": hb2, "hw3": hw3, "hb3": hb3}


def prepare_params(params):
    """One-time host-side packing of f32 params into the kernel layout."""
    pad = C5_PAD - C5
    tw = [jnp.asarray(w, jnp.float32) for w in params["tdnn_w"]]
    tb = [jnp.asarray(b, jnp.float32).reshape(1, -1) for b in params["tdnn_b"]]
    tw[-1] = jnp.pad(tw[-1], ((0, 0), (0, 0), (0, pad)))  # 1500 -> 1536 columns
    tb[-1] = jnp.pad(tb[-1], ((0, 0), (0, pad)))

    # Head W1: split into [mean | std] halves, zero-pad rows 1500 -> 1536,
    # quantize to int8 with per-output-column scales (scale applied after the
    # matmul in-kernel, so dequant is an exact int8->bf16 cast).
    hw1 = jnp.asarray(params["hw1"], jnp.float32)         # (3000, 512)
    halves = jnp.stack([jnp.pad(hw1[:C5], ((0, pad), (0, 0))),
                        jnp.pad(hw1[C5:], ((0, pad), (0, 0)))])  # (2, 1536, 512)
    scale = jnp.maximum(jnp.max(jnp.abs(halves), axis=(0, 1)) / 127.0, 1e-12)
    hw1_q = jnp.clip(jnp.round(halves / scale[None, None, :]),
                     -127.0, 127.0).astype(jnp.int8)

    return {
        "tdnn_w": tuple(tw), "tdnn_b": tuple(tb),
        "hw1_q": hw1_q,
        "hw1_scale": scale.reshape(1, -1).astype(jnp.float32),
        "hb1": jnp.asarray(params["hb1"], jnp.float32).reshape(1, -1),
        "hw2": jnp.asarray(params["hw2"], jnp.float32),
        "hb2": jnp.asarray(params["hb2"], jnp.float32).reshape(1, -1),
        "hw3": jnp.asarray(params["hw3"], jnp.float32),
        "hb3": jnp.asarray(params["hb3"], jnp.float32).reshape(1, -1),
    }


# ----------------------------------------------------------------------------
# Pure-JAX f32 reference (mirrors the PyTorch module) for a sanity check
# ----------------------------------------------------------------------------
def x_vector_reference(params, x):
    hp = jax.lax.Precision.HIGHEST
    h = jnp.transpose(x, (0, 2, 1))                       # (B, S, D)
    for ctx, w, b in zip(CONTEXTS, params["tdnn_w"], params["tdnn_b"]):
        K, offset, t_out = tdnn_geometry(ctx, h.shape[1])
        acc = 0.0
        for k in range(K):
            acc = acc + jnp.einsum("btd,do->bto",
                                   h[:, offset + k:offset + k + t_out, :],
                                   w[k], precision=hp)
        h = jax.nn.relu(acc + b[None, None, :])
    mean = jnp.mean(h, axis=1)
    std = jnp.std(h, axis=1, ddof=1)                      # torch.std (unbiased)
    pooled = jnp.concatenate([mean, std], axis=1)         # (B, 3000)
    h1 = jax.nn.relu(jnp.dot(pooled, params["hw1"], precision=hp) + params["hb1"])
    emb = jax.nn.relu(jnp.dot(h1, params["hw2"], precision=hp) + params["hb2"])
    prob = jnp.dot(emb, params["hw3"], precision=hp) + params["hb3"]
    return emb, prob


if __name__ == "__main__":
    B, C_in, S = 2, 16, 32            # hp.input_dim = 16, sequence length 32
    output_dim, num_classes = 32, 8   # hp.output_dim = 32

    key = jax.random.PRNGKey(0)
    kp, kx = jax.random.split(key)
    params = init_params(kp, C_in, output_dim, num_classes)
    packed = prepare_params(params)
    x = jax.random.normal(kx, (B, C_in, S), jnp.float32)

    fwd = jax.jit(x_vector_forward)
    embedding, prob = fwd(packed, x)
    jax.block_until_ready((embedding, prob))

    assert embedding.shape == (B, output_dim), embedding.shape
    assert prob.shape == (B, num_classes), prob.shape
    assert bool(jnp.all(jnp.isfinite(embedding))) and bool(jnp.all(jnp.isfinite(prob)))

    # Loose-tolerance check vs the f32 reference (the kernel's head weight is
    # int8-quantized and its big matmul runs in bf16 by design).
    ref_emb, ref_prob = x_vector_reference(params, x)

    def rel_err(a, b):
        return float(jnp.linalg.norm(a - b) / jnp.maximum(jnp.linalg.norm(b), 1e-3))

    e_emb, e_prob = rel_err(embedding, ref_emb), rel_err(prob, ref_prob)
    assert e_emb < 8e-2 and e_prob < 8e-2, (e_emb, e_prob)
    print("KERNEL_OK")
</pallas_src>

<mosaic_0001>
module attributes {stable_mosaic.version = 11 : i64} {
  func.func @_xvector_kernel(%arg0: i32, %arg1: memref<64x16xf32, #tpu.memory_space<vmem>>, %arg2: memref<2x48xf32, #tpu.memory_space<vmem>>, %arg3: memref<5x16x32xf32, #tpu.memory_space<vmem>>, %arg4: memref<1x32xf32, #tpu.memory_space<vmem>>, %arg5: memref<5x32x32xf32, #tpu.memory_space<vmem>>, %arg6: memref<1x32xf32, #tpu.memory_space<vmem>>, %arg7: memref<7x32x32xf32, #tpu.memory_space<vmem>>, %arg8: memref<1x32xf32, #tpu.memory_space<vmem>>, %arg9: memref<1x32x32xf32, #tpu.memory_space<vmem>>, %arg10: memref<1x32xf32, #tpu.memory_space<vmem>>, %arg11: memref<1x32x1536xf32, #tpu.memory_space<vmem>>, %arg12: memref<1x1536xf32, #tpu.memory_space<vmem>>, %arg13: memref<2x1536x512xi8, #tpu.memory_space<any>>, %arg14: memref<1x512xf32, #tpu.memory_space<vmem>>, %arg15: memref<1x512xf32, #tpu.memory_space<vmem>>, %arg16: memref<512x32xf32, #tpu.memory_space<vmem>>, %arg17: memref<1x32xf32, #tpu.memory_space<vmem>>, %arg18: memref<32x8xf32, #tpu.memory_space<vmem>>, %arg19: memref<1x8xf32, #tpu.memory_space<vmem>>, %arg20: memref<2x32xf32, #tpu.memory_space<vmem>>, %arg21: memref<2x8xf32, #tpu.memory_space<vmem>>, %arg22: memref<2x1536x512xi8, #tpu.memory_space<vmem>>, %arg23: memref<!tpu.dma_semaphore, #tpu.memory_space<semaphore_mem>>) attributes {dimension_semantics = [#tpu.dimension_semantics<arbitrary>], iteration_bounds = array<i64: 1>, scalar_prefetch = 0 : i64, scratch_operands = 2 : i64, tpu.core_type = #tpu.core_type<tc>, window_params = [{pipeline_mode = #tpu.pipeline_mode<synchronous>, transform_indices = @transform_0, window_bounds = array<i64: 64, 16>}, {pipeline_mode = #tpu.pipeline_mode<synchronous>, transform_indices = @transform_1, window_bounds = array<i64: 2, 48>}, {pipeline_mode = #tpu.pipeline_mode<synchronous>, transform_indices = @transform_2, window_bounds = array<i64: 5, 16, 32>}, {pipeline_mode = #tpu.pipeline_mode<synchronous>, transform_indices = @transform_3, window_bounds = array<i64: 1, 32>}, {pipeline_mode = #tpu.pipeline_mode<synchronous>, transform_indices = @transform_4, window_bounds = array<i64: 5, 32, 32>}, {pipeline_mode = #tpu.pipeline_mode<synchronous>, transform_indices = @transform_5, window_bounds = array<i64: 1, 32>}, {pipeline_mode = #tpu.pipeline_mode<synchronous>, transform_indices = @transform_6, window_bounds = array<i64: 7, 32, 32>}, {pipeline_mode = #tpu.pipeline_mode<synchronous>, transform_indices = @transform_7, window_bounds = array<i64: 1, 32>}, {pipeline_mode = #tpu.pipeline_mode<synchronous>, transform_indices = @transform_8, window_bounds = array<i64: 1, 32, 32>}, {pipeline_mode = #tpu.pipeline_mode<synchronous>, transform_indices = @transform_9, window_bounds = array<i64: 1, 32>}, {pipeline_mode = #tpu.pipeline_mode<synchronous>, transform_indices = @transform_10, window_bounds = array<i64: 1, 32, 1536>}, {pipeline_mode = #tpu.pipeline_mode<synchronous>, transform_indices = @transform_11, window_bounds = array<i64: 1, 1536>}, {}, {pipeline_mode = #tpu.pipeline_mode<synchronous>, transform_indices = @transform_13, window_bounds = array<i64: 1, 512>}, {pipeline_mode = #tpu.pipeline_mode<synchronous>, transform_indices = @transform_14, window_bounds = array<i64: 1, 512>}, {pipeline_mode = #tpu.pipeline_mode<synchronous>, transform_indices = @transform_15, window_bounds = array<i64: 512, 32>}, {pipeline_mode = #tpu.pipeline_mode<synchronous>, transform_indices = @transform_16, window_bounds = array<i64: 1, 32>}, {pipeline_mode = #tpu.pipeline_mode<synchronous>, transform_indices = @transform_17, window_bounds = array<i64: 32, 8>}, {pipeline_mode = #tpu.pipeline_mode<synchronous>, transform_indices = @transform_18, window_bounds = array<i64: 1, 8>}, {pipeline_mode = #tpu.pipeline_mode<synchronous>, transform_indices = @transform_19, window_bounds = array<i64: 2, 32>}, {pipeline_mode = #tpu.pipeline_mode<synchronous>, transform_indices = @transform_20, window_bounds = array<i64: 2, 8>}]} {
    tpu.enqueue_dma source(%arg13 : memref<2x1536x512xi8, #tpu.memory_space<any>>) target(%arg22 : memref<2x1536x512xi8, #tpu.memory_space<vmem>>) target_semaphore(%arg23 : memref<!tpu.dma_semaphore, #tpu.memory_space<semaphore_mem>>)
    %c0 = arith.constant 0 : index
    %c0_0 = arith.constant 0 : index
    %0 = vector.load %arg1[%c0, %c0_0] : memref<64x16xf32, #tpu.memory_space<vmem>>, vector<64x16xf32>
    %1 = vector.extract_strided_slice %0 {offsets = [0, 0], sizes = [60, 16], strides = [1, 1]} : vector<64x16xf32> to vector<60x16xf32>
    %c0_1 = arith.constant 0 : index
    %c0_2 = arith.constant 0 : index
    %c0_3 = arith.constant 0 : index
    %2 = vector.load %arg3[%c0_1, %c0_2, %c0_3] : memref<5x16x32xf32, #tpu.memory_space<vmem>>, vector<1x16x32xf32>
    %3 = vector.shape_cast %2 : vector<1x16x32xf32> to vector<16x32xf32>
    %cst = arith.constant dense<0.000000e+00> : vector<60x32xf32>
    %4 = tpu.matmul %1, %3, %cst {dimension_numbers = #tpu.dot_dimension_numbers<[1], [0], [0], [1], [0, 0, 1, 1], [], []>} : vector<60x16xf32>, vector<16x32xf32>, vector<60x32xf32> -> vector<60x32xf32>
    %5 = vector.extract_strided_slice %0 {offsets = [1, 0], sizes = [60, 16], strides = [1, 1]} : vector<64x16xf32> to vector<60x16xf32>
    %c1 = arith.constant 1 : index
    %c0_4 = arith.constant 0 : index
    %c0_5 = arith.constant 0 : index
    %6 = vector.load %arg3[%c1, %c0_4, %c0_5] : memref<5x16x32xf32, #tpu.memory_space<vmem>>, vector<1x16x32xf32>
    %7 = vector.shape_cast %6 : vector<1x16x32xf32> to vector<16x32xf32>
    %cst_6 = arith.constant dense<0.000000e+00> : vector<60x32xf32>
    %8 = tpu.matmul %5, %7, %cst_6 {dimension_numbers = #tpu.dot_dimension_numbers<[1], [0], [0], [1], [0, 0, 1, 1], [], []>} : vector<60x16xf32>, vector<16x32xf32>, vector<60x32xf32> -> vector<60x32xf32>
    %9 = arith.addf %4, %8 : vector<60x32xf32>
    %10 = vector.extract_strided_slice %0 {offsets = [2, 0], sizes = [60, 16], strides = [1, 1]} : vector<64x16xf32> to vector<60x16xf32>
    %c2 = arith.constant 2 : index
    %c0_7 = arith.constant 0 : index
    %c0_8 = arith.constant 0 : index
    %11 = vector.load %arg3[%c2, %c0_7, %c0_8] : memref<5x16x32xf32, #tpu.memory_space<vmem>>, vector<1x16x32xf32>
    %12 = vector.shape_cast %11 : vector<1x16x32xf32> to vector<16x32xf32>
    %cst_9 = arith.constant dense<0.000000e+00> : vector<60x32xf32>
    %13 = tpu.matmul %10, %12, %cst_9 {dimension_numbers = #tpu.dot_dimension_numbers<[1], [0], [0], [1], [0, 0, 1, 1], [], []>} : vector<60x16xf32>, vector<16x32xf32>, vector<60x32xf32> -> vector<60x32xf32>
    %14 = arith.addf %9, %13 : vector<60x32xf32>
    %15 = vector.extract_strided_slice %0 {offsets = [3, 0], sizes = [60, 16], strides = [1, 1]} : vector<64x16xf32> to vector<60x16xf32>
    %c3 = arith.constant 3 : index
    %c0_10 = arith.constant 0 : index
    %c0_11 = arith.constant 0 : index
    %16 = vector.load %arg3[%c3, %c0_10, %c0_11] : memref<5x16x32xf32, #tpu.memory_space<vmem>>, vector<1x16x32xf32>
    %17 = vector.shape_cast %16 : vector<1x16x32xf32> to vector<16x32xf32>
    %cst_12 = arith.constant dense<0.000000e+00> : vector<60x32xf32>
    %18 = tpu.matmul %15, %17, %cst_12 {dimension_numbers = #tpu.dot_dimension_numbers<[1], [0], [0], [1], [0, 0, 1, 1], [], []>} : vector<60x16xf32>, vector<16x32xf32>, vector<60x32xf32> -> vector<60x32xf32>
    %19 = arith.addf %14, %18 : vector<60x32xf32>
    %20 = vector.extract_strided_slice %0 {offsets = [4, 0], sizes = [60, 16], strides = [1, 1]} : vector<64x16xf32> to vector<60x16xf32>
    %c4 = arith.constant 4 : index
    %c0_13 = arith.constant 0 : index
    %c0_14 = arith.constant 0 : index
    %21 = vector.load %arg3[%c4, %c0_13, %c0_14] : memref<5x16x32xf32, #tpu.memory_space<vmem>>, vector<1x16x32xf32>
    %22 = vector.shape_cast %21 : vector<1x16x32xf32> to vector<16x32xf32>
    %cst_15 = arith.constant dense<0.000000e+00> : vector<60x32xf32>
    %23 = tpu.matmul %20, %22, %cst_15 {dimension_numbers = #tpu.dot_dimension_numbers<[1], [0], [0], [1], [0, 0, 1, 1], [], []>} : vector<60x16xf32>, vector<16x32xf32>, vector<60x32xf32> -> vector<60x32xf32>
    %24 = arith.addf %19, %23 : vector<60x32xf32>
    %c0_16 = arith.constant 0 : index
    %c0_17 = arith.constant 0 : index
    %25 = vector.load %arg4[%c0_16, %c0_17] : memref<1x32xf32, #tpu.memory_space<vmem>>, vector<1x32xf32>
    %26 = vector.broadcast %25 : vector<1x32xf32> to vector<60x32xf32>
    %27 = arith.addf %24, %26 : vector<60x32xf32>
    %cst_18 = arith.constant 0.000000e+00 : f32
    %28 = vector.broadcast %cst_18 : f32 to vector<60x32xf32>
    %29 = arith.maximumf %27, %28 : vector<60x32xf32>
    %30 = vector.extract_strided_slice %29 {offsets = [0, 0], sizes = [56, 32], strides = [1, 1]} : vector<60x32xf32> to vector<56x32xf32>
    %c0_19 = arith.constant 0 : index
    %c0_20 = arith.constant 0 : index
    %c0_21 = arith.constant 0 : index
    %31 = vector.load %arg5[%c0_19, %c0_20, %c0_21] : memref<5x32x32xf32, #tpu.memory_space<vmem>>, vector<1x32x32xf32>
    %32 = vector.shape_cast %31 : vector<1x32x32xf32> to vector<32x32xf32>
    %cst_22 = arith.constant dense<0.000000e+00> : vector<56x32xf32>
    %33 = tpu.matmul %30, %32, %cst_22 {dimension_numbers = #tpu.dot_dimension_numbers<[1], [0], [0], [1], [0, 0, 1, 1], [], []>} : vector<56x32xf32>, vector<32x32xf32>, vector<56x32xf32> -> vector<56x32xf32>
    %34 = vector.extract_strided_slice %29 {offsets = [1, 0], sizes = [56, 32], strides = [1, 1]} : vector<60x32xf32> to vector<56x32xf32>
    %c1_23 = arith.constant 1 : index
    %c0_24 = arith.constant 0 : index
    %c0_25 = arith.constant 0 : index
    %35 = vector.load %arg5[%c1_23, %c0_24, %c0_25] : memref<5x32x32xf32, #tpu.memory_space<vmem>>, vector<1x32x32xf32>
    %36 = vector.shape_cast %35 : vector<1x32x32xf32> to vector<32x32xf32>
    %cst_26 = arith.constant dense<0.000000e+00> : vector<56x32xf32>
    %37 = tpu.matmul %34, %36, %cst_26 {dimension_numbers = #tpu.dot_dimension_numbers<[1], [0], [0], [1], [0, 0, 1, 1], [], []>} : vector<56x32xf32>, vector<32x32xf32>, vector<56x32xf32> -> vector<56x32xf32>
    %38 = arith.addf %33, %37 : vector<56x32xf32>
    %39 = vector.extract_strided_slice %29 {offsets = [2, 0], sizes = [56, 32], strides = [1, 1]} : vector<60x32xf32> to vector<56x32xf32>
    %c2_27 = arith.constant 2 : index
    %c0_28 = arith.constant 0 : index
    %c0_29 = arith.constant 0 : index
    %40 = vector.load %arg5[%c2_27, %c0_28, %c0_29] : memref<5x32x32xf32, #tpu.memory_space<vmem>>, vector<1x32x32xf32>
    %41 = vector.shape_cast %40 : vector<1x32x32xf32> to vector<32x32xf32>
    %cst_30 = arith.constant dense<0.000000e+00> : vector<56x32xf32>
    %42 = tpu.matmul %39, %41, %cst_30 {dimension_numbers = #tpu.dot_dimension_numbers<[1], [0], [0], [1], [0, 0, 1, 1], [], []>} : vector<56x32xf32>, vector<32x32xf32>, vector<56x32xf32> -> vector<56x32xf32>
    %43 = arith.addf %38, %42 : vector<56x32xf32>
    %44 = vector.extract_strided_slice %29 {offsets = [3, 0], sizes = [56, 32], strides = [1, 1]} : vector<60x32xf32> to vector<56x32xf32>
    %c3_31 = arith.constant 3 : index
    %c0_32 = arith.constant 0 : index
    %c0_33 = arith.constant 0 : index
    %45 = vector.load %arg5[%c3_31, %c0_32, %c0_33] : memref<5x32x32xf32, #tpu.memory_space<vmem>>, vector<1x32x32xf32>
    %46 = vector.shape_cast %45 : vector<1x32x32xf32> to vector<32x32xf32>
    %cst_34 = arith.constant dense<0.000000e+00> : vector<56x32xf32>
    %47 = tpu.matmul %44, %46, %cst_34 {dimension_numbers = #tpu.dot_dimension_numbers<[1], [0], [0], [1], [0, 0, 1, 1], [], []>} : vector<56x32xf32>, vector<32x32xf32>, vector<56x32xf32> -> vector<56x32xf32>
    %48 = arith.addf %43, %47 : vector<56x32xf32>
    %49 = vector.extract_strided_slice %29 {offsets = [4, 0], sizes = [56, 32], strides = [1, 1]} : vector<60x32xf32> to vector<56x32xf32>
    %c4_35 = arith.constant 4 : index
    %c0_36 = arith.constant 0 : index
    %c0_37 = arith.constant 0 : index
    %50 = vector.load %arg5[%c4_35, %c0_36, %c0_37] : memref<5x32x32xf32, #tpu.memory_space<vmem>>, vector<1x32x32xf32>
    %51 = vector.shape_cast %50 : vector<1x32x32xf32> to vector<32x32xf32>
    %cst_38 = arith.constant dense<0.000000e+00> : vector<56x32xf32>
    %52 = tpu.matmul %49, %51, %cst_38 {dimension_numbers = #tpu.dot_dimension_numbers<[1], [0], [0], [1], [0, 0, 1, 1], [], []>} : vector<56x32xf32>, vector<32x32xf32>, vector<56x32xf32> -> vector<56x32xf32>
    %53 = arith.addf %48, %52 : vector<56x32xf32>
    %c0_39 = arith.constant 0 : index
    %c0_40 = arith.constant 0 : index
    %54 = vector.load %arg6[%c0_39, %c0_40] : memref<1x32xf32, #tpu.memory_space<vmem>>, vector<1x32xf32>
    %55 = vector.broadcast %54 : vector<1x32xf32> to vector<56x32xf32>
    %56 = arith.addf %53, %55 : vector<56x32xf32>
    %cst_41 = arith.constant 0.000000e+00 : f32
    %57 = vector.broadcast %cst_41 : f32 to vector<56x32xf32>
    %58 = arith.maximumf %56, %57 : vector<56x32xf32>
    %59 = vector.extract_strided_slice %58 {offsets = [0, 0], sizes = [50, 32], strides = [1, 1]} : vector<56x32xf32> to vector<50x32xf32>
    %c0_42 = arith.constant 0 : index
    %c0_43 = arith.constant 0 : index
    %c0_44 = arith.constant 0 : index
    %60 = vector.load %arg7[%c0_42, %c0_43, %c0_44] : memref<7x32x32xf32, #tpu.memory_space<vmem>>, vector<1x32x32xf32>
    %61 = vector.shape_cast %60 : vector<1x32x32xf32> to vector<32x32xf32>
    %cst_45 = arith.constant dense<0.000000e+00> : vector<50x32xf32>
    %62 = tpu.matmul %59, %61, %cst_45 {dimension_numbers = #tpu.dot_dimension_numbers<[1], [0], [0], [1], [0, 0, 1, 1], [], []>} : vector<50x32xf32>, vector<32x32xf32>, vector<50x32xf32> -> vector<50x32xf32>
    %63 = vector.extract_strided_slice %58 {offsets = [1, 0], sizes = [50, 32], strides = [1, 1]} : vector<56x32xf32> to vector<50x32xf32>
    %c1_46 = arith.constant 1 : index
    %c0_47 = arith.constant 0 : index
    %c0_48 = arith.constant 0 : index
    %64 = vector.load %arg7[%c1_46, %c0_47, %c0_48] : memref<7x32x32xf32, #tpu.memory_space<vmem>>, vector<1x32x32xf32>
    %65 = vector.shape_cast %64 : vector<1x32x32xf32> to vector<32x32xf32>
    %cst_49 = arith.constant dense<0.000000e+00> : vector<50x32xf32>
    %66 = tpu.matmul %63, %65, %cst_49 {dimension_numbers = #tpu.dot_dimension_numbers<[1], [0], [0], [1], [0, 0, 1, 1], [], []>} : vector<50x32xf32>, vector<32x32xf32>, vector<50x32xf32> -> vector<50x32xf32>
    %67 = arith.addf %62, %66 : vector<50x32xf32>
    %68 = vector.extract_strided_slice %58 {offsets = [2, 0], sizes = [50, 32], strides = [1, 1]} : vector<56x32xf32> to vector<50x32xf32>
    %c2_50 = arith.constant 2 : index
    %c0_51 = arith.constant 0 : index
    %c0_52 = arith.constant 0 : index
    %69 = vector.load %arg7[%c2_50, %c0_51, %c0_52] : memref<7x32x32xf32, #tpu.memory_space<vmem>>, vector<1x32x32xf32>
    %70 = vector.shape_cast %69 : vector<1x32x32xf32> to vector<32x32xf32>
    %cst_53 = arith.constant dense<0.000000e+00> : vector<50x32xf32>
    %71 = tpu.matmul %68, %70, %cst_53 {dimension_numbers = #tpu.dot_dimension_numbers<[1], [0], [0], [1], [0, 0, 1, 1], [], []>} : vector<50x32xf32>, vector<32x32xf32>, vector<50x32xf32> -> vector<50x32xf32>
    %72 = arith.addf %67, %71 : vector<50x32xf32>
    %73 = vector.extract_strided_slice %58 {offsets = [3, 0], sizes = [50, 32], strides = [1, 1]} : vector<56x32xf32> to vector<50x32xf32>
    %c3_54 = arith.constant 3 : index
    %c0_55 = arith.constant 0 : index
    %c0_56 = arith.constant 0 : index
    %74 = vector.load %arg7[%c3_54, %c0_55, %c0_56] : memref<7x32x32xf32, #tpu.memory_space<vmem>>, vector<1x32x32xf32>
    %75 = vector.shape_cast %74 : vector<1x32x32xf32> to vector<32x32xf32>
    %cst_57 = arith.constant dense<0.000000e+00> : vector<50x32xf32>
    %76 = tpu.matmul %73, %75, %cst_57 {dimension_numbers = #tpu.dot_dimension_numbers<[1], [0], [0], [1], [0, 0, 1, 1], [], []>} : vector<50x32xf32>, vector<32x32xf32>, vector<50x32xf32> -> vector<50x32xf32>
    %77 = arith.addf %72, %76 : vector<50x32xf32>
    %78 = vector.extract_strided_slice %58 {offsets = [4, 0], sizes = [50, 32], strides = [1, 1]} : vector<56x32xf32> to vector<50x32xf32>
    %c4_58 = arith.constant 4 : index
    %c0_59 = arith.constant 0 : index
    %c0_60 = arith.constant 0 : index
    %79 = vector.load %arg7[%c4_58, %c0_59, %c0_60] : memref<7x32x32xf32, #tpu.memory_space<vmem>>, vector<1x32x32xf32>
    %80 = vector.shape_cast %79 : vector<1x32x32xf32> to vector<32x32xf32>
    %cst_61 = arith.constant dense<0.000000e+00> : vector<50x32xf32>
    %81 = tpu.matmul %78, %80, %cst_61 {dimension_numbers = #tpu.dot_dimension_numbers<[1], [0], [0], [1], [0, 0, 1, 1], [], []>} : vector<50x32xf32>, vector<32x32xf32>, vector<50x32xf32> -> vector<50x32xf32>
    %82 = arith.addf %77, %81 : vector<50x32xf32>
    %83 = vector.extract_strided_slice %58 {offsets = [5, 0], sizes = [50, 32], strides = [1, 1]} : vector<56x32xf32> to vector<50x32xf32>
    %c5 = arith.constant 5 : index
    %c0_62 = arith.constant 0 : index
    %c0_63 = arith.constant 0 : index
    %84 = vector.load %arg7[%c5, %c0_62, %c0_63] : memref<7x32x32xf32, #tpu.memory_space<vmem>>, vector<1x32x32xf32>
    %85 = vector.shape_cast %84 : vector<1x32x32xf32> to vector<32x32xf32>
    %cst_64 = arith.constant dense<0.000000e+00> : vector<50x32xf32>
    %86 = tpu.matmul %83, %85, %cst_64 {dimension_numbers = #tpu.dot_dimension_numbers<[1], [0], [0], [1], [0, 0, 1, 1], [], []>} : vector<50x32xf32>, vector<32x32xf32>, vector<50x32xf32> -> vector<50x32xf32>
    %87 = arith.addf %82, %86 : vector<50x32xf32>
    %88 = vector.extract_strided_slice %58 {offsets = [6, 0], sizes = [50, 32], strides = [1, 1]} : vector<56x32xf32> to vector<50x32xf32>
    %c6 = arith.constant 6 : index
    %c0_65 = arith.constant 0 : index
    %c0_66 = arith.constant 0 : index
    %89 = vector.load %arg7[%c6, %c0_65, %c0_66] : memref<7x32x32xf32, #tpu.memory_space<vmem>>, vector<1x32x32xf32>
    %90 = vector.shape_cast %89 : vector<1x32x32xf32> to vector<32x32xf32>
    %cst_67 = arith.constant dense<0.000000e+00> : vector<50x32xf32>
    %91 = tpu.matmul %88, %90, %cst_67 {dimension_numbers = #tpu.dot_dimension_numbers<[1], [0], [0], [1], [0, 0, 1, 1], [], []>} : vector<50x32xf32>, vector<32x32xf32>, vector<50x32xf32> -> vector<50x32xf32>
    %92 = arith.addf %87, %91 : vector<50x32xf32>
    %c0_68 = arith.constant 0 : index
    %c0_69 = arith.constant 0 : index
    %93 = vector.load %arg8[%c0_68, %c0_69] : memref<1x32xf32, #tpu.memory_space<vmem>>, vector<1x32xf32>
    %94 = vector.broadcast %93 : vector<1x32xf32> to vector<50x32xf32>
    %95 = arith.addf %92, %94 : vector<50x32xf32>
    %cst_70 = arith.constant 0.000000e+00 : f32
    %96 = vector.broadcast %cst_70 : f32 to vector<50x32xf32>
    %97 = arith.maximumf %95, %96 : vector<50x32xf32>
    %98 = vector.extract_strided_slice %97 {offsets = [1, 0], sizes = [49, 32], strides = [1, 1]} : vector<50x32xf32> to vector<49x32xf32>
    %c0_71 = arith.constant 0 : index
    %c0_72 = arith.constant 0 : index
    %c0_73 = arith.constant 0 : index
    %99 = vector.load %arg9[%c0_71, %c0_72, %c0_73] : memref<1x32x32xf32, #tpu.memory_space<vmem>>, vector<1x32x32xf32>
    %100 = vector.shape_cast %99 : vector<1x32x32xf32> to vector<32x32xf32>
    %cst_74 = arith.constant dense<0.000000e+00> : vector<49x32xf32>
    %101 = tpu.matmul %98, %100, %cst_74 {dimension_numbers = #tpu.dot_dimension_numbers<[1], [0], [0], [1], [0, 0, 1, 1], [], []>} : vector<49x32xf32>, vector<32x32xf32>, vector<49x32xf32> -> vector<49x32xf32>
    %c0_75 = arith.constant 0 : index
    %c0_76 = arith.constant 0 : index
    %102 = vector.load %arg10[%c0_75, %c0_76] : memref<1x32xf32, #tpu.memory_space<vmem>>, vector<1x32xf32>
    %103 = vector.broadcast %102 : vector<1x32xf32> to vector<49x32xf32>
    %104 = arith.addf %101, %103 : vector<49x32xf32>
    %cst_77 = arith.constant 0.000000e+00 : f32
    %105 = vector.broadcast %cst_77 : f32 to vector<49x32xf32>
    %106 = arith.maximumf %104, %105 : vector<49x32xf32>
    %107 = vector.extract_strided_slice %106 {offsets = [1, 0], sizes = [48, 32], strides = [1, 1]} : vector<49x32xf32> to vector<48x32xf32>
    %c0_78 = arith.constant 0 : index
    %c0_79 = arith.constant 0 : index
    %c0_80 = arith.constant 0 : index
    %108 = vector.load %arg11[%c0_78, %c0_79, %c0_80] : memref<1x32x1536xf32, #tpu.memory_space<vmem>>, vector<1x32x1536xf32>
    %109 = vector.shape_cast %108 : vector<1x32x1536xf32> to vector<32x1536xf32>
    %cst_81 = arith.constant dense<0.000000e+00> : vector<48x1536xf32>
    %110 = tpu.matmul %107, %109, %cst_81 {dimension_numbers = #tpu.dot_dimension_numbers<[1], [0], [0], [1], [0, 0, 1, 1], [], []>} : vector<48x32xf32>, vector<32x1536xf32>, vector<48x1536xf32> -> vector<48x1536xf32>
    %c0_82 = arith.constant 0 : index
    %c0_83 = arith.constant 0 : index
    %111 = vector.load %arg12[%c0_82, %c0_83] : memref<1x1536xf32, #tpu.memory_space<vmem>>, vector<1x1536xf32>
    %112 = vector.broadcast %111 : vector<1x1536xf32> to vector<48x1536xf32>
    %113 = arith.addf %110, %112 : vector<48x1536xf32>
    %cst_84 = arith.constant 0.000000e+00 : f32
    %114 = vector.broadcast %cst_84 : f32 to vector<48x1536xf32>
    %115 = arith.maximumf %113, %114 : vector<48x1536xf32>
    %c0_85 = arith.constant 0 : index
    %c0_86 = arith.constant 0 : index
    %116 = vector.load %arg2[%c0_85, %c0_86] : memref<2x48xf32, #tpu.memory_space<vmem>>, vector<2x48xf32>
    %cst_87 = arith.constant dense<0.000000e+00> : vector<2x1536xf32>
    %117 = tpu.matmul %116, %115, %cst_87 {dimension_numbers = #tpu.dot_dimension_numbers<[1], [0], [0], [1], [0, 0, 1, 1], [], []>} : vector<2x48xf32>, vector<48x1536xf32>, vector<2x1536xf32> -> vector<2x1536xf32>
    %118 = arith.mulf %115, %115 : vector<48x1536xf32>
    %cst_88 = arith.constant dense<0.000000e+00> : vector<2x1536xf32>
    %119 = tpu.matmul %116, %118, %cst_88 {dimension_numbers = #tpu.dot_dimension_numbers<[1], [0], [0], [1], [0, 0, 1, 1], [], []>} : vector<2x48xf32>, vector<48x1536xf32>, vector<2x1536xf32> -> vector<2x1536xf32>
    %120 = arith.mulf %117, %117 : vector<2x1536xf32>
    %121 = arith.subf %119, %120 : vector<2x1536xf32>
    %cst_89 = arith.constant 1.06666672 : f32
    %122 = vector.broadcast %cst_89 : f32 to vector<2x1536xf32>
    %123 = arith.mulf %121, %122 : vector<2x1536xf32>
    %cst_90 = arith.constant 0.000000e+00 : f32
    %124 = vector.broadcast %cst_90 : f32 to vector<2x1536xf32>
    %125 = arith.maximumf %123, %124 : vector<2x1536xf32>
    %126 = math.sqrt %125 : vector<2x1536xf32>
    tpu.wait_dma2 semaphore(%arg23 : memref<!tpu.dma_semaphore, #tpu.memory_space<semaphore_mem>>) src(%arg13 : memref<2x1536x512xi8, #tpu.memory_space<any>>) dst(%arg22 : memref<2x1536x512xi8, #tpu.memory_space<vmem>>)
    %c0_91 = arith.constant 0 : index
    %c0_92 = arith.constant 0 : index
    %c0_93 = arith.constant 0 : index
    %127 = vector.load %arg22[%c0_91, %c0_92, %c0_93] : memref<2x1536x512xi8, #tpu.memory_space<vmem>>, vector<1x1536x512xi8>
    %128 = vector.shape_cast %127 : vector<1x1536x512xi8> to vector<1536x512xi8>
    %129 = arith.sitofp %128 : vector<1536x512xi8> to vector<1536x512xf32>
    %130 = arith.truncf %129 : vector<1536x512xf32> to vector<1536x512xbf16>
    %131 = arith.truncf %117 : vector<2x1536xf32> to vector<2x1536xbf16>
    %cst_94 = arith.constant dense<0.000000e+00> : vector<2x512xf32>
    %132 = tpu.matmul %131, %130, %cst_94 {dimension_numbers = #tpu.dot_dimension_numbers<[1], [0], [0], [1], [0, 0, 1, 1], [], []>} : vector<2x1536xbf16>, vector<1536x512xbf16>, vector<2x512xf32> -> vector<2x512xf32>
    %c1_95 = arith.constant 1 : index
    %c0_96 = arith.constant 0 : index
    %c0_97 = arith.constant 0 : index
    %133 = vector.load %arg22[%c1_95, %c0_96, %c0_97] : memref<2x1536x512xi8, #tpu.memory_space<vmem>>, vector<1x1536x512xi8>
    %134 = vector.shape_cast %133 : vector<1x1536x512xi8> to vector<1536x512xi8>
    %135 = arith.sitofp %134 : vector<1536x512xi8> to vector<1536x512xf32>
    %136 = arith.truncf %135 : vector<1536x512xf32> to vector<1536x512xbf16>
    %137 = arith.truncf %126 : vector<2x1536xf32> to vector<2x1536xbf16>
    %cst_98 = arith.constant dense<0.000000e+00> : vector<2x512xf32>
    %138 = tpu.matmul %137, %136, %cst_98 {dimension_numbers = #tpu.dot_dimension_numbers<[1], [0], [0], [1], [0, 0, 1, 1], [], []>} : vector<2x1536xbf16>, vector<1536x512xbf16>, vector<2x512xf32> -> vector<2x512xf32>
    %139 = arith.addf %132, %138 : vector<2x512xf32>
    %c0_99 = arith.constant 0 : index
    %c0_100 = arith.constant 0 : index
    %140 = vector.load %arg14[%c0_99, %c0_100] : memref<1x512xf32, #tpu.memory_space<vmem>>, vector<1x512xf32>
    %141 = vector.broadcast %140 : vector<1x512xf32> to vector<2x512xf32>
    %142 = arith.mulf %139, %141 : vector<2x512xf32>
    %c0_101 = arith.constant 0 : index
    %c0_102 = arith.constant 0 : index
    %143 = vector.load %arg15[%c0_101, %c0_102] : memref<1x512xf32, #tpu.memory_space<vmem>>, vector<1x512xf32>
    %144 = vector.broadcast %143 : vector<1x512xf32> to vector<2x512xf32>
    %145 = arith.addf %142, %144 : vector<2x512xf32>
    %cst_103 = arith.constant 0.000000e+00 : f32
    %146 = vector.broadcast %cst_103 : f32 to vector<2x512xf32>
    %147 = arith.maximumf %145, %146 : vector<2x512xf32>
    %c0_104 = arith.constant 0 : index
    %c0_105 = arith.constant 0 : index
    %148 = vector.load %arg16[%c0_104, %c0_105] : memref<512x32xf32, #tpu.memory_space<vmem>>, vector<512x32xf32>
    %cst_106 = arith.constant dense<0.000000e+00> : vector<2x32xf32>
    %149 = tpu.matmul %147, %148, %cst_106 {dimension_numbers = #tpu.dot_dimension_numbers<[1], [0], [0], [1], [0, 0, 1, 1], [], []>} : vector<2x512xf32>, vector<512x32xf32>, vector<2x32xf32> -> vector<2x32xf32>
    %c0_107 = arith.constant 0 : index
    %c0_108 = arith.constant 0 : index
    %150 = vector.load %arg17[%c0_107, %c0_108] : memref<1x32xf32, #tpu.memory_space<vmem>>, vector<1x32xf32>
    %151 = vector.broadcast %150 : vector<1x32xf32> to vector<2x32xf32>
    %152 = arith.addf %149, %151 : vector<2x32xf32>
    %cst_109 = arith.constant 0.000000e+00 : f32
    %153 = vector.broadcast %cst_109 : f32 to vector<2x32xf32>
    %154 = arith.maximumf %152, %153 : vector<2x32xf32>
    %c0_110 = arith.constant 0 : index
    %c0_111 = arith.constant 0 : index
    %155 = vector.load %arg18[%c0_110, %c0_111] : memref<32x8xf32, #tpu.memory_space<vmem>>, vector<32x8xf32>
    %cst_112 = arith.constant dense<0.000000e+00> : vector<2x8xf32>
    %156 = tpu.matmul %154, %155, %cst_112 {dimension_numbers = #tpu.dot_dimension_numbers<[1], [0], [0], [1], [0, 0, 1, 1], [], []>} : vector<2x32xf32>, vector<32x8xf32>, vector<2x8xf32> -> vector<2x8xf32>
    %c0_113 = arith.constant 0 : index
    %c0_114 = arith.constant 0 : index
    %157 = vector.load %arg19[%c0_113, %c0_114] : memref<1x8xf32, #tpu.memory_space<vmem>>, vector<1x8xf32>
    %158 = vector.broadcast %157 : vector<1x8xf32> to vector<2x8xf32>
    %159 = arith.addf %156, %158 : vector<2x8xf32>
    %c0_115 = arith.constant 0 : index
    %c0_116 = arith.constant 0 : index
    %160 = vector.load %arg20[%c0_115, %c0_116] : memref<2x32xf32, #tpu.memory_space<vmem>>, vector<2x32xf32>
    tpu.vector_store %arg20[%c0_115, %c0_116], %154 {strides = array<i32>} : memref<2x32xf32, #tpu.memory_space<vmem>>, vector<2x32xf32>,
    %c0_117 = arith.constant 0 : index
    %c0_118 = arith.constant 0 : index
    %161 = vector.load %arg21[%c0_117, %c0_118] : memref<2x8xf32, #tpu.memory_space<vmem>>, vector<2x8xf32>
    tpu.vector_store %arg21[%c0_117, %c0_118], %159 {strides = array<i32>} : memref<2x8xf32, #tpu.memory_space<vmem>>, vector<2x8xf32>,
    return
  }
  func.func @transform_0(%arg0: i32) -> (i32, i32) {
    %c0_i32 = arith.constant 0 : i32
    %c0_i32_0 = arith.constant 0 : i32
    %c0_i32_1 = arith.constant 0 : i32
    return %c0_i32, %c0_i32_0 : i32, i32
  }
  func.func @transform_1(%arg0: i32) -> (i32, i32) {
    %c0_i32 = arith.constant 0 : i32
    %c0_i32_0 = arith.constant 0 : i32
    %c0_i32_1 = arith.constant 0 : i32
    return %c0_i32, %c0_i32_0 : i32, i32
  }
  func.func @transform_2(%arg0: i32) -> (i32, i32, i32) {
    %c0_i32 = arith.constant 0 : i32
    %c0_i32_0 = arith.constant 0 : i32
    %c0_i32_1 = arith.constant 0 : i32
    %c0_i32_2 = arith.constant 0 : i32
    return %c0_i32, %c0_i32_0, %c0_i32_1 : i32, i32, i32
  }
  func.func @transform_3(%arg0: i32) -> (i32, i32) {
    %c0_i32 = arith.constant 0 : i32
    %c0_i32_0 = arith.constant 0 : i32
    %c0_i32_1 = arith.constant 0 : i32
    return %c0_i32, %c0_i32_0 : i32, i32
  }
  func.func @transform_4(%arg0: i32) -> (i32, i32, i32) {
    %c0_i32 = arith.constant 0 : i32
    %c0_i32_0 = arith.constant 0 : i32
    %c0_i32_1 = arith.constant 0 : i32
    %c0_i32_2 = arith.constant 0 : i32
    return %c0_i32, %c0_i32_0, %c0_i32_1 : i32, i32, i32
  }
  func.func @transform_5(%arg0: i32) -> (i32, i32) {
    %c0_i32 = arith.constant 0 : i32
    %c0_i32_0 = arith.constant 0 : i32
    %c0_i32_1 = arith.constant 0 : i32
    return %c0_i32, %c0_i32_0 : i32, i32
  }
  func.func @transform_6(%arg0: i32) -> (i32, i32, i32) {
    %c0_i32 = arith.constant 0 : i32
    %c0_i32_0 = arith.constant 0 : i32
    %c0_i32_1 = arith.constant 0 : i32
    %c0_i32_2 = arith.constant 0 : i32
    return %c0_i32, %c0_i32_0, %c0_i32_1 : i32, i32, i32
  }
  func.func @transform_7(%arg0: i32) -> (i32, i32) {
    %c0_i32 = arith.constant 0 : i32
    %c0_i32_0 = arith.constant 0 : i32
    %c0_i32_1 = arith.constant 0 : i32
    return %c0_i32, %c0_i32_0 : i32, i32
  }
  func.func @transform_8(%arg0: i32) -> (i32, i32, i32) {
    %c0_i32 = arith.constant 0 : i32
    %c0_i32_0 = arith.constant 0 : i32
    %c0_i32_1 = arith.constant 0 : i32
    %c0_i32_2 = arith.constant 0 : i32
    return %c0_i32, %c0_i32_0, %c0_i32_1 : i32, i32, i32
  }
  func.func @transform_9(%arg0: i32) -> (i32, i32) {
    %c0_i32 = arith.constant 0 : i32
    %c0_i32_0 = arith.constant 0 : i32
    %c0_i32_1 = arith.constant 0 : i32
    return %c0_i32, %c0_i32_0 : i32, i32
  }
  func.func @transform_10(%arg0: i32) -> (i32, i32, i32) {
    %c0_i32 = arith.constant 0 : i32
    %c0_i32_0 = arith.constant 0 : i32
    %c0_i32_1 = arith.constant 0 : i32
    %c0_i32_2 = arith.constant 0 : i32
    return %c0_i32, %c0_i32_0, %c0_i32_1 : i32, i32, i32
  }
  func.func @transform_11(%arg0: i32) -> (i32, i32) {
    %c0_i32 = arith.constant 0 : i32
    %c0_i32_0 = arith.constant 0 : i32
    %c0_i32_1 = arith.constant 0 : i32
    return %c0_i32, %c0_i32_0 : i32, i32
  }
  func.func @transform_13(%arg0: i32) -> (i32, i32) {
    %c0_i32 = arith.constant 0 : i32
    %c0_i32_0 = arith.constant 0 : i32
    %c0_i32_1 = arith.constant 0 : i32
    return %c0_i32, %c0_i32_0 : i32, i32
  }
  func.func @transform_14(%arg0: i32) -> (i32, i32) {
    %c0_i32 = arith.constant 0 : i32
    %c0_i32_0 = arith.constant 0 : i32
    %c0_i32_1 = arith.constant 0 : i32
    return %c0_i32, %c0_i32_0 : i32, i32
  }
  func.func @transform_15(%arg0: i32) -> (i32, i32) {
    %c0_i32 = arith.constant 0 : i32
    %c0_i32_0 = arith.constant 0 : i32
    %c0_i32_1 = arith.constant 0 : i32
    return %c0_i32, %c0_i32_0 : i32, i32
  }
  func.func @transform_16(%arg0: i32) -> (i32, i32) {
    %c0_i32 = arith.constant 0 : i32
    %c0_i32_0 = arith.constant 0 : i32
    %c0_i32_1 = arith.constant 0 : i32
    return %c0_i32, %c0_i32_0 : i32, i32
  }
  func.func @transform_17(%arg0: i32) -> (i32, i32) {
    %c0_i32 = arith.constant 0 : i32
    %c0_i32_0 = arith.constant 0 : i32
    %c0_i32_1 = arith.constant 0 : i32
    return %c0_i32, %c0_i32_0 : i32, i32
  }
  func.func @transform_18(%arg0: i32) -> (i32, i32) {
    %c0_i32 = arith.constant 0 : i32
    %c0_i32_0 = arith.constant 0 : i32
    %c0_i32_1 = arith.constant 0 : i32
    return %c0_i32, %c0_i32_0 : i32, i32
  }
  func.func @transform_19(%arg0: i32) -> (i32, i32) {
    %c0_i32 = arith.constant 0 : i32
    %c0_i32_0 = arith.constant 0 : i32
    %c0_i32_1 = arith.constant 0 : i32
    return %c0_i32, %c0_i32_0 : i32, i32
  }
  func.func @transform_20(%arg0: i32) -> (i32, i32) {
    %c0_i32 = arith.constant 0 : i32
    %c0_i32_0 = arith.constant 0 : i32
    %c0_i32_1 = arith.constant 0 : i32
    return %c0_i32, %c0_i32_0 : i32, i32
  }
}

</mosaic_0001>

<llo_original>
// kernel: x_vector_forward.1
$region0: #{x_vector_forward.1}
  #allocation0 [shape = 'u32[]', space=smem, size = 0x4, offset = 0x4, fixed_abs, tag = 'smem constant byte address 0x4 - core index']
  #allocation1 [shape = 'u32[144,128]{1,0:T(1,128)}', space=vmem, size = 0x12000, scoped, tag = 'internal scratch']
  #allocation2 [shape = 's8[2,1536,512]{2,1,0:T(32,128)(4,1)}', space=vmem, size = 0x180000, scoped, tag = 'scratch operand']
  #allocation3 [shape = 's32[1]{0}', space=sflag, size = 0x4, scoped, tag = 'scratch operand']
  #allocation31 [shape = 's32[]', space=sflag, size = 0x4, offset = 0, fixed_abs, tag = 'sflag constant byte address 0x0 - dummy sync flag']
  #allocation32 [shape = 's32[]', space=sflag, size = 0x4, offset = 0, fixed_abs, tag = 'sflag constant byte address 0x0 - dummy sync flag']
  #allocation33 [shape = 'u32[]', space=smem, size = 0x4, offset = 0x44, fixed_abs, tag = 'smem constant byte address 0x44 - assertion arg 0']
  #allocation34 [shape = 'u32[]', space=smem, size = 0x4, offset = 0x48, fixed_abs, tag = 'smem constant byte address 0x48 - assertion arg 1']
  %s0 = inlined_call_operand.vmem [shape: f32[64,16], index: 0, kind: input, shape index: {}]
  %s1 = inlined_call_operand.hbm [shape: f32[2,48], index: 1, kind: input, shape index: {}]
  %s2 = inlined_call_operand.hbm [shape: f32[5,16,32], index: 2, kind: input, shape index: {}]
  %s3 = inlined_call_operand.hbm [shape: f32[1,32], index: 3, kind: input, shape index: {}]
  %s4 = inlined_call_operand.hbm [shape: f32[5,32,32], index: 4, kind: input, shape index: {}]
  %s5 = inlined_call_operand.hbm [shape: f32[1,32], index: 5, kind: input, shape index: {}]
  %s6 = inlined_call_operand.hbm [shape: f32[7,32,32], index: 6, kind: input, shape index: {}]
  %s7 = inlined_call_operand.hbm [shape: f32[1,32], index: 7, kind: input, shape index: {}]
  %s8 = inlined_call_operand.hbm [shape: f32[1,32,32], index: 8, kind: input, shape index: {}]
  %s9 = inlined_call_operand.hbm [shape: f32[1,32], index: 9, kind: input, shape index: {}]
  %s10 = inlined_call_operand.hbm [shape: f32[1,32,1536], index: 10, kind: input, shape index: {}]
  %s11 = inlined_call_operand.hbm [shape: f32[1,1536], index: 11, kind: input, shape index: {}]
  %s12 = inlined_call_operand.hbm [shape: s8[2,1536,512], index: 12, kind: input, shape index: {}]
  %s13 = inlined_call_operand.hbm [shape: f32[1,512], index: 13, kind: input, shape index: {}]
  %s14 = inlined_call_operand.hbm [shape: f32[1,512], index: 14, kind: input, shape index: {}]
  %s15 = inlined_call_operand.vmem [shape: f32[512,32], index: 15, kind: input, shape index: {}]
  %s16 = inlined_call_operand.hbm [shape: f32[1,32], index: 16, kind: input, shape index: {}]
  %s17 = inlined_call_operand.vmem [shape: f32[32,8], index: 17, kind: input, shape index: {}]
  %s18 = inlined_call_operand.hbm [shape: f32[1,8], index: 18, kind: input, shape index: {}]
  %s19 = inlined_call_operand.hbm [shape: f32[2,32], index: 19, kind: output, shape index: {0}]
  %s20 = inlined_call_operand.hbm [shape: f32[2,8], index: 20, kind: output, shape index: {1}]
  %21 = xla_tuple %s19, %s20
  %s22 = sld [smem:[#allocation0]]
  $region154: #{x_vector_forward.1} parent=0
    _
  %s24 = ssub.s32 1, %s22
  %s25 = scalar_select 0, %s24, %s22
  $region1: #{x_vector_forward.1} parent=0
    #allocation4 [shape = 'u8[1024]{0}', space=vmem, size = 0x400, scoped, tag = 'input window, operand 1, single buffered']
    #allocation5 [shape = 's32[1]{0}', space=sflag, size = 0x4, scoped, tag = 'scoped memory for x_vector_forward.1']
    #allocation6 [shape = 's32[1]{0}', space=sflag, size = 0x4, scoped, tag = 'scoped memory for x_vector_forward.1']
    #allocation7 [shape = 'u8[40960]{0}', space=vmem, size = 0xa000, scoped, tag = 'input window, operand 2, single buffered']
    #allocation8 [shape = 's32[1]{0}', space=sflag, size = 0x4, scoped, tag = 'scoped memory for x_vector_forward.1']
    #allocation9 [shape = 'u8[512]{0}', space=vmem, size = 0x400, scoped, tag = 'input window, operand 3, single buffered']
    #allocation10 [shape = 'u8[81920]{0}', space=vmem, size = 0x14000, scoped, tag = 'input window, operand 4, single buffered']
    #allocation11 [shape = 's32[1]{0}', space=sflag, size = 0x4, scoped, tag = 'scoped memory for x_vector_forward.1']
    #allocation12 [shape = 'u8[512]{0}', space=vmem, size = 0x400, scoped, tag = 'input window, operand 5, single buffered']
    #allocation13 [shape = 'u8[114688]{0}', space=vmem, size = 0x1c000, scoped, tag = 'input window, operand 6, single buffered']
    #allocation14 [shape = 's32[1]{0}', space=sflag, size = 0x4, scoped, tag = 'scoped memory for x_vector_forward.1']
    #allocation15 [shape = 'u8[512]{0}', space=vmem, size = 0x400, scoped, tag = 'input window, operand 7, single buffered']
    #allocation16 [shape = 'u8[16384]{0}', space=vmem, size = 0x4000, scoped, tag = 'input window, operand 8, single buffered']
    #allocation17 [shape = 's32[1]{0}', space=sflag, size = 0x4, scoped, tag = 'scoped memory for x_vector_forward.1']
    #allocation18 [shape = 'u8[512]{0}', space=vmem, size = 0x400, scoped, tag = 'input window, operand 9, single buffered']
    #allocation19 [shape = 'u8[196608]{0}', space=vmem, size = 0x30000, scoped, tag = 'input window, operand 10, single buffered']
    #allocation20 [shape = 's32[1]{0}', space=sflag, size = 0x4, scoped, tag = 'scoped memory for x_vector_forward.1']
    #allocation21 [shape = 'u8[6144]{0}', space=vmem, size = 0x1800, scoped, tag = 'input window, operand 11, single buffered']
    #allocation22 [shape = 'u8[2048]{0}', space=vmem, size = 0x800, scoped, tag = 'input window, operand 13, single buffered']
    #allocation23 [shape = 's32[1]{0}', space=sflag, size = 0x4, scoped, tag = 'scoped memory for x_vector_forward.1']
    #allocation24 [shape = 'u8[2048]{0}', space=vmem, size = 0x800, scoped, tag = 'input window, operand 14, single buffered']
    #allocation25 [shape = 'u8[512]{0}', space=vmem, size = 0x400, scoped, tag = 'input window, operand 16, single buffered']
    #allocation26 [shape = 's32[1]{0}', space=sflag, size = 0x4, scoped, tag = 'scoped memory for x_vector_forward.1']
    #allocation27 [shape = 'u8[512]{0}', space=vmem, size = 0x400, scoped, tag = 'input window, operand 18, single buffered']
    #allocation28 [shape = 'u8[1024]{0}', space=vmem, size = 0x400, scoped, tag = 'output window, operand 0, single buffered']
    #allocation29 [shape = 'u8[1024]{0}', space=vmem, size = 0x400, scoped, tag = 'output window, operand 1, single buffered']
    #allocation30 [shape = 's32[1]{0}', space=sflag, size = 0x4, scoped, tag = 'scoped memory for x_vector_forward.1']
    %26 = vsyncpa [#allocation5], 0
    %27 = vsyncpa [#allocation8], 0
    %28 = vsyncpa [#allocation11], 0
    %29 = vsyncpa [#allocation14], 0
    %30 = vsyncpa [#allocation17], 0
    %31 = vsyncpa [#allocation20], 0
    %32 = vsyncpa [#allocation23], 0
    %33 = vsyncpa [#allocation26], 0
    %34 = vsyncpa [#allocation6], 0
    %35 = vsyncpa [#allocation30], 0
    // Predicated region
    $region2: #{x_vector_forward.1} parent=1 // pred_check
      _
    $region3: #{x_vector_forward.1} parent=1 // pred_check_branch
      %37 = sbr.rel (0) target = $region5
    $region4: #{x_vector_forward.1} parent=1 // pred_region
      _
    $region5: #{x_vector_forward.1} parent=1 // pred_fallthru
      _
    // Predicated region
    $region6: #{x_vector_forward.1} parent=1 // pred_check
      _
    $region7: #{x_vector_forward.1} parent=1 // pred_check_branch
      %39 = sbr.rel (0) target = $region9
    $region8: #{x_vector_forward.1} parent=1 // pred_region
      %s41 = ssub.s32 32, 32
      %42 = vsyncadd [#allocation5], %s41
      %s44 = sshll.u32 [#allocation4], 4
      %s45 = int_to_ptr.vmem [resolvable:$true] %s44
      %47 = dma.hbm_to_vmem [thread:$0]  %s1, 32, %s45, [#allocation5]
    $region9: #{x_vector_forward.1} parent=1 // pred_fallthru
      _
    // Predicated region
    $region10: #{x_vector_forward.1} parent=1 // pred_check
      _
    $region11: #{x_vector_forward.1} parent=1 // pred_check_branch
      %49 = sbr.rel (0) target = $region13
    $region12: #{x_vector_forward.1} parent=1 // pred_region
      %s51 = ssub.s32 1280, 1280
      %52 = vsyncadd [#allocation8], %s51
      %s53 = sshll.u32 [#allocation7], 4
      %s54 = int_to_ptr.vmem [resolvable:$true] %s53
      %59 = dma.hbm_to_vmem [thread:$0]  %s2, 1280, %s54, [#allocation8], 128, 128, 8
    $region13: #{x_vector_forward.1} parent=1 // pred_fallthru
      _
    // Predicated region
    $region14: #{x_vector_forward.1} parent=1 // pred_check
      _
    $region15: #{x_vector_forward.1} parent=1 // pred_check_branch
      %61 = sbr.rel (0) target = $region17
    $region16: #{x_vector_forward.1} parent=1 // pred_region
      %s63 = ssub.s32 16, 16
      %64 = vsyncadd [#allocation8], %s63
      %s66 = sshll.u32 [#allocation9], 4
      %s67 = int_to_ptr.vmem [resolvable:$true] %s66
      %69 = dma.hbm_to_vmem [thread:$0]  %s3, 16, %s67, [#allocation8]
    $region17: #{x_vector_forward.1} parent=1 // pred_fallthru
      _
    // Predicated region
    $region18: #{x_vector_forward.1} parent=1 // pred_check
      _
    $region19: #{x_vector_forward.1} parent=1 // pred_check_branch
      %71 = sbr.rel (0) target = $region21
    $region20: #{x_vector_forward.1} parent=1 // pred_region
      %s73 = ssub.s32 2560, 2560
      %74 = vsyncadd [#allocation11], %s73
      %s75 = sshll.u32 [#allocation10], 4
      %s76 = int_to_ptr.vmem [resolvable:$true] %s75
      %81 = dma.hbm_to_vmem [thread:$0]  %s4, 2560, %s76, [#allocation11], 128, 128, 8
    $region21: #{x_vector_forward.1} parent=1 // pred_fallthru
      _
    // Predicated region
    $region22: #{x_vector_forward.1} parent=1 // pred_check
      _
    $region23: #{x_vector_forward.1} parent=1 // pred_check_branch
      %83 = sbr.rel (0) target = $region25
    $region24: #{x_vector_forward.1} parent=1 // pred_region
      %s85 = ssub.s32 16, 16
      %86 = vsyncadd [#allocation11], %s85
      %s88 = sshll.u32 [#allocation12], 4
      %s89 = int_to_ptr.vmem [resolvable:$true] %s88
      %91 = dma.hbm_to_vmem [thread:$0]  %s5, 16, %s89, [#allocation11]
    $region25: #{x_vector_forward.1} parent=1 // pred_fallthru
      _
    // Predicated region
    $region26: #{x_vector_forward.1} parent=1 // pred_check
      _
    $region27: #{x_vector_forward.1} parent=1 // pred_check_branch
      %93 = sbr.rel (0) target = $region29
    $region28: #{x_vector_forward.1} parent=1 // pred_region
      %s95 = ssub.s32 3584, 3584
      %96 = vsyncadd [#allocation14], %s95
      %s97 = sshll.u32 [#allocation13], 4
      %s98 = int_to_ptr.vmem [resolvable:$true] %s97
      %103 = dma.hbm_to_vmem [thread:$0]  %s6, 3584, %s98, [#allocation14], 128, 128, 8
    $region29: #{x_vector_forward.1} parent=1 // pred_fallthru
      _
    // Predicated region
    $region30: #{x_vector_forward.1} parent=1 // pred_check
      _
    $region31: #{x_vector_forward.1} parent=1 // pred_check_branch
      %105 = sbr.rel (0) target = $region33
    $region32: #{x_vector_forward.1} parent=1 // pred_region
      %s107 = ssub.s32 16, 16
      %108 = vsyncadd [#allocation14], %s107
      %s110 = sshll.u32 [#allocation15], 4
      %s111 = int_to_ptr.vmem [resolvable:$true] %s110
      %113 = dma.hbm_to_vmem [thread:$0]  %s7, 16, %s111, [#allocation14]
    $region33: #{x_vector_forward.1} parent=1 // pred_fallthru
      _
    // Predicated region
    $region34: #{x_vector_forward.1} parent=1 // pred_check
      _
    $region35: #{x_vector_forward.1} parent=1 // pred_check_branch
      %115 = sbr.rel (0) target = $region37
    $region36: #{x_vector_forward.1} parent=1 // pred_region
      %s117 = ssub.s32 512, 512
      %118 = vsyncadd [#allocation17], %s117
      %s119 = sshll.u32 [#allocation16], 4
      %s120 = int_to_ptr.vmem [resolvable:$true] %s119
      %125 = dma.hbm_to_vmem [thread:$0]  %s8, 512, %s120, [#allocation17], 128, 128, 8
    $region37: #{x_vector_forward.1} parent=1 // pred_fallthru
      _
    // Predicated region
    $region38: #{x_vector_forward.1} parent=1 // pred_check
      _
    $region39: #{x_vector_forward.1} parent=1 // pred_check_branch
      %127 = sbr.rel (0) target = $region41
    $region40: #{x_vector_forward.1} parent=1 // pred_region
      %s129 = ssub.s32 16, 16
      %130 = vsyncadd [#allocation17], %s129
      %s132 = sshll.u32 [#allocation18], 4
      %s133 = int_to_ptr.vmem [resolvable:$true] %s132
      %135 = dma.hbm_to_vmem [thread:$0]  %s9, 16, %s133, [#allocation17]
    $region41: #{x_vector_forward.1} parent=1 // pred_fallthru
      _
    // Predicated region
    $region42: #{x_vector_forward.1} parent=1 // pred_check
      _
    $region43: #{x_vector_forward.1} parent=1 // pred_check_branch
      %137 = sbr.rel (0) target = $region45
    $region44: #{x_vector_forward.1} parent=1 // pred_region
      %s139 = ssub.s32 6144, 6144
      %140 = vsyncadd [#allocation20], %s139
      %s141 = sshll.u32 [#allocation19], 4
      %s142 = int_to_ptr.vmem [resolvable:$true] %s141
      %147 = dma.hbm_to_vmem [thread:$0]  %s10, 6144, %s142, [#allocation20], 1536, 1536, 96
    $region45: #{x_vector_forward.1} parent=1 // pred_fallthru
      _
    // Predicated region
    $region46: #{x_vector_forward.1} parent=1 // pred_check
      _
    $region47: #{x_vector_forward.1} parent=1 // pred_check_branch
      %149 = sbr.rel (0) target = $region49
    $region48: #{x_vector_forward.1} parent=1 // pred_region
      %s151 = ssub.s32 192, 192
      %152 = vsyncadd [#allocation20], %s151
      %s154 = sshll.u32 [#allocation21], 4
      %s155 = int_to_ptr.vmem [resolvable:$true] %s154
      %157 = dma.hbm_to_vmem [thread:$0]  %s11, 192, %s155, [#allocation20]
    $region49: #{x_vector_forward.1} parent=1 // pred_fallthru
      _
    // Predicated region
    $region50: #{x_vector_forward.1} parent=1 // pred_check
      _
    $region51: #{x_vector_forward.1} parent=1 // pred_check_branch
      %159 = sbr.rel (0) target = $region53
    $region52: #{x_vector_forward.1} parent=1 // pred_region
      %s161 = ssub.s32 64, 64
      %162 = vsyncadd [#allocation23], %s161
      %s164 = sshll.u32 [#allocation22], 4
      %s165 = int_to_ptr.vmem [resolvable:$true] %s164
      %167 = dma.hbm_to_vmem [thread:$0]  %s13, 64, %s165, [#allocation23]
    $region53: #{x_vector_forward.1} parent=1 // pred_fallthru
      _
    // Predicated region
    $region54: #{x_vector_forward.1} parent=1 // pred_check
      _
    $region55: #{x_vector_forward.1} parent=1 // pred_check_branch
      %169 = sbr.rel (0) target = $region57
    $region56: #{x_vector_forward.1} parent=1 // pred_region
      %s171 = ssub.s32 64, 64
      %172 = vsyncadd [#allocation23], %s171
      %s174 = sshll.u32 [#allocation24], 4
      %s175 = int_to_ptr.vmem [resolvable:$true] %s174
      %177 = dma.hbm_to_vmem [thread:$0]  %s14, 64, %s175, [#allocation23]
    $region57: #{x_vector_forward.1} parent=1 // pred_fallthru
      _
    // Predicated region
    $region58: #{x_vector_forward.1} parent=1 // pred_check
      _
    $region59: #{x_vector_forward.1} parent=1 // pred_check_branch
      %179 = sbr.rel (0) target = $region61
    $region60: #{x_vector_forward.1} parent=1 // pred_region
      _
    $region61: #{x_vector_forward.1} parent=1 // pred_fallthru
      _
    // Predicated region
    $region62: #{x_vector_forward.1} parent=1 // pred_check
      _
    $region63: #{x_vector_forward.1} parent=1 // pred_check_branch
      %181 = sbr.rel (0) target = $region65
    $region64: #{x_vector_forward.1} parent=1 // pred_region
      %s183 = ssub.s32 16, 16
      %184 = vsyncadd [#allocation26], %s183
      %s186 = sshll.u32 [#allocation25], 4
      %s187 = int_to_ptr.vmem [resolvable:$true] %s186
      %189 = dma.hbm_to_vmem [thread:$0]  %s16, 16, %s187, [#allocation26]
    $region65: #{x_vector_forward.1} parent=1 // pred_fallthru
      _
    // Predicated region
    $region66: #{x_vector_forward.1} parent=1 // pred_check
      _
    $region67: #{x_vector_forward.1} parent=1 // pred_check_branch
      %191 = sbr.rel (0) target = $region69
    $region68: #{x_vector_forward.1} parent=1 // pred_region
      _
    $region69: #{x_vector_forward.1} parent=1 // pred_fallthru
      _
    // Predicated region
    $region70: #{x_vector_forward.1} parent=1 // pred_check
      _
    $region71: #{x_vector_forward.1} parent=1 // pred_check_branch
      %193 = sbr.rel (0) target = $region73
    $region72: #{x_vector_forward.1} parent=1 // pred_region
      %s195 = ssub.s32 16, 16
      %196 = vsyncadd [#allocation26], %s195
      %s198 = sshll.u32 [#allocation27], 4
      %s199 = int_to_ptr.vmem [resolvable:$true] %s198
      %201 = dma.hbm_to_vmem [thread:$0]  %s18, 16, %s199, [#allocation26]
    $region73: #{x_vector_forward.1} parent=1 // pred_fallthru
      _
    // Predicated region
    $region74: #{x_vector_forward.1} parent=1 // pred_check
      _
    $region75: #{x_vector_forward.1} parent=1 // pred_check_branch
      %203 = sbr.rel (0) target = $region77
    $region76: #{x_vector_forward.1} parent=1 // pred_region
      %204 = dma.done [#allocation5], 32
    $region77: #{x_vector_forward.1} parent=1 // pred_fallthru
      _
    // Predicated region
    $region78: #{x_vector_forward.1} parent=1 // pred_check
      _
    $region79: #{x_vector_forward.1} parent=1 // pred_check_branch
      %206 = sbr.rel (0) target = $region81
    $region80: #{x_vector_forward.1} parent=1 // pred_region
      %207 = dma.done [#allocation8], 1280
    $region81: #{x_vector_forward.1} parent=1 // pred_fallthru
      _
    // Predicated region
    $region82: #{x_vector_forward.1} parent=1 // pred_check
      _
    $region83: #{x_vector_forward.1} parent=1 // pred_check_branch
      %209 = sbr.rel (0) target = $region85
    $region84: #{x_vector_forward.1} parent=1 // pred_region
      %210 = dma.done [#allocation8], 16
    $region85: #{x_vector_forward.1} parent=1 // pred_fallthru
      _
    // Predicated region
    $region86: #{x_vector_forward.1} parent=1 // pred_check
      _
    $region87: #{x_vector_forward.1} parent=1 // pred_check_branch
      %212 = sbr.rel (0) target = $region89
    $region88: #{x_vector_forward.1} parent=1 // pred_region
      %213 = dma.done [#allocation11], 2560
    $region89: #{x_vector_forward.1} parent=1 // pred_fallthru
      _
    // Predicated region
    $region90: #{x_vector_forward.1} parent=1 // pred_check
      _
    $region91: #{x_vector_forward.1} parent=1 // pred_check_branch
      %215 = sbr.rel (0) target = $region93
    $region92: #{x_vector_forward.1} parent=1 // pred_region
      %216 = dma.done [#allocation11], 16
    $region93: #{x_vector_forward.1} parent=1 // pred_fallthru
      _
    // Predicated region
    $region94: #{x_vector_forward.1} parent=1 // pred_check
      _
    $region95: #{x_vector_forward.1} parent=1 // pred_check_branch
      %218 = sbr.rel (0) target = $region97
    $region96: #{x_vector_forward.1} parent=1 // pred_region
      %219 = dma.done [#allocation14], 3584
    $region97: #{x_vector_forward.1} parent=1 // pred_fallthru
      _
    // Predicated region
    $region98: #{x_vector_forward.1} parent=1 // pred_check
      _
    $region99: #{x_vector_forward.1} parent=1 // pred_check_branch
      %221 = sbr.rel (0) target = $region101
    $region100: #{x_vector_forward.1} parent=1 // pred_region
      %222 = dma.done [#allocation14], 16
    $region101: #{x_vector_forward.1} parent=1 // pred_fallthru
      _
    // Predicated region
    $region102: #{x_vector_forward.1} parent=1 // pred_check
      _
    $region103: #{x_vector_forward.1} parent=1 // pred_check_branch
      %224 = sbr.rel (0) target = $region105
    $region104: #{x_vector_forward.1} parent=1 // pred_region
      %225 = dma.done [#allocation17], 512
    $region105: #{x_vector_forward.1} parent=1 // pred_fallthru
      _
    // Predicated region
    $region106: #{x_vector_forward.1} parent=1 // pred_check
      _
    $region107: #{x_vector_forward.1} parent=1 // pred_check_branch
      %227 = sbr.rel (0) target = $region109
    $region108: #{x_vector_forward.1} parent=1 // pred_region
      %228 = dma.done [#allocation17], 16
    $region109: #{x_vector_forward.1} parent=1 // pred_fallthru
      _
    // Predicated region
    $region110: #{x_vector_forward.1} parent=1 // pred_check
      _
    $region111: #{x_vector_forward.1} parent=1 // pred_check_branch
      %230 = sbr.rel (0) target = $region113
    $region112: #{x_vector_forward.1} parent=1 // pred_region
      %231 = dma.done [#allocation20], 6144
    $region113: #{x_vector_forward.1} parent=1 // pred_fallthru
      _
    // Predicated region
    $region114: #{x_vector_forward.1} parent=1 // pred_check
      _
    $region115: #{x_vector_forward.1} parent=1 // pred_check_branch
      %233 = sbr.rel (0) target = $region117
    $region116: #{x_vector_forward.1} parent=1 // pred_region
      %234 = dma.done [#allocation20], 192
    $region117: #{x_vector_forward.1} parent=1 // pred_fallthru
      _
    // Predicated region
    $region118: #{x_vector_forward.1} parent=1 // pred_check
      _
    $region119: #{x_vector_forward.1} parent=1 // pred_check_branch
      %236 = sbr.rel (0) target = $region121
    $region120: #{x_vector_forward.1} parent=1 // pred_region
      %237 = dma.done [#allocation23], 64
    $region121: #{x_vector_forward.1} parent=1 // pred_fallthru
      _
    // Predicated region
    $region122: #{x_vector_forward.1} parent=1 // pred_check
      _
    $region123: #{x_vector_forward.1} parent=1 // pred_check_branch
      %239 = sbr.rel (0) target = $region125
    $region124: #{x_vector_forward.1} parent=1 // pred_region
      %240 = dma.done [#allocation23], 64
    $region125: #{x_vector_forward.1} parent=1 // pred_fallthru
      _
    // Predicated region
    $region126: #{x_vector_forward.1} parent=1 // pred_check
      _
    $region127: #{x_vector_forward.1} parent=1 // pred_check_branch
      %242 = sbr.rel (0) target = $region129
    $region128: #{x_vector_forward.1} parent=1 // pred_region
      %243 = dma.done [#allocation26], 16
    $region129: #{x_vector_forward.1} parent=1 // pred_fallthru
      _
    // Predicated region
    $region130: #{x_vector_forward.1} parent=1 // pred_check
      _
    $region131: #{x_vector_forward.1} parent=1 // pred_check_branch
      %245 = sbr.rel (0) target = $region133
    $region132: #{x_vector_forward.1} parent=1 // pred_region
      %246 = dma.done [#allocation26], 16
    $region133: #{x_vector_forward.1} parent=1 // pred_fallthru
      _
    // Predicated region
    $region134: #{x_vector_forward.1} parent=1 // pred_check
      _
    $region135: #{x_vector_forward.1} parent=1 // pred_check_branch
      %248 = sbr.rel target = $region137
    $region136: #{x_vector_forward.1} parent=1 // pred_region
      %249 = sst [smem:[#allocation33]] [#allocation32]
      %250 = sst [smem:[#allocation34]] [#allocation31]
    $region137: #{x_vector_forward.1} parent=1 // pred_fallthru
      _
    %252 = shalt.err (0)
    %s254 = sshll.u32 [#allocation2], 4
    %s255 = int_to_ptr.vmem [resolvable:$true] %s254
    %257 = dma.hbm_to_vmem [thread:$0]  %s12, 49152, %s255, [#allocation3]
    %v258 = vld [vmem:[%s0] sm:$0xff]
    %v259 = vld [vmem:[%s0 + $0x8] sm:$0xff]
    %v260 = vld [vmem:[%s0 + $0x10] sm:$0xff]
    %v261 = vld [vmem:[%s0 + $0x18] sm:$0xff]
    %v262 = vld [vmem:[%s0 + $0x20] sm:$0xff]
    %v263 = vld [vmem:[%s0 + $0x28] sm:$0xff]
    %v264 = vld [vmem:[%s0 + $0x30] sm:$0xff]
    %v265 = vld [vmem:[%s0 + $0x38] sm:$0xff]
    %v266 = vld [vmem:[#allocation7] sm:$0xff]
    %v267 = vld [vmem:[#allocation7 + $0x8] sm:$0xff]
    %s268 = scalar_lea.vmem [#allocation7], 16
    %v269 = vld [vmem:[%s268] sm:$0xff]
    %v270 = vld [vmem:[%s268 + $0x8] sm:$0xff]
    %vm279 = vcmask 1046528
    %v280 = vrot.slane %v258, 1
    %v281 = vrot.slane %v259, 1
    %v282 = vsel %vm279, %v280, %v281
    %v283 = vrot.slane %v260, 1
    %v284 = vsel %vm279, %v281, %v283
    %v285 = vrot.slane %v261, 1
    %v286 = vsel %vm279, %v283, %v285
    %v287 = vrot.slane %v262, 1
    %v288 = vsel %vm279, %v285, %v287
    %v289 = vrot.slane %v263, 1
    %v290 = vsel %vm279, %v287, %v289
    %v291 = vrot.slane %v264, 1
    %v292 = vsel %vm279, %v289, %v291
    %v293 = vrot.slane %v265, 1
    %v294 = vsel %vm279, %v291, %v293
    %vm295 = vcmask 130048
    %v296 = vsel %vm295, %v282, 0
    %v298 = vsel %vm295, %v284, 0
    %v300 = vsel %vm295, %v286, 0
    %v302 = vsel %vm295, %v288, 0
    %v304 = vsel %vm295, %v290, 0
    %v306 = vsel %vm295, %v292, 0
    %v308 = vsel %vm295, %v294, 0
    %v310 = vsel %vm295, %v293, 0
    %312 = vmatprep.subr.mxu0 0.0
    %313 = vmatpush1.msra.mxu0 %v269
    %314 = vmatprep.subr.mxu0 0.0
    %315 = vmatpush1.msra.mxu0 %v270
    %316 = vmatprep.subr.mxu0 0.0
    %317 = vmatpush1.msra.mxu0 0.0
    %318 = vmatprep.subr.mxu0 0.0
    %319 = vmatpush1.msra.mxu0 0.0
    %320 = vmatprep.subr.mxu0 0.0
    %321 = vmatpush1.msra.mxu0 0.0
    %322 = vmatprep.subr.mxu0 0.0
    %323 = vmatpush1.msra.mxu0 0.0
    %324 = vmatprep.subr.mxu0 0.0
    %325 = vmatpush1.msra.mxu0 0.0
    %326 = vmatprep.subr.mxu0 0.0
    %327 = vmatpush1.msra.mxu0 0.0
    %328 = vmatprep.subr.mxu0 0.0
    %329 = vmatpush1.msra.mxu0 0.0
    %330 = vmatprep.subr.mxu0 0.0
    %331 = vmatpush1.msra.mxu0 0.0
    %332 = vmatprep.subr.mxu0 0.0
    %333 = vmatpush1.msra.mxu0 0.0
    %334 = vmatprep.subr.mxu0 0.0
    %335 = vmatpush1.msra.mxu0 0.0
    %336 = vmatprep.subr.mxu0 0.0
    %337 = vmatpush1.msra.mxu0 0.0
    %338 = vmatprep.subr.mxu0 0.0
    %339 = vmatpush1.msra.mxu0 0.0
    %340 = vmatprep.subr.mxu0 0.0
    %341 = vmatpush1.msra.mxu0 0.0
    %342 = vmatprep.subr.mxu0 0.0
    %343 = vmatpush1.msra.mxu0 0.0
    %344 = vmatprep.subr.mxu0 0.0
    %345 = vmatpush1.msra.mxu0 0.0
    %346 = vmatprep.subr.mxu0 0.0
    %347 = vmatpush1.msra.mxu0 0.0
    %348 = vmatprep.subr.mxu0 0.0
    %349 = vmatpush1.msra.mxu0 0.0
    %350 = vmatprep.subr.mxu0 0.0
    %351 = vmatpush1.msra.mxu0 0.0
    %352 = vmatprep.subr.mxu0 0.0
    %353 = vmatpush1.msra.mxu0 0.0
    %354 = vmatprep.subr.mxu0 0.0
    %355 = vmatpush1.msra.mxu0 0.0
    %356 = vmatprep.subr.mxu0 0.0
    %357 = vmatpush1.msra.mxu0 0.0
    %358 = vmatprep.subr.mxu0 0.0
    %359 = vmatpush1.msra.mxu0 0.0
    %360 = vmatprep.subr.mxu0 0.0
    %361 = vmatpush1.msra.mxu0 0.0
    %362 = vmatprep.subr.mxu0 0.0
    %363 = vmatpush1.msra.mxu0 0.0
    %364 = vmatprep.subr.mxu0 0.0
    %365 = vmatpush1.msra.mxu0 0.0
    %366 = vmatprep.subr.mxu0 0.0
    %367 = vmatpush1.msra.mxu0 0.0
    %368 = vmatprep.subr.mxu0 0.0
    %369 = vmatpush1.msra.mxu0 0.0
    %370 = vmatprep.subr.mxu0 0.0
    %371 = vmatpush1.msra.mxu0 0.0
    %372 = vmatprep.subr.mxu0 0.0
    %373 = vmatpush1.msra.mxu0 0.0
    %374 = vmatprep.subr.mxu0 0.0
    %375 = vmatpush1.msra.mxu0 0.0
    %376 = vmatprep.mubr.f32.mxu0 0.0
    %377 = vmatmul.mubr.f32.gmra.mrb[0].mxu0 %v296
    %v378 = vpop.f32.mrb[0].mxu0
    %v379 = vadd.f32 0.0, %v378
    %v380 = vpop.f32.mrb[0].mxu0
    %381 = vmatprep.mubr.f32.mxu0 0.0
    %382 = vmatmul.mubr.f32.gmra.mrb[0].mxu0 %v298
    %v383 = vpop.f32.mrb[0].mxu0
    %v384 = vadd.f32 0.0, %v383
    %v385 = vpop.f32.mrb[0].mxu0
    %386 = vmatprep.mubr.f32.mxu0 0.0
    %387 = vmatmul.mubr.f32.gmra.mrb[0].mxu0 %v300
    %v388 = vpop.f32.mrb[0].mxu0
    %v389 = vadd.f32 0.0, %v388
    %v390 = vpop.f32.mrb[0].mxu0
    %391 = vmatprep.mubr.f32.mxu0 0.0
    %392 = vmatmul.mubr.f32.gmra.mrb[0].mxu0 %v302
    %v393 = vpop.f32.mrb[0].mxu0
    %v394 = vadd.f32 0.0, %v393
    %v395 = vpop.f32.mrb[0].mxu0
    %396 = vmatprep.mubr.f32.mxu0 0.0
    %397 = vmatmul.mubr.f32.gmra.mrb[0].mxu0 %v304
    %v398 = vpop.f32.mrb[0].mxu0
    %v399 = vadd.f32 0.0, %v398
    %v400 = vpop.f32.mrb[0].mxu0
    %401 = vmatprep.mubr.f32.mxu0 0.0
    %402 = vmatmul.mubr.f32.gmra.mrb[0].mxu0 %v306
    %v403 = vpop.f32.mrb[0].mxu0
    %v404 = vadd.f32 0.0, %v403
    %v405 = vpop.f32.mrb[0].mxu0
    %406 = vmatprep.mubr.f32.mxu0 0.0
    %407 = vmatmul.mubr.f32.gmra.mrb[0].mxu0 %v308
    %v408 = vpop.f32.mrb[0].mxu0
    %v409 = vadd.f32 0.0, %v408
    %v410 = vpop.f32.mrb[0].mxu0
    %411 = vmatprep.mubr.f32.mxu0 0.0
    %412 = vmatmul.mubr.f32.gmra.mrb[0].mxu0 %v310
    %v413 = vpop.f32.mrb[0].mxu0
    %v414 = vadd.f32 0.0, %v413
    %v415 = vpop.f32.mrb[0].mxu0
    %416 = vdwg.mxu0
    %v417 = vsel %vm295, %v258, 0
    %v419 = vsel %vm295, %v259, 0
    %v421 = vsel %vm295, %v260, 0
    %v423 = vsel %vm295, %v261, 0
    %v425 = vsel %vm295, %v262, 0
    %v427 = vsel %vm295, %v263, 0
    %v429 = vsel %vm295, %v264, 0
    %v431 = vsel %vm295, %v265, 0
    %433 = vmatprep.subr.mxu0 0.0
    %434 = vmatpush1.msra.mxu0 %v266
    %435 = vmatprep.subr.mxu0 0.0
    %436 = vmatpush1.msra.mxu0 %v267
    %437 = vmatprep.subr.mxu0 0.0
    %438 = vmatpush1.msra.mxu0 0.0
    %439 = vmatprep.subr.mxu0 0.0
    %440 = vmatpush1.msra.mxu0 0.0
    %441 = vmatprep.subr.mxu0 0.0
    %442 = vmatpush1.msra.mxu0 0.0
    %443 = vmatprep.subr.mxu0 0.0
    %444 = vmatpush1.msra.mxu0 0.0
    %445 = vmatprep.subr.mxu0 0.0
    %446 = vmatpush1.msra.mxu0 0.0
    %447 = vmatprep.subr.mxu0 0.0
    %448 = vmatpush1.msra.mxu0 0.0
    %449 = vmatprep.subr.mxu0 0.0
    %450 = vmatpush1.msra.mxu0 0.0
    %451 = vmatprep.subr.mxu0 0.0
    %452 = vmatpush1.msra.mxu0 0.0
    %453 = vmatprep.subr.mxu0 0.0
    %454 = vmatpush1.msra.mxu0 0.0
    %455 = vmatprep.subr.mxu0 0.0
    %456 = vmatpush1.msra.mxu0 0.0
    %457 = vmatprep.subr.mxu0 0.0
    %458 = vmatpush1.msra.mxu0 0.0
    %459 = vmatprep.subr.mxu0 0.0
    %460 = vmatpush1.msra.mxu0 0.0
    %461 = vmatprep.subr.mxu0 0.0
    %462 = vmatpush1.msra.mxu0 0.0
    %463 = vmatprep.subr.mxu0 0.0
    %464 = vmatpush1.msra.mxu0 0.0
    %465 = vmatprep.subr.mxu0 0.0
    %466 = vmatpush1.msra.mxu0 0.0
    %467 = vmatprep.subr.mxu0 0.0
    %468 = vmatpush1.msra.mxu0 0.0
    %469 = vmatprep.subr.mxu0 0.0
    %470 = vmatpush1.msra.mxu0 0.0
    %471 = vmatprep.subr.mxu0 0.0
    %472 = vmatpush1.msra.mxu0 0.0
    %473 = vmatprep.subr.mxu0 0.0
    %474 = vmatpush1.msra.mxu0 0.0
    %475 = vmatprep.subr.mxu0 0.0
    %476 = vmatpush1.msra.mxu0 0.0
    %477 = vmatprep.subr.mxu0 0.0
    %478 = vmatpush1.msra.mxu0 0.0
    %479 = vmatprep.subr.mxu0 0.0
    %480 = vmatpush1.msra.mxu0 0.0
    %481 = vmatprep.subr.mxu0 0.0
    %482 = vmatpush1.msra.mxu0 0.0
    %483 = vmatprep.subr.mxu0 0.0
    %484 = vmatpush1.msra.mxu0 0.0
    %485 = vmatprep.subr.mxu0 0.0
    %486 = vmatpush1.msra.mxu0 0.0
    %487 = vmatprep.subr.mxu0 0.0
    %488 = vmatpush1.msra.mxu0 0.0
    %489 = vmatprep.subr.mxu0 0.0
    %490 = vmatpush1.msra.mxu0 0.0
    %491 = vmatprep.subr.mxu0 0.0
    %492 = vmatpush1.msra.mxu0 0.0
    %493 = vmatprep.subr.mxu0 0.0
    %494 = vmatpush1.msra.mxu0 0.0
    %495 = vmatprep.subr.mxu0 0.0
    %496 = vmatpush1.msra.mxu0 0.0
    %497 = vmatprep.mubr.f32.mxu0 0.0
    %498 = vmatmul.mubr.f32.gmra.mrb[0].mxu0 %v417
    %v499 = vpop.f32.mrb[0].mxu0
    %v500 = vadd.f32 %v379, %v499
    %v501 = vpop.f32.mrb[0].mxu0
    %502 = vmatprep.mubr.f32.mxu0 0.0
    %503 = vmatmul.mubr.f32.gmra.mrb[0].mxu0 %v419
    %v504 = vpop.f32.mrb[0].mxu0
    %v505 = vadd.f32 %v384, %v504
    %v506 = vpop.f32.mrb[0].mxu0
    %507 = vmatprep.mubr.f32.mxu0 0.0
    %508 = vmatmul.mubr.f32.gmra.mrb[0].mxu0 %v421
    %v509 = vpop.f32.mrb[0].mxu0
    %v510 = vadd.f32 %v389, %v509
    %v511 = vpop.f32.mrb[0].mxu0
    %512 = vmatprep.mubr.f32.mxu0 0.0
    %513 = vmatmul.mubr.f32.gmra.mrb[0].mxu0 %v423
    %v514 = vpop.f32.mrb[0].mxu0
    %v515 = vadd.f32 %v394, %v514
    %v516 = vpop.f32.mrb[0].mxu0
    %517 = vmatprep.mubr.f32.mxu0 0.0
    %518 = vmatmul.mubr.f32.gmra.mrb[0].mxu0 %v425
    %v519 = vpop.f32.mrb[0].mxu0
    %v520 = vadd.f32 %v399, %v519
    %v521 = vpop.f32.mrb[0].mxu0
    %522 = vmatprep.mubr.f32.mxu0 0.0
    %523 = vmatmul.mubr.f32.gmra.mrb[0].mxu0 %v427
    %v524 = vpop.f32.mrb[0].mxu0
    %v525 = vadd.f32 %v404, %v524
    %v526 = vpop.f32.mrb[0].mxu0
    %527 = vmatprep.mubr.f32.mxu0 0.0
    %528 = vmatmul.mubr.f32.gmra.mrb[0].mxu0 %v429
    %v529 = vpop.f32.mrb[0].mxu0
    %v530 = vadd.f32 %v409, %v529
    %v531 = vpop.f32.mrb[0].mxu0
    %532 = vmatprep.mubr.f32.mxu0 0.0
    %533 = vmatmul.mubr.f32.gmra.mrb[0].mxu0 %v431
    %v534 = vpop.f32.mrb[0].mxu0
    %v535 = vadd.f32 %v414, %v534
    %v536 = vpop.f32.mrb[0].mxu0
    %537 = vdwg.mxu0
    %s538 = scalar_lea.vmem [#allocation7], 32
    %v539 = vld [vmem:[%s538] sm:$0xff]
    %v540 = vld [vmem:[%s538 + $0x8] sm:$0xff]
    %vm541 = vcmask 1045504
    %v542 = vrot.slane %v258, 2
    %v543 = vrot.slane %v259, 2
    %v544 = vsel %vm541, %v542, %v543
    %v545 = vrot.slane %v260, 2
    %v546 = vsel %vm541, %v543, %v545
    %v547 = vrot.slane %v261, 2
    %v548 = vsel %vm541, %v545, %v547
    %v549 = vrot.slane %v262, 2
    %v550 = vsel %vm541, %v547, %v549
    %v551 = vrot.slane %v263, 2
    %v552 = vsel %vm541, %v549, %v551
    %v553 = vrot.slane %v264, 2
    %v554 = vsel %vm541, %v551, %v553
    %v555 = vrot.slane %v265, 2
    %v556 = vsel %vm541, %v553, %v555
    %v557 = vsel %vm295, %v544, 0
    %v559 = vsel %vm295, %v546, 0
    %v561 = vsel %vm295, %v548, 0
    %v563 = vsel %vm295, %v550, 0
    %v565 = vsel %vm295, %v552, 0
    %v567 = vsel %vm295, %v554, 0
    %v569 = vsel %vm295, %v556, 0
    %v571 = vsel %vm295, %v555, 0
    %573 = vmatprep.subr.mxu0 0.0
    %574 = vmatpush1.msra.mxu0 %v539
    %575 = vmatprep.subr.mxu0 0.0
    %576 = vmatpush1.msra.mxu0 %v540
    %577 = vmatprep.subr.mxu0 0.0
    %578 = vmatpush1.msra.mxu0 0.0
    %579 = vmatprep.subr.mxu0 0.0
    %580 = vmatpush1.msra.mxu0 0.0
    %581 = vmatprep.subr.mxu0 0.0
    %582 = vmatpush1.msra.mxu0 0.0
    %583 = vmatprep.subr.mxu0 0.0
    %584 = vmatpush1.msra.mxu0 0.0
    %585 = vmatprep.subr.mxu0 0.0
    %586 = vmatpush1.msra.mxu0 0.0
    %587 = vmatprep.subr.mxu0 0.0
    %588 = vmatpush1.msra.mxu0 0.0
    %589 = vmatprep.subr.mxu0 0.0
    %590 = vmatpush1.msra.mxu0 0.0
    %591 = vmatprep.subr.mxu0 0.0
    %592 = vmatpush1.msra.mxu0 0.0
    %593 = vmatprep.subr.mxu0 0.0
    %594 = vmatpush1.msra.mxu0 0.0
    %595 = vmatprep.subr.mxu0 0.0
    %596 = vmatpush1.msra.mxu0 0.0
    %597 = vmatprep.subr.mxu0 0.0
    %598 = vmatpush1.msra.mxu0 0.0
    %599 = vmatprep.subr.mxu0 0.0
    %600 = vmatpush1.msra.mxu0 0.0
    %601 = vmatprep.subr.mxu0 0.0
    %602 = vmatpush1.msra.mxu0 0.0
    %603 = vmatprep.subr.mxu0 0.0
    %604 = vmatpush1.msra.mxu0 0.0
    %605 = vmatprep.subr.mxu0 0.0
    %606 = vmatpush1.msra.mxu0 0.0
    %607 = vmatprep.subr.mxu0 0.0
    %608 = vmatpush1.msra.mxu0 0.0
    %609 = vmatprep.subr.mxu0 0.0
    %610 = vmatpush1.msra.mxu0 0.0
    %611 = vmatprep.subr.mxu0 0.0
    %612 = vmatpush1.msra.mxu0 0.0
    %613 = vmatprep.subr.mxu0 0.0
    %614 = vmatpush1.msra.mxu0 0.0
    %615 = vmatprep.subr.mxu0 0.0
    %616 = vmatpush1.msra.mxu0 0.0
    %617 = vmatprep.subr.mxu0 0.0
    %618 = vmatpush1.msra.mxu0 0.0
    %619 = vmatprep.subr.mxu0 0.0
    %620 = vmatpush1.msra.mxu0 0.0
    %621 = vmatprep.subr.mxu0 0.0
    %622 = vmatpush1.msra.mxu0 0.0
    %623 = vmatprep.subr.mxu0 0.0
    %624 = vmatpush1.msra.mxu0 0.0
    %625 = vmatprep.subr.mxu0 0.0
    %626 = vmatpush1.msra.mxu0 0.0
    %627 = vmatprep.subr.mxu0 0.0
    %628 = vmatpush1.msra.mxu0 0.0
    %629 = vmatprep.subr.mxu0 0.0
    %630 = vmatpush1.msra.mxu0 0.0
    %631 = vmatprep.subr.mxu0 0.0
    %632 = vmatpush1.msra.mxu0 0.0
    %633 = vmatprep.subr.mxu0 0.0
    %634 = vmatpush1.msra.mxu0 0.0
    %635 = vmatprep.subr.mxu0 0.0
    %636 = vmatpush1.msra.mxu0 0.0
    %637 = vmatprep.mubr.f32.mxu0 0.0
    %638 = vmatmul.mubr.f32.gmra.mrb[0].mxu0 %v557
    %v639 = vpop.f32.mrb[0].mxu0
    %v640 = vadd.f32 0.0, %v639
    %v641 = vpop.f32.mrb[0].mxu0
    %642 = vmatprep.mubr.f32.mxu0 0.0
    %643 = vmatmul.mubr.f32.gmra.mrb[0].mxu0 %v559
    %v644 = vpop.f32.mrb[0].mxu0
    %v645 = vadd.f32 0.0, %v644
    %v646 = vpop.f32.mrb[0].mxu0
    %647 = vmatprep.mubr.f32.mxu0 0.0
    %648 = vmatmul.mubr.f32.gmra.mrb[0].mxu0 %v561
    %v649 = vpop.f32.mrb[0].mxu0
    %v650 = vadd.f32 0.0, %v649
    %v651 = vpop.f32.mrb[0].mxu0
    %652 = vmatprep.mubr.f32.mxu0 0.0
    %653 = vmatmul.mubr.f32.gmra.mrb[0].mxu0 %v563
    %v654 = vpop.f32.mrb[0].mxu0
    %v655 = vadd.f32 0.0, %v654
    %v656 = vpop.f32.mrb[0].mxu0
    %657 = vmatprep.mubr.f32.mxu0 0.0
    %658 = vmatmul.mubr.f32.gmra.mrb[0].mxu0 %v565
    %v659 = vpop.f32.mrb[0].mxu0
    %v660 = vadd.f32 0.0, %v659
    %v661 = vpop.f32.mrb[0].mxu0
    %662 = vmatprep.mubr.f32.mxu0 0.0
    %663 = vmatmul.mubr.f32.gmra.mrb[0].mxu0 %v567
    %v664 = vpop.f32.mrb[0].mxu0
    %v665 = vadd.f32 0.0, %v664
    %v666 = vpop.f32.mrb[0].mxu0
    %667 = vmatprep.mubr.f32.mxu0 0.0
    %668 = vmatmul.mubr.f32.gmra.mrb[0].mxu0 %v569
    %v669 = vpop.f32.mrb[0].mxu0
    %v670 = vadd.f32 0.0, %v669
    %v671 = vpop.f32.mrb[0].mxu0
    %672 = vmatprep.mubr.f32.mxu0 0.0
    %673 = vmatmul.mubr.f32.gmra.mrb[0].mxu0 %v571
    %v674 = vpop.f32.mrb[0].mxu0
    %v675 = vadd.f32 0.0, %v674
    %v676 = vpop.f32.mrb[0].mxu0
    %677 = vdwg.mxu0
    %v678 = vadd.f32 %v500, %v640
    %v679 = vadd.f32 %v505, %v645
    %v680 = vadd.f32 %v510, %v650
    %v681 = vadd.f32 %v515, %v655
    %v682 = vadd.f32 %v520, %v660
    %v683 = vadd.f32 %v525, %v665
    %v684 = vadd.f32 %v530, %v670
    %v685 = vadd.f32 %v535, %v675
    %s686 = scalar_lea.vmem [#allocation7], 48
    %v687 = vld [vmem:[%s686] sm:$0xff]
    %v688 = vld [vmem:[%s686 + $0x8] sm:$0xff]
    %vm689 = vcmask 1044480
    %v690 = vrot.slane %v258, 3
    %v691 = vrot.slane %v259, 3
    %v692 = vsel %vm689, %v690, %v691
    %v693 = vrot.slane %v260, 3
    %v694 = vsel %vm689, %v691, %v693
    %v695 = vrot.slane %v261, 3
    %v696 = vsel %vm689, %v693, %v695
    %v697 = vrot.slane %v262, 3
    %v698 = vsel %vm689, %v695, %v697
    %v699 = vrot.slane %v263, 3
    %v700 = vsel %vm689, %v697, %v699
    %v701 = vrot.slane %v264, 3
    %v702 = vsel %vm689, %v699, %v701
    %v703 = vrot.slane %v265, 3
    %v704 = vsel %vm689, %v701, %v703
    %v705 = vsel %vm295, %v692, 0
    %v707 = vsel %vm295, %v694, 0
    %v709 = vsel %vm295, %v696, 0
    %v711 = vsel %vm295, %v698, 0
    %v713 = vsel %vm295, %v700, 0
    %v715 = vsel %vm295, %v702, 0
    %v717 = vsel %vm295, %v704, 0
    %v719 = vsel %vm295, %v703, 0
    %721 = vmatprep.subr.mxu0 0.0
    %722 = vmatpush1.msra.mxu0 %v687
    %723 = vmatprep.subr.mxu0 0.0
    %724 = vmatpush1.msra.mxu0 %v688
    %725 = vmatprep.subr.mxu0 0.0
    %726 = vmatpush1.msra.mxu0 0.0
    %727 = vmatprep.subr.mxu0 0.0
    %728 = vmatpush1.msra.mxu0 0.0
    %729 = vmatprep.subr.mxu0 0.0
    %730 = vmatpush1.msra.mxu0 0.0
    %731 = vmatprep.subr.mxu0 0.0
    %732 = vmatpush1.msra.mxu0 0.0
    %733 = vmatprep.subr.mxu0 0.0
    %734 = vmatpush1.msra.mxu0 0.0
    %735 = vmatprep.subr.mxu0 0.0
    %736 = vmatpush1.msra.mxu0 0.0
    %737 = vmatprep.subr.mxu0 0.0
    %738 = vmatpush1.msra.mxu0 0.0
    %739 = vmatprep.subr.mxu0 0.0
    %740 = vmatpush1.msra.mxu0 0.0
    %741 = vmatprep.subr.mxu0 0.0
    %742 = vmatpush1.msra.mxu0 0.0
    %743 = vmatprep.subr.mxu0 0.0
    %744 = vmatpush1.msra.mxu0 0.0
    %745 = vmatprep.subr.mxu0 0.0
    %746 = vmatpush1.msra.mxu0 0.0
    %747 = vmatprep.subr.mxu0 0.0
    %748 = vmatpush1.msra.mxu0 0.0
    %749 = vmatprep.subr.mxu0 0.0
    %750 = vmatpush1.msra.mxu0 0.0
    %751 = vmatprep.subr.mxu0 0.0
    %752 = vmatpush1.msra.mxu0 0.0
    %753 = vmatprep.subr.mxu0 0.0
    %754 = vmatpush1.msra.mxu0 0.0
    %755 = vmatprep.subr.mxu0 0.0
    %756 = vmatpush1.msra.mxu0 0.0
    %757 = vmatprep.subr.mxu0 0.0
    %758 = vmatpush1.msra.mxu0 0.0
    %759 = vmatprep.subr.mxu0 0.0
    %760 = vmatpush1.msra.mxu0 0.0
    %761 = vmatprep.subr.mxu0 0.0
    %762 = vmatpush1.msra.mxu0 0.0
    %763 = vmatprep.subr.mxu0 0.0
    %764 = vmatpush1.msra.mxu0 0.0
    %765 = vmatprep.subr.mxu0 0.0
    %766 = vmatpush1.msra.mxu0 0.0
    %767 = vmatprep.subr.mxu0 0.0
    %768 = vmatpush1.msra.mxu0 0.0
    %769 = vmatprep.subr.mxu0 0.0
    %770 = vmatpush1.msra.mxu0 0.0
    %771 = vmatprep.subr.mxu0 0.0
    %772 = vmatpush1.msra.mxu0 0.0
    %773 = vmatprep.subr.mxu0 0.0
    %774 = vmatpush1.msra.mxu0 0.0
    %775 = vmatprep.subr.mxu0 0.0
    %776 = vmatpush1.msra.mxu0 0.0
    %777 = vmatprep.subr.mxu0 0.0
    %778 = vmatpush1.msra.mxu0 0.0
    %779 = vmatprep.subr.mxu0 0.0
    %780 = vmatpush1.msra.mxu0 0.0
    %781 = vmatprep.subr.mxu0 0.0
    %782 = vmatpush1.msra.mxu0 0.0
    %783 = vmatprep.subr.mxu0 0.0
    %784 = vmatpush1.msra.mxu0 0.0
    %785 = vmatprep.mubr.f32.mxu0 0.0
    %786 = vmatmul.mubr.f32.gmra.mrb[0].mxu0 %v705
    %v787 = vpop.f32.mrb[0].mxu0
    %v788 = vadd.f32 0.0, %v787
    %v789 = vpop.f32.mrb[0].mxu0
    %790 = vmatprep.mubr.f32.mxu0 0.0
    %791 = vmatmul.mubr.f32.gmra.mrb[0].mxu0 %v707
    %v792 = vpop.f32.mrb[0].mxu0
    %v793 = vadd.f32 0.0, %v792
    %v794 = vpop.f32.mrb[0].mxu0
    %795 = vmatprep.mubr.f32.mxu0 0.0
    %796 = vmatmul.mubr.f32.gmra.mrb[0].mxu0 %v709
    %v797 = vpop.f32.mrb[0].mxu0
    %v798 = vadd.f32 0.0, %v797
    %v799 = vpop.f32.mrb[0].mxu0
    %800 = vmatprep.mubr.f32.mxu0 0.0
    %801 = vmatmul.mubr.f32.gmra.mrb[0].mxu0 %v711
    %v802 = vpop.f32.mrb[0].mxu0
    %v803 = vadd.f32 0.0, %v802
    %v804 = vpop.f32.mrb[0].mxu0
    %805 = vmatprep.mubr.f32.mxu0 0.0
    %806 = vmatmul.mubr.f32.gmra.mrb[0].mxu0 %v713
    %v807 = vpop.f32.mrb[0].mxu0
    %v808 = vadd.f32 0.0, %v807
    %v809 = vpop.f32.mrb[0].mxu0
    %810 = vmatprep.mubr.f32.mxu0 0.0
    %811 = vmatmul.mubr.f32.gmra.mrb[0].mxu0 %v715
    %v812 = vpop.f32.mrb[0].mxu0
    %v813 = vadd.f32 0.0, %v812
    %v814 = vpop.f32.mrb[0].mxu0
    %815 = vmatprep.mubr.f32.mxu0 0.0
    %816 = vmatmul.mubr.f32.gmra.mrb[0].mxu0 %v717
    %v817 = vpop.f32.mrb[0].mxu0
    %v818 = vadd.f32 0.0, %v817
    %v819 = vpop.f32.mrb[0].mxu0
    %820 = vmatprep.mubr.f32.mxu0 0.0
    %821 = vmatmul.mubr.f32.gmra.mrb[0].mxu0 %v719
    %v822 = vpop.f32.mrb[0].mxu0
    %v823 = vadd.f32 0.0, %v822
    %v824 = vpop.f32.mrb[0].mxu0
    %825 = vdwg.mxu0
    %v826 = vadd.f32 %v678, %v788
    %v827 = vadd.f32 %v679, %v793
    %v828 = vadd.f32 %v680, %v798
    %v829 = vadd.f32 %v681, %v803
    %v830 = vadd.f32 %v682, %v808
    %v831 = vadd.f32 %v683, %v813
    %v832 = vadd.f32 %v684, %v818
    %v833 = vadd.f32 %v685, %v823
    %s834 = scalar_lea.vmem [#allocation7], 64
    %v835 = vld [vmem:[%s834] sm:$0xff]
    %v836 = vld [vmem:[%s834 + $0x8] sm:$0xff]
    %vm837 = vcmask 1043456
    %v838 = vrot.slane %v258, 4
    %v839 = vrot.slane %v259, 4
    %v840 = vsel %vm837, %v838, %v839
    %v841 = vrot.slane %v260, 4
    %v842 = vsel %vm837, %v839, %v841
    %v843 = vrot.slane %v261, 4
    %v844 = vsel %vm837, %v841, %v843
    %v845 = vrot.slane %v262, 4
    %v846 = vsel %vm837, %v843, %v845
    %v847 = vrot.slane %v263, 4
    %v848 = vsel %vm837, %v845, %v847
    %v849 = vrot.slane %v264, 4
    %v850 = vsel %vm837, %v847, %v849
    %v851 = vrot.slane %v265, 4
    %v852 = vsel %vm837, %v849, %v851
    %v853 = vsel %vm295, %v840, 0
    %v855 = vsel %vm295, %v842, 0
    %v857 = vsel %vm295, %v844, 0
    %v859 = vsel %vm295, %v846, 0
    %v861 = vsel %vm295, %v848, 0
    %v863 = vsel %vm295, %v850, 0
    %v865 = vsel %vm295, %v852, 0
    %v867 = vsel %vm295, %v851, 0
    %869 = vmatprep.subr.mxu0 0.0
    %870 = vmatpush1.msra.mxu0 %v835
    %871 = vmatprep.subr.mxu0 0.0
    %872 = vmatpush1.msra.mxu0 %v836
    %873 = vmatprep.subr.mxu0 0.0
    %874 = vmatpush1.msra.mxu0 0.0
    %875 = vmatprep.subr.mxu0 0.0
    %876 = vmatpush1.msra.mxu0 0.0
    %877 = vmatprep.subr.mxu0 0.0
    %878 = vmatpush1.msra.mxu0 0.0
    %879 = vmatprep.subr.mxu0 0.0
    %880 = vmatpush1.msra.mxu0 0.0
    %881 = vmatprep.subr.mxu0 0.0
    %882 = vmatpush1.msra.mxu0 0.0
    %883 = vmatprep.subr.mxu0 0.0
    %884 = vmatpush1.msra.mxu0 0.0
    %885 = vmatprep.subr.mxu0 0.0
    %886 = vmatpush1.msra.mxu0 0.0
    %887 = vmatprep.subr.mxu0 0.0
    %888 = vmatpush1.msra.mxu0 0.0
    %889 = vmatprep.subr.mxu0 0.0
    %890 = vmatpush1.msra.mxu0 0.0
    %891 = vmatprep.subr.mxu0 0.0
    %892 = vmatpush1.msra.mxu0 0.0
    %893 = vmatprep.subr.mxu0 0.0
    %894 = vmatpush1.msra.mxu0 0.0
    %895 = vmatprep.subr.mxu0 0.0
    %896 = vmatpush1.msra.mxu0 0.0
    %897 = vmatprep.subr.mxu0 0.0
    %898 = vmatpush1.msra.mxu0 0.0
    %899 = vmatprep.subr.mxu0 0.0
    %900 = vmatpush1.msra.mxu0 0.0
    %901 = vmatprep.subr.mxu0 0.0
    %902 = vmatpush1.msra.mxu0 0.0
    %903 = vmatprep.subr.mxu0 0.0
    %904 = vmatpush1.msra.mxu0 0.0
    %905 = vmatprep.subr.mxu0 0.0
    %906 = vmatpush1.msra.mxu0 0.0
    %907 = vmatprep.subr.mxu0 0.0
    %908 = vmatpush1.msra.mxu0 0.0
    %909 = vmatprep.subr.mxu0 0.0
    %910 = vmatpush1.msra.mxu0 0.0
    %911 = vmatprep.subr.mxu0 0.0
    %912 = vmatpush1.msra.mxu0 0.0
    %913 = vmatprep.subr.mxu0 0.0
    %914 = vmatpush1.msra.mxu0 0.0
    %915 = vmatprep.subr.mxu0 0.0
    %916 = vmatpush1.msra.mxu0 0.0
    %917 = vmatprep.subr.mxu0 0.0
    %918 = vmatpush1.msra.mxu0 0.0
    %919 = vmatprep.subr.mxu0 0.0
    %920 = vmatpush1.msra.mxu0 0.0
    %921 = vmatprep.subr.mxu0 0.0
    %922 = vmatpush1.msra.mxu0 0.0
    %923 = vmatprep.subr.mxu0 0.0
    %924 = vmatpush1.msra.mxu0 0.0
    %925 = vmatprep.subr.mxu0 0.0
    %926 = vmatpush1.msra.mxu0 0.0
    %927 = vmatprep.subr.mxu0 0.0
    %928 = vmatpush1.msra.mxu0 0.0
    %929 = vmatprep.subr.mxu0 0.0
    %930 = vmatpush1.msra.mxu0 0.0
    %931 = vmatprep.subr.mxu0 0.0
    %932 = vmatpush1.msra.mxu0 0.0
    %933 = vmatprep.mubr.f32.mxu0 0.0
    %934 = vmatmul.mubr.f32.gmra.mrb[0].mxu0 %v853
    %v935 = vpop.f32.mrb[0].mxu0
    %v936 = vadd.f32 0.0, %v935
    %v937 = vpop.f32.mrb[0].mxu0
    %938 = vmatprep.mubr.f32.mxu0 0.0
    %939 = vmatmul.mubr.f32.gmra.mrb[0].mxu0 %v855
    %v940 = vpop.f32.mrb[0].mxu0
    %v941 = vadd.f32 0.0, %v940
    %v942 = vpop.f32.mrb[0].mxu0
    %943 = vmatprep.mubr.f32.mxu0 0.0
    %944 = vmatmul.mubr.f32.gmra.mrb[0].mxu0 %v857
    %v945 = vpop.f32.mrb[0].mxu0
    %v946 = vadd.f32 0.0, %v945
    %v947 = vpop.f32.mrb[0].mxu0
    %948 = vmatprep.mubr.f32.mxu0 0.0
    %949 = vmatmul.mubr.f32.gmra.mrb[0].mxu0 %v859
    %v950 = vpop.f32.mrb[0].mxu0
    %v951 = vadd.f32 0.0, %v950
    %v952 = vpop.f32.mrb[0].mxu0
    %953 = vmatprep.mubr.f32.mxu0 0.0
    %954 = vmatmul.mubr.f32.gmra.mrb[0].mxu0 %v861
    %v955 = vpop.f32.mrb[0].mxu0
    %v956 = vadd.f32 0.0, %v955
    %v957 = vpop.f32.mrb[0].mxu0
    %958 = vmatprep.mubr.f32.mxu0 0.0
    %959 = vmatmul.mubr.f32.gmra.mrb[0].mxu0 %v863
    %v960 = vpop.f32.mrb[0].mxu0
    %v961 = vadd.f32 0.0, %v960
    %v962 = vpop.f32.mrb[0].mxu0
    %963 = vmatprep.mubr.f32.mxu0 0.0
    %964 = vmatmul.mubr.f32.gmra.mrb[0].mxu0 %v865
    %v965 = vpop.f32.mrb[0].mxu0
    %v966 = vadd.f32 0.0, %v965
    %v967 = vpop.f32.mrb[0].mxu0
    %968 = vmatprep.mubr.f32.mxu0 0.0
    %969 = vmatmul.mubr.f32.gmra.mrb[0].mxu0 %v867
    %v970 = vpop.f32.mrb[0].mxu0
    %v971 = vadd.f32 0.0, %v970
    %v972 = vpop.f32.mrb[0].mxu0
    %973 = vdwg.mxu0
    %v974 = vadd.f32 %v826, %v936
    %v975 = vadd.f32 %v827, %v941
    %v976 = vadd.f32 %v828, %v946
    %v977 = vadd.f32 %v829, %v951
    %v978 = vadd.f32 %v830, %v956
    %v979 = vadd.f32 %v831, %v961
    %v980 = vadd.f32 %v832, %v966
    %v981 = vadd.f32 %v833, %v971
    %v982 = vld [vmem:[#allocation9] sm:$0x1]
    %v984 = vlaneseq
    %v985 = vshrl.u32 %v984, 7
    %v986 = vsub.s32 0, %v985
    %v987 = vrot.slane %v982, %v986
    %v989 = vadd.f32 %v974, %v987
    %v990 = vadd.f32 %v975, %v987
    %v991 = vadd.f32 %v976, %v987
    %v992 = vadd.f32 %v977, %v987
    %v993 = vadd.f32 %v978, %v987
    %v994 = vadd.f32 %v979, %v987
    %v995 = vadd.f32 %v980, %v987
    %v996 = vadd.f32 %v981, %v987
    %v997 = vmax.f32 %v989, 0.0
    %v998 = vmax.f32 %v990, 0.0
    %v999 = vmax.f32 %v991, 0.0
    %v1000 = vmax.f32 %v992, 0.0
    %v1001 = vmax.f32 %v993, 0.0
    %v1002 = vmax.f32 %v994, 0.0
    %v1003 = vmax.f32 %v995, 0.0
    %v1004 = vmax.f32 %v996, 0.0
    %v1005 = vld [vmem:[#allocation10] sm:$0xff]
    %v1006 = vld [vmem:[#allocation10 + $0x8] sm:$0xff]
    %v1007 = vld [vmem:[#allocation10 + $0x10] sm:$0xff]
    %v1008 = vld [vmem:[#allocation10 + $0x18] sm:$0xff]
    %s1009 = scalar_lea.vmem [#allocation10], 32
    %v1010 = vld [vmem:[%s1009] sm:$0xff]
    %v1011 = vld [vmem:[%s1009 + $0x8] sm:$0xff]
    %v1012 = vld [vmem:[%s1009 + $0x10] sm:$0xff]
    %v1013 = vld [vmem:[%s1009 + $0x18] sm:$0xff]
    %v1022 = vrot.slane %v997, 1
    %v1023 = vrot.slane %v998, 1
    %v1024 = vsel %vm279, %v1022, %v1023
    %v1025 = vrot.slane %v999, 1
    %v1026 = vsel %vm279, %v1023, %v1025
    %v1027 = vrot.slane %v1000, 1
    %v1028 = vsel %vm279, %v1025, %v1027
    %v1029 = vrot.slane %v1001, 1
    %v1030 = vsel %vm279, %v1027, %v1029
    %v1031 = vrot.slane %v1002, 1
    %v1032 = vsel %vm279, %v1029, %v1031
    %v1033 = vrot.slane %v1003, 1
    %v1034 = vsel %vm279, %v1031, %v1033
    %v1035 = vrot.slane %v1004, 1
    %v1036 = vsel %vm279, %v1033, %v1035
    %vm1037 = vcmask 261120
    %v1038 = vsel %vm1037, %v1024, 0
    %v1040 = vsel %vm1037, %v1026, 0
    %v1042 = vsel %vm1037, %v1028, 0
    %v1044 = vsel %vm1037, %v1030, 0
    %v1046 = vsel %vm1037, %v1032, 0
    %v1048 = vsel %vm1037, %v1034, 0
    %v1050 = vsel %vm1037, %v1036, 0
    %1052 = vmatprep.subr.mxu0 0.0
    %1053 = vmatpush1.msra.mxu0 %v1010
    %1054 = vmatprep.subr.mxu0 0.0
    %1055 = vmatpush1.msra.mxu0 %v1011
    %1056 = vmatprep.subr.mxu0 0.0
    %1057 = vmatpush1.msra.mxu0 %v1012
    %1058 = vmatprep.subr.mxu0 0.0
    %1059 = vmatpush1.msra.mxu0 %v1013
    %1060 = vmatprep.subr.mxu0 0.0
    %1061 = vmatpush1.msra.mxu0 0.0
    %1062 = vmatprep.subr.mxu0 0.0
    %1063 = vmatpush1.msra.mxu0 0.0
    %1064 = vmatprep.subr.mxu0 0.0
    %1065 = vmatpush1.msra.mxu0 0.0
    %1066 = vmatprep.subr.mxu0 0.0
    %1067 = vmatpush1.msra.mxu0 0.0
    %1068 = vmatprep.subr.mxu0 0.0
    %1069 = vmatpush1.msra.mxu0 0.0
    %1070 = vmatprep.subr.mxu0 0.0
    %1071 = vmatpush1.msra.mxu0 0.0
    %1072 = vmatprep.subr.mxu0 0.0
    %1073 = vmatpush1.msra.mxu0 0.0
    %1074 = vmatprep.subr.mxu0 0.0
    %1075 = vmatpush1.msra.mxu0 0.0
    %1076 = vmatprep.subr.mxu0 0.0
    %1077 = vmatpush1.msra.mxu0 0.0
    %1078 = vmatprep.subr.mxu0 0.0
    %1079 = vmatpush1.msra.mxu0 0.0
    %1080 = vmatprep.subr.mxu0 0.0
    %1081 = vmatpush1.msra.mxu0 0.0
    %1082 = vmatprep.subr.mxu0 0.0
    %1083 = vmatpush1.msra.mxu0 0.0
    %1084 = vmatprep.subr.mxu0 0.0
    %1085 = vmatpush1.msra.mxu0 0.0
    %1086 = vmatprep.subr.mxu0 0.0
    %1087 = vmatpush1.msra.mxu0 0.0
    %1088 = vmatprep.subr.mxu0 0.0
    %1089 = vmatpush1.msra.mxu0 0.0
    %1090 = vmatprep.subr.mxu0 0.0
    %1091 = vmatpush1.msra.mxu0 0.0
    %1092 = vmatprep.subr.mxu0 0.0
    %1093 = vmatpush1.msra.mxu0 0.0
    %1094 = vmatprep.subr.mxu0 0.0
    %1095 = vmatpush1.msra.mxu0 0.0
    %1096 = vmatprep.subr.mxu0 0.0
    %1097 = vmatpush1.msra.mxu0 0.0
    %1098 = vmatprep.subr.mxu0 0.0
    %1099 = vmatpush1.msra.mxu0 0.0
    %1100 = vmatprep.subr.mxu0 0.0
    %1101 = vmatpush1.msra.mxu0 0.0
    %1102 = vmatprep.subr.mxu0 0.0
    %1103 = vmatpush1.msra.mxu0 0.0
    %1104 = vmatprep.subr.mxu0 0.0
    %1105 = vmatpush1.msra.mxu0 0.0
    %1106 = vmatprep.subr.mxu0 0.0
    %1107 = vmatpush1.msra.mxu0 0.0
    %1108 = vmatprep.subr.mxu0 0.0
    %1109 = vmatpush1.msra.mxu0 0.0
    %1110 = vmatprep.subr.mxu0 0.0
    %1111 = vmatpush1.msra.mxu0 0.0
    %1112 = vmatprep.subr.mxu0 0.0
    %1113 = vmatpush1.msra.mxu0 0.0
    %1114 = vmatprep.subr.mxu0 0.0
    %1115 = vmatpush1.msra.mxu0 0.0
    %1116 = vmatprep.mubr.f32.mxu0 0.0
    %1117 = vmatmul.mubr.f32.gmra.mrb[0].mxu0 %v1038
    %v1118 = vpop.f32.mrb[0].mxu0
    %v1119 = vadd.f32 0.0, %v1118
    %v1120 = vpop.f32.mrb[0].mxu0
    %1121 = vmatprep.mubr.f32.mxu0 0.0
    %1122 = vmatmul.mubr.f32.gmra.mrb[0].mxu0 %v1040
    %v1123 = vpop.f32.mrb[0].mxu0
    %v1124 = vadd.f32 0.0, %v1123
    %v1125 = vpop.f32.mrb[0].mxu0
    %1126 = vmatprep.mubr.f32.mxu0 0.0
    %1127 = vmatmul.mubr.f32.gmra.mrb[0].mxu0 %v1042
    %v1128 = vpop.f32.mrb[0].mxu0
    %v1129 = vadd.f32 0.0, %v1128
    %v1130 = vpop.f32.mrb[0].mxu0
    %1131 = vmatprep.mubr.f32.mxu0 0.0
    %1132 = vmatmul.mubr.f32.gmra.mrb[0].mxu0 %v1044
    %v1133 = vpop.f32.mrb[0].mxu0
    %v1134 = vadd.f32 0.0, %v1133
    %v1135 = vpop.f32.mrb[0].mxu0
    %1136 = vmatprep.mubr.f32.mxu0 0.0
    %1137 = vmatmul.mubr.f32.gmra.mrb[0].mxu0 %v1046
    %v1138 = vpop.f32.mrb[0].mxu0
    %v1139 = vadd.f32 0.0, %v1138
    %v1140 = vpop.f32.mrb[0].mxu0
    %1141 = vmatprep.mubr.f32.mxu0 0.0
    %1142 = vmatmul.mubr.f32.gmra.mrb[0].mxu0 %v1048
    %v1143 = vpop.f32.mrb[0].mxu0
    %v1144 = vadd.f32 0.0, %v1143
    %v1145 = vpop.f32.mrb[0].mxu0
    %1146 = vmatprep.mubr.f32.mxu0 0.0
    %1147 = vmatmul.mubr.f32.gmra.mrb[0].mxu0 %v1050
    %v1148 = vpop.f32.mrb[0].mxu0
    %v1149 = vadd.f32 0.0, %v1148
    %v1150 = vpop.f32.mrb[0].mxu0
    %1151 = vdwg.mxu0
    %v1152 = vsel %vm1037, %v997, 0
    %v1154 = vsel %vm1037, %v998, 0
    %v1156 = vsel %vm1037, %v999, 0
    %v1158 = vsel %vm1037, %v1000, 0
    %v1160 = vsel %vm1037, %v1001, 0
    %v1162 = vsel %vm1037, %v1002, 0
    %v1164 = vsel %vm1037, %v1003, 0
    %1166 = vmatprep.subr.mxu0 0.0
    %1167 = vmatpush1.msra.mxu0 %v1005
    %1168 = vmatprep.subr.mxu0 0.0
    %1169 = vmatpush1.msra.mxu0 %v1006
    %1170 = vmatprep.subr.mxu0 0.0
    %1171 = vmatpush1.msra.mxu0 %v1007
    %1172 = vmatprep.subr.mxu0 0.0
    %1173 = vmatpush1.msra.mxu0 %v1008
    %1174 = vmatprep.subr.mxu0 0.0
    %1175 = vmatpush1.msra.mxu0 0.0
    %1176 = vmatprep.subr.mxu0 0.0
    %1177 = vmatpush1.msra.mxu0 0.0
    %1178 = vmatprep.subr.mxu0 0.0
    %1179 = vmatpush1.msra.mxu0 0.0
    %1180 = vmatprep.subr.mxu0 0.0
    %1181 = vmatpush1.msra.mxu0 0.0
    %1182 = vmatprep.subr.mxu0 0.0
    %1183 = vmatpush1.msra.mxu0 0.0
    %1184 = vmatprep.subr.mxu0 0.0
    %1185 = vmatpush1.msra.mxu0 0.0
    %1186 = vmatprep.subr.mxu0 0.0
    %1187 = vmatpush1.msra.mxu0 0.0
    %1188 = vmatprep.subr.mxu0 0.0
    %1189 = vmatpush1.msra.mxu0 0.0
    %1190 = vmatprep.subr.mxu0 0.0
    %1191 = vmatpush1.msra.mxu0 0.0
    %1192 = vmatprep.subr.mxu0 0.0
    %1193 = vmatpush1.msra.mxu0 0.0
    %1194 = vmatprep.subr.mxu0 0.0
    %1195 = vmatpush1.msra.mxu0 0.0
    %1196 = vmatprep.subr.mxu0 0.0
    %1197 = vmatpush1.msra.mxu0 0.0
    %1198 = vmatprep.subr.mxu0 0.0
    %1199 = vmatpush1.msra.mxu0 0.0
    %1200 = vmatprep.subr.mxu0 0.0
    %1201 = vmatpush1.msra.mxu0 0.0
    %1202 = vmatprep.subr.mxu0 0.0
    %1203 = vmatpush1.msra.mxu0 0.0
    %1204 = vmatprep.subr.mxu0 0.0
    %1205 = vmatpush1.msra.mxu0 0.0
    %1206 = vmatprep.subr.mxu0 0.0
    %1207 = vmatpush1.msra.mxu0 0.0
    %1208 = vmatprep.subr.mxu0 0.0
    %1209 = vmatpush1.msra.mxu0 0.0
    %1210 = vmatprep.subr.mxu0 0.0
    %1211 = vmatpush1.msra.mxu0 0.0
    %1212 = vmatprep.subr.mxu0 0.0
    %1213 = vmatpush1.msra.mxu0 0.0
    %1214 = vmatprep.subr.mxu0 0.0
    %1215 = vmatpush1.msra.mxu0 0.0
    %1216 = vmatprep.subr.mxu0 0.0
    %1217 = vmatpush1.msra.mxu0 0.0
    %1218 = vmatprep.subr.mxu0 0.0
    %1219 = vmatpush1.msra.mxu0 0.0
    %1220 = vmatprep.subr.mxu0 0.0
    %1221 = vmatpush1.msra.mxu0 0.0
    %1222 = vmatprep.subr.mxu0 0.0
    %1223 = vmatpush1.msra.mxu0 0.0
    %1224 = vmatprep.subr.mxu0 0.0
    %1225 = vmatpush1.msra.mxu0 0.0
    %1226 = vmatprep.subr.mxu0 0.0
    %1227 = vmatpush1.msra.mxu0 0.0
    %1228 = vmatprep.subr.mxu0 0.0
    %1229 = vmatpush1.msra.mxu0 0.0
    %1230 = vmatprep.mubr.f32.mxu0 0.0
    %1231 = vmatmul.mubr.f32.gmra.mrb[0].mxu0 %v1152
    %v1232 = vpop.f32.mrb[0].mxu0
    %v1233 = vadd.f32 %v1119, %v1232
    %v1234 = vpop.f32.mrb[0].mxu0
    %1235 = vmatprep.mubr.f32.mxu0 0.0
    %1236 = vmatmul.mubr.f32.gmra.mrb[0].mxu0 %v1154
    %v1237 = vpop.f32.mrb[0].mxu0
    %v1238 = vadd.f32 %v1124, %v1237
    %v1239 = vpop.f32.mrb[0].mxu0
    %1240 = vmatprep.mubr.f32.mxu0 0.0
    %1241 = vmatmul.mubr.f32.gmra.mrb[0].mxu0 %v1156
    %v1242 = vpop.f32.mrb[0].mxu0
    %v1243 = vadd.f32 %v1129, %v1242
    %v1244 = vpop.f32.mrb[0].mxu0
    %1245 = vmatprep.mubr.f32.mxu0 0.0
    %1246 = vmatmul.mubr.f32.gmra.mrb[0].mxu0 %v1158
    %v1247 = vpop.f32.mrb[0].mxu0
    %v1248 = vadd.f32 %v1134, %v1247
    %v1249 = vpop.f32.mrb[0].mxu0
    %1250 = vmatprep.mubr.f32.mxu0 0.0
    %1251 = vmatmul.mubr.f32.gmra.mrb[0].mxu0 %v1160
    %v1252 = vpop.f32.mrb[0].mxu0
    %v1253 = vadd.f32 %v1139, %v1252
    %v1254 = vpop.f32.mrb[0].mxu0
    %1255 = vmatprep.mubr.f32.mxu0 0.0
    %1256 = vmatmul.mubr.f32.gmra.mrb[0].mxu0 %v1162
    %v1257 = vpop.f32.mrb[0].mxu0
    %v1258 = vadd.f32 %v1144, %v1257
    %v1259 = vpop.f32.mrb[0].mxu0
    %1260 = vmatprep.mubr.f32.mxu0 0.0
    %1261 = vmatmul.mubr.f32.gmra.mrb[0].mxu0 %v1164
    %v1262 = vpop.f32.mrb[0].mxu0
    %v1263 = vadd.f32 %v1149, %v1262
    %v1264 = vpop.f32.mrb[0].mxu0
    %1265 = vdwg.mxu0
    %s1266 = scalar_lea.vmem [#allocation10], 64
    %v1267 = vld [vmem:[%s1266] sm:$0xff]
    %v1268 = vld [vmem:[%s1266 + $0x8] sm:$0xff]
    %v1269 = vld [vmem:[%s1266 + $0x10] sm:$0xff]
    %v1270 = vld [vmem:[%s1266 + $0x18] sm:$0xff]
    %v1271 = vrot.slane %v997, 2
    %v1272 = vrot.slane %v998, 2
    %v1273 = vsel %vm541, %v1271, %v1272
    %v1274 = vrot.slane %v999, 2
    %v1275 = vsel %vm541, %v1272, %v1274
    %v1276 = vrot.slane %v1000, 2
    %v1277 = vsel %vm541, %v1274, %v1276
    %v1278 = vrot.slane %v1001, 2
    %v1279 = vsel %vm541, %v1276, %v1278
    %v1280 = vrot.slane %v1002, 2
    %v1281 = vsel %vm541, %v1278, %v1280
    %v1282 = vrot.slane %v1003, 2
    %v1283 = vsel %vm541, %v1280, %v1282
    %v1284 = vrot.slane %v1004, 2
    %v1285 = vsel %vm541, %v1282, %v1284
    %v1286 = vsel %vm1037, %v1273, 0
    %v1288 = vsel %vm1037, %v1275, 0
    %v1290 = vsel %vm1037, %v1277, 0
    %v1292 = vsel %vm1037, %v1279, 0
    %v1294 = vsel %vm1037, %v1281, 0
    %v1296 = vsel %vm1037, %v1283, 0
    %v1298 = vsel %vm1037, %v1285, 0
    %1300 = vmatprep.subr.mxu0 0.0
    %1301 = vmatpush1.msra.mxu0 %v1267
    %1302 = vmatprep.subr.mxu0 0.0
    %1303 = vmatpush1.msra.mxu0 %v1268
    %1304 = vmatprep.subr.mxu0 0.0
    %1305 = vmatpush1.msra.mxu0 %v1269
    %1306 = vmatprep.subr.mxu0 0.0
    %1307 = vmatpush1.msra.mxu0 %v1270
    %1308 = vmatprep.subr.mxu0 0.0
    %1309 = vmatpush1.msra.mxu0 0.0
    %1310 = vmatprep.subr.mxu0 0.0
    %1311 = vmatpush1.msra.mxu0 0.0
    %1312 = vmatprep.subr.mxu0 0.0
    %1313 = vmatpush1.msra.mxu0 0.0
    %1314 = vmatprep.subr.mxu0 0.0
    %1315 = vmatpush1.msra.mxu0 0.0
    %1316 = vmatprep.subr.mxu0 0.0
    %1317 = vmatpush1.msra.mxu0 0.0
    %1318 = vmatprep.subr.mxu0 0.0
    %1319 = vmatpush1.msra.mxu0 0.0
    %1320 = vmatprep.subr.mxu0 0.0
    %1321 = vmatpush1.msra.mxu0 0.0
    %1322 = vmatprep.subr.mxu0 0.0
    %1323 = vmatpush1.msra.mxu0 0.0
    %1324 = vmatprep.subr.mxu0 0.0
    %1325 = vmatpush1.msra.mxu0 0.0
    %1326 = vmatprep.subr.mxu0 0.0
    %1327 = vmatpush1.msra.mxu0 0.0
    %1328 = vmatprep.subr.mxu0 0.0
    %1329 = vmatpush1.msra.mxu0 0.0
    %1330 = vmatprep.subr.mxu0 0.0
    %1331 = vmatpush1.msra.mxu0 0.0
    %1332 = vmatprep.subr.mxu0 0.0
    %1333 = vmatpush1.msra.mxu0 0.0
    %1334 = vmatprep.subr.mxu0 0.0
    %1335 = vmatpush1.msra.mxu0 0.0
    %1336 = vmatprep.subr.mxu0 0.0
    %1337 = vmatpush1.msra.mxu0 0.0
    %1338 = vmatprep.subr.mxu0 0.0
    %1339 = vmatpush1.msra.mxu0 0.0
    %1340 = vmatprep.subr.mxu0 0.0
    %1341 = vmatpush1.msra.mxu0 0.0
    %1342 = vmatprep.subr.mxu0 0.0
    %1343 = vmatpush1.msra.mxu0 0.0
    %1344 = vmatprep.subr.mxu0 0.0
    %1345 = vmatpush1.msra.mxu0 0.0
    %1346 = vmatprep.subr.mxu0 0.0
    %1347 = vmatpush1.msra.mxu0 0.0
    %1348 = vmatprep.subr.mxu0 0.0
    %1349 = vmatpush1.msra.mxu0 0.0
    %1350 = vmatprep.subr.mxu0 0.0
    %1351 = vmatpush1.msra.mxu0 0.0
    %1352 = vmatprep.subr.mxu0 0.0
    %1353 = vmatpush1.msra.mxu0 0.0
    %1354 = vmatprep.subr.mxu0 0.0
    %1355 = vmatpush1.msra.mxu0 0.0
    %1356 = vmatprep.subr.mxu0 0.0
    %1357 = vmatpush1.msra.mxu0 0.0
    %1358 = vmatprep.subr.mxu0 0.0
    %1359 = vmatpush1.msra.mxu0 0.0
    %1360 = vmatprep.subr.mxu0 0.0
    %1361 = vmatpush1.msra.mxu0 0.0
    %1362 = vmatprep.subr.mxu0 0.0
    %1363 = vmatpush1.msra.mxu0 0.0
    %1364 = vmatprep.mubr.f32.mxu0 0.0
    %1365 = vmatmul.mubr.f32.gmra.mrb[0].mxu0 %v1286
    %v1366 = vpop.f32.mrb[0].mxu0
    %v1367 = vadd.f32 0.0, %v1366
    %v1368 = vpop.f32.mrb[0].mxu0
    %1369 = vmatprep.mubr.f32.mxu0 0.0
    %1370 = vmatmul.mubr.f32.gmra.mrb[0].mxu0 %v1288
    %v1371 = vpop.f32.mrb[0].mxu0
    %v1372 = vadd.f32 0.0, %v1371
    %v1373 = vpop.f32.mrb[0].mxu0
    %1374 = vmatprep.mubr.f32.mxu0 0.0
    %1375 = vmatmul.mubr.f32.gmra.mrb[0].mxu0 %v1290
    %v1376 = vpop.f32.mrb[0].mxu0
    %v1377 = vadd.f32 0.0, %v1376
    %v1378 = vpop.f32.mrb[0].mxu0
    %1379 = vmatprep.mubr.f32.mxu0 0.0
    %1380 = vmatmul.mubr.f32.gmra.mrb[0].mxu0 %v1292
    %v1381 = vpop.f32.mrb[0].mxu0
    %v1382 = vadd.f32 0.0, %v1381
    %v1383 = vpop.f32.mrb[0].mxu0
    %1384 = vmatprep.mubr.f32.mxu0 0.0
    %1385 = vmatmul.mubr.f32.gmra.mrb[0].mxu0 %v1294
    %v1386 = vpop.f32.mrb[0].mxu0
    %v1387 = vadd.f32 0.0, %v1386
    %v1388 = vpop.f32.mrb[0].mxu0
    %1389 = vmatprep.mubr.f32.mxu0 0.0
    %1390 = vmatmul.mubr.f32.gmra.mrb[0].mxu0 %v1296
    %v1391 = vpop.f32.mrb[0].mxu0
    %v1392 = vadd.f32 0.0, %v1391
    %v1393 = vpop.f32.mrb[0].mxu0
    %1394 = vmatprep.mubr.f32.mxu0 0.0
    %1395 = vmatmul.mubr.f32.gmra.mrb[0].mxu0 %v1298
    %v1396 = vpop.f32.mrb[0].mxu0
    %v1397 = vadd.f32 0.0, %v1396
    %v1398 = vpop.f32.mrb[0].mxu0
    %1399 = vdwg.mxu0
    %v1400 = vadd.f32 %v1233, %v1367
    %v1401 = vadd.f32 %v1238, %v1372
    %v1402 = vadd.f32 %v1243, %v1377
    %v1403 = vadd.f32 %v1248, %v1382
    %v1404 = vadd.f32 %v1253, %v1387
    %v1405 = vadd.f32 %v1258, %v1392
    %v1406 = vadd.f32 %v1263, %v1397
    %s1407 = scalar_lea.vmem [#allocation10], 96
    %v1408 = vld [vmem:[%s1407] sm:$0xff]
    %v1409 = vld [vmem:[%s1407 + $0x8] sm:$0xff]
    %v1410 = vld [vmem:[%s1407 + $0x10] sm:$0xff]
    %v1411 = vld [vmem:[%s1407 + $0x18] sm:$0xff]
    %v1412 = vrot.slane %v997, 3
    %v1413 = vrot.slane %v998, 3
    %v1414 = vsel %vm689, %v1412, %v1413
    %v1415 = vrot.slane %v999, 3
    %v1416 = vsel %vm689, %v1413, %v1415
    %v1417 = vrot.slane %v1000, 3
    %v1418 = vsel %vm689, %v1415, %v1417
    %v1419 = vrot.slane %v1001, 3
    %v1420 = vsel %vm689, %v1417, %v1419
    %v1421 = vrot.slane %v1002, 3
    %v1422 = vsel %vm689, %v1419, %v1421
    %v1423 = vrot.slane %v1003, 3
    %v1424 = vsel %vm689, %v1421, %v1423
    %v1425 = vrot.slane %v1004, 3
    %v1426 = vsel %vm689, %v1423, %v1425
    %v1427 = vsel %vm1037, %v1414, 0
    %v1429 = vsel %vm1037, %v1416, 0
    %v1431 = vsel %vm1037, %v1418, 0
    %v1433 = vsel %vm1037, %v1420, 0
    %v1435 = vsel %vm1037, %v1422, 0
    %v1437 = vsel %vm1037, %v1424, 0
    %v1439 = vsel %vm1037, %v1426, 0
    %1441 = vmatprep.subr.mxu0 0.0
    %1442 = vmatpush1.msra.mxu0 %v1408
    %1443 = vmatprep.subr.mxu0 0.0
    %1444 = vmatpush1.msra.mxu0 %v1409
    %1445 = vmatprep.subr.mxu0 0.0
    %1446 = vmatpush1.msra.mxu0 %v1410
    %1447 = vmatprep.subr.mxu0 0.0
    %1448 = vmatpush1.msra.mxu0 %v1411
    %1449 = vmatprep.subr.mxu0 0.0
    %1450 = vmatpush1.msra.mxu0 0.0
    %1451 = vmatprep.subr.mxu0 0.0
    %1452 = vmatpush1.msra.mxu0 0.0
    %1453 = vmatprep.subr.mxu0 0.0
    %1454 = vmatpush1.msra.mxu0 0.0
    %1455 = vmatprep.subr.mxu0 0.0
    %1456 = vmatpush1.msra.mxu0 0.0
    %1457 = vmatprep.subr.mxu0 0.0
    %1458 = vmatpush1.msra.mxu0 0.0
    %1459 = vmatprep.subr.mxu0 0.0
    %1460 = vmatpush1.msra.mxu0 0.0
    %1461 = vmatprep.subr.mxu0 0.0
    %1462 = vmatpush1.msra.mxu0 0.0
    %1463 = vmatprep.subr.mxu0 0.0
    %1464 = vmatpush1.msra.mxu0 0.0
    %1465 = vmatprep.subr.mxu0 0.0
    %1466 = vmatpush1.msra.mxu0 0.0
    %1467 = vmatprep.subr.mxu0 0.0
    %1468 = vmatpush1.msra.mxu0 0.0
    %1469 = vmatprep.subr.mxu0 0.0
    %1470 = vmatpush1.msra.mxu0 0.0
    %1471 = vmatprep.subr.mxu0 0.0
    %1472 = vmatpush1.msra.mxu0 0.0
    %1473 = vmatprep.subr.mxu0 0.0
    %1474 = vmatpush1.msra.mxu0 0.0
    %1475 = vmatprep.subr.mxu0 0.0
    %1476 = vmatpush1.msra.mxu0 0.0
    %1477 = vmatprep.subr.mxu0 0.0
    %1478 = vmatpush1.msra.mxu0 0.0
    %1479 = vmatprep.subr.mxu0 0.0
    %1480 = vmatpush1.msra.mxu0 0.0
    %1481 = vmatprep.subr.mxu0 0.0
    %1482 = vmatpush1.msra.mxu0 0.0
    %1483 = vmatprep.subr.mxu0 0.0
    %1484 = vmatpush1.msra.mxu0 0.0
    %1485 = vmatprep.subr.mxu0 0.0
    %1486 = vmatpush1.msra.mxu0 0.0
    %1487 = vmatprep.subr.mxu0 0.0
    %1488 = vmatpush1.msra.mxu0 0.0
    %1489 = vmatprep.subr.mxu0 0.0
    %1490 = vmatpush1.msra.mxu0 0.0
    %1491 = vmatprep.subr.mxu0 0.0
    %1492 = vmatpush1.msra.mxu0 0.0
    %1493 = vmatprep.subr.mxu0 0.0
    %1494 = vmatpush1.msra.mxu0 0.0
    %1495 = vmatprep.subr.mxu0 0.0
    %1496 = vmatpush1.msra.mxu0 0.0
    %1497 = vmatprep.subr.mxu0 0.0
    %1498 = vmatpush1.msra.mxu0 0.0
    %1499 = vmatprep.subr.mxu0 0.0
    %1500 = vmatpush1.msra.mxu0 0.0
    %1501 = vmatprep.subr.mxu0 0.0
    %1502 = vmatpush1.msra.mxu0 0.0
    %1503 = vmatprep.subr.mxu0 0.0
    %1504 = vmatpush1.msra.mxu0 0.0
    %1505 = vmatprep.mubr.f32.mxu0 0.0
    %1506 = vmatmul.mubr.f32.gmra.mrb[0].mxu0 %v1427
    %v1507 = vpop.f32.mrb[0].mxu0
    %v1508 = vadd.f32 0.0, %v1507
    %v1509 = vpop.f32.mrb[0].mxu0
    %1510 = vmatprep.mubr.f32.mxu0 0.0
    %1511 = vmatmul.mubr.f32.gmra.mrb[0].mxu0 %v1429
    %v1512 = vpop.f32.mrb[0].mxu0
    %v1513 = vadd.f32 0.0, %v1512
    %v1514 = vpop.f32.mrb[0].mxu0
    %1515 = vmatprep.mubr.f32.mxu0 0.0
    %1516 = vmatmul.mubr.f32.gmra.mrb[0].mxu0 %v1431
    %v1517 = vpop.f32.mrb[0].mxu0
    %v1518 = vadd.f32 0.0, %v1517
    %v1519 = vpop.f32.mrb[0].mxu0
    %1520 = vmatprep.mubr.f32.mxu0 0.0
    %1521 = vmatmul.mubr.f32.gmra.mrb[0].mxu0 %v1433
    %v1522 = vpop.f32.mrb[0].mxu0
    %v1523 = vadd.f32 0.0, %v1522
    %v1524 = vpop.f32.mrb[0].mxu0
    %1525 = vmatprep.mubr.f32.mxu0 0.0
    %1526 = vmatmul.mubr.f32.gmra.mrb[0].mxu0 %v1435
    %v1527 = vpop.f32.mrb[0].mxu0
    %v1528 = vadd.f32 0.0, %v1527
    %v1529 = vpop.f32.mrb[0].mxu0
    %1530 = vmatprep.mubr.f32.mxu0 0.0
    %1531 = vmatmul.mubr.f32.gmra.mrb[0].mxu0 %v1437
    %v1532 = vpop.f32.mrb[0].mxu0
    %v1533 = vadd.f32 0.0, %v1532
    %v1534 = vpop.f32.mrb[0].mxu0
    %1535 = vmatprep.mubr.f32.mxu0 0.0
    %1536 = vmatmul.mubr.f32.gmra.mrb[0].mxu0 %v1439
    %v1537 = vpop.f32.mrb[0].mxu0
    %v1538 = vadd.f32 0.0, %v1537
    %v1539 = vpop.f32.mrb[0].mxu0
    %1540 = vdwg.mxu0
    %v1541 = vadd.f32 %v1400, %v1508
    %v1542 = vadd.f32 %v1401, %v1513
    %v1543 = vadd.f32 %v1402, %v1518
    %v1544 = vadd.f32 %v1403, %v1523
    %v1545 = vadd.f32 %v1404, %v1528
    %v1546 = vadd.f32 %v1405, %v1533
    %v1547 = vadd.f32 %v1406, %v1538
    %s1548 = scalar_lea.vmem [#allocation10], 128
    %v1549 = vld [vmem:[%s1548] sm:$0xff]
    %v1550 = vld [vmem:[%s1548 + $0x8] sm:$0xff]
    %v1551 = vld [vmem:[%s1548 + $0x10] sm:$0xff]
    %v1552 = vld [vmem:[%s1548 + $0x18] sm:$0xff]
    %v1553 = vrot.slane %v997, 4
    %v1554 = vrot.slane %v998, 4
    %v1555 = vsel %vm837, %v1553, %v1554
    %v1556 = vrot.slane %v999, 4
    %v1557 = vsel %vm837, %v1554, %v1556
    %v1558 = vrot.slane %v1000, 4
    %v1559 = vsel %vm837, %v1556, %v1558
    %v1560 = vrot.slane %v1001, 4
    %v1561 = vsel %vm837, %v1558, %v1560
    %v1562 = vrot.slane %v1002, 4
    %v1563 = vsel %vm837, %v1560, %v1562
    %v1564 = vrot.slane %v1003, 4
    %v1565 = vsel %vm837, %v1562, %v1564
    %v1566 = vrot.slane %v1004, 4
    %v1567 = vsel %vm837, %v1564, %v1566
    %v1568 = vsel %vm1037, %v1555, 0
    %v1570 = vsel %vm1037, %v1557, 0
    %v1572 = vsel %vm1037, %v1559, 0
    %v1574 = vsel %vm1037, %v1561, 0
    %v1576 = vsel %vm1037, %v1563, 0
    %v1578 = vsel %vm1037, %v1565, 0
    %v1580 = vsel %vm1037, %v1567, 0
    %1582 = vmatprep.subr.mxu0 0.0
    %1583 = vmatpush1.msra.mxu0 %v1549
    %1584 = vmatprep.subr.mxu0 0.0
    %1585 = vmatpush1.msra.mxu0 %v1550
    %1586 = vmatprep.subr.mxu0 0.0
    %1587 = vmatpush1.msra.mxu0 %v1551
    %1588 = vmatprep.subr.mxu0 0.0
    %1589 = vmatpush1.msra.mxu0 %v1552
    %1590 = vmatprep.subr.mxu0 0.0
    %1591 = vmatpush1.msra.mxu0 0.0
    %1592 = vmatprep.subr.mxu0 0.0
    %1593 = vmatpush1.msra.mxu0 0.0
    %1594 = vmatprep.subr.mxu0 0.0
    %1595 = vmatpush1.msra.mxu0 0.0
    %1596 = vmatprep.subr.mxu0 0.0
    %1597 = vmatpush1.msra.mxu0 0.0
    %1598 = vmatprep.subr.mxu0 0.0
    %1599 = vmatpush1.msra.mxu0 0.0
    %1600 = vmatprep.subr.mxu0 0.0
    %1601 = vmatpush1.msra.mxu0 0.0
    %1602 = vmatprep.subr.mxu0 0.0
    %1603 = vmatpush1.msra.mxu0 0.0
    %1604 = vmatprep.subr.mxu0 0.0
    %1605 = vmatpush1.msra.mxu0 0.0
    %1606 = vmatprep.subr.mxu0 0.0
    %1607 = vmatpush1.msra.mxu0 0.0
    %1608 = vmatprep.subr.mxu0 0.0
    %1609 = vmatpush1.msra.mxu0 0.0
    %1610 = vmatprep.subr.mxu0 0.0
    %1611 = vmatpush1.msra.mxu0 0.0
    %1612 = vmatprep.subr.mxu0 0.0
    %1613 = vmatpush1.msra.mxu0 0.0
    %1614 = vmatprep.subr.mxu0 0.0
    %1615 = vmatpush1.msra.mxu0 0.0
    %1616 = vmatprep.subr.mxu0 0.0
    %1617 = vmatpush1.msra.mxu0 0.0
    %1618 = vmatprep.subr.mxu0 0.0
    %1619 = vmatpush1.msra.mxu0 0.0
    %1620 = vmatprep.subr.mxu0 0.0
    %1621 = vmatpush1.msra.mxu0 0.0
    %1622 = vmatprep.subr.mxu0 0.0
    %1623 = vmatpush1.msra.mxu0 0.0
    %1624 = vmatprep.subr.mxu0 0.0
    %1625 = vmatpush1.msra.mxu0 0.0
    %1626 = vmatprep.subr.mxu0 0.0
    %1627 = vmatpush1.msra.mxu0 0.0
    %1628 = vmatprep.subr.mxu0 0.0
    %1629 = vmatpush1.msra.mxu0 0.0
    %1630 = vmatprep.subr.mxu0 0.0
    %1631 = vmatpush1.msra.mxu0 0.0
    %1632 = vmatprep.subr.mxu0 0.0
    %1633 = vmatpush1.msra.mxu0 0.0
    %1634 = vmatprep.subr.mxu0 0.0
    %1635 = vmatpush1.msra.mxu0 0.0
    %1636 = vmatprep.subr.mxu0 0.0
    %1637 = vmatpush1.msra.mxu0 0.0
    %1638 = vmatprep.subr.mxu0 0.0
    %1639 = vmatpush1.msra.mxu0 0.0
    %1640 = vmatprep.subr.mxu0 0.0
    %1641 = vmatpush1.msra.mxu0 0.0
    %1642 = vmatprep.subr.mxu0 0.0
    %1643 = vmatpush1.msra.mxu0 0.0
    %1644 = vmatprep.subr.mxu0 0.0
    %1645 = vmatpush1.msra.mxu0 0.0
    %1646 = vmatprep.mubr.f32.mxu0 0.0
    %1647 = vmatmul.mubr.f32.gmra.mrb[0].mxu0 %v1568
    %v1648 = vpop.f32.mrb[0].mxu0
    %v1649 = vadd.f32 0.0, %v1648
    %v1650 = vpop.f32.mrb[0].mxu0
    %1651 = vmatprep.mubr.f32.mxu0 0.0
    %1652 = vmatmul.mubr.f32.gmra.mrb[0].mxu0 %v1570
    %v1653 = vpop.f32.mrb[0].mxu0
    %v1654 = vadd.f32 0.0, %v1653
    %v1655 = vpop.f32.mrb[0].mxu0
    %1656 = vmatprep.mubr.f32.mxu0 0.0
    %1657 = vmatmul.mubr.f32.gmra.mrb[0].mxu0 %v1572
    %v1658 = vpop.f32.mrb[0].mxu0
    %v1659 = vadd.f32 0.0, %v1658
    %v1660 = vpop.f32.mrb[0].mxu0
    %1661 = vmatprep.mubr.f32.mxu0 0.0
    %1662 = vmatmul.mubr.f32.gmra.mrb[0].mxu0 %v1574
    %v1663 = vpop.f32.mrb[0].mxu0
    %v1664 = vadd.f32 0.0, %v1663
    %v1665 = vpop.f32.mrb[0].mxu0
    %1666 = vmatprep.mubr.f32.mxu0 0.0
    %1667 = vmatmul.mubr.f32.gmra.mrb[0].mxu0 %v1576
    %v1668 = vpop.f32.mrb[0].mxu0
    %v1669 = vadd.f32 0.0, %v1668
    %v1670 = vpop.f32.mrb[0].mxu0
    %1671 = vmatprep.mubr.f32.mxu0 0.0
    %1672 = vmatmul.mubr.f32.gmra.mrb[0].mxu0 %v1578
    %v1673 = vpop.f32.mrb[0].mxu0
    %v1674 = vadd.f32 0.0, %v1673
    %v1675 = vpop.f32.mrb[0].mxu0
    %1676 = vmatprep.mubr.f32.mxu0 0.0
    %1677 = vmatmul.mubr.f32.gmra.mrb[0].mxu0 %v1580
    %v1678 = vpop.f32.mrb[0].mxu0
    %v1679 = vadd.f32 0.0, %v1678
    %v1680 = vpop.f32.mrb[0].mxu0
    %1681 = vdwg.mxu0
    %v1682 = vadd.f32 %v1541, %v1649
    %v1683 = vadd.f32 %v1542, %v1654
    %v1684 = vadd.f32 %v1543, %v1659
    %v1685 = vadd.f32 %v1544, %v1664
    %v1686 = vadd.f32 %v1545, %v1669
    %v1687 = vadd.f32 %v1546, %v1674
    %v1688 = vadd.f32 %v1547, %v1679
    %v1689 = vld [vmem:[#allocation12] sm:$0x1]
    %v1691 = vlaneseq
    %v1692 = vshrl.u32 %v1691, 7
    %v1693 = vsub.s32 0, %v1692
    %v1694 = vrot.slane %v1689, %v1693
    %v1696 = vadd.f32 %v1682, %v1694
    %v1697 = vadd.f32 %v1683, %v1694
    %v1698 = vadd.f32 %v1684, %v1694
    %v1699 = vadd.f32 %v1685, %v1694
    %v1700 = vadd.f32 %v1686, %v1694
    %v1701 = vadd.f32 %v1687, %v1694
    %v1702 = vadd.f32 %v1688, %v1694
    %v1703 = vmax.f32 %v1696, 0.0
    %v1704 = vmax.f32 %v1697, 0.0
    %v1705 = vmax.f32 %v1698, 0.0
    %v1706 = vmax.f32 %v1699, 0.0
    %v1707 = vmax.f32 %v1700, 0.0
    %v1708 = vmax.f32 %v1701, 0.0
    %v1709 = vmax.f32 %v1702, 0.0
    %v1710 = vld [vmem:[#allocation13] sm:$0xff]
    %v1711 = vld [vmem:[#allocation13 + $0x8] sm:$0xff]
    %v1712 = vld [vmem:[#allocation13 + $0x10] sm:$0xff]
    %v1713 = vld [vmem:[#allocation13 + $0x18] sm:$0xff]
    %s1714 = scalar_lea.vmem [#allocation13], 32
    %v1715 = vld [vmem:[%s1714] sm:$0xff]
    %v1716 = vld [vmem:[%s1714 + $0x8] sm:$0xff]
    %v1717 = vld [vmem:[%s1714 + $0x10] sm:$0xff]
    %v1718 = vld [vmem:[%s1714 + $0x18] sm:$0xff]
    %v1726 = vrot.slane %v1703, 1
    %v1727 = vrot.slane %v1704, 1
    %v1728 = vsel %vm279, %v1726, %v1727
    %v1729 = vrot.slane %v1705, 1
    %v1730 = vsel %vm279, %v1727, %v1729
    %v1731 = vrot.slane %v1706, 1
    %v1732 = vsel %vm279, %v1729, %v1731
    %v1733 = vrot.slane %v1707, 1
    %v1734 = vsel %vm279, %v1731, %v1733
    %v1735 = vrot.slane %v1708, 1
    %v1736 = vsel %vm279, %v1733, %v1735
    %v1737 = vrot.slane %v1709, 1
    %v1738 = vsel %vm279, %v1735, %v1737
    %v1739 = vsel %vm1037, %v1728, 0
    %v1741 = vsel %vm1037, %v1730, 0
    %v1743 = vsel %vm1037, %v1732, 0
    %v1745 = vsel %vm1037, %v1734, 0
    %v1747 = vsel %vm1037, %v1736, 0
    %v1749 = vsel %vm1037, %v1738, 0
    %v1751 = vsel %vm1037, %v1737, 0
    %1753 = vmatprep.subr.mxu0 0.0
    %1754 = vmatpush1.msra.mxu0 %v1715
    %1755 = vmatprep.subr.mxu0 0.0
    %1756 = vmatpush1.msra.mxu0 %v1716
    %1757 = vmatprep.subr.mxu0 0.0
    %1758 = vmatpush1.msra.mxu0 %v1717
    %1759 = vmatprep.subr.mxu0 0.0
    %1760 = vmatpush1.msra.mxu0 %v1718
    %1761 = vmatprep.subr.mxu0 0.0
    %1762 = vmatpush1.msra.mxu0 0.0
    %1763 = vmatprep.subr.mxu0 0.0
    %1764 = vmatpush1.msra.mxu0 0.0
    %1765 = vmatprep.subr.mxu0 0.0
    %1766 = vmatpush1.msra.mxu0 0.0
    %1767 = vmatprep.subr.mxu0 0.0
    %1768 = vmatpush1.msra.mxu0 0.0
    %1769 = vmatprep.subr.mxu0 0.0
    %1770 = vmatpush1.msra.mxu0 0.0
    %1771 = vmatprep.subr.mxu0 0.0
    %1772 = vmatpush1.msra.mxu0 0.0
    %1773 = vmatprep.subr.mxu0 0.0
    %1774 = vmatpush1.msra.mxu0 0.0
    %1775 = vmatprep.subr.mxu0 0.0
    %1776 = vmatpush1.msra.mxu0 0.0
    %1777 = vmatprep.subr.mxu0 0.0
    %1778 = vmatpush1.msra.mxu0 0.0
    %1779 = vmatprep.subr.mxu0 0.0
    %1780 = vmatpush1.msra.mxu0 0.0
    %1781 = vmatprep.subr.mxu0 0.0
    %1782 = vmatpush1.msra.mxu0 0.0
    %1783 = vmatprep.subr.mxu0 0.0
    %1784 = vmatpush1.msra.mxu0 0.0
    %1785 = vmatprep.subr.mxu0 0.0
    %1786 = vmatpush1.msra.mxu0 0.0
    %1787 = vmatprep.subr.mxu0 0.0
    %1788 = vmatpush1.msra.mxu0 0.0
    %1789 = vmatprep.subr.mxu0 0.0
    %1790 = vmatpush1.msra.mxu0 0.0
    %1791 = vmatprep.subr.mxu0 0.0
    %1792 = vmatpush1.msra.mxu0 0.0
    %1793 = vmatprep.subr.mxu0 0.0
    %1794 = vmatpush1.msra.mxu0 0.0
    %1795 = vmatprep.subr.mxu0 0.0
    %1796 = vmatpush1.msra.mxu0 0.0
    %1797 = vmatprep.subr.mxu0 0.0
    %1798 = vmatpush1.msra.mxu0 0.0
    %1799 = vmatprep.subr.mxu0 0.0
    %1800 = vmatpush1.msra.mxu0 0.0
    %1801 = vmatprep.subr.mxu0 0.0
    %1802 = vmatpush1.msra.mxu0 0.0
    %1803 = vmatprep.subr.mxu0 0.0
    %1804 = vmatpush1.msra.mxu0 0.0
    %1805 = vmatprep.subr.mxu0 0.0
    %1806 = vmatpush1.msra.mxu0 0.0
    %1807 = vmatprep.subr.mxu0 0.0
    %1808 = vmatpush1.msra.mxu0 0.0
    %1809 = vmatprep.subr.mxu0 0.0
    %1810 = vmatpush1.msra.mxu0 0.0
    %1811 = vmatprep.subr.mxu0 0.0
    %1812 = vmatpush1.msra.mxu0 0.0
    %1813 = vmatprep.subr.mxu0 0.0
    %1814 = vmatpush1.msra.mxu0 0.0
    %1815 = vmatprep.subr.mxu0 0.0
    %1816 = vmatpush1.msra.mxu0 0.0
    %1817 = vmatprep.mubr.f32.mxu0 0.0
    %1818 = vmatmul.mubr.f32.gmra.mrb[0].mxu0 %v1739
    %v1819 = vpop.f32.mrb[0].mxu0
    %v1820 = vadd.f32 0.0, %v1819
    %v1821 = vpop.f32.mrb[0].mxu0
    %1822 = vmatprep.mubr.f32.mxu0 0.0
    %1823 = vmatmul.mubr.f32.gmra.mrb[0].mxu0 %v1741
    %v1824 = vpop.f32.mrb[0].mxu0
    %v1825 = vadd.f32 0.0, %v1824
    %v1826 = vpop.f32.mrb[0].mxu0
    %1827 = vmatprep.mubr.f32.mxu0 0.0
    %1828 = vmatmul.mubr.f32.gmra.mrb[0].mxu0 %v1743
    %v1829 = vpop.f32.mrb[0].mxu0
    %v1830 = vadd.f32 0.0, %v1829
    %v1831 = vpop.f32.mrb[0].mxu0
    %1832 = vmatprep.mubr.f32.mxu0 0.0
    %1833 = vmatmul.mubr.f32.gmra.mrb[0].mxu0 %v1745
    %v1834 = vpop.f32.mrb[0].mxu0
    %v1835 = vadd.f32 0.0, %v1834
    %v1836 = vpop.f32.mrb[0].mxu0
    %1837 = vmatprep.mubr.f32.mxu0 0.0
    %1838 = vmatmul.mubr.f32.gmra.mrb[0].mxu0 %v1747
    %v1839 = vpop.f32.mrb[0].mxu0
    %v1840 = vadd.f32 0.0, %v1839
    %v1841 = vpop.f32.mrb[0].mxu0
    %1842 = vmatprep.mubr.f32.mxu0 0.0
    %1843 = vmatmul.mubr.f32.gmra.mrb[0].mxu0 %v1749
    %v1844 = vpop.f32.mrb[0].mxu0
    %v1845 = vadd.f32 0.0, %v1844
    %v1846 = vpop.f32.mrb[0].mxu0
    %1847 = vmatprep.mubr.f32.mxu0 0.0
    %1848 = vmatmul.mubr.f32.gmra.mrb[0].mxu0 %v1751
    %v1849 = vpop.f32.mrb[0].mxu0
    %v1850 = vadd.f32 0.0, %v1849
    %v1851 = vpop.f32.mrb[0].mxu0
    %1852 = vdwg.mxu0
    %v1853 = vsel %vm1037, %v1703, 0
    %v1855 = vsel %vm1037, %v1704, 0
    %v1857 = vsel %vm1037, %v1705, 0
    %v1859 = vsel %vm1037, %v1706, 0
    %v1861 = vsel %vm1037, %v1707, 0
    %v1863 = vsel %vm1037, %v1708, 0
    %v1865 = vsel %vm1037, %v1709, 0
    %1867 = vmatprep.subr.mxu0 0.0
    %1868 = vmatpush1.msra.mxu0 %v1710
    %1869 = vmatprep.subr.mxu0 0.0
    %1870 = vmatpush1.msra.mxu0 %v1711
    %1871 = vmatprep.subr.mxu0 0.0
    %1872 = vmatpush1.msra.mxu0 %v1712
    %1873 = vmatprep.subr.mxu0 0.0
    %1874 = vmatpush1.msra.mxu0 %v1713
    %1875 = vmatprep.subr.mxu0 0.0
    %1876 = vmatpush1.msra.mxu0 0.0
    %1877 = vmatprep.subr.mxu0 0.0
    %1878 = vmatpush1.msra.mxu0 0.0
    %1879 = vmatprep.subr.mxu0 0.0
    %1880 = vmatpush1.msra.mxu0 0.0
    %1881 = vmatprep.subr.mxu0 0.0
    %1882 = vmatpush1.msra.mxu0 0.0
    %1883 = vmatprep.subr.mxu0 0.0
    %1884 = vmatpush1.msra.mxu0 0.0
    %1885 = vmatprep.subr.mxu0 0.0
    %1886 = vmatpush1.msra.mxu0 0.0
    %1887 = vmatprep.subr.mxu0 0.0
    %1888 = vmatpush1.msra.mxu0 0.0
    %1889 = vmatprep.subr.mxu0 0.0
    %1890 = vmatpush1.msra.mxu0 0.0
    %1891 = vmatprep.subr.mxu0 0.0
    %1892 = vmatpush1.msra.mxu0 0.0
    %1893 = vmatprep.subr.mxu0 0.0
    %1894 = vmatpush1.msra.mxu0 0.0
    %1895 = vmatprep.subr.mxu0 0.0
    %1896 = vmatpush1.msra.mxu0 0.0
    %1897 = vmatprep.subr.mxu0 0.0
    %1898 = vmatpush1.msra.mxu0 0.0
    %1899 = vmatprep.subr.mxu0 0.0
    %1900 = vmatpush1.msra.mxu0 0.0
    %1901 = vmatprep.subr.mxu0 0.0
    %1902 = vmatpush1.msra.mxu0 0.0
    %1903 = vmatprep.subr.mxu0 0.0
    %1904 = vmatpush1.msra.mxu0 0.0
    %1905 = vmatprep.subr.mxu0 0.0
    %1906 = vmatpush1.msra.mxu0 0.0
    %1907 = vmatprep.subr.mxu0 0.0
    %1908 = vmatpush1.msra.mxu0 0.0
    %1909 = vmatprep.subr.mxu0 0.0
    %1910 = vmatpush1.msra.mxu0 0.0
    %1911 = vmatprep.subr.mxu0 0.0
    %1912 = vmatpush1.msra.mxu0 0.0
    %1913 = vmatprep.subr.mxu0 0.0
    %1914 = vmatpush1.msra.mxu0 0.0
    %1915 = vmatprep.subr.mxu0 0.0
    %1916 = vmatpush1.msra.mxu0 0.0
    %1917 = vmatprep.subr.mxu0 0.0
    %1918 = vmatpush1.msra.mxu0 0.0
    %1919 = vmatprep.subr.mxu0 0.0
    %1920 = vmatpush1.msra.mxu0 0.0
    %1921 = vmatprep.subr.mxu0 0.0
    %1922 = vmatpush1.msra.mxu0 0.0
    %1923 = vmatprep.subr.mxu0 0.0
    %1924 = vmatpush1.msra.mxu0 0.0
    %1925 = vmatprep.subr.mxu0 0.0
    %1926 = vmatpush1.msra.mxu0 0.0
    %1927 = vmatprep.subr.mxu0 0.0
    %1928 = vmatpush1.msra.mxu0 0.0
    %1929 = vmatprep.subr.mxu0 0.0
    %1930 = vmatpush1.msra.mxu0 0.0
    %1931 = vmatprep.mubr.f32.mxu0 0.0
    %1932 = vmatmul.mubr.f32.gmra.mrb[0].mxu0 %v1853
    %v1933 = vpop.f32.mrb[0].mxu0
    %v1934 = vadd.f32 %v1820, %v1933
    %v1935 = vpop.f32.mrb[0].mxu0
    %1936 = vmatprep.mubr.f32.mxu0 0.0
    %1937 = vmatmul.mubr.f32.gmra.mrb[0].mxu0 %v1855
    %v1938 = vpop.f32.mrb[0].mxu0
    %v1939 = vadd.f32 %v1825, %v1938
    %v1940 = vpop.f32.mrb[0].mxu0
    %1941 = vmatprep.mubr.f32.mxu0 0.0
    %1942 = vmatmul.mubr.f32.gmra.mrb[0].mxu0 %v1857
    %v1943 = vpop.f32.mrb[0].mxu0
    %v1944 = vadd.f32 %v1830, %v1943
    %v1945 = vpop.f32.mrb[0].mxu0
    %1946 = vmatprep.mubr.f32.mxu0 0.0
    %1947 = vmatmul.mubr.f32.gmra.mrb[0].mxu0 %v1859
    %v1948 = vpop.f32.mrb[0].mxu0
    %v1949 = vadd.f32 %v1835, %v1948
    %v1950 = vpop.f32.mrb[0].mxu0
    %1951 = vmatprep.mubr.f32.mxu0 0.0
    %1952 = vmatmul.mubr.f32.gmra.mrb[0].mxu0 %v1861
    %v1953 = vpop.f32.mrb[0].mxu0
    %v1954 = vadd.f32 %v1840, %v1953
    %v1955 = vpop.f32.mrb[0].mxu0
    %1956 = vmatprep.mubr.f32.mxu0 0.0
    %1957 = vmatmul.mubr.f32.gmra.mrb[0].mxu0 %v1863
    %v1958 = vpop.f32.mrb[0].mxu0
    %v1959 = vadd.f32 %v1845, %v1958
    %v1960 = vpop.f32.mrb[0].mxu0
    %1961 = vmatprep.mubr.f32.mxu0 0.0
    %1962 = vmatmul.mubr.f32.gmra.mrb[0].mxu0 %v1865
    %v1963 = vpop.f32.mrb[0].mxu0
    %v1964 = vadd.f32 %v1850, %v1963
    %v1965 = vpop.f32.mrb[0].mxu0
    %1966 = vdwg.mxu0
    %s1967 = scalar_lea.vmem [#allocation13], 64
    %v1968 = vld [vmem:[%s1967] sm:$0xff]
    %v1969 = vld [vmem:[%s1967 + $0x8] sm:$0xff]
    %v1970 = vld [vmem:[%s1967 + $0x10] sm:$0xff]
    %v1971 = vld [vmem:[%s1967 + $0x18] sm:$0xff]
    %v1972 = vrot.slane %v1703, 2
    %v1973 = vrot.slane %v1704, 2
    %v1974 = vsel %vm541, %v1972, %v1973
    %v1975 = vrot.slane %v1705, 2
    %v1976 = vsel %vm541, %v1973, %v1975
    %v1977 = vrot.slane %v1706, 2
    %v1978 = vsel %vm541, %v1975, %v1977
    %v1979 = vrot.slane %v1707, 2
    %v1980 = vsel %vm541, %v1977, %v1979
    %v1981 = vrot.slane %v1708, 2
    %v1982 = vsel %vm541, %v1979, %v1981
    %v1983 = vrot.slane %v1709, 2
    %v1984 = vsel %vm541, %v1981, %v1983
    %v1985 = vsel %vm1037, %v1974, 0
    %v1987 = vsel %vm1037, %v1976, 0
    %v1989 = vsel %vm1037, %v1978, 0
    %v1991 = vsel %vm1037, %v1980, 0
    %v1993 = vsel %vm1037, %v1982, 0
    %v1995 = vsel %vm1037, %v1984, 0
    %v1997 = vsel %vm1037, %v1983, 0
    %1999 = vmatprep.subr.mxu0 0.0
    %2000 = vmatpush1.msra.mxu0 %v1968
    %2001 = vmatprep.subr.mxu0 0.0
    %2002 = vmatpush1.msra.mxu0 %v1969
    %2003 = vmatprep.subr.mxu0 0.0
    %2004 = vmatpush1.msra.mxu0 %v1970
    %2005 = vmatprep.subr.mxu0 0.0
    %2006 = vmatpush1.msra.mxu0 %v1971
    %2007 = vmatprep.subr.mxu0 0.0
    %2008 = vmatpush1.msra.mxu0 0.0
    %2009 = vmatprep.subr.mxu0 0.0
    %2010 = vmatpush1.msra.mxu0 0.0
    %2011 = vmatprep.subr.mxu0 0.0
    %2012 = vmatpush1.msra.mxu0 0.0
    %2013 = vmatprep.subr.mxu0 0.0
    %2014 = vmatpush1.msra.mxu0 0.0
    %2015 = vmatprep.subr.mxu0 0.0
    %2016 = vmatpush1.msra.mxu0 0.0
    %2017 = vmatprep.subr.mxu0 0.0
    %2018 = vmatpush1.msra.mxu0 0.0
    %2019 = vmatprep.subr.mxu0 0.0
    %2020 = vmatpush1.msra.mxu0 0.0
    %2021 = vmatprep.subr.mxu0 0.0
    %2022 = vmatpush1.msra.mxu0 0.0
    %2023 = vmatprep.subr.mxu0 0.0
    %2024 = vmatpush1.msra.mxu0 0.0
    %2025 = vmatprep.subr.mxu0 0.0
    %2026 = vmatpush1.msra.mxu0 0.0
    %2027 = vmatprep.subr.mxu0 0.0
    %2028 = vmatpush1.msra.mxu0 0.0
    %2029 = vmatprep.subr.mxu0 0.0
    %2030 = vmatpush1.msra.mxu0 0.0
    %2031 = vmatprep.subr.mxu0 0.0
    %2032 = vmatpush1.msra.mxu0 0.0
    %2033 = vmatprep.subr.mxu0 0.0
    %2034 = vmatpush1.msra.mxu0 0.0
    %2035 = vmatprep.subr.mxu0 0.0
    %2036 = vmatpush1.msra.mxu0 0.0
    %2037 = vmatprep.subr.mxu0 0.0
    %2038 = vmatpush1.msra.mxu0 0.0
    %2039 = vmatprep.subr.mxu0 0.0
    %2040 = vmatpush1.msra.mxu0 0.0
    %2041 = vmatprep.subr.mxu0 0.0
    %2042 = vmatpush1.msra.mxu0 0.0
    %2043 = vmatprep.subr.mxu0 0.0
    %2044 = vmatpush1.msra.mxu0 0.0
    %2045 = vmatprep.subr.mxu0 0.0
    %2046 = vmatpush1.msra.mxu0 0.0
    %2047 = vmatprep.subr.mxu0 0.0
    %2048 = vmatpush1.msra.mxu0 0.0
    %2049 = vmatprep.subr.mxu0 0.0
    %2050 = vmatpush1.msra.mxu0 0.0
    %2051 = vmatprep.subr.mxu0 0.0
    %2052 = vmatpush1.msra.mxu0 0.0
    %2053 = vmatprep.subr.mxu0 0.0
    %2054 = vmatpush1.msra.mxu0 0.0
    %2055 = vmatprep.subr.mxu0 0.0
    %2056 = vmatpush1.msra.mxu0 0.0
    %2057 = vmatprep.subr.mxu0 0.0
    %2058 = vmatpush1.msra.mxu0 0.0
    %2059 = vmatprep.subr.mxu0 0.0
    %2060 = vmatpush1.msra.mxu0 0.0
    %2061 = vmatprep.subr.mxu0 0.0
    %2062 = vmatpush1.msra.mxu0 0.0
    %2063 = vmatprep.mubr.f32.mxu0 0.0
    %2064 = vmatmul.mubr.f32.gmra.mrb[0].mxu0 %v1985
    %v2065 = vpop.f32.mrb[0].mxu0
    %v2066 = vadd.f32 0.0, %v2065
    %v2067 = vpop.f32.mrb[0].mxu0
    %2068 = vmatprep.mubr.f32.mxu0 0.0
    %2069 = vmatmul.mubr.f32.gmra.mrb[0].mxu0 %v1987
    %v2070 = vpop.f32.mrb[0].mxu0
    %v2071 = vadd.f32 0.0, %v2070
    %v2072 = vpop.f32.mrb[0].mxu0
    %2073 = vmatprep.mubr.f32.mxu0 0.0
    %2074 = vmatmul.mubr.f32.gmra.mrb[0].mxu0 %v1989
    %v2075 = vpop.f32.mrb[0].mxu0
    %v2076 = vadd.f32 0.0, %v2075
    %v2077 = vpop.f32.mrb[0].mxu0
    %2078 = vmatprep.mubr.f32.mxu0 0.0
    %2079 = vmatmul.mubr.f32.gmra.mrb[0].mxu0 %v1991
    %v2080 = vpop.f32.mrb[0].mxu0
    %v2081 = vadd.f32 0.0, %v2080
    %v2082 = vpop.f32.mrb[0].mxu0
    %2083 = vmatprep.mubr.f32.mxu0 0.0
    %2084 = vmatmul.mubr.f32.gmra.mrb[0].mxu0 %v1993
    %v2085 = vpop.f32.mrb[0].mxu0
    %v2086 = vadd.f32 0.0, %v2085
    %v2087 = vpop.f32.mrb[0].mxu0
    %2088 = vmatprep.mubr.f32.mxu0 0.0
    %2089 = vmatmul.mubr.f32.gmra.mrb[0].mxu0 %v1995
    %v2090 = vpop.f32.mrb[0].mxu0
    %v2091 = vadd.f32 0.0, %v2090
    %v2092 = vpop.f32.mrb[0].mxu0
    %2093 = vmatprep.mubr.f32.mxu0 0.0
    %2094 = vmatmul.mubr.f32.gmra.mrb[0].mxu0 %v1997
    %v2095 = vpop.f32.mrb[0].mxu0
    %v2096 = vadd.f32 0.0, %v2095
    %v2097 = vpop.f32.mrb[0].mxu0
    %2098 = vdwg.mxu0
    %v2099 = vadd.f32 %v1934, %v2066
    %v2100 = vadd.f32 %v1939, %v2071
    %v2101 = vadd.f32 %v1944, %v2076
    %v2102 = vadd.f32 %v1949, %v2081
    %v2103 = vadd.f32 %v1954, %v2086
    %v2104 = vadd.f32 %v1959, %v2091
    %v2105 = vadd.f32 %v1964, %v2096
    %s2106 = scalar_lea.vmem [#allocation13], 96
    %v2107 = vld [vmem:[%s2106] sm:$0xff]
    %v2108 = vld [vmem:[%s2106 + $0x8] sm:$0xff]
    %v2109 = vld [vmem:[%s2106 + $0x10] sm:$0xff]
    %v2110 = vld [vmem:[%s2106 + $0x18] sm:$0xff]
    %v2111 = vrot.slane %v1703, 3
    %v2112 = vrot.slane %v1704, 3
    %v2113 = vsel %vm689, %v2111, %v2112
    %v2114 = vrot.slane %v1705, 3
    %v2115 = vsel %vm689, %v2112, %v2114
    %v2116 = vrot.slane %v1706, 3
    %v2117 = vsel %vm689, %v2114, %v2116
    %v2118 = vrot.slane %v1707, 3
    %v2119 = vsel %vm689, %v2116, %v2118
    %v2120 = vrot.slane %v1708, 3
    %v2121 = vsel %vm689, %v2118, %v2120
    %v2122 = vrot.slane %v1709, 3
    %v2123 = vsel %vm689, %v2120, %v2122
    %v2124 = vsel %vm1037, %v2113, 0
    %v2126 = vsel %vm1037, %v2115, 0
    %v2128 = vsel %vm1037, %v2117, 0
    %v2130 = vsel %vm1037, %v2119, 0
    %v2132 = vsel %vm1037, %v2121, 0
    %v2134 = vsel %vm1037, %v2123, 0
    %v2136 = vsel %vm1037, %v2122, 0
    %2138 = vmatprep.subr.mxu0 0.0
    %2139 = vmatpush1.msra.mxu0 %v2107
    %2140 = vmatprep.subr.mxu0 0.0
    %2141 = vmatpush1.msra.mxu0 %v2108
    %2142 = vmatprep.subr.mxu0 0.0
    %2143 = vmatpush1.msra.mxu0 %v2109
    %2144 = vmatprep.subr.mxu0 0.0
    %2145 = vmatpush1.msra.mxu0 %v2110
    %2146 = vmatprep.subr.mxu0 0.0
    %2147 = vmatpush1.msra.mxu0 0.0
    %2148 = vmatprep.subr.mxu0 0.0
    %2149 = vmatpush1.msra.mxu0 0.0
    %2150 = vmatprep.subr.mxu0 0.0
    %2151 = vmatpush1.msra.mxu0 0.0
    %2152 = vmatprep.subr.mxu0 0.0
    %2153 = vmatpush1.msra.mxu0 0.0
    %2154 = vmatprep.subr.mxu0 0.0
    %2155 = vmatpush1.msra.mxu0 0.0
    %2156 = vmatprep.subr.mxu0 0.0
    %2157 = vmatpush1.msra.mxu0 0.0
    %2158 = vmatprep.subr.mxu0 0.0
    %2159 = vmatpush1.msra.mxu0 0.0
    %2160 = vmatprep.subr.mxu0 0.0
    %2161 = vmatpush1.msra.mxu0 0.0
    %2162 = vmatprep.subr.mxu0 0.0
    %2163 = vmatpush1.msra.mxu0 0.0
    %2164 = vmatprep.subr.mxu0 0.0
    %2165 = vmatpush1.msra.mxu0 0.0
    %2166 = vmatprep.subr.mxu0 0.0
    %2167 = vmatpush1.msra.mxu0 0.0
    %2168 = vmatprep.subr.mxu0 0.0
    %2169 = vmatpush1.msra.mxu0 0.0
    %2170 = vmatprep.subr.mxu0 0.0
    %2171 = vmatpush1.msra.mxu0 0.0
    %2172 = vmatprep.subr.mxu0 0.0
    %2173 = vmatpush1.msra.mxu0 0.0
    %2174 = vmatprep.subr.mxu0 0.0
    %2175 = vmatpush1.msra.mxu0 0.0
    %2176 = vmatprep.subr.mxu0 0.0
    %2177 = vmatpush1.msra.mxu0 0.0
    %2178 = vmatprep.subr.mxu0 0.0
    %2179 = vmatpush1.msra.mxu0 0.0
    %2180 = vmatprep.subr.mxu0 0.0
    %2181 = vmatpush1.msra.mxu0 0.0
    %2182 = vmatprep.subr.mxu0 0.0
    %2183 = vmatpush1.msra.mxu0 0.0
    %2184 = vmatprep.subr.mxu0 0.0
    %2185 = vmatpush1.msra.mxu0 0.0
    %2186 = vmatprep.subr.mxu0 0.0
    %2187 = vmatpush1.msra.mxu0 0.0
    %2188 = vmatprep.subr.mxu0 0.0
    %2189 = vmatpush1.msra.mxu0 0.0
    %2190 = vmatprep.subr.mxu0 0.0
    %2191 = vmatpush1.msra.mxu0 0.0
    %2192 = vmatprep.subr.mxu0 0.0
    %2193 = vmatpush1.msra.mxu0 0.0
    %2194 = vmatprep.subr.mxu0 0.0
    %2195 = vmatpush1.msra.mxu0 0.0
    %2196 = vmatprep.subr.mxu0 0.0
    %2197 = vmatpush1.msra.mxu0 0.0
    %2198 = vmatprep.subr.mxu0 0.0
    %2199 = vmatpush1.msra.mxu0 0.0
    %2200 = vmatprep.subr.mxu0 0.0
    %2201 = vmatpush1.msra.mxu0 0.0
    %2202 = vmatprep.mubr.f32.mxu0 0.0
    %2203 = vmatmul.mubr.f32.gmra.mrb[0].mxu0 %v2124
    %v2204 = vpop.f32.mrb[0].mxu0
    %v2205 = vadd.f32 0.0, %v2204
    %v2206 = vpop.f32.mrb[0].mxu0
    %2207 = vmatprep.mubr.f32.mxu0 0.0
    %2208 = vmatmul.mubr.f32.gmra.mrb[0].mxu0 %v2126
    %v2209 = vpop.f32.mrb[0].mxu0
    %v2210 = vadd.f32 0.0, %v2209
    %v2211 = vpop.f32.mrb[0].mxu0
    %2212 = vmatprep.mubr.f32.mxu0 0.0
    %2213 = vmatmul.mubr.f32.gmra.mrb[0].mxu0 %v2128
    %v2214 = vpop.f32.mrb[0].mxu0
    %v2215 = vadd.f32 0.0, %v2214
    %v2216 = vpop.f32.mrb[0].mxu0
    %2217 = vmatprep.mubr.f32.mxu0 0.0
    %2218 = vmatmul.mubr.f32.gmra.mrb[0].mxu0 %v2130
    %v2219 = vpop.f32.mrb[0].mxu0
    %v2220 = vadd.f32 0.0, %v2219
    %v2221 = vpop.f32.mrb[0].mxu0
    %2222 = vmatprep.mubr.f32.mxu0 0.0
    %2223 = vmatmul.mubr.f32.gmra.mrb[0].mxu0 %v2132
    %v2224 = vpop.f32.mrb[0].mxu0
    %v2225 = vadd.f32 0.0, %v2224
    %v2226 = vpop.f32.mrb[0].mxu0
    %2227 = vmatprep.mubr.f32.mxu0 0.0
    %2228 = vmatmul.mubr.f32.gmra.mrb[0].mxu0 %v2134
    %v2229 = vpop.f32.mrb[0].mxu0
    %v2230 = vadd.f32 0.0, %v2229
    %v2231 = vpop.f32.mrb[0].mxu0
    %2232 = vmatprep.mubr.f32.mxu0 0.0
    %2233 = vmatmul.mubr.f32.gmra.mrb[0].mxu0 %v2136
    %v2234 = vpop.f32.mrb[0].mxu0
    %v2235 = vadd.f32 0.0, %v2234
    %v2236 = vpop.f32.mrb[0].mxu0
    %2237 = vdwg.mxu0
    %v2238 = vadd.f32 %v2099, %v2205
    %v2239 = vadd.f32 %v2100, %v2210
    %v2240 = vadd.f32 %v2101, %v2215
    %v2241 = vadd.f32 %v2102, %v2220
    %v2242 = vadd.f32 %v2103, %v2225
    %v2243 = vadd.f32 %v2104, %v2230
    %v2244 = vadd.f32 %v2105, %v2235
    %s2245 = scalar_lea.vmem [#allocation13], 128
    %v2246 = vld [vmem:[%s2245] sm:$0xff]
    %v2247 = vld [vmem:[%s2245 + $0x8] sm:$0xff]
    %v2248 = vld [vmem:[%s2245 + $0x10] sm:$0xff]
    %v2249 = vld [vmem:[%s2245 + $0x18] sm:$0xff]
    %v2250 = vrot.slane %v1703, 4
    %v2251 = vrot.slane %v1704, 4
    %v2252 = vsel %vm837, %v2250, %v2251
    %v2253 = vrot.slane %v1705, 4
    %v2254 = vsel %vm837, %v2251, %v2253
    %v2255 = vrot.slane %v1706, 4
    %v2256 = vsel %vm837, %v2253, %v2255
    %v2257 = vrot.slane %v1707, 4
    %v2258 = vsel %vm837, %v2255, %v2257
    %v2259 = vrot.slane %v1708, 4
    %v2260 = vsel %vm837, %v2257, %v2259
    %v2261 = vrot.slane %v1709, 4
    %v2262 = vsel %vm837, %v2259, %v2261
    %v2263 = vsel %vm1037, %v2252, 0
    %v2265 = vsel %vm1037, %v2254, 0
    %v2267 = vsel %vm1037, %v2256, 0
    %v2269 = vsel %vm1037, %v2258, 0
    %v2271 = vsel %vm1037, %v2260, 0
    %v2273 = vsel %vm1037, %v2262, 0
    %v2275 = vsel %vm1037, %v2261, 0
    %2277 = vmatprep.subr.mxu0 0.0
    %2278 = vmatpush1.msra.mxu0 %v2246
    %2279 = vmatprep.subr.mxu0 0.0
    %2280 = vmatpush1.msra.mxu0 %v2247
    %2281 = vmatprep.subr.mxu0 0.0
    %2282 = vmatpush1.msra.mxu0 %v2248
    %2283 = vmatprep.subr.mxu0 0.0
    %2284 = vmatpush1.msra.mxu0 %v2249
    %2285 = vmatprep.subr.mxu0 0.0
    %2286 = vmatpush1.msra.mxu0 0.0
    %2287 = vmatprep.subr.mxu0 0.0
    %2288 = vmatpush1.msra.mxu0 0.0
    %2289 = vmatprep.subr.mxu0 0.0
    %2290 = vmatpush1.msra.mxu0 0.0
    %2291 = vmatprep.subr.mxu0 0.0
    %2292 = vmatpush1.msra.mxu0 0.0
    %2293 = vmatprep.subr.mxu0 0.0
    %2294 = vmatpush1.msra.mxu0 0.0
    %2295 = vmatprep.subr.mxu0 0.0
    %2296 = vmatpush1.msra.mxu0 0.0
    %2297 = vmatprep.subr.mxu0 0.0
    %2298 = vmatpush1.msra.mxu0 0.0
    %2299 = vmatprep.subr.mxu0 0.0
    %2300 = vmatpush1.msra.mxu0 0.0
    %2301 = vmatprep.subr.mxu0 0.0
    %2302 = vmatpush1.msra.mxu0 0.0
    %2303 = vmatprep.subr.mxu0 0.0
    %2304 = vmatpush1.msra.mxu0 0.0
    %2305 = vmatprep.subr.mxu0 0.0
    %2306 = vmatpush1.msra.mxu0 0.0
    %2307 = vmatprep.subr.mxu0 0.0
    %2308 = vmatpush1.msra.mxu0 0.0
    %2309 = vmatprep.subr.mxu0 0.0
    %2310 = vmatpush1.msra.mxu0 0.0
    %2311 = vmatprep.subr.mxu0 0.0
    %2312 = vmatpush1.msra.mxu0 0.0
    %2313 = vmatprep.subr.mxu0 0.0
    %2314 = vmatpush1.msra.mxu0 0.0
    %2315 = vmatprep.subr.mxu0 0.0
    %2316 = vmatpush1.msra.mxu0 0.0
    %2317 = vmatprep.subr.mxu0 0.0
    %2318 = vmatpush1.msra.mxu0 0.0
    %2319 = vmatprep.subr.mxu0 0.0
    %2320 = vmatpush1.msra.mxu0 0.0
    %2321 = vmatprep.subr.mxu0 0.0
    %2322 = vmatpush1.msra.mxu0 0.0
    %2323 = vmatprep.subr.mxu0 0.0
    %2324 = vmatpush1.msra.mxu0 0.0
    %2325 = vmatprep.subr.mxu0 0.0
    %2326 = vmatpush1.msra.mxu0 0.0
    %2327 = vmatprep.subr.mxu0 0.0
    %2328 = vmatpush1.msra.mxu0 0.0
    %2329 = vmatprep.subr.mxu0 0.0
    %2330 = vmatpush1.msra.mxu0 0.0
    %2331 = vmatprep.subr.mxu0 0.0
    %2332 = vmatpush1.msra.mxu0 0.0
    %2333 = vmatprep.subr.mxu0 0.0
    %2334 = vmatpush1.msra.mxu0 0.0
    %2335 = vmatprep.subr.mxu0 0.0
    %2336 = vmatpush1.msra.mxu0 0.0
    %2337 = vmatprep.subr.mxu0 0.0
    %2338 = vmatpush1.msra.mxu0 0.0
    %2339 = vmatprep.subr.mxu0 0.0
    %2340 = vmatpush1.msra.mxu0 0.0
    %2341 = vmatprep.mubr.f32.mxu0 0.0
    %2342 = vmatmul.mubr.f32.gmra.mrb[0].mxu0 %v2263
    %v2343 = vpop.f32.mrb[0].mxu0
    %v2344 = vadd.f32 0.0, %v2343
    %v2345 = vpop.f32.mrb[0].mxu0
    %2346 = vmatprep.mubr.f32.mxu0 0.0
    %2347 = vmatmul.mubr.f32.gmra.mrb[0].mxu0 %v2265
    %v2348 = vpop.f32.mrb[0].mxu0
    %v2349 = vadd.f32 0.0, %v2348
    %v2350 = vpop.f32.mrb[0].mxu0
    %2351 = vmatprep.mubr.f32.mxu0 0.0
    %2352 = vmatmul.mubr.f32.gmra.mrb[0].mxu0 %v2267
    %v2353 = vpop.f32.mrb[0].mxu0
    %v2354 = vadd.f32 0.0, %v2353
    %v2355 = vpop.f32.mrb[0].mxu0
    %2356 = vmatprep.mubr.f32.mxu0 0.0
    %2357 = vmatmul.mubr.f32.gmra.mrb[0].mxu0 %v2269
    %v2358 = vpop.f32.mrb[0].mxu0
    %v2359 = vadd.f32 0.0, %v2358
    %v2360 = vpop.f32.mrb[0].mxu0
    %2361 = vmatprep.mubr.f32.mxu0 0.0
    %2362 = vmatmul.mubr.f32.gmra.mrb[0].mxu0 %v2271
    %v2363 = vpop.f32.mrb[0].mxu0
    %v2364 = vadd.f32 0.0, %v2363
    %v2365 = vpop.f32.mrb[0].mxu0
    %2366 = vmatprep.mubr.f32.mxu0 0.0
    %2367 = vmatmul.mubr.f32.gmra.mrb[0].mxu0 %v2273
    %v2368 = vpop.f32.mrb[0].mxu0
    %v2369 = vadd.f32 0.0, %v2368
    %v2370 = vpop.f32.mrb[0].mxu0
    %2371 = vmatprep.mubr.f32.mxu0 0.0
    %2372 = vmatmul.mubr.f32.gmra.mrb[0].mxu0 %v2275
    %v2373 = vpop.f32.mrb[0].mxu0
    %v2374 = vadd.f32 0.0, %v2373
    %v2375 = vpop.f32.mrb[0].mxu0
    %2376 = vdwg.mxu0
    %v2377 = vadd.f32 %v2238, %v2344
    %v2378 = vadd.f32 %v2239, %v2349
    %v2379 = vadd.f32 %v2240, %v2354
    %v2380 = vadd.f32 %v2241, %v2359
    %v2381 = vadd.f32 %v2242, %v2364
    %v2382 = vadd.f32 %v2243, %v2369
    %v2383 = vadd.f32 %v2244, %v2374
    %s2384 = scalar_lea.vmem [#allocation13], 160
    %v2385 = vld [vmem:[%s2384] sm:$0xff]
    %v2386 = vld [vmem:[%s2384 + $0x8] sm:$0xff]
    %v2387 = vld [vmem:[%s2384 + $0x10] sm:$0xff]
    %v2388 = vld [vmem:[%s2384 + $0x18] sm:$0xff]
    %vm2389 = vcmask 1042432
    %v2390 = vrot.slane %v1703, 5
    %v2391 = vrot.slane %v1704, 5
    %v2392 = vsel %vm2389, %v2390, %v2391
    %v2393 = vrot.slane %v1705, 5
    %v2394 = vsel %vm2389, %v2391, %v2393
    %v2395 = vrot.slane %v1706, 5
    %v2396 = vsel %vm2389, %v2393, %v2395
    %v2397 = vrot.slane %v1707, 5
    %v2398 = vsel %vm2389, %v2395, %v2397
    %v2399 = vrot.slane %v1708, 5
    %v2400 = vsel %vm2389, %v2397, %v2399
    %v2401 = vrot.slane %v1709, 5
    %v2402 = vsel %vm2389, %v2399, %v2401
    %v2403 = vsel %vm1037, %v2392, 0
    %v2405 = vsel %vm1037, %v2394, 0
    %v2407 = vsel %vm1037, %v2396, 0
    %v2409 = vsel %vm1037, %v2398, 0
    %v2411 = vsel %vm1037, %v2400, 0
    %v2413 = vsel %vm1037, %v2402, 0
    %v2415 = vsel %vm1037, %v2401, 0
    %2417 = vmatprep.subr.mxu0 0.0
    %2418 = vmatpush1.msra.mxu0 %v2385
    %2419 = vmatprep.subr.mxu0 0.0
    %2420 = vmatpush1.msra.mxu0 %v2386
    %2421 = vmatprep.subr.mxu0 0.0
    %2422 = vmatpush1.msra.mxu0 %v2387
    %2423 = vmatprep.subr.mxu0 0.0
    %2424 = vmatpush1.msra.mxu0 %v2388
    %2425 = vmatprep.subr.mxu0 0.0
    %2426 = vmatpush1.msra.mxu0 0.0
    %2427 = vmatprep.subr.mxu0 0.0
    %2428 = vmatpush1.msra.mxu0 0.0
    %2429 = vmatprep.subr.mxu0 0.0
    %2430 = vmatpush1.msra.mxu0 0.0
    %2431 = vmatprep.subr.mxu0 0.0
    %2432 = vmatpush1.msra.mxu0 0.0
    %2433 = vmatprep.subr.mxu0 0.0
    %2434 = vmatpush1.msra.mxu0 0.0
    %2435 = vmatprep.subr.mxu0 0.0
    %2436 = vmatpush1.msra.mxu0 0.0
    %2437 = vmatprep.subr.mxu0 0.0
    %2438 = vmatpush1.msra.mxu0 0.0
    %2439 = vmatprep.subr.mxu0 0.0
    %2440 = vmatpush1.msra.mxu0 0.0
    %2441 = vmatprep.subr.mxu0 0.0
    %2442 = vmatpush1.msra.mxu0 0.0
    %2443 = vmatprep.subr.mxu0 0.0
    %2444 = vmatpush1.msra.mxu0 0.0
    %2445 = vmatprep.subr.mxu0 0.0
    %2446 = vmatpush1.msra.mxu0 0.0
    %2447 = vmatprep.subr.mxu0 0.0
    %2448 = vmatpush1.msra.mxu0 0.0
    %2449 = vmatprep.subr.mxu0 0.0
    %2450 = vmatpush1.msra.mxu0 0.0
    %2451 = vmatprep.subr.mxu0 0.0
    %2452 = vmatpush1.msra.mxu0 0.0
    %2453 = vmatprep.subr.mxu0 0.0
    %2454 = vmatpush1.msra.mxu0 0.0
    %2455 = vmatprep.subr.mxu0 0.0
    %2456 = vmatpush1.msra.mxu0 0.0
    %2457 = vmatprep.subr.mxu0 0.0
    %2458 = vmatpush1.msra.mxu0 0.0
    %2459 = vmatprep.subr.mxu0 0.0
    %2460 = vmatpush1.msra.mxu0 0.0
    %2461 = vmatprep.subr.mxu0 0.0
    %2462 = vmatpush1.msra.mxu0 0.0
    %2463 = vmatprep.subr.mxu0 0.0
    %2464 = vmatpush1.msra.mxu0 0.0
    %2465 = vmatprep.subr.mxu0 0.0
    %2466 = vmatpush1.msra.mxu0 0.0
    %2467 = vmatprep.subr.mxu0 0.0
    %2468 = vmatpush1.msra.mxu0 0.0
    %2469 = vmatprep.subr.mxu0 0.0
    %2470 = vmatpush1.msra.mxu0 0.0
    %2471 = vmatprep.subr.mxu0 0.0
    %2472 = vmatpush1.msra.mxu0 0.0
    %2473 = vmatprep.subr.mxu0 0.0
    %2474 = vmatpush1.msra.mxu0 0.0
    %2475 = vmatprep.subr.mxu0 0.0
    %2476 = vmatpush1.msra.mxu0 0.0
    %2477 = vmatprep.subr.mxu0 0.0
    %2478 = vmatpush1.msra.mxu0 0.0
    %2479 = vmatprep.subr.mxu0 0.0
    %2480 = vmatpush1.msra.mxu0 0.0
    %2481 = vmatprep.mubr.f32.mxu0 0.0
    %2482 = vmatmul.mubr.f32.gmra.mrb[0].mxu0 %v2403
    %v2483 = vpop.f32.mrb[0].mxu0
    %v2484 = vadd.f32 0.0, %v2483
    %v2485 = vpop.f32.mrb[0].mxu0
    %2486 = vmatprep.mubr.f32.mxu0 0.0
    %2487 = vmatmul.mubr.f32.gmra.mrb[0].mxu0 %v2405
    %v2488 = vpop.f32.mrb[0].mxu0
    %v2489 = vadd.f32 0.0, %v2488
    %v2490 = vpop.f32.mrb[0].mxu0
    %2491 = vmatprep.mubr.f32.mxu0 0.0
    %2492 = vmatmul.mubr.f32.gmra.mrb[0].mxu0 %v2407
    %v2493 = vpop.f32.mrb[0].mxu0
    %v2494 = vadd.f32 0.0, %v2493
    %v2495 = vpop.f32.mrb[0].mxu0
    %2496 = vmatprep.mubr.f32.mxu0 0.0
    %2497 = vmatmul.mubr.f32.gmra.mrb[0].mxu0 %v2409
    %v2498 = vpop.f32.mrb[0].mxu0
    %v2499 = vadd.f32 0.0, %v2498
    %v2500 = vpop.f32.mrb[0].mxu0
    %2501 = vmatprep.mubr.f32.mxu0 0.0
    %2502 = vmatmul.mubr.f32.gmra.mrb[0].mxu0 %v2411
    %v2503 = vpop.f32.mrb[0].mxu0
    %v2504 = vadd.f32 0.0, %v2503
    %v2505 = vpop.f32.mrb[0].mxu0
    %2506 = vmatprep.mubr.f32.mxu0 0.0
    %2507 = vmatmul.mubr.f32.gmra.mrb[0].mxu0 %v2413
    %v2508 = vpop.f32.mrb[0].mxu0
    %v2509 = vadd.f32 0.0, %v2508
    %v2510 = vpop.f32.mrb[0].mxu0
    %2511 = vmatprep.mubr.f32.mxu0 0.0
    %2512 = vmatmul.mubr.f32.gmra.mrb[0].mxu0 %v2415
    %v2513 = vpop.f32.mrb[0].mxu0
    %v2514 = vadd.f32 0.0, %v2513
    %v2515 = vpop.f32.mrb[0].mxu0
    %2516 = vdwg.mxu0
    %v2517 = vadd.f32 %v2377, %v2484
    %v2518 = vadd.f32 %v2378, %v2489
    %v2519 = vadd.f32 %v2379, %v2494
    %v2520 = vadd.f32 %v2380, %v2499
    %v2521 = vadd.f32 %v2381, %v2504
    %v2522 = vadd.f32 %v2382, %v2509
    %v2523 = vadd.f32 %v2383, %v2514
    %s2524 = scalar_lea.vmem [#allocation13], 192
    %v2525 = vld [vmem:[%s2524] sm:$0xff]
    %v2526 = vld [vmem:[%s2524 + $0x8] sm:$0xff]
    %v2527 = vld [vmem:[%s2524 + $0x10] sm:$0xff]
    %v2528 = vld [vmem:[%s2524 + $0x18] sm:$0xff]
    %vm2529 = vcmask 1041408
    %v2530 = vrot.slane %v1703, 6
    %v2531 = vrot.slane %v1704, 6
    %v2532 = vsel %vm2529, %v2530, %v2531
    %v2533 = vrot.slane %v1705, 6
    %v2534 = vsel %vm2529, %v2531, %v2533
    %v2535 = vrot.slane %v1706, 6
    %v2536 = vsel %vm2529, %v2533, %v2535
    %v2537 = vrot.slane %v1707, 6
    %v2538 = vsel %vm2529, %v2535, %v2537
    %v2539 = vrot.slane %v1708, 6
    %v2540 = vsel %vm2529, %v2537, %v2539
    %v2541 = vrot.slane %v1709, 6
    %v2542 = vsel %vm2529, %v2539, %v2541
    %v2543 = vsel %vm1037, %v2532, 0
    %v2545 = vsel %vm1037, %v2534, 0
    %v2547 = vsel %vm1037, %v2536, 0
    %v2549 = vsel %vm1037, %v2538, 0
    %v2551 = vsel %vm1037, %v2540, 0
    %v2553 = vsel %vm1037, %v2542, 0
    %v2555 = vsel %vm1037, %v2541, 0
    %2557 = vmatprep.subr.mxu0 0.0
    %2558 = vmatpush1.msra.mxu0 %v2525
    %2559 = vmatprep.subr.mxu0 0.0
    %2560 = vmatpush1.msra.mxu0 %v2526
    %2561 = vmatprep.subr.mxu0 0.0
    %2562 = vmatpush1.msra.mxu0 %v2527
    %2563 = vmatprep.subr.mxu0 0.0
    %2564 = vmatpush1.msra.mxu0 %v2528
    %2565 = vmatprep.subr.mxu0 0.0
    %2566 = vmatpush1.msra.mxu0 0.0
    %2567 = vmatprep.subr.mxu0 0.0
    %2568 = vmatpush1.msra.mxu0 0.0
    %2569 = vmatprep.subr.mxu0 0.0
    %2570 = vmatpush1.msra.mxu0 0.0
    %2571 = vmatprep.subr.mxu0 0.0
    %2572 = vmatpush1.msra.mxu0 0.0
    %2573 = vmatprep.subr.mxu0 0.0
    %2574 = vmatpush1.msra.mxu0 0.0
    %2575 = vmatprep.subr.mxu0 0.0
    %2576 = vmatpush1.msra.mxu0 0.0
    %2577 = vmatprep.subr.mxu0 0.0
    %2578 = vmatpush1.msra.mxu0 0.0
    %2579 = vmatprep.subr.mxu0 0.0
    %2580 = vmatpush1.msra.mxu0 0.0
    %2581 = vmatprep.subr.mxu0 0.0
    %2582 = vmatpush1.msra.mxu0 0.0
    %2583 = vmatprep.subr.mxu0 0.0
    %2584 = vmatpush1.msra.mxu0 0.0
    %2585 = vmatprep.subr.mxu0 0.0
    %2586 = vmatpush1.msra.mxu0 0.0
    %2587 = vmatprep.subr.mxu0 0.0
    %2588 = vmatpush1.msra.mxu0 0.0
    %2589 = vmatprep.subr.mxu0 0.0
    %2590 = vmatpush1.msra.mxu0 0.0
    %2591 = vmatprep.subr.mxu0 0.0
    %2592 = vmatpush1.msra.mxu0 0.0
    %2593 = vmatprep.subr.mxu0 0.0
    %2594 = vmatpush1.msra.mxu0 0.0
    %2595 = vmatprep.subr.mxu0 0.0
    %2596 = vmatpush1.msra.mxu0 0.0
    %2597 = vmatprep.subr.mxu0 0.0
    %2598 = vmatpush1.msra.mxu0 0.0
    %2599 = vmatprep.subr.mxu0 0.0
    %2600 = vmatpush1.msra.mxu0 0.0
    %2601 = vmatprep.subr.mxu0 0.0
    %2602 = vmatpush1.msra.mxu0 0.0
    %2603 = vmatprep.subr.mxu0 0.0
    %2604 = vmatpush1.msra.mxu0 0.0
    %2605 = vmatprep.subr.mxu0 0.0
    %2606 = vmatpush1.msra.mxu0 0.0
    %2607 = vmatprep.subr.mxu0 0.0
    %2608 = vmatpush1.msra.mxu0 0.0
    %2609 = vmatprep.subr.mxu0 0.0
    %2610 = vmatpush1.msra.mxu0 0.0
    %2611 = vmatprep.subr.mxu0 0.0
    %2612 = vmatpush1.msra.mxu0 0.0
    %2613 = vmatprep.subr.mxu0 0.0
    %2614 = vmatpush1.msra.mxu0 0.0
    %2615 = vmatprep.subr.mxu0 0.0
    %2616 = vmatpush1.msra.mxu0 0.0
    %2617 = vmatprep.subr.mxu0 0.0
    %2618 = vmatpush1.msra.mxu0 0.0
    %2619 = vmatprep.subr.mxu0 0.0
    %2620 = vmatpush1.msra.mxu0 0.0
    %2621 = vmatprep.mubr.f32.mxu0 0.0
    %2622 = vmatmul.mubr.f32.gmra.mrb[0].mxu0 %v2543
    %v2623 = vpop.f32.mrb[0].mxu0
    %v2624 = vadd.f32 0.0, %v2623
    %v2625 = vpop.f32.mrb[0].mxu0
    %2626 = vmatprep.mubr.f32.mxu0 0.0
    %2627 = vmatmul.mubr.f32.gmra.mrb[0].mxu0 %v2545
    %v2628 = vpop.f32.mrb[0].mxu0
    %v2629 = vadd.f32 0.0, %v2628
    %v2630 = vpop.f32.mrb[0].mxu0
    %2631 = vmatprep.mubr.f32.mxu0 0.0
    %2632 = vmatmul.mubr.f32.gmra.mrb[0].mxu0 %v2547
    %v2633 = vpop.f32.mrb[0].mxu0
    %v2634 = vadd.f32 0.0, %v2633
    %v2635 = vpop.f32.mrb[0].mxu0
    %2636 = vmatprep.mubr.f32.mxu0 0.0
    %2637 = vmatmul.mubr.f32.gmra.mrb[0].mxu0 %v2549
    %v2638 = vpop.f32.mrb[0].mxu0
    %v2639 = vadd.f32 0.0, %v2638
    %v2640 = vpop.f32.mrb[0].mxu0
    %2641 = vmatprep.mubr.f32.mxu0 0.0
    %2642 = vmatmul.mubr.f32.gmra.mrb[0].mxu0 %v2551
    %v2643 = vpop.f32.mrb[0].mxu0
    %v2644 = vadd.f32 0.0, %v2643
    %v2645 = vpop.f32.mrb[0].mxu0
    %2646 = vmatprep.mubr.f32.mxu0 0.0
    %2647 = vmatmul.mubr.f32.gmra.mrb[0].mxu0 %v2553
    %v2648 = vpop.f32.mrb[0].mxu0
    %v2649 = vadd.f32 0.0, %v2648
    %v2650 = vpop.f32.mrb[0].mxu0
    %2651 = vmatprep.mubr.f32.mxu0 0.0
    %2652 = vmatmul.mubr.f32.gmra.mrb[0].mxu0 %v2555
    %v2653 = vpop.f32.mrb[0].mxu0
    %v2654 = vadd.f32 0.0, %v2653
    %v2655 = vpop.f32.mrb[0].mxu0
    %2656 = vdwg.mxu0
    %v2657 = vadd.f32 %v2517, %v2624
    %v2658 = vadd.f32 %v2518, %v2629
    %v2659 = vadd.f32 %v2519, %v2634
    %v2660 = vadd.f32 %v2520, %v2639
    %v2661 = vadd.f32 %v2521, %v2644
    %v2662 = vadd.f32 %v2522, %v2649
    %v2663 = vadd.f32 %v2523, %v2654
    %v2664 = vld [vmem:[#allocation15] sm:$0x1]
    %v2666 = vlaneseq
    %v2667 = vshrl.u32 %v2666, 7
    %v2668 = vsub.s32 0, %v2667
    %v2669 = vrot.slane %v2664, %v2668
    %v2671 = vadd.f32 %v2657, %v2669
    %v2672 = vadd.f32 %v2658, %v2669
    %v2673 = vadd.f32 %v2659, %v2669
    %v2674 = vadd.f32 %v2660, %v2669
    %v2675 = vadd.f32 %v2661, %v2669
    %v2676 = vadd.f32 %v2662, %v2669
    %v2677 = vadd.f32 %v2663, %v2669
    %v2678 = vmax.f32 %v2671, 0.0
    %v2679 = vmax.f32 %v2672, 0.0
    %v2680 = vmax.f32 %v2673, 0.0
    %v2681 = vmax.f32 %v2674, 0.0
    %v2682 = vmax.f32 %v2675, 0.0
    %v2683 = vmax.f32 %v2676, 0.0
    %v2684 = vmax.f32 %v2677, 0.0
    %v2685 = vld [vmem:[#allocation16] sm:$0xff]
    %v2686 = vld [vmem:[#allocation16 + $0x8] sm:$0xff]
    %v2687 = vld [vmem:[#allocation16 + $0x10] sm:$0xff]
    %v2688 = vld [vmem:[#allocation16 + $0x18] sm:$0xff]
    %v2689 = vld [vmem:[#allocation18] sm:$0x1]
    %v2691 = vlaneseq
    %v2692 = vshrl.u32 %v2691, 7
    %v2693 = vsub.s32 0, %v2692
    %v2694 = vrot.slane %v2689, %v2693
    %v2703 = vrot.slane %v2678, 1
    %v2704 = vrot.slane %v2679, 1
    %v2705 = vsel %vm279, %v2703, %v2704
    %v2706 = vrot.slane %v2680, 1
    %v2707 = vsel %vm279, %v2704, %v2706
    %v2708 = vrot.slane %v2681, 1
    %v2709 = vsel %vm279, %v2706, %v2708
    %v2710 = vrot.slane %v2682, 1
    %v2711 = vsel %vm279, %v2708, %v2710
    %v2712 = vrot.slane %v2683, 1
    %v2713 = vsel %vm279, %v2710, %v2712
    %v2714 = vrot.slane %v2684, 1
    %v2715 = vsel %vm279, %v2712, %v2714
    %v2716 = vsel %vm1037, %v2705, 0
    %v2718 = vsel %vm1037, %v2707, 0
    %v2720 = vsel %vm1037, %v2709, 0
    %v2722 = vsel %vm1037, %v2711, 0
    %v2724 = vsel %vm1037, %v2713, 0
    %v2726 = vsel %vm1037, %v2715, 0
    %v2728 = vsel %vm1037, %v2714, 0
    %2730 = vmatprep.subr.mxu0 0.0
    %2731 = vmatpush1.msra.mxu0 %v2685
    %2732 = vmatprep.subr.mxu0 0.0
    %2733 = vmatpush1.msra.mxu0 %v2686
    %2734 = vmatprep.subr.mxu0 0.0
    %2735 = vmatpush1.msra.mxu0 %v2687
    %2736 = vmatprep.subr.mxu0 0.0
    %2737 = vmatpush1.msra.mxu0 %v2688
    %2738 = vmatprep.subr.mxu0 0.0
    %2739 = vmatpush1.msra.mxu0 0.0
    %2740 = vmatprep.subr.mxu0 0.0
    %2741 = vmatpush1.msra.mxu0 0.0
    %2742 = vmatprep.subr.mxu0 0.0
    %2743 = vmatpush1.msra.mxu0 0.0
    %2744 = vmatprep.subr.mxu0 0.0
    %2745 = vmatpush1.msra.mxu0 0.0
    %2746 = vmatprep.subr.mxu0 0.0
    %2747 = vmatpush1.msra.mxu0 0.0
    %2748 = vmatprep.subr.mxu0 0.0
    %2749 = vmatpush1.msra.mxu0 0.0
    %2750 = vmatprep.subr.mxu0 0.0
    %2751 = vmatpush1.msra.mxu0 0.0
    %2752 = vmatprep.subr.mxu0 0.0
    %2753 = vmatpush1.msra.mxu0 0.0
    %2754 = vmatprep.subr.mxu0 0.0
    %2755 = vmatpush1.msra.mxu0 0.0
    %2756 = vmatprep.subr.mxu0 0.0
    %2757 = vmatpush1.msra.mxu0 0.0
    %2758 = vmatprep.subr.mxu0 0.0
    %2759 = vmatpush1.msra.mxu0 0.0
    %2760 = vmatprep.subr.mxu0 0.0
    %2761 = vmatpush1.msra.mxu0 0.0
    %2762 = vmatprep.subr.mxu0 0.0
    %2763 = vmatpush1.msra.mxu0 0.0
    %2764 = vmatprep.subr.mxu0 0.0
    %2765 = vmatpush1.msra.mxu0 0.0
    %2766 = vmatprep.subr.mxu0 0.0
    %2767 = vmatpush1.msra.mxu0 0.0
    %2768 = vmatprep.subr.mxu0 0.0
    %2769 = vmatpush1.msra.mxu0 0.0
    %2770 = vmatprep.subr.mxu0 0.0
    %2771 = vmatpush1.msra.mxu0 0.0
    %2772 = vmatprep.subr.mxu0 0.0
    %2773 = vmatpush1.msra.mxu0 0.0
    %2774 = vmatprep.subr.mxu0 0.0
    %2775 = vmatpush1.msra.mxu0 0.0
    %2776 = vmatprep.subr.mxu0 0.0
    %2777 = vmatpush1.msra.mxu0 0.0
    %2778 = vmatprep.subr.mxu0 0.0
    %2779 = vmatpush1.msra.mxu0 0.0
    %2780 = vmatprep.subr.mxu0 0.0
    %2781 = vmatpush1.msra.mxu0 0.0
    %2782 = vmatprep.subr.mxu0 0.0
    %2783 = vmatpush1.msra.mxu0 0.0
    %2784 = vmatprep.subr.mxu0 0.0
    %2785 = vmatpush1.msra.mxu0 0.0
    %2786 = vmatprep.subr.mxu0 0.0
    %2787 = vmatpush1.msra.mxu0 0.0
    %2788 = vmatprep.subr.mxu0 0.0
    %2789 = vmatpush1.msra.mxu0 0.0
    %2790 = vmatprep.subr.mxu0 0.0
    %2791 = vmatpush1.msra.mxu0 0.0
    %2792 = vmatprep.subr.mxu0 0.0
    %2793 = vmatpush1.msra.mxu0 0.0
    %2794 = vmatprep.mubr.f32.mxu0 0.0
    %2795 = vmatmul.mubr.f32.gmra.mrb[0].mxu0 %v2716
    %v2796 = vpop.f32.mrb[0].mxu0
    %v2797 = vadd.f32 %v2694, %v2796
    %v2798 = vpop.f32.mrb[0].mxu0
    %2799 = vmatprep.mubr.f32.mxu0 0.0
    %2800 = vmatmul.mubr.f32.gmra.mrb[0].mxu0 %v2718
    %v2801 = vpop.f32.mrb[0].mxu0
    %v2802 = vadd.f32 %v2694, %v2801
    %v2803 = vpop.f32.mrb[0].mxu0
    %2804 = vmatprep.mubr.f32.mxu0 0.0
    %2805 = vmatmul.mubr.f32.gmra.mrb[0].mxu0 %v2720
    %v2806 = vpop.f32.mrb[0].mxu0
    %v2807 = vadd.f32 %v2694, %v2806
    %v2808 = vpop.f32.mrb[0].mxu0
    %2809 = vmatprep.mubr.f32.mxu0 0.0
    %2810 = vmatmul.mubr.f32.gmra.mrb[0].mxu0 %v2722
    %v2811 = vpop.f32.mrb[0].mxu0
    %v2812 = vadd.f32 %v2694, %v2811
    %v2813 = vpop.f32.mrb[0].mxu0
    %2814 = vmatprep.mubr.f32.mxu0 0.0
    %2815 = vmatmul.mubr.f32.gmra.mrb[0].mxu0 %v2724
    %v2816 = vpop.f32.mrb[0].mxu0
    %v2817 = vadd.f32 %v2694, %v2816
    %v2818 = vpop.f32.mrb[0].mxu0
    %2819 = vmatprep.mubr.f32.mxu0 0.0
    %2820 = vmatmul.mubr.f32.gmra.mrb[0].mxu0 %v2726
    %v2821 = vpop.f32.mrb[0].mxu0
    %v2822 = vadd.f32 %v2694, %v2821
    %v2823 = vpop.f32.mrb[0].mxu0
    %2824 = vmatprep.mubr.f32.mxu0 0.0
    %2825 = vmatmul.mubr.f32.gmra.mrb[0].mxu0 %v2728
    %v2826 = vpop.f32.mrb[0].mxu0
    %v2827 = vadd.f32 %v2694, %v2826
    %v2828 = vpop.f32.mrb[0].mxu0
    %2829 = vdwg.mxu0
    %v2830 = vmax.f32 %v2797, 0.0
    %v2831 = vmax.f32 %v2802, 0.0
    %v2832 = vmax.f32 %v2807, 0.0
    %v2833 = vmax.f32 %v2812, 0.0
    %v2834 = vmax.f32 %v2817, 0.0
    %v2835 = vmax.f32 %v2822, 0.0
    %v2836 = vmax.f32 %v2827, 0.0
    %v2837 = vld [vmem:[#allocation19] sm:$0xff]
    %v2838 = vld [vmem:[#allocation19 + $0x8] sm:$0xff]
    %v2839 = vld [vmem:[#allocation19 + $0x10] sm:$0xff]
    %v2840 = vld [vmem:[#allocation19 + $0x18] sm:$0xff]
    %v2841 = vld [vmem:[#allocation19 + $0x20] sm:$0xff]
    %v2842 = vld [vmem:[#allocation19 + $0x28] sm:$0xff]
    %v2843 = vld [vmem:[#allocation19 + $0x30] sm:$0xff]
    %v2844 = vld [vmem:[#allocation19 + $0x38] sm:$0xff]
    %v2845 = vld [vmem:[#allocation19 + $0x40] sm:$0xff]
    %v2846 = vld [vmem:[#allocation19 + $0x48] sm:$0xff]
    %v2847 = vld [vmem:[#allocation19 + $0x50] sm:$0xff]
    %v2848 = vld [vmem:[#allocation19 + $0x58] sm:$0xff]
    %v2849 = vld [vmem:[#allocation19 + $0x60] sm:$0xff]
    %v2850 = vld [vmem:[#allocation19 + $0x68] sm:$0xff]
    %v2851 = vld [vmem:[#allocation19 + $0x70] sm:$0xff]
    %v2852 = vld [vmem:[#allocation19 + $0x78] sm:$0xff]
    %v2853 = vld [vmem:[#allocation19 + $0x80] sm:$0xff]
    %v2854 = vld [vmem:[#allocation19 + $0x88] sm:$0xff]
    %v2855 = vld [vmem:[#allocation19 + $0x90] sm:$0xff]
    %v2856 = vld [vmem:[#allocation19 + $0x98] sm:$0xff]
    %v2857 = vld [vmem:[#allocation19 + $0xa0] sm:$0xff]
    %v2858 = vld [vmem:[#allocation19 + $0xa8] sm:$0xff]
    %v2859 = vld [vmem:[#allocation19 + $0xb0] sm:$0xff]
    %v2860 = vld [vmem:[#allocation19 + $0xb8] sm:$0xff]
    %v2861 = vld [vmem:[#allocation19 + $0xc0] sm:$0xff]
    %v2862 = vld [vmem:[#allocation19 + $0xc8] sm:$0xff]
    %v2863 = vld [vmem:[#allocation19 + $0xd0] sm:$0xff]
    %v2864 = vld [vmem:[#allocation19 + $0xd8] sm:$0xff]
    %v2865 = vld [vmem:[#allocation19 + $0xe0] sm:$0xff]
    %v2866 = vld [vmem:[#allocation19 + $0xe8] sm:$0xff]
    %v2867 = vld [vmem:[#allocation19 + $0xf0] sm:$0xff]
    %v2868 = vld [vmem:[#allocation19 + $0xf8] sm:$0xff]
    %v2869 = vld [vmem:[#allocation19 + $0x100] sm:$0xff]
    %v2870 = vld [vmem:[#allocation19 + $0x108] sm:$0xff]
    %v2871 = vld [vmem:[#allocation19 + $0x110] sm:$0xff]
    %v2872 = vld [vmem:[#allocation19 + $0x118] sm:$0xff]
    %v2873 = vld [vmem:[#allocation19 + $0x120] sm:$0xff]
    %v2874 = vld [vmem:[#allocation19 + $0x128] sm:$0xff]
    %v2875 = vld [vmem:[#allocation19 + $0x130] sm:$0xff]
    %v2876 = vld [vmem:[#allocation19 + $0x138] sm:$0xff]
    %v2877 = vld [vmem:[#allocation19 + $0x140] sm:$0xff]
    %v2878 = vld [vmem:[#allocation19 + $0x148] sm:$0xff]
    %v2879 = vld [vmem:[#allocation19 + $0x150] sm:$0xff]
    %v2880 = vld [vmem:[#allocation19 + $0x158] sm:$0xff]
    %v2881 = vld [vmem:[#allocation19 + $0x160] sm:$0xff]
    %v2882 = vld [vmem:[#allocation19 + $0x168] sm:$0xff]
    %v2883 = vld [vmem:[#allocation19 + $0x170] sm:$0xff]
    %v2884 = vld [vmem:[#allocation19 + $0x178] sm:$0xff]
    %v2885 = vld [vmem:[#allocation21] sm:$0xff]
    %v2886 = vld [vmem:[#allocation21 + $0x8] sm:$0xf]
    %v2889 = vlaneseq
    %v2890 = vshrl.u32 %v2889, 7
    %v2891 = vsub.s32 0, %v2890
    %v2892 = vrot.slane %v2885, %v2891
    %v2893 = vlaneseq
    %v2894 = vshrl.u32 %v2893, 7
    %v2895 = vsub.s32 1, %v2894
    %v2896 = vrot.slane %v2885, %v2895
    %v2897 = vlaneseq
    %v2898 = vshrl.u32 %v2897, 7
    %v2899 = vsub.s32 2, %v2898
    %v2900 = vrot.slane %v2885, %v2899
    %v2901 = vlaneseq
    %v2902 = vshrl.u32 %v2901, 7
    %v2903 = vsub.s32 3, %v2902
    %v2904 = vrot.slane %v2885, %v2903
    %v2905 = vlaneseq
    %v2906 = vshrl.u32 %v2905, 7
    %v2907 = vsub.s32 4, %v2906
    %v2908 = vrot.slane %v2885, %v2907
    %v2909 = vlaneseq
    %v2910 = vshrl.u32 %v2909, 7
    %v2911 = vsub.s32 5, %v2910
    %v2912 = vrot.slane %v2885, %v2911
    %v2913 = vlaneseq
    %v2914 = vshrl.u32 %v2913, 7
    %v2915 = vsub.s32 6, %v2914
    %v2916 = vrot.slane %v2885, %v2915
    %v2917 = vlaneseq
    %v2918 = vshrl.u32 %v2917, 7
    %v2919 = vsub.s32 7, %v2918
    %v2920 = vrot.slane %v2885, %v2919
    %v2921 = vlaneseq
    %v2922 = vshrl.u32 %v2921, 7
    %v2923 = vsub.s32 0, %v2922
    %v2924 = vrot.slane %v2886, %v2923
    %v2925 = vlaneseq
    %v2926 = vshrl.u32 %v2925, 7
    %v2927 = vsub.s32 1, %v2926
    %v2928 = vrot.slane %v2886, %v2927
    %v2929 = vlaneseq
    %v2930 = vshrl.u32 %v2929, 7
    %v2931 = vsub.s32 2, %v2930
    %v2932 = vrot.slane %v2886, %v2931
    %v2933 = vlaneseq
    %v2934 = vshrl.u32 %v2933, 7
    %v2935 = vsub.s32 3, %v2934
    %v2936 = vrot.slane %v2886, %v2935
    %v2956 = vrot.slane %v2830, 1
    %v2957 = vrot.slane %v2831, 1
    %v2958 = vsel %vm279, %v2956, %v2957
    %v2959 = vrot.slane %v2832, 1
    %v2960 = vsel %vm279, %v2957, %v2959
    %v2961 = vrot.slane %v2833, 1
    %v2962 = vsel %vm279, %v2959, %v2961
    %v2963 = vrot.slane %v2834, 1
    %v2964 = vsel %vm279, %v2961, %v2963
    %v2965 = vrot.slane %v2835, 1
    %v2966 = vsel %vm279, %v2963, %v2965
    %v2967 = vrot.slane %v2836, 1
    %v2968 = vsel %vm279, %v2965, %v2967
    %v2969 = vsel %vm1037, %v2958, 0
    %v2971 = vsel %vm1037, %v2960, 0
    %v2973 = vsel %vm1037, %v2962, 0
    %v2975 = vsel %vm1037, %v2964, 0
    %v2977 = vsel %vm1037, %v2966, 0
    %v2979 = vsel %vm1037, %v2968, 0
    %2981 = vmatprep.subr.mxu0 %v2838
    %2982 = vmatpush1.msra.mxu0 %v2837
    %2983 = vmatprep.subr.mxu0 %v2850
    %2984 = vmatpush1.msra.mxu0 %v2849
    %2985 = vmatprep.subr.mxu0 %v2862
    %2986 = vmatpush1.msra.mxu0 %v2861
    %2987 = vmatprep.subr.mxu0 %v2874
    %2988 = vmatpush1.msra.mxu0 %v2873
    %2989 = vmatprep.subr.mxu0 0.0
    %2990 = vmatpush1.msra.mxu0 0.0
    %2991 = vmatprep.subr.mxu0 0.0
    %2992 = vmatpush1.msra.mxu0 0.0
    %2993 = vmatprep.subr.mxu0 0.0
    %2994 = vmatpush1.msra.mxu0 0.0
    %2995 = vmatprep.subr.mxu0 0.0
    %2996 = vmatpush1.msra.mxu0 0.0
    %2997 = vmatprep.subr.mxu0 0.0
    %2998 = vmatpush1.msra.mxu0 0.0
    %2999 = vmatprep.subr.mxu0 0.0
    %3000 = vmatpush1.msra.mxu0 0.0
    %3001 = vmatprep.subr.mxu0 0.0
    %3002 = vmatpush1.msra.mxu0 0.0
    %3003 = vmatprep.subr.mxu0 0.0
    %3004 = vmatpush1.msra.mxu0 0.0
    %3005 = vmatprep.subr.mxu0 0.0
    %3006 = vmatpush1.msra.mxu0 0.0
    %3007 = vmatprep.subr.mxu0 0.0
    %3008 = vmatpush1.msra.mxu0 0.0
    %3009 = vmatprep.subr.mxu0 0.0
    %3010 = vmatpush1.msra.mxu0 0.0
    %3011 = vmatprep.subr.mxu0 0.0
    %3012 = vmatpush1.msra.mxu0 0.0
    %3013 = vmatprep.subr.mxu0 0.0
    %3014 = vmatpush1.msra.mxu0 0.0
    %3015 = vmatprep.subr.mxu0 0.0
    %3016 = vmatpush1.msra.mxu0 0.0
    %3017 = vmatprep.subr.mxu0 0.0
    %3018 = vmatpush1.msra.mxu0 0.0
    %3019 = vmatprep.subr.mxu0 0.0
    %3020 = vmatpush1.msra.mxu0 0.0
    %3021 = vmatprep.subr.mxu0 0.0
    %3022 = vmatpush1.msra.mxu0 0.0
    %3023 = vmatprep.subr.mxu0 0.0
    %3024 = vmatpush1.msra.mxu0 0.0
    %3025 = vmatprep.subr.mxu0 0.0
    %3026 = vmatpush1.msra.mxu0 0.0
    %3027 = vmatprep.subr.mxu0 0.0
    %3028 = vmatpush1.msra.mxu0 0.0
    %3029 = vmatprep.subr.mxu0 0.0
    %3030 = vmatpush1.msra.mxu0 0.0
    %3031 = vmatprep.subr.mxu0 0.0
    %3032 = vmatpush1.msra.mxu0 0.0
    %3033 = vmatprep.subr.mxu0 0.0
    %3034 = vmatpush1.msra.mxu0 0.0
    %3035 = vmatprep.subr.mxu0 0.0
    %3036 = vmatpush1.msra.mxu0 0.0
    %3037 = vmatprep.subr.mxu0 0.0
    %3038 = vmatpush1.msra.mxu0 0.0
    %3039 = vmatprep.subr.mxu0 0.0
    %3040 = vmatpush1.msra.mxu0 0.0
    %3041 = vmatprep.subr.mxu0 0.0
    %3042 = vmatpush1.msra.mxu0 0.0
    %3043 = vmatprep.subr.mxu0 0.0
    %3044 = vmatpush1.msra.mxu0 0.0
    %3045 = vmatprep.mubr.f32.mxu0 0.0
    %3046 = vmatmul.mubr.f32.gmra.mrb[0].mxu0 %v2969
    %v3047 = vpop.f32.mrb[0].mxu0
    %v3048 = vadd.f32 %v2892, %v3047
    %v3049 = vpop.f32.mrb[0].mxu0
    %v3050 = vadd.f32 %v2896, %v3049
    %3051 = vmatprep.mubr.f32.mxu0 0.0
    %3052 = vmatmul.mubr.f32.gmra.mrb[0].mxu0 %v2971
    %v3053 = vpop.f32.mrb[0].mxu0
    %v3054 = vadd.f32 %v2892, %v3053
    %v3055 = vpop.f32.mrb[0].mxu0
    %v3056 = vadd.f32 %v2896, %v3055
    %3057 = vmatprep.mubr.f32.mxu0 0.0
    %3058 = vmatmul.mubr.f32.gmra.mrb[0].mxu0 %v2973
    %v3059 = vpop.f32.mrb[0].mxu0
    %v3060 = vadd.f32 %v2892, %v3059
    %v3061 = vpop.f32.mrb[0].mxu0
    %v3062 = vadd.f32 %v2896, %v3061
    %3063 = vmatprep.mubr.f32.mxu0 0.0
    %3064 = vmatmul.mubr.f32.gmra.mrb[0].mxu0 %v2975
    %v3065 = vpop.f32.mrb[0].mxu0
    %v3066 = vadd.f32 %v2892, %v3065
    %v3067 = vpop.f32.mrb[0].mxu0
    %v3068 = vadd.f32 %v2896, %v3067
    %3069 = vmatprep.mubr.f32.mxu0 0.0
    %3070 = vmatmul.mubr.f32.gmra.mrb[0].mxu0 %v2977
    %v3071 = vpop.f32.mrb[0].mxu0
    %v3072 = vadd.f32 %v2892, %v3071
    %v3073 = vpop.f32.mrb[0].mxu0
    %v3074 = vadd.f32 %v2896, %v3073
    %3075 = vmatprep.mubr.f32.mxu0 0.0
    %3076 = vmatmul.mubr.f32.gmra.mrb[0].mxu0 %v2979
    %v3077 = vpop.f32.mrb[0].mxu0
    %v3078 = vadd.f32 %v2892, %v3077
    %v3079 = vpop.f32.mrb[0].mxu0
    %v3080 = vadd.f32 %v2896, %v3079
    %3081 = vdwg.mxu0
    %3082 = vmatprep.subr.mxu0 %v2840
    %3083 = vmatpush1.msra.mxu0 %v2839
    %3084 = vmatprep.subr.mxu0 %v2852
    %3085 = vmatpush1.msra.mxu0 %v2851
    %3086 = vmatprep.subr.mxu0 %v2864
    %3087 = vmatpush1.msra.mxu0 %v2863
    %3088 = vmatprep.subr.mxu0 %v2876
    %3089 = vmatpush1.msra.mxu0 %v2875
    %3090 = vmatprep.subr.mxu0 0.0
    %3091 = vmatpush1.msra.mxu0 0.0
    %3092 = vmatprep.subr.mxu0 0.0
    %3093 = vmatpush1.msra.mxu0 0.0
    %3094 = vmatprep.subr.mxu0 0.0
    %3095 = vmatpush1.msra.mxu0 0.0
    %3096 = vmatprep.subr.mxu0 0.0
    %3097 = vmatpush1.msra.mxu0 0.0
    %3098 = vmatprep.subr.mxu0 0.0
    %3099 = vmatpush1.msra.mxu0 0.0
    %3100 = vmatprep.subr.mxu0 0.0
    %3101 = vmatpush1.msra.mxu0 0.0
    %3102 = vmatprep.subr.mxu0 0.0
    %3103 = vmatpush1.msra.mxu0 0.0
    %3104 = vmatprep.subr.mxu0 0.0
    %3105 = vmatpush1.msra.mxu0 0.0
    %3106 = vmatprep.subr.mxu0 0.0
    %3107 = vmatpush1.msra.mxu0 0.0
    %3108 = vmatprep.subr.mxu0 0.0
    %3109 = vmatpush1.msra.mxu0 0.0
    %3110 = vmatprep.subr.mxu0 0.0
    %3111 = vmatpush1.msra.mxu0 0.0
    %3112 = vmatprep.subr.mxu0 0.0
    %3113 = vmatpush1.msra.mxu0 0.0
    %3114 = vmatprep.subr.mxu0 0.0
    %3115 = vmatpush1.msra.mxu0 0.0
    %3116 = vmatprep.subr.mxu0 0.0
    %3117 = vmatpush1.msra.mxu0 0.0
    %3118 = vmatprep.subr.mxu0 0.0
    %3119 = vmatpush1.msra.mxu0 0.0
    %3120 = vmatprep.subr.mxu0 0.0
    %3121 = vmatpush1.msra.mxu0 0.0
    %3122 = vmatprep.subr.mxu0 0.0
    %3123 = vmatpush1.msra.mxu0 0.0
    %3124 = vmatprep.subr.mxu0 0.0
    %3125 = vmatpush1.msra.mxu0 0.0
    %3126 = vmatprep.subr.mxu0 0.0
    %3127 = vmatpush1.msra.mxu0 0.0
    %3128 = vmatprep.subr.mxu0 0.0
    %3129 = vmatpush1.msra.mxu0 0.0
    %3130 = vmatprep.subr.mxu0 0.0
    %3131 = vmatpush1.msra.mxu0 0.0
    %3132 = vmatprep.subr.mxu0 0.0
    %3133 = vmatpush1.msra.mxu0 0.0
    %3134 = vmatprep.subr.mxu0 0.0
    %3135 = vmatpush1.msra.mxu0 0.0
    %3136 = vmatprep.subr.mxu0 0.0
    %3137 = vmatpush1.msra.mxu0 0.0
    %3138 = vmatprep.subr.mxu0 0.0
    %3139 = vmatpush1.msra.mxu0 0.0
    %3140 = vmatprep.subr.mxu0 0.0
    %3141 = vmatpush1.msra.mxu0 0.0
    %3142 = vmatprep.subr.mxu0 0.0
    %3143 = vmatpush1.msra.mxu0 0.0
    %3144 = vmatprep.subr.mxu0 0.0
    %3145 = vmatpush1.msra.mxu0 0.0
    %3146 = vmatprep.mubr.f32.mxu0 0.0
    %3147 = vmatmul.mubr.f32.gmra.mrb[0].mxu0 %v2969
    %v3148 = vpop.f32.mrb[0].mxu0
    %v3149 = vadd.f32 %v2900, %v3148
    %v3150 = vpop.f32.mrb[0].mxu0
    %v3151 = vadd.f32 %v2904, %v3150
    %3152 = vmatprep.mubr.f32.mxu0 0.0
    %3153 = vmatmul.mubr.f32.gmra.mrb[0].mxu0 %v2971
    %v3154 = vpop.f32.mrb[0].mxu0
    %v3155 = vadd.f32 %v2900, %v3154
    %v3156 = vpop.f32.mrb[0].mxu0
    %v3157 = vadd.f32 %v2904, %v3156
    %3158 = vmatprep.mubr.f32.mxu0 0.0
    %3159 = vmatmul.mubr.f32.gmra.mrb[0].mxu0 %v2973
    %v3160 = vpop.f32.mrb[0].mxu0
    %v3161 = vadd.f32 %v2900, %v3160
    %v3162 = vpop.f32.mrb[0].mxu0
    %v3163 = vadd.f32 %v2904, %v3162
    %3164 = vmatprep.mubr.f32.mxu0 0.0
    %3165 = vmatmul.mubr.f32.gmra.mrb[0].mxu0 %v2975
    %v3166 = vpop.f32.mrb[0].mxu0
    %v3167 = vadd.f32 %v2900, %v3166
    %v3168 = vpop.f32.mrb[0].mxu0
    %v3169 = vadd.f32 %v2904, %v3168
    %3170 = vmatprep.mubr.f32.mxu0 0.0
    %3171 = vmatmul.mubr.f32.gmra.mrb[0].mxu0 %v2977
    %v3172 = vpop.f32.mrb[0].mxu0
    %v3173 = vadd.f32 %v2900, %v3172
    %v3174 = vpop.f32.mrb[0].mxu0
    %v3175 = vadd.f32 %v2904, %v3174
    %3176 = vmatprep.mubr.f32.mxu0 0.0
    %3177 = vmatmul.mubr.f32.gmra.mrb[0].mxu0 %v2979
    %v3178 = vpop.f32.mrb[0].mxu0
    %v3179 = vadd.f32 %v2900, %v3178
    %v3180 = vpop.f32.mrb[0].mxu0
    %v3181 = vadd.f32 %v2904, %v3180
    %3182 = vdwg.mxu0
    %3183 = vmatprep.subr.mxu0 %v2842
    %3184 = vmatpush1.msra.mxu0 %v2841
    %3185 = vmatprep.subr.mxu0 %v2854
    %3186 = vmatpush1.msra.mxu0 %v2853
    %3187 = vmatprep.subr.mxu0 %v2866
    %3188 = vmatpush1.msra.mxu0 %v2865
    %3189 = vmatprep.subr.mxu0 %v2878
    %3190 = vmatpush1.msra.mxu0 %v2877
    %3191 = vmatprep.subr.mxu0 0.0
    %3192 = vmatpush1.msra.mxu0 0.0
    %3193 = vmatprep.subr.mxu0 0.0
    %3194 = vmatpush1.msra.mxu0 0.0
    %3195 = vmatprep.subr.mxu0 0.0
    %3196 = vmatpush1.msra.mxu0 0.0
    %3197 = vmatprep.subr.mxu0 0.0
    %3198 = vmatpush1.msra.mxu0 0.0
    %3199 = vmatprep.subr.mxu0 0.0
    %3200 = vmatpush1.msra.mxu0 0.0
    %3201 = vmatprep.subr.mxu0 0.0
    %3202 = vmatpush1.msra.mxu0 0.0
    %3203 = vmatprep.subr.mxu0 0.0
    %3204 = vmatpush1.msra.mxu0 0.0
    %3205 = vmatprep.subr.mxu0 0.0
    %3206 = vmatpush1.msra.mxu0 0.0
    %3207 = vmatprep.subr.mxu0 0.0
    %3208 = vmatpush1.msra.mxu0 0.0
    %3209 = vmatprep.subr.mxu0 0.0
    %3210 = vmatpush1.msra.mxu0 0.0
    %3211 = vmatprep.subr.mxu0 0.0
    %3212 = vmatpush1.msra.mxu0 0.0
    %3213 = vmatprep.subr.mxu0 0.0
    %3214 = vmatpush1.msra.mxu0 0.0
    %3215 = vmatprep.subr.mxu0 0.0
    %3216 = vmatpush1.msra.mxu0 0.0
    %3217 = vmatprep.subr.mxu0 0.0
    %3218 = vmatpush1.msra.mxu0 0.0
    %3219 = vmatprep.subr.mxu0 0.0
    %3220 = vmatpush1.msra.mxu0 0.0
    %3221 = vmatprep.subr.mxu0 0.0
    %3222 = vmatpush1.msra.mxu0 0.0
    %3223 = vmatprep.subr.mxu0 0.0
    %3224 = vmatpush1.msra.mxu0 0.0
    %3225 = vmatprep.subr.mxu0 0.0
    %3226 = vmatpush1.msra.mxu0 0.0
    %3227 = vmatprep.subr.mxu0 0.0
    %3228 = vmatpush1.msra.mxu0 0.0
    %3229 = vmatprep.subr.mxu0 0.0
    %3230 = vmatpush1.msra.mxu0 0.0
    %3231 = vmatprep.subr.mxu0 0.0
    %3232 = vmatpush1.msra.mxu0 0.0
    %3233 = vmatprep.subr.mxu0 0.0
    %3234 = vmatpush1.msra.mxu0 0.0
    %3235 = vmatprep.subr.mxu0 0.0
    %3236 = vmatpush1.msra.mxu0 0.0
    %3237 = vmatprep.subr.mxu0 0.0
    %3238 = vmatpush1.msra.mxu0 0.0
    %3239 = vmatprep.subr.mxu0 0.0
    %3240 = vmatpush1.msra.mxu0 0.0
    %3241 = vmatprep.subr.mxu0 0.0
    %3242 = vmatpush1.msra.mxu0 0.0
    %3243 = vmatprep.subr.mxu0 0.0
    %3244 = vmatpush1.msra.mxu0 0.0
    %3245 = vmatprep.subr.mxu0 0.0
    %3246 = vmatpush1.msra.mxu0 0.0
    %3247 = vmatprep.mubr.f32.mxu0 0.0
    %3248 = vmatmul.mubr.f32.gmra.mrb[0].mxu0 %v2969
    %v3249 = vpop.f32.mrb[0].mxu0
    %v3250 = vadd.f32 %v2908, %v3249
    %v3251 = vpop.f32.mrb[0].mxu0
    %v3252 = vadd.f32 %v2912, %v3251
    %3253 = vmatprep.mubr.f32.mxu0 0.0
    %3254 = vmatmul.mubr.f32.gmra.mrb[0].mxu0 %v2971
    %v3255 = vpop.f32.mrb[0].mxu0
    %v3256 = vadd.f32 %v2908, %v3255
    %v3257 = vpop.f32.mrb[0].mxu0
    %v3258 = vadd.f32 %v2912, %v3257
    %3259 = vmatprep.mubr.f32.mxu0 0.0
    %3260 = vmatmul.mubr.f32.gmra.mrb[0].mxu0 %v2973
    %v3261 = vpop.f32.mrb[0].mxu0
    %v3262 = vadd.f32 %v2908, %v3261
    %v3263 = vpop.f32.mrb[0].mxu0
    %v3264 = vadd.f32 %v2912, %v3263
    %3265 = vmatprep.mubr.f32.mxu0 0.0
    %3266 = vmatmul.mubr.f32.gmra.mrb[0].mxu0 %v2975
    %v3267 = vpop.f32.mrb[0].mxu0
    %v3268 = vadd.f32 %v2908, %v3267
    %v3269 = vpop.f32.mrb[0].mxu0
    %v3270 = vadd.f32 %v2912, %v3269
    %3271 = vmatprep.mubr.f32.mxu0 0.0
    %3272 = vmatmul.mubr.f32.gmra.mrb[0].mxu0 %v2977
    %v3273 = vpop.f32.mrb[0].mxu0
    %v3274 = vadd.f32 %v2908, %v3273
    %v3275 = vpop.f32.mrb[0].mxu0
    %v3276 = vadd.f32 %v2912, %v3275
    %3277 = vmatprep.mubr.f32.mxu0 0.0
    %3278 = vmatmul.mubr.f32.gmra.mrb[0].mxu0 %v2979
    %v3279 = vpop.f32.mrb[0].mxu0
    %v3280 = vadd.f32 %v2908, %v3279
    %v3281 = vpop.f32.mrb[0].mxu0
    %v3282 = vadd.f32 %v2912, %v3281
    %3283 = vdwg.mxu0
    %3284 = vmatprep.subr.mxu0 %v2844
    %3285 = vmatpush1.msra.mxu0 %v2843
    %3286 = vmatprep.subr.mxu0 %v2856
    %3287 = vmatpush1.msra.mxu0 %v2855
    %3288 = vmatprep.subr.mxu0 %v2868
    %3289 = vmatpush1.msra.mxu0 %v2867
    %3290 = vmatprep.subr.mxu0 %v2880
    %3291 = vmatpush1.msra.mxu0 %v2879
    %3292 = vmatprep.subr.mxu0 0.0
    %3293 = vmatpush1.msra.mxu0 0.0
    %3294 = vmatprep.subr.mxu0 0.0
    %3295 = vmatpush1.msra.mxu0 0.0
    %3296 = vmatprep.subr.mxu0 0.0
    %3297 = vmatpush1.msra.mxu0 0.0
    %3298 = vmatprep.subr.mxu0 0.0
    %3299 = vmatpush1.msra.mxu0 0.0
    %3300 = vmatprep.subr.mxu0 0.0
    %3301 = vmatpush1.msra.mxu0 0.0
    %3302 = vmatprep.subr.mxu0 0.0
    %3303 = vmatpush1.msra.mxu0 0.0
    %3304 = vmatprep.subr.mxu0 0.0
    %3305 = vmatpush1.msra.mxu0 0.0
    %3306 = vmatprep.subr.mxu0 0.0
    %3307 = vmatpush1.msra.mxu0 0.0
    %3308 = vmatprep.subr.mxu0 0.0
    %3309 = vmatpush1.msra.mxu0 0.0
    %3310 = vmatprep.subr.mxu0 0.0
    %3311 = vmatpush1.msra.mxu0 0.0
    %3312 = vmatprep.subr.mxu0 0.0
    %3313 = vmatpush1.msra.mxu0 0.0
    %3314 = vmatprep.subr.mxu0 0.0
    %3315 = vmatpush1.msra.mxu0 0.0
    %3316 = vmatprep.subr.mxu0 0.0
    %3317 = vmatpush1.msra.mxu0 0.0
    %3318 = vmatprep.subr.mxu0 0.0
    %3319 = vmatpush1.msra.mxu0 0.0
    %3320 = vmatprep.subr.mxu0 0.0
    %3321 = vmatpush1.msra.mxu0 0.0
    %3322 = vmatprep.subr.mxu0 0.0
    %3323 = vmatpush1.msra.mxu0 0.0
    %3324 = vmatprep.subr.mxu0 0.0
    %3325 = vmatpush1.msra.mxu0 0.0
    %3326 = vmatprep.subr.mxu0 0.0
    %3327 = vmatpush1.msra.mxu0 0.0
    %3328 = vmatprep.subr.mxu0 0.0
    %3329 = vmatpush1.msra.mxu0 0.0
    %3330 = vmatprep.subr.mxu0 0.0
    %3331 = vmatpush1.msra.mxu0 0.0
    %3332 = vmatprep.subr.mxu0 0.0
    %3333 = vmatpush1.msra.mxu0 0.0
    %3334 = vmatprep.subr.mxu0 0.0
    %3335 = vmatpush1.msra.mxu0 0.0
    %3336 = vmatprep.subr.mxu0 0.0
    %3337 = vmatpush1.msra.mxu0 0.0
    %3338 = vmatprep.subr.mxu0 0.0
    %3339 = vmatpush1.msra.mxu0 0.0
    %3340 = vmatprep.subr.mxu0 0.0
    %3341 = vmatpush1.msra.mxu0 0.0
    %3342 = vmatprep.subr.mxu0 0.0
    %3343 = vmatpush1.msra.mxu0 0.0
    %3344 = vmatprep.subr.mxu0 0.0
    %3345 = vmatpush1.msra.mxu0 0.0
    %3346 = vmatprep.subr.mxu0 0.0
    %3347 = vmatpush1.msra.mxu0 0.0
    %3348 = vmatprep.mubr.f32.mxu0 0.0
    %3349 = vmatmul.mubr.f32.gmra.mrb[0].mxu0 %v2969
    %v3350 = vpop.f32.mrb[0].mxu0
    %v3351 = vadd.f32 %v2916, %v3350
    %v3352 = vpop.f32.mrb[0].mxu0
    %v3353 = vadd.f32 %v2920, %v3352
    %3354 = vmatprep.mubr.f32.mxu0 0.0
    %3355 = vmatmul.mubr.f32.gmra.mrb[0].mxu0 %v2971
    %v3356 = vpop.f32.mrb[0].mxu0
    %v3357 = vadd.f32 %v2916, %v3356
    %v3358 = vpop.f32.mrb[0].mxu0
    %v3359 = vadd.f32 %v2920, %v3358
    %3360 = vmatprep.mubr.f32.mxu0 0.0
    %3361 = vmatmul.mubr.f32.gmra.mrb[0].mxu0 %v2973
    %v3362 = vpop.f32.mrb[0].mxu0
    %v3363 = vadd.f32 %v2916, %v3362
    %v3364 = vpop.f32.mrb[0].mxu0
    %v3365 = vadd.f32 %v2920, %v3364
    %3366 = vmatprep.mubr.f32.mxu0 0.0
    %3367 = vmatmul.mubr.f32.gmra.mrb[0].mxu0 %v2975
    %v3368 = vpop.f32.mrb[0].mxu0
    %v3369 = vadd.f32 %v2916, %v3368
    %v3370 = vpop.f32.mrb[0].mxu0
    %v3371 = vadd.f32 %v2920, %v3370
    %3372 = vmatprep.mubr.f32.mxu0 0.0
    %3373 = vmatmul.mubr.f32.gmra.mrb[0].mxu0 %v2977
    %v3374 = vpop.f32.mrb[0].mxu0
    %v3375 = vadd.f32 %v2916, %v3374
    %v3376 = vpop.f32.mrb[0].mxu0
    %v3377 = vadd.f32 %v2920, %v3376
    %3378 = vmatprep.mubr.f32.mxu0 0.0
    %3379 = vmatmul.mubr.f32.gmra.mrb[0].mxu0 %v2979
    %v3380 = vpop.f32.mrb[0].mxu0
    %v3381 = vadd.f32 %v2916, %v3380
    %v3382 = vpop.f32.mrb[0].mxu0
    %v3383 = vadd.f32 %v2920, %v3382
    %3384 = vdwg.mxu0
    %3385 = vmatprep.subr.mxu0 %v2846
    %3386 = vmatpush1.msra.mxu0 %v2845
    %3387 = vmatprep.subr.mxu0 %v2858
    %3388 = vmatpush1.msra.mxu0 %v2857
    %3389 = vmatprep.subr.mxu0 %v2870
    %3390 = vmatpush1.msra.mxu0 %v2869
    %3391 = vmatprep.subr.mxu0 %v2882
    %3392 = vmatpush1.msra.mxu0 %v2881
    %3393 = vmatprep.subr.mxu0 0.0
    %3394 = vmatpush1.msra.mxu0 0.0
    %3395 = vmatprep.subr.mxu0 0.0
    %3396 = vmatpush1.msra.mxu0 0.0
    %3397 = vmatprep.subr.mxu0 0.0
    %3398 = vmatpush1.msra.mxu0 0.0
    %3399 = vmatprep.subr.mxu0 0.0
    %3400 = vmatpush1.msra.mxu0 0.0
    %3401 = vmatprep.subr.mxu0 0.0
    %3402 = vmatpush1.msra.mxu0 0.0
    %3403 = vmatprep.subr.mxu0 0.0
    %3404 = vmatpush1.msra.mxu0 0.0
    %3405 = vmatprep.subr.mxu0 0.0
    %3406 = vmatpush1.msra.mxu0 0.0
    %3407 = vmatprep.subr.mxu0 0.0
    %3408 = vmatpush1.msra.mxu0 0.0
    %3409 = vmatprep.subr.mxu0 0.0
    %3410 = vmatpush1.msra.mxu0 0.0
    %3411 = vmatprep.subr.mxu0 0.0
    %3412 = vmatpush1.msra.mxu0 0.0
    %3413 = vmatprep.subr.mxu0 0.0
    %3414 = vmatpush1.msra.mxu0 0.0
    %3415 = vmatprep.subr.mxu0 0.0
    %3416 = vmatpush1.msra.mxu0 0.0
    %3417 = vmatprep.subr.mxu0 0.0
    %3418 = vmatpush1.msra.mxu0 0.0
    %3419 = vmatprep.subr.mxu0 0.0
    %3420 = vmatpush1.msra.mxu0 0.0
    %3421 = vmatprep.subr.mxu0 0.0
    %3422 = vmatpush1.msra.mxu0 0.0
    %3423 = vmatprep.subr.mxu0 0.0
    %3424 = vmatpush1.msra.mxu0 0.0
    %3425 = vmatprep.subr.mxu0 0.0
    %3426 = vmatpush1.msra.mxu0 0.0
    %3427 = vmatprep.subr.mxu0 0.0
    %3428 = vmatpush1.msra.mxu0 0.0
    %3429 = vmatprep.subr.mxu0 0.0
    %3430 = vmatpush1.msra.mxu0 0.0
    %3431 = vmatprep.subr.mxu0 0.0
    %3432 = vmatpush1.msra.mxu0 0.0
    %3433 = vmatprep.subr.mxu0 0.0
    %3434 = vmatpush1.msra.mxu0 0.0
    %3435 = vmatprep.subr.mxu0 0.0
    %3436 = vmatpush1.msra.mxu0 0.0
    %3437 = vmatprep.subr.mxu0 0.0
    %3438 = vmatpush1.msra.mxu0 0.0
    %3439 = vmatprep.subr.mxu0 0.0
    %3440 = vmatpush1.msra.mxu0 0.0
    %3441 = vmatprep.subr.mxu0 0.0
    %3442 = vmatpush1.msra.mxu0 0.0
    %3443 = vmatprep.subr.mxu0 0.0
    %3444 = vmatpush1.msra.mxu0 0.0
    %3445 = vmatprep.subr.mxu0 0.0
    %3446 = vmatpush1.msra.mxu0 0.0
    %3447 = vmatprep.subr.mxu0 0.0
    %3448 = vmatpush1.msra.mxu0 0.0
    %3449 = vmatprep.mubr.f32.mxu0 0.0
    %3450 = vmatmul.mubr.f32.gmra.mrb[0].mxu0 %v2969
    %v3451 = vpop.f32.mrb[0].mxu0
    %v3452 = vadd.f32 %v2924, %v3451
    %v3453 = vpop.f32.mrb[0].mxu0
    %v3454 = vadd.f32 %v2928, %v3453
    %3455 = vmatprep.mubr.f32.mxu0 0.0
    %3456 = vmatmul.mubr.f32.gmra.mrb[0].mxu0 %v2971
    %v3457 = vpop.f32.mrb[0].mxu0
    %v3458 = vadd.f32 %v2924, %v3457
    %v3459 = vpop.f32.mrb[0].mxu0
    %v3460 = vadd.f32 %v2928, %v3459
    %3461 = vmatprep.mubr.f32.mxu0 0.0
    %3462 = vmatmul.mubr.f32.gmra.mrb[0].mxu0 %v2973
    %v3463 = vpop.f32.mrb[0].mxu0
    %v3464 = vadd.f32 %v2924, %v3463
    %v3465 = vpop.f32.mrb[0].mxu0
    %v3466 = vadd.f32 %v2928, %v3465
    %3467 = vmatprep.mubr.f32.mxu0 0.0
    %3468 = vmatmul.mubr.f32.gmra.mrb[0].mxu0 %v2975
    %v3469 = vpop.f32.mrb[0].mxu0
    %v3470 = vadd.f32 %v2924, %v3469
    %v3471 = vpop.f32.mrb[0].mxu0
    %v3472 = vadd.f32 %v2928, %v3471
    %3473 = vmatprep.mubr.f32.mxu0 0.0
    %3474 = vmatmul.mubr.f32.gmra.mrb[0].mxu0 %v2977
    %v3475 = vpop.f32.mrb[0].mxu0
    %v3476 = vadd.f32 %v2924, %v3475
    %v3477 = vpop.f32.mrb[0].mxu0
    %v3478 = vadd.f32 %v2928, %v3477
    %3479 = vmatprep.mubr.f32.mxu0 0.0
    %3480 = vmatmul.mubr.f32.gmra.mrb[0].mxu0 %v2979
    %v3481 = vpop.f32.mrb[0].mxu0
    %v3482 = vadd.f32 %v2924, %v3481
    %v3483 = vpop.f32.mrb[0].mxu0
    %v3484 = vadd.f32 %v2928, %v3483
    %3485 = vdwg.mxu0
    %3486 = vmatprep.subr.mxu0 %v2848
    %3487 = vmatpush1.msra.mxu0 %v2847
    %3488 = vmatprep.subr.mxu0 %v2860
    %3489 = vmatpush1.msra.mxu0 %v2859
    %3490 = vmatprep.subr.mxu0 %v2872
    %3491 = vmatpush1.msra.mxu0 %v2871
    %3492 = vmatprep.subr.mxu0 %v2884
    %3493 = vmatpush1.msra.mxu0 %v2883
    %3494 = vmatprep.subr.mxu0 0.0
    %3495 = vmatpush1.msra.mxu0 0.0
    %3496 = vmatprep.subr.mxu0 0.0
    %3497 = vmatpush1.msra.mxu0 0.0
    %3498 = vmatprep.subr.mxu0 0.0
    %3499 = vmatpush1.msra.mxu0 0.0
    %3500 = vmatprep.subr.mxu0 0.0
    %3501 = vmatpush1.msra.mxu0 0.0
    %3502 = vmatprep.subr.mxu0 0.0
    %3503 = vmatpush1.msra.mxu0 0.0
    %3504 = vmatprep.subr.mxu0 0.0
    %3505 = vmatpush1.msra.mxu0 0.0
    %3506 = vmatprep.subr.mxu0 0.0
    %3507 = vmatpush1.msra.mxu0 0.0
    %3508 = vmatprep.subr.mxu0 0.0
    %3509 = vmatpush1.msra.mxu0 0.0
    %3510 = vmatprep.subr.mxu0 0.0
    %3511 = vmatpush1.msra.mxu0 0.0
    %3512 = vmatprep.subr.mxu0 0.0
    %3513 = vmatpush1.msra.mxu0 0.0
    %3514 = vmatprep.subr.mxu0 0.0
    %3515 = vmatpush1.msra.mxu0 0.0
    %3516 = vmatprep.subr.mxu0 0.0
    %3517 = vmatpush1.msra.mxu0 0.0
    %3518 = vmatprep.subr.mxu0 0.0
    %3519 = vmatpush1.msra.mxu0 0.0
    %3520 = vmatprep.subr.mxu0 0.0
    %3521 = vmatpush1.msra.mxu0 0.0
    %3522 = vmatprep.subr.mxu0 0.0
    %3523 = vmatpush1.msra.mxu0 0.0
    %3524 = vmatprep.subr.mxu0 0.0
    %3525 = vmatpush1.msra.mxu0 0.0
    %3526 = vmatprep.subr.mxu0 0.0
    %3527 = vmatpush1.msra.mxu0 0.0
    %3528 = vmatprep.subr.mxu0 0.0
    %3529 = vmatpush1.msra.mxu0 0.0
    %3530 = vmatprep.subr.mxu0 0.0
    %3531 = vmatpush1.msra.mxu0 0.0
    %3532 = vmatprep.subr.mxu0 0.0
    %3533 = vmatpush1.msra.mxu0 0.0
    %3534 = vmatprep.subr.mxu0 0.0
    %3535 = vmatpush1.msra.mxu0 0.0
    %3536 = vmatprep.subr.mxu0 0.0
    %3537 = vmatpush1.msra.mxu0 0.0
    %3538 = vmatprep.subr.mxu0 0.0
    %3539 = vmatpush1.msra.mxu0 0.0
    %3540 = vmatprep.subr.mxu0 0.0
    %3541 = vmatpush1.msra.mxu0 0.0
    %3542 = vmatprep.subr.mxu0 0.0
    %3543 = vmatpush1.msra.mxu0 0.0
    %3544 = vmatprep.subr.mxu0 0.0
    %3545 = vmatpush1.msra.mxu0 0.0
    %3546 = vmatprep.subr.mxu0 0.0
    %3547 = vmatpush1.msra.mxu0 0.0
    %3548 = vmatprep.subr.mxu0 0.0
    %3549 = vmatpush1.msra.mxu0 0.0
    %3550 = vmatprep.mubr.f32.mxu0 0.0
    %3551 = vmatmul.mubr.f32.gmra.mrb[0].mxu0 %v2969
    %v3552 = vpop.f32.mrb[0].mxu0
    %v3553 = vadd.f32 %v2932, %v3552
    %v3554 = vpop.f32.mrb[0].mxu0
    %v3555 = vadd.f32 %v2936, %v3554
    %3556 = vmatprep.mubr.f32.mxu0 0.0
    %3557 = vmatmul.mubr.f32.gmra.mrb[0].mxu0 %v2971
    %v3558 = vpop.f32.mrb[0].mxu0
    %v3559 = vadd.f32 %v2932, %v3558
    %v3560 = vpop.f32.mrb[0].mxu0
    %v3561 = vadd.f32 %v2936, %v3560
    %3562 = vmatprep.mubr.f32.mxu0 0.0
    %3563 = vmatmul.mubr.f32.gmra.mrb[0].mxu0 %v2973
    %v3564 = vpop.f32.mrb[0].mxu0
    %v3565 = vadd.f32 %v2932, %v3564
    %v3566 = vpop.f32.mrb[0].mxu0
    %v3567 = vadd.f32 %v2936, %v3566
    %3568 = vmatprep.mubr.f32.mxu0 0.0
    %3569 = vmatmul.mubr.f32.gmra.mrb[0].mxu0 %v2975
    %v3570 = vpop.f32.mrb[0].mxu0
    %v3571 = vadd.f32 %v2932, %v3570
    %v3572 = vpop.f32.mrb[0].mxu0
    %v3573 = vadd.f32 %v2936, %v3572
    %3574 = vmatprep.mubr.f32.mxu0 0.0
    %3575 = vmatmul.mubr.f32.gmra.mrb[0].mxu0 %v2977
    %v3576 = vpop.f32.mrb[0].mxu0
    %v3577 = vadd.f32 %v2932, %v3576
    %v3578 = vpop.f32.mrb[0].mxu0
    %v3579 = vadd.f32 %v2936, %v3578
    %3580 = vmatprep.mubr.f32.mxu0 0.0
    %3581 = vmatmul.mubr.f32.gmra.mrb[0].mxu0 %v2979
    %v3582 = vpop.f32.mrb[0].mxu0
    %v3583 = vadd.f32 %v2932, %v3582
    %v3584 = vpop.f32.mrb[0].mxu0
    %v3585 = vadd.f32 %v2936, %v3584
    %3586 = vdwg.mxu0
    %v3587 = vmax.f32 %v3048, 0.0
    %v3588 = vmax.f32 %v3050, 0.0
    %v3589 = vmax.f32 %v3149, 0.0
    %v3590 = vmax.f32 %v3151, 0.0
    %v3591 = vmax.f32 %v3250, 0.0
    %v3592 = vmax.f32 %v3252, 0.0
    %v3593 = vmax.f32 %v3351, 0.0
    %v3594 = vmax.f32 %v3353, 0.0
    %v3595 = vmax.f32 %v3452, 0.0
    %v3596 = vmax.f32 %v3454, 0.0
    %v3597 = vmax.f32 %v3553, 0.0
    %v3598 = vmax.f32 %v3555, 0.0
    %v3599 = vmax.f32 %v3054, 0.0
    %v3600 = vmax.f32 %v3056, 0.0
    %v3601 = vmax.f32 %v3155, 0.0
    %v3602 = vmax.f32 %v3157, 0.0
    %v3603 = vmax.f32 %v3256, 0.0
    %v3604 = vmax.f32 %v3258, 0.0
    %v3605 = vmax.f32 %v3357, 0.0
    %v3606 = vmax.f32 %v3359, 0.0
    %v3607 = vmax.f32 %v3458, 0.0
    %v3608 = vmax.f32 %v3460, 0.0
    %v3609 = vmax.f32 %v3559, 0.0
    %v3610 = vmax.f32 %v3561, 0.0
    %v3611 = vmax.f32 %v3060, 0.0
    %v3612 = vmax.f32 %v3062, 0.0
    %v3613 = vmax.f32 %v3161, 0.0
    %v3614 = vmax.f32 %v3163, 0.0
    %v3615 = vmax.f32 %v3262, 0.0
    %v3616 = vmax.f32 %v3264, 0.0
    %v3617 = vmax.f32 %v3363, 0.0
    %v3618 = vmax.f32 %v3365, 0.0
    %v3619 = vmax.f32 %v3464, 0.0
    %v3620 = vmax.f32 %v3466, 0.0
    %v3621 = vmax.f32 %v3565, 0.0
    %v3622 = vmax.f32 %v3567, 0.0
    %v3623 = vmax.f32 %v3066, 0.0
    %v3624 = vmax.f32 %v3068, 0.0
    %v3625 = vmax.f32 %v3167, 0.0
    %v3626 = vmax.f32 %v3169, 0.0
    %v3627 = vmax.f32 %v3268, 0.0
    %v3628 = vmax.f32 %v3270, 0.0
    %v3629 = vmax.f32 %v3369, 0.0
    %v3630 = vmax.f32 %v3371, 0.0
    %v3631 = vmax.f32 %v3470, 0.0
    %v3632 = vmax.f32 %v3472, 0.0
    %v3633 = vmax.f32 %v3571, 0.0
    %v3634 = vmax.f32 %v3573, 0.0
    %v3635 = vmax.f32 %v3072, 0.0
    %v3636 = vmax.f32 %v3074, 0.0
    %v3637 = vmax.f32 %v3173, 0.0
    %v3638 = vmax.f32 %v3175, 0.0
    %v3639 = vmax.f32 %v3274, 0.0
    %v3640 = vmax.f32 %v3276, 0.0
    %v3641 = vmax.f32 %v3375, 0.0
    %v3642 = vmax.f32 %v3377, 0.0
    %v3643 = vmax.f32 %v3476, 0.0
    %v3644 = vmax.f32 %v3478, 0.0
    %v3645 = vmax.f32 %v3577, 0.0
    %v3646 = vmax.f32 %v3579, 0.0
    %v3647 = vmax.f32 %v3078, 0.0
    %v3648 = vmax.f32 %v3080, 0.0
    %v3649 = vmax.f32 %v3179, 0.0
    %v3650 = vmax.f32 %v3181, 0.0
    %v3651 = vmax.f32 %v3280, 0.0
    %v3652 = vmax.f32 %v3282, 0.0
    %v3653 = vmax.f32 %v3381, 0.0
    %v3654 = vmax.f32 %v3383, 0.0
    %v3655 = vmax.f32 %v3482, 0.0
    %v3656 = vmax.f32 %v3484, 0.0
    %v3657 = vmax.f32 %v3583, 0.0
    %v3658 = vmax.f32 %v3585, 0.0
    %v3659 = vld [vmem:[#allocation4] sm:$0x3]
    %vm3660 = vcmask 392192
    %v3662 = vsel %vm3660, %v3659, 0
    %3664 = vmatprep.subr.mxu0 %v3588
    %3665 = vmatpush1.msra.mxu0 %v3587
    %3666 = vmatprep.subr.mxu0 %v3600
    %3667 = vmatpush1.msra.mxu0 %v3599
    %3668 = vmatprep.subr.mxu0 %v3612
    %3669 = vmatpush1.msra.mxu0 %v3611
    %3670 = vmatprep.subr.mxu0 %v3624
    %3671 = vmatpush1.msra.mxu0 %v3623
    %3672 = vmatprep.subr.mxu0 %v3636
    %3673 = vmatpush1.msra.mxu0 %v3635
    %3674 = vmatprep.subr.mxu0 %v3648
    %3675 = vmatpush1.msra.mxu0 %v3647
    %3676 = vmatprep.subr.mxu0 0.0
    %3677 = vmatpush1.msra.mxu0 0.0
    %3678 = vmatprep.subr.mxu0 0.0
    %3679 = vmatpush1.msra.mxu0 0.0
    %3680 = vmatprep.subr.mxu0 0.0
    %3681 = vmatpush1.msra.mxu0 0.0
    %3682 = vmatprep.subr.mxu0 0.0
    %3683 = vmatpush1.msra.mxu0 0.0
    %3684 = vmatprep.subr.mxu0 0.0
    %3685 = vmatpush1.msra.mxu0 0.0
    %3686 = vmatprep.subr.mxu0 0.0
    %3687 = vmatpush1.msra.mxu0 0.0
    %3688 = vmatprep.subr.mxu0 0.0
    %3689 = vmatpush1.msra.mxu0 0.0
    %3690 = vmatprep.subr.mxu0 0.0
    %3691 = vmatpush1.msra.mxu0 0.0
    %3692 = vmatprep.subr.mxu0 0.0
    %3693 = vmatpush1.msra.mxu0 0.0
    %3694 = vmatprep.subr.mxu0 0.0
    %3695 = vmatpush1.msra.mxu0 0.0
    %3696 = vmatprep.subr.mxu0 0.0
    %3697 = vmatpush1.msra.mxu0 0.0
    %3698 = vmatprep.subr.mxu0 0.0
    %3699 = vmatpush1.msra.mxu0 0.0
    %3700 = vmatprep.subr.mxu0 0.0
    %3701 = vmatpush1.msra.mxu0 0.0
    %3702 = vmatprep.subr.mxu0 0.0
    %3703 = vmatpush1.msra.mxu0 0.0
    %3704 = vmatprep.subr.mxu0 0.0
    %3705 = vmatpush1.msra.mxu0 0.0
    %3706 = vmatprep.subr.mxu0 0.0
    %3707 = vmatpush1.msra.mxu0 0.0
    %3708 = vmatprep.subr.mxu0 0.0
    %3709 = vmatpush1.msra.mxu0 0.0
    %3710 = vmatprep.subr.mxu0 0.0
    %3711 = vmatpush1.msra.mxu0 0.0
    %3712 = vmatprep.subr.mxu0 0.0
    %3713 = vmatpush1.msra.mxu0 0.0
    %3714 = vmatprep.subr.mxu0 0.0
    %3715 = vmatpush1.msra.mxu0 0.0
    %3716 = vmatprep.subr.mxu0 0.0
    %3717 = vmatpush1.msra.mxu0 0.0
    %3718 = vmatprep.subr.mxu0 0.0
    %3719 = vmatpush1.msra.mxu0 0.0
    %3720 = vmatprep.subr.mxu0 0.0
    %3721 = vmatpush1.msra.mxu0 0.0
    %3722 = vmatprep.subr.mxu0 0.0
    %3723 = vmatpush1.msra.mxu0 0.0
    %3724 = vmatprep.subr.mxu0 0.0
    %3725 = vmatpush1.msra.mxu0 0.0
    %3726 = vmatprep.subr.mxu0 0.0
    %3727 = vmatpush1.msra.mxu0 0.0
    %3728 = vmatprep.mubr.f32.mxu0 0.0
    %3729 = vmatmul.mubr.f32.gmra.mrb[0].mxu0 %v3662
    %v3730 = vpop.f32.mrb[0].mxu0
    %v3731 = vadd.f32 0.0, %v3730
    %v3732 = vpop.f32.mrb[0].mxu0
    %v3733 = vadd.f32 0.0, %v3732
    %3734 = vdwg.mxu0
    %3735 = vmatprep.subr.mxu0 %v3590
    %3736 = vmatpush1.msra.mxu0 %v3589
    %3737 = vmatprep.subr.mxu0 %v3602
    %3738 = vmatpush1.msra.mxu0 %v3601
    %3739 = vmatprep.subr.mxu0 %v3614
    %3740 = vmatpush1.msra.mxu0 %v3613
    %3741 = vmatprep.subr.mxu0 %v3626
    %3742 = vmatpush1.msra.mxu0 %v3625
    %3743 = vmatprep.subr.mxu0 %v3638
    %3744 = vmatpush1.msra.mxu0 %v3637
    %3745 = vmatprep.subr.mxu0 %v3650
    %3746 = vmatpush1.msra.mxu0 %v3649
    %3747 = vmatprep.subr.mxu0 0.0
    %3748 = vmatpush1.msra.mxu0 0.0
    %3749 = vmatprep.subr.mxu0 0.0
    %3750 = vmatpush1.msra.mxu0 0.0
    %3751 = vmatprep.subr.mxu0 0.0
    %3752 = vmatpush1.msra.mxu0 0.0
    %3753 = vmatprep.subr.mxu0 0.0
    %3754 = vmatpush1.msra.mxu0 0.0
    %3755 = vmatprep.subr.mxu0 0.0
    %3756 = vmatpush1.msra.mxu0 0.0
    %3757 = vmatprep.subr.mxu0 0.0
    %3758 = vmatpush1.msra.mxu0 0.0
    %3759 = vmatprep.subr.mxu0 0.0
    %3760 = vmatpush1.msra.mxu0 0.0
    %3761 = vmatprep.subr.mxu0 0.0
    %3762 = vmatpush1.msra.mxu0 0.0
    %3763 = vmatprep.subr.mxu0 0.0
    %3764 = vmatpush1.msra.mxu0 0.0
    %3765 = vmatprep.subr.mxu0 0.0
    %3766 = vmatpush1.msra.mxu0 0.0
    %3767 = vmatprep.subr.mxu0 0.0
    %3768 = vmatpush1.msra.mxu0 0.0
    %3769 = vmatprep.subr.mxu0 0.0
    %3770 = vmatpush1.msra.mxu0 0.0
    %3771 = vmatprep.subr.mxu0 0.0
    %3772 = vmatpush1.msra.mxu0 0.0
    %3773 = vmatprep.subr.mxu0 0.0
    %3774 = vmatpush1.msra.mxu0 0.0
    %3775 = vmatprep.subr.mxu0 0.0
    %3776 = vmatpush1.msra.mxu0 0.0
    %3777 = vmatprep.subr.mxu0 0.0
    %3778 = vmatpush1.msra.mxu0 0.0
    %3779 = vmatprep.subr.mxu0 0.0
    %3780 = vmatpush1.msra.mxu0 0.0
    %3781 = vmatprep.subr.mxu0 0.0
    %3782 = vmatpush1.msra.mxu0 0.0
    %3783 = vmatprep.subr.mxu0 0.0
    %3784 = vmatpush1.msra.mxu0 0.0
    %3785 = vmatprep.subr.mxu0 0.0
    %3786 = vmatpush1.msra.mxu0 0.0
    %3787 = vmatprep.subr.mxu0 0.0
    %3788 = vmatpush1.msra.mxu0 0.0
    %3789 = vmatprep.subr.mxu0 0.0
    %3790 = vmatpush1.msra.mxu0 0.0
    %3791 = vmatprep.subr.mxu0 0.0
    %3792 = vmatpush1.msra.mxu0 0.0
    %3793 = vmatprep.subr.mxu0 0.0
    %3794 = vmatpush1.msra.mxu0 0.0
    %3795 = vmatprep.subr.mxu0 0.0
    %3796 = vmatpush1.msra.mxu0 0.0
    %3797 = vmatprep.subr.mxu0 0.0
    %3798 = vmatpush1.msra.mxu0 0.0
    %3799 = vmatprep.mubr.f32.mxu0 0.0
    %3800 = vmatmul.mubr.f32.gmra.mrb[0].mxu0 %v3662
    %v3801 = vpop.f32.mrb[0].mxu0
    %v3802 = vadd.f32 0.0, %v3801
    %v3803 = vpop.f32.mrb[0].mxu0
    %v3804 = vadd.f32 0.0, %v3803
    %3805 = vdwg.mxu0
    %3806 = vmatprep.subr.mxu0 %v3592
    %3807 = vmatpush1.msra.mxu0 %v3591
    %3808 = vmatprep.subr.mxu0 %v3604
    %3809 = vmatpush1.msra.mxu0 %v3603
    %3810 = vmatprep.subr.mxu0 %v3616
    %3811 = vmatpush1.msra.mxu0 %v3615
    %3812 = vmatprep.subr.mxu0 %v3628
    %3813 = vmatpush1.msra.mxu0 %v3627
    %3814 = vmatprep.subr.mxu0 %v3640
    %3815 = vmatpush1.msra.mxu0 %v3639
    %3816 = vmatprep.subr.mxu0 %v3652
    %3817 = vmatpush1.msra.mxu0 %v3651
    %3818 = vmatprep.subr.mxu0 0.0
    %3819 = vmatpush1.msra.mxu0 0.0
    %3820 = vmatprep.subr.mxu0 0.0
    %3821 = vmatpush1.msra.mxu0 0.0
    %3822 = vmatprep.subr.mxu0 0.0
    %3823 = vmatpush1.msra.mxu0 0.0
    %3824 = vmatprep.subr.mxu0 0.0
    %3825 = vmatpush1.msra.mxu0 0.0
    %3826 = vmatprep.subr.mxu0 0.0
    %3827 = vmatpush1.msra.mxu0 0.0
    %3828 = vmatprep.subr.mxu0 0.0
    %3829 = vmatpush1.msra.mxu0 0.0
    %3830 = vmatprep.subr.mxu0 0.0
    %3831 = vmatpush1.msra.mxu0 0.0
    %3832 = vmatprep.subr.mxu0 0.0
    %3833 = vmatpush1.msra.mxu0 0.0
    %3834 = vmatprep.subr.mxu0 0.0
    %3835 = vmatpush1.msra.mxu0 0.0
    %3836 = vmatprep.subr.mxu0 0.0
    %3837 = vmatpush1.msra.mxu0 0.0
    %3838 = vmatprep.subr.mxu0 0.0
    %3839 = vmatpush1.msra.mxu0 0.0
    %3840 = vmatprep.subr.mxu0 0.0
    %3841 = vmatpush1.msra.mxu0 0.0
    %3842 = vmatprep.subr.mxu0 0.0
    %3843 = vmatpush1.msra.mxu0 0.0
    %3844 = vmatprep.subr.mxu0 0.0
    %3845 = vmatpush1.msra.mxu0 0.0
    %3846 = vmatprep.subr.mxu0 0.0
    %3847 = vmatpush1.msra.mxu0 0.0
    %3848 = vmatprep.subr.mxu0 0.0
    %3849 = vmatpush1.msra.mxu0 0.0
    %3850 = vmatprep.subr.mxu0 0.0
    %3851 = vmatpush1.msra.mxu0 0.0
    %3852 = vmatprep.subr.mxu0 0.0
    %3853 = vmatpush1.msra.mxu0 0.0
    %3854 = vmatprep.subr.mxu0 0.0
    %3855 = vmatpush1.msra.mxu0 0.0
    %3856 = vmatprep.subr.mxu0 0.0
    %3857 = vmatpush1.msra.mxu0 0.0
    %3858 = vmatprep.subr.mxu0 0.0
    %3859 = vmatpush1.msra.mxu0 0.0
    %3860 = vmatprep.subr.mxu0 0.0
    %3861 = vmatpush1.msra.mxu0 0.0
    %3862 = vmatprep.subr.mxu0 0.0
    %3863 = vmatpush1.msra.mxu0 0.0
    %3864 = vmatprep.subr.mxu0 0.0
    %3865 = vmatpush1.msra.mxu0 0.0
    %3866 = vmatprep.subr.mxu0 0.0
    %3867 = vmatpush1.msra.mxu0 0.0
    %3868 = vmatprep.subr.mxu0 0.0
    %3869 = vmatpush1.msra.mxu0 0.0
    %3870 = vmatprep.mubr.f32.mxu0 0.0
    %3871 = vmatmul.mubr.f32.gmra.mrb[0].mxu0 %v3662
    %v3872 = vpop.f32.mrb[0].mxu0
    %v3873 = vadd.f32 0.0, %v3872
    %v3874 = vpop.f32.mrb[0].mxu0
    %v3875 = vadd.f32 0.0, %v3874
    %3876 = vdwg.mxu0
    %3877 = vmatprep.subr.mxu0 %v3594
    %3878 = vmatpush1.msra.mxu0 %v3593
    %3879 = vmatprep.subr.mxu0 %v3606
    %3880 = vmatpush1.msra.mxu0 %v3605
    %3881 = vmatprep.subr.mxu0 %v3618
    %3882 = vmatpush1.msra.mxu0 %v3617
    %3883 = vmatprep.subr.mxu0 %v3630
    %3884 = vmatpush1.msra.mxu0 %v3629
    %3885 = vmatprep.subr.mxu0 %v3642
    %3886 = vmatpush1.msra.mxu0 %v3641
    %3887 = vmatprep.subr.mxu0 %v3654
    %3888 = vmatpush1.msra.mxu0 %v3653
    %3889 = vmatprep.subr.mxu0 0.0
    %3890 = vmatpush1.msra.mxu0 0.0
    %3891 = vmatprep.subr.mxu0 0.0
    %3892 = vmatpush1.msra.mxu0 0.0
    %3893 = vmatprep.subr.mxu0 0.0
    %3894 = vmatpush1.msra.mxu0 0.0
    %3895 = vmatprep.subr.mxu0 0.0
    %3896 = vmatpush1.msra.mxu0 0.0
    %3897 = vmatprep.subr.mxu0 0.0
    %3898 = vmatpush1.msra.mxu0 0.0
    %3899 = vmatprep.subr.mxu0 0.0
    %3900 = vmatpush1.msra.mxu0 0.0
    %3901 = vmatprep.subr.mxu0 0.0
    %3902 = vmatpush1.msra.mxu0 0.0
    %3903 = vmatprep.subr.mxu0 0.0
    %3904 = vmatpush1.msra.mxu0 0.0
    %3905 = vmatprep.subr.mxu0 0.0
    %3906 = vmatpush1.msra.mxu0 0.0
    %3907 = vmatprep.subr.mxu0 0.0
    %3908 = vmatpush1.msra.mxu0 0.0
    %3909 = vmatprep.subr.mxu0 0.0
    %3910 = vmatpush1.msra.mxu0 0.0
    %3911 = vmatprep.subr.mxu0 0.0
    %3912 = vmatpush1.msra.mxu0 0.0
    %3913 = vmatprep.subr.mxu0 0.0
    %3914 = vmatpush1.msra.mxu0 0.0
    %3915 = vmatprep.subr.mxu0 0.0
    %3916 = vmatpush1.msra.mxu0 0.0
    %3917 = vmatprep.subr.mxu0 0.0
    %3918 = vmatpush1.msra.mxu0 0.0
    %3919 = vmatprep.subr.mxu0 0.0
    %3920 = vmatpush1.msra.mxu0 0.0
    %3921 = vmatprep.subr.mxu0 0.0
    %3922 = vmatpush1.msra.mxu0 0.0
    %3923 = vmatprep.subr.mxu0 0.0
    %3924 = vmatpush1.msra.mxu0 0.0
    %3925 = vmatprep.subr.mxu0 0.0
    %3926 = vmatpush1.msra.mxu0 0.0
    %3927 = vmatprep.subr.mxu0 0.0
    %3928 = vmatpush1.msra.mxu0 0.0
    %3929 = vmatprep.subr.mxu0 0.0
    %3930 = vmatpush1.msra.mxu0 0.0
    %3931 = vmatprep.subr.mxu0 0.0
    %3932 = vmatpush1.msra.mxu0 0.0
    %3933 = vmatprep.subr.mxu0 0.0
    %3934 = vmatpush1.msra.mxu0 0.0
    %3935 = vmatprep.subr.mxu0 0.0
    %3936 = vmatpush1.msra.mxu0 0.0
    %3937 = vmatprep.subr.mxu0 0.0
    %3938 = vmatpush1.msra.mxu0 0.0
    %3939 = vmatprep.subr.mxu0 0.0
    %3940 = vmatpush1.msra.mxu0 0.0
    %3941 = vmatprep.mubr.f32.mxu0 0.0
    %3942 = vmatmul.mubr.f32.gmra.mrb[0].mxu0 %v3662
    %v3943 = vpop.f32.mrb[0].mxu0
    %v3944 = vadd.f32 0.0, %v3943
    %v3945 = vpop.f32.mrb[0].mxu0
    %v3946 = vadd.f32 0.0, %v3945
    %3947 = vdwg.mxu0
    %3948 = vmatprep.subr.mxu0 %v3596
    %3949 = vmatpush1.msra.mxu0 %v3595
    %3950 = vmatprep.subr.mxu0 %v3608
    %3951 = vmatpush1.msra.mxu0 %v3607
    %3952 = vmatprep.subr.mxu0 %v3620
    %3953 = vmatpush1.msra.mxu0 %v3619
    %3954 = vmatprep.subr.mxu0 %v3632
    %3955 = vmatpush1.msra.mxu0 %v3631
    %3956 = vmatprep.subr.mxu0 %v3644
    %3957 = vmatpush1.msra.mxu0 %v3643
    %3958 = vmatprep.subr.mxu0 %v3656
    %3959 = vmatpush1.msra.mxu0 %v3655
    %3960 = vmatprep.subr.mxu0 0.0
    %3961 = vmatpush1.msra.mxu0 0.0
    %3962 = vmatprep.subr.mxu0 0.0
    %3963 = vmatpush1.msra.mxu0 0.0
    %3964 = vmatprep.subr.mxu0 0.0
    %3965 = vmatpush1.msra.mxu0 0.0
    %3966 = vmatprep.subr.mxu0 0.0
    %3967 = vmatpush1.msra.mxu0 0.0
    %3968 = vmatprep.subr.mxu0 0.0
    %3969 = vmatpush1.msra.mxu0 0.0
    %3970 = vmatprep.subr.mxu0 0.0
    %3971 = vmatpush1.msra.mxu0 0.0
    %3972 = vmatprep.subr.mxu0 0.0
    %3973 = vmatpush1.msra.mxu0 0.0
    %3974 = vmatprep.subr.mxu0 0.0
    %3975 = vmatpush1.msra.mxu0 0.0
    %3976 = vmatprep.subr.mxu0 0.0
    %3977 = vmatpush1.msra.mxu0 0.0
    %3978 = vmatprep.subr.mxu0 0.0
    %3979 = vmatpush1.msra.mxu0 0.0
    %3980 = vmatprep.subr.mxu0 0.0
    %3981 = vmatpush1.msra.mxu0 0.0
    %3982 = vmatprep.subr.mxu0 0.0
    %3983 = vmatpush1.msra.mxu0 0.0
    %3984 = vmatprep.subr.mxu0 0.0
    %3985 = vmatpush1.msra.mxu0 0.0
    %3986 = vmatprep.subr.mxu0 0.0
    %3987 = vmatpush1.msra.mxu0 0.0
    %3988 = vmatprep.subr.mxu0 0.0
    %3989 = vmatpush1.msra.mxu0 0.0
    %3990 = vmatprep.subr.mxu0 0.0
    %3991 = vmatpush1.msra.mxu0 0.0
    %3992 = vmatprep.subr.mxu0 0.0
    %3993 = vmatpush1.msra.mxu0 0.0
    %3994 = vmatprep.subr.mxu0 0.0
    %3995 = vmatpush1.msra.mxu0 0.0
    %3996 = vmatprep.subr.mxu0 0.0
    %3997 = vmatpush1.msra.mxu0 0.0
    %3998 = vmatprep.subr.mxu0 0.0
    %3999 = vmatpush1.msra.mxu0 0.0
    %4000 = vmatprep.subr.mxu0 0.0
    %4001 = vmatpush1.msra.mxu0 0.0
    %4002 = vmatprep.subr.mxu0 0.0
    %4003 = vmatpush1.msra.mxu0 0.0
    %4004 = vmatprep.subr.mxu0 0.0
    %4005 = vmatpush1.msra.mxu0 0.0
    %4006 = vmatprep.subr.mxu0 0.0
    %4007 = vmatpush1.msra.mxu0 0.0
    %4008 = vmatprep.subr.mxu0 0.0
    %4009 = vmatpush1.msra.mxu0 0.0
    %4010 = vmatprep.subr.mxu0 0.0
    %4011 = vmatpush1.msra.mxu0 0.0
    %4012 = vmatprep.mubr.f32.mxu0 0.0
    %4013 = vmatmul.mubr.f32.gmra.mrb[0].mxu0 %v3662
    %v4014 = vpop.f32.mrb[0].mxu0
    %v4015 = vadd.f32 0.0, %v4014
    %v4016 = vpop.f32.mrb[0].mxu0
    %v4017 = vadd.f32 0.0, %v4016
    %4018 = vdwg.mxu0
    %4019 = vmatprep.subr.mxu0 %v3598
    %4020 = vmatpush1.msra.mxu0 %v3597
    %4021 = vmatprep.subr.mxu0 %v3610
    %4022 = vmatpush1.msra.mxu0 %v3609
    %4023 = vmatprep.subr.mxu0 %v3622
    %4024 = vmatpush1.msra.mxu0 %v3621
    %4025 = vmatprep.subr.mxu0 %v3634
    %4026 = vmatpush1.msra.mxu0 %v3633
    %4027 = vmatprep.subr.mxu0 %v3646
    %4028 = vmatpush1.msra.mxu0 %v3645
    %4029 = vmatprep.subr.mxu0 %v3658
    %4030 = vmatpush1.msra.mxu0 %v3657
    %4031 = vmatprep.subr.mxu0 0.0
    %4032 = vmatpush1.msra.mxu0 0.0
    %4033 = vmatprep.subr.mxu0 0.0
    %4034 = vmatpush1.msra.mxu0 0.0
    %4035 = vmatprep.subr.mxu0 0.0
    %4036 = vmatpush1.msra.mxu0 0.0
    %4037 = vmatprep.subr.mxu0 0.0
    %4038 = vmatpush1.msra.mxu0 0.0
    %4039 = vmatprep.subr.mxu0 0.0
    %4040 = vmatpush1.msra.mxu0 0.0
    %4041 = vmatprep.subr.mxu0 0.0
    %4042 = vmatpush1.msra.mxu0 0.0
    %4043 = vmatprep.subr.mxu0 0.0
    %4044 = vmatpush1.msra.mxu0 0.0
    %4045 = vmatprep.subr.mxu0 0.0
    %4046 = vmatpush1.msra.mxu0 0.0
    %4047 = vmatprep.subr.mxu0 0.0
    %4048 = vmatpush1.msra.mxu0 0.0
    %4049 = vmatprep.subr.mxu0 0.0
    %4050 = vmatpush1.msra.mxu0 0.0
    %4051 = vmatprep.subr.mxu0 0.0
    %4052 = vmatpush1.msra.mxu0 0.0
    %4053 = vmatprep.subr.mxu0 0.0
    %4054 = vmatpush1.msra.mxu0 0.0
    %4055 = vmatprep.subr.mxu0 0.0
    %4056 = vmatpush1.msra.mxu0 0.0
    %4057 = vmatprep.subr.mxu0 0.0
    %4058 = vmatpush1.msra.mxu0 0.0
    %4059 = vmatprep.subr.mxu0 0.0
    %4060 = vmatpush1.msra.mxu0 0.0
    %4061 = vmatprep.subr.mxu0 0.0
    %4062 = vmatpush1.msra.mxu0 0.0
    %4063 = vmatprep.subr.mxu0 0.0
    %4064 = vmatpush1.msra.mxu0 0.0
    %4065 = vmatprep.subr.mxu0 0.0
    %4066 = vmatpush1.msra.mxu0 0.0
    %4067 = vmatprep.subr.mxu0 0.0
    %4068 = vmatpush1.msra.mxu0 0.0
    %4069 = vmatprep.subr.mxu0 0.0
    %4070 = vmatpush1.msra.mxu0 0.0
    %4071 = vmatprep.subr.mxu0 0.0
    %4072 = vmatpush1.msra.mxu0 0.0
    %4073 = vmatprep.subr.mxu0 0.0
    %4074 = vmatpush1.msra.mxu0 0.0
    %4075 = vmatprep.subr.mxu0 0.0
    %4076 = vmatpush1.msra.mxu0 0.0
    %4077 = vmatprep.subr.mxu0 0.0
    %4078 = vmatpush1.msra.mxu0 0.0
    %4079 = vmatprep.subr.mxu0 0.0
    %4080 = vmatpush1.msra.mxu0 0.0
    %4081 = vmatprep.subr.mxu0 0.0
    %4082 = vmatpush1.msra.mxu0 0.0
    %4083 = vmatprep.mubr.f32.mxu0 0.0
    %4084 = vmatmul.mubr.f32.gmra.mrb[0].mxu0 %v3662
    %v4085 = vpop.f32.mrb[0].mxu0
    %v4086 = vadd.f32 0.0, %v4085
    %v4087 = vpop.f32.mrb[0].mxu0
    %v4088 = vadd.f32 0.0, %v4087
    %4089 = vdwg.mxu0
    %v4090 = vmul.f32 %v3587, %v3587
    %v4091 = vmul.f32 %v3588, %v3588
    %v4092 = vmul.f32 %v3589, %v3589
    %v4093 = vmul.f32 %v3590, %v3590
    %v4094 = vmul.f32 %v3591, %v3591
    %v4095 = vmul.f32 %v3592, %v3592
    %v4096 = vmul.f32 %v3593, %v3593
    %v4097 = vmul.f32 %v3594, %v3594
    %v4098 = vmul.f32 %v3595, %v3595
    %v4099 = vmul.f32 %v3596, %v3596
    %v4100 = vmul.f32 %v3597, %v3597
    %v4101 = vmul.f32 %v3598, %v3598
    %v4102 = vmul.f32 %v3599, %v3599
    %v4103 = vmul.f32 %v3600, %v3600
    %v4104 = vmul.f32 %v3601, %v3601
    %v4105 = vmul.f32 %v3602, %v3602
    %v4106 = vmul.f32 %v3603, %v3603
    %v4107 = vmul.f32 %v3604, %v3604
    %v4108 = vmul.f32 %v3605, %v3605
    %v4109 = vmul.f32 %v3606, %v3606
    %v4110 = vmul.f32 %v3607, %v3607
    %v4111 = vmul.f32 %v3608, %v3608
    %v4112 = vmul.f32 %v3609, %v3609
    %v4113 = vmul.f32 %v3610, %v3610
    %v4114 = vmul.f32 %v3611, %v3611
    %v4115 = vmul.f32 %v3612, %v3612
    %v4116 = vmul.f32 %v3613, %v3613
    %v4117 = vmul.f32 %v3614, %v3614
    %v4118 = vmul.f32 %v3615, %v3615
    %v4119 = vmul.f32 %v3616, %v3616
    %v4120 = vmul.f32 %v3617, %v3617
    %v4121 = vmul.f32 %v3618, %v3618
    %v4122 = vmul.f32 %v3619, %v3619
    %v4123 = vmul.f32 %v3620, %v3620
    %v4124 = vmul.f32 %v3621, %v3621
    %v4125 = vmul.f32 %v3622, %v3622
    %v4126 = vmul.f32 %v3623, %v3623
    %v4127 = vmul.f32 %v3624, %v3624
    %v4128 = vmul.f32 %v3625, %v3625
    %v4129 = vmul.f32 %v3626, %v3626
    %v4130 = vmul.f32 %v3627, %v3627
    %v4131 = vmul.f32 %v3628, %v3628
    %v4132 = vmul.f32 %v3629, %v3629
    %v4133 = vmul.f32 %v3630, %v3630
    %v4134 = vmul.f32 %v3631, %v3631
    %v4135 = vmul.f32 %v3632, %v3632
    %v4136 = vmul.f32 %v3633, %v3633
    %v4137 = vmul.f32 %v3634, %v3634
    %v4138 = vmul.f32 %v3635, %v3635
    %v4139 = vmul.f32 %v3636, %v3636
    %v4140 = vmul.f32 %v3637, %v3637
    %v4141 = vmul.f32 %v3638, %v3638
    %v4142 = vmul.f32 %v3639, %v3639
    %v4143 = vmul.f32 %v3640, %v3640
    %v4144 = vmul.f32 %v3641, %v3641
    %v4145 = vmul.f32 %v3642, %v3642
    %v4146 = vmul.f32 %v3643, %v3643
    %v4147 = vmul.f32 %v3644, %v3644
    %v4148 = vmul.f32 %v3645, %v3645
    %v4149 = vmul.f32 %v3646, %v3646
    %v4150 = vmul.f32 %v3647, %v3647
    %v4151 = vmul.f32 %v3648, %v3648
    %v4152 = vmul.f32 %v3649, %v3649
    %v4153 = vmul.f32 %v3650, %v3650
    %v4154 = vmul.f32 %v3651, %v3651
    %v4155 = vmul.f32 %v3652, %v3652
    %v4156 = vmul.f32 %v3653, %v3653
    %v4157 = vmul.f32 %v3654, %v3654
    %v4158 = vmul.f32 %v3655, %v3655
    %v4159 = vmul.f32 %v3656, %v3656
    %v4160 = vmul.f32 %v3657, %v3657
    %v4161 = vmul.f32 %v3658, %v3658
    %4162 = vmatprep.subr.mxu0 %v4091
    %4163 = vmatpush1.msra.mxu0 %v4090
    %4164 = vmatprep.subr.mxu0 %v4103
    %4165 = vmatpush1.msra.mxu0 %v4102
    %4166 = vmatprep.subr.mxu0 %v4115
    %4167 = vmatpush1.msra.mxu0 %v4114
    %4168 = vmatprep.subr.mxu0 %v4127
    %4169 = vmatpush1.msra.mxu0 %v4126
    %4170 = vmatprep.subr.mxu0 %v4139
    %4171 = vmatpush1.msra.mxu0 %v4138
    %4172 = vmatprep.subr.mxu0 %v4151
    %4173 = vmatpush1.msra.mxu0 %v4150
    %4174 = vmatprep.subr.mxu0 0.0
    %4175 = vmatpush1.msra.mxu0 0.0
    %4176 = vmatprep.subr.mxu0 0.0
    %4177 = vmatpush1.msra.mxu0 0.0
    %4178 = vmatprep.subr.mxu0 0.0
    %4179 = vmatpush1.msra.mxu0 0.0
    %4180 = vmatprep.subr.mxu0 0.0
    %4181 = vmatpush1.msra.mxu0 0.0
    %4182 = vmatprep.subr.mxu0 0.0
    %4183 = vmatpush1.msra.mxu0 0.0
    %4184 = vmatprep.subr.mxu0 0.0
    %4185 = vmatpush1.msra.mxu0 0.0
    %4186 = vmatprep.subr.mxu0 0.0
    %4187 = vmatpush1.msra.mxu0 0.0
    %4188 = vmatprep.subr.mxu0 0.0
    %4189 = vmatpush1.msra.mxu0 0.0
    %4190 = vmatprep.subr.mxu0 0.0
    %4191 = vmatpush1.msra.mxu0 0.0
    %4192 = vmatprep.subr.mxu0 0.0
    %4193 = vmatpush1.msra.mxu0 0.0
    %4194 = vmatprep.subr.mxu0 0.0
    %4195 = vmatpush1.msra.mxu0 0.0
    %4196 = vmatprep.subr.mxu0 0.0
    %4197 = vmatpush1.msra.mxu0 0.0
    %4198 = vmatprep.subr.mxu0 0.0
    %4199 = vmatpush1.msra.mxu0 0.0
    %4200 = vmatprep.subr.mxu0 0.0
    %4201 = vmatpush1.msra.mxu0 0.0
    %4202 = vmatprep.subr.mxu0 0.0
    %4203 = vmatpush1.msra.mxu0 0.0
    %4204 = vmatprep.subr.mxu0 0.0
    %4205 = vmatpush1.msra.mxu0 0.0
    %4206 = vmatprep.subr.mxu0 0.0
    %4207 = vmatpush1.msra.mxu0 0.0
    %4208 = vmatprep.subr.mxu0 0.0
    %4209 = vmatpush1.msra.mxu0 0.0
    %4210 = vmatprep.subr.mxu0 0.0
    %4211 = vmatpush1.msra.mxu0 0.0
    %4212 = vmatprep.subr.mxu0 0.0
    %4213 = vmatpush1.msra.mxu0 0.0
    %4214 = vmatprep.subr.mxu0 0.0
    %4215 = vmatpush1.msra.mxu0 0.0
    %4216 = vmatprep.subr.mxu0 0.0
    %4217 = vmatpush1.msra.mxu0 0.0
    %4218 = vmatprep.subr.mxu0 0.0
    %4219 = vmatpush1.msra.mxu0 0.0
    %4220 = vmatprep.subr.mxu0 0.0
    %4221 = vmatpush1.msra.mxu0 0.0
    %4222 = vmatprep.subr.mxu0 0.0
    %4223 = vmatpush1.msra.mxu0 0.0
    %4224 = vmatprep.subr.mxu0 0.0
    %4225 = vmatpush1.msra.mxu0 0.0
    %4226 = vmatprep.mubr.f32.mxu0 0.0
    %4227 = vmatmul.mubr.f32.gmra.mrb[0].mxu0 %v3662
    %v4228 = vpop.f32.mrb[0].mxu0
    %v4229 = vadd.f32 0.0, %v4228
    %v4230 = vpop.f32.mrb[0].mxu0
    %v4231 = vadd.f32 0.0, %v4230
    %4232 = vdwg.mxu0
    %4233 = vmatprep.subr.mxu0 %v4093
    %4234 = vmatpush1.msra.mxu0 %v4092
    %4235 = vmatprep.subr.mxu0 %v4105
    %4236 = vmatpush1.msra.mxu0 %v4104
    %4237 = vmatprep.subr.mxu0 %v4117
    %4238 = vmatpush1.msra.mxu0 %v4116
    %4239 = vmatprep.subr.mxu0 %v4129
    %4240 = vmatpush1.msra.mxu0 %v4128
    %4241 = vmatprep.subr.mxu0 %v4141
    %4242 = vmatpush1.msra.mxu0 %v4140
    %4243 = vmatprep.subr.mxu0 %v4153
    %4244 = vmatpush1.msra.mxu0 %v4152
    %4245 = vmatprep.subr.mxu0 0.0
    %4246 = vmatpush1.msra.mxu0 0.0
    %4247 = vmatprep.subr.mxu0 0.0
    %4248 = vmatpush1.msra.mxu0 0.0
    %4249 = vmatprep.subr.mxu0 0.0
    %4250 = vmatpush1.msra.mxu0 0.0
    %4251 = vmatprep.subr.mxu0 0.0
    %4252 = vmatpush1.msra.mxu0 0.0
    %4253 = vmatprep.subr.mxu0 0.0
    %4254 = vmatpush1.msra.mxu0 0.0
    %4255 = vmatprep.subr.mxu0 0.0
    %4256 = vmatpush1.msra.mxu0 0.0
    %4257 = vmatprep.subr.mxu0 0.0
    %4258 = vmatpush1.msra.mxu0 0.0
    %4259 = vmatprep.subr.mxu0 0.0
    %4260 = vmatpush1.msra.mxu0 0.0
    %4261 = vmatprep.subr.mxu0 0.0
    %4262 = vmatpush1.msra.mxu0 0.0
    %4263 = vmatprep.subr.mxu0 0.0
    %4264 = vmatpush1.msra.mxu0 0.0
    %4265 = vmatprep.subr.mxu0 0.0
    %4266 = vmatpush1.msra.mxu0 0.0
    %4267 = vmatprep.subr.mxu0 0.0
    %4268 = vmatpush1.msra.mxu0 0.0
    %4269 = vmatprep.subr.mxu0 0.0
    %4270 = vmatpush1.msra.mxu0 0.0
    %4271 = vmatprep.subr.mxu0 0.0
    %4272 = vmatpush1.msra.mxu0 0.0
    %4273 = vmatprep.subr.mxu0 0.0
    %4274 = vmatpush1.msra.mxu0 0.0
    %4275 = vmatprep.subr.mxu0 0.0
    %4276 = vmatpush1.msra.mxu0 0.0
    %4277 = vmatprep.subr.mxu0 0.0
    %4278 = vmatpush1.msra.mxu0 0.0
    %4279 = vmatprep.subr.mxu0 0.0
    %4280 = vmatpush1.msra.mxu0 0.0
    %4281 = vmatprep.subr.mxu0 0.0
    %4282 = vmatpush1.msra.mxu0 0.0
    %4283 = vmatprep.subr.mxu0 0.0
    %4284 = vmatpush1.msra.mxu0 0.0
    %4285 = vmatprep.subr.mxu0 0.0
    %4286 = vmatpush1.msra.mxu0 0.0
    %4287 = vmatprep.subr.mxu0 0.0
    %4288 = vmatpush1.msra.mxu0 0.0
    %4289 = vmatprep.subr.mxu0 0.0
    %4290 = vmatpush1.msra.mxu0 0.0
    %4291 = vmatprep.subr.mxu0 0.0
    %4292 = vmatpush1.msra.mxu0 0.0
    %4293 = vmatprep.subr.mxu0 0.0
    %4294 = vmatpush1.msra.mxu0 0.0
    %4295 = vmatprep.subr.mxu0 0.0
    %4296 = vmatpush1.msra.mxu0 0.0
    %4297 = vmatprep.mubr.f32.mxu0 0.0
    %4298 = vmatmul.mubr.f32.gmra.mrb[0].mxu0 %v3662
    %v4299 = vpop.f32.mrb[0].mxu0
    %v4300 = vadd.f32 0.0, %v4299
    %v4301 = vpop.f32.mrb[0].mxu0
    %v4302 = vadd.f32 0.0, %v4301
    %4303 = vdwg.mxu0
    %4304 = vmatprep.subr.mxu0 %v4095
    %4305 = vmatpush1.msra.mxu0 %v4094
    %4306 = vmatprep.subr.mxu0 %v4107
    %4307 = vmatpush1.msra.mxu0 %v4106
    %4308 = vmatprep.subr.mxu0 %v4119
    %4309 = vmatpush1.msra.mxu0 %v4118
    %4310 = vmatprep.subr.mxu0 %v4131
    %4311 = vmatpush1.msra.mxu0 %v4130
    %4312 = vmatprep.subr.mxu0 %v4143
    %4313 = vmatpush1.msra.mxu0 %v4142
    %4314 = vmatprep.subr.mxu0 %v4155
    %4315 = vmatpush1.msra.mxu0 %v4154
    %4316 = vmatprep.subr.mxu0 0.0
    %4317 = vmatpush1.msra.mxu0 0.0
    %4318 = vmatprep.subr.mxu0 0.0
    %4319 = vmatpush1.msra.mxu0 0.0
    %4320 = vmatprep.subr.mxu0 0.0
    %4321 = vmatpush1.msra.mxu0 0.0
    %4322 = vmatprep.subr.mxu0 0.0
    %4323 = vmatpush1.msra.mxu0 0.0
    %4324 = vmatprep.subr.mxu0 0.0
    %4325 = vmatpush1.msra.mxu0 0.0
    %4326 = vmatprep.subr.mxu0 0.0
    %4327 = vmatpush1.msra.mxu0 0.0
    %4328 = vmatprep.subr.mxu0 0.0
    %4329 = vmatpush1.msra.mxu0 0.0
    %4330 = vmatprep.subr.mxu0 0.0
    %4331 = vmatpush1.msra.mxu0 0.0
    %4332 = vmatprep.subr.mxu0 0.0
    %4333 = vmatpush1.msra.mxu0 0.0
    %4334 = vmatprep.subr.mxu0 0.0
    %4335 = vmatpush1.msra.mxu0 0.0
    %4336 = vmatprep.subr.mxu0 0.0
    %4337 = vmatpush1.msra.mxu0 0.0
    %4338 = vmatprep.subr.mxu0 0.0
    %4339 = vmatpush1.msra.mxu0 0.0
    %4340 = vmatprep.subr.mxu0 0.0
    %4341 = vmatpush1.msra.mxu0 0.0
    %4342 = vmatprep.subr.mxu0 0.0
    %4343 = vmatpush1.msra.mxu0 0.0
    %4344 = vmatprep.subr.mxu0 0.0
    %4345 = vmatpush1.msra.mxu0 0.0
    %4346 = vmatprep.subr.mxu0 0.0
    %4347 = vmatpush1.msra.mxu0 0.0
    %4348 = vmatprep.subr.mxu0 0.0
    %4349 = vmatpush1.msra.mxu0 0.0
    %4350 = vmatprep.subr.mxu0 0.0
    %4351 = vmatpush1.msra.mxu0 0.0
    %4352 = vmatprep.subr.mxu0 0.0
    %4353 = vmatpush1.msra.mxu0 0.0
    %4354 = vmatprep.subr.mxu0 0.0
    %4355 = vmatpush1.msra.mxu0 0.0
    %4356 = vmatprep.subr.mxu0 0.0
    %4357 = vmatpush1.msra.mxu0 0.0
    %4358 = vmatprep.subr.mxu0 0.0
    %4359 = vmatpush1.msra.mxu0 0.0
    %4360 = vmatprep.subr.mxu0 0.0
    %4361 = vmatpush1.msra.mxu0 0.0
    %4362 = vmatprep.subr.mxu0 0.0
    %4363 = vmatpush1.msra.mxu0 0.0
    %4364 = vmatprep.subr.mxu0 0.0
    %4365 = vmatpush1.msra.mxu0 0.0
    %4366 = vmatprep.subr.mxu0 0.0
    %4367 = vmatpush1.msra.mxu0 0.0
    %4368 = vmatprep.mubr.f32.mxu0 0.0
    %4369 = vmatmul.mubr.f32.gmra.mrb[0].mxu0 %v3662
    %v4370 = vpop.f32.mrb[0].mxu0
    %v4371 = vadd.f32 0.0, %v4370
    %v4372 = vpop.f32.mrb[0].mxu0
    %v4373 = vadd.f32 0.0, %v4372
    %4374 = vdwg.mxu0
    %4375 = vmatprep.subr.mxu0 %v4097
    %4376 = vmatpush1.msra.mxu0 %v4096
    %4377 = vmatprep.subr.mxu0 %v4109
    %4378 = vmatpush1.msra.mxu0 %v4108
    %4379 = vmatprep.subr.mxu0 %v4121
    %4380 = vmatpush1.msra.mxu0 %v4120
    %4381 = vmatprep.subr.mxu0 %v4133
    %4382 = vmatpush1.msra.mxu0 %v4132
    %4383 = vmatprep.subr.mxu0 %v4145
    %4384 = vmatpush1.msra.mxu0 %v4144
    %4385 = vmatprep.subr.mxu0 %v4157
    %4386 = vmatpush1.msra.mxu0 %v4156
    %4387 = vmatprep.subr.mxu0 0.0
    %4388 = vmatpush1.msra.mxu0 0.0
    %4389 = vmatprep.subr.mxu0 0.0
    %4390 = vmatpush1.msra.mxu0 0.0
    %4391 = vmatprep.subr.mxu0 0.0
    %4392 = vmatpush1.msra.mxu0 0.0
    %4393 = vmatprep.subr.mxu0 0.0
    %4394 = vmatpush1.msra.mxu0 0.0
    %4395 = vmatprep.subr.mxu0 0.0
    %4396 = vmatpush1.msra.mxu0 0.0
    %4397 = vmatprep.subr.mxu0 0.0
    %4398 = vmatpush1.msra.mxu0 0.0
    %4399 = vmatprep.subr.mxu0 0.0
    %4400 = vmatpush1.msra.mxu0 0.0
    %4401 = vmatprep.subr.mxu0 0.0
    %4402 = vmatpush1.msra.mxu0 0.0
    %4403 = vmatprep.subr.mxu0 0.0
    %4404 = vmatpush1.msra.mxu0 0.0
    %4405 = vmatprep.subr.mxu0 0.0
    %4406 = vmatpush1.msra.mxu0 0.0
    %4407 = vmatprep.subr.mxu0 0.0
    %4408 = vmatpush1.msra.mxu0 0.0
    %4409 = vmatprep.subr.mxu0 0.0
    %4410 = vmatpush1.msra.mxu0 0.0
    %4411 = vmatprep.subr.mxu0 0.0
    %4412 = vmatpush1.msra.mxu0 0.0
    %4413 = vmatprep.subr.mxu0 0.0
    %4414 = vmatpush1.msra.mxu0 0.0
    %4415 = vmatprep.subr.mxu0 0.0
    %4416 = vmatpush1.msra.mxu0 0.0
    %4417 = vmatprep.subr.mxu0 0.0
    %4418 = vmatpush1.msra.mxu0 0.0
    %4419 = vmatprep.subr.mxu0 0.0
    %4420 = vmatpush1.msra.mxu0 0.0
    %4421 = vmatprep.subr.mxu0 0.0
    %4422 = vmatpush1.msra.mxu0 0.0
    %4423 = vmatprep.subr.mxu0 0.0
    %4424 = vmatpush1.msra.mxu0 0.0
    %4425 = vmatprep.subr.mxu0 0.0
    %4426 = vmatpush1.msra.mxu0 0.0
    %4427 = vmatprep.subr.mxu0 0.0
    %4428 = vmatpush1.msra.mxu0 0.0
    %4429 = vmatprep.subr.mxu0 0.0
    %4430 = vmatpush1.msra.mxu0 0.0
    %4431 = vmatprep.subr.mxu0 0.0
    %4432 = vmatpush1.msra.mxu0 0.0
    %4433 = vmatprep.subr.mxu0 0.0
    %4434 = vmatpush1.msra.mxu0 0.0
    %4435 = vmatprep.subr.mxu0 0.0
    %4436 = vmatpush1.msra.mxu0 0.0
    %4437 = vmatprep.subr.mxu0 0.0
    %4438 = vmatpush1.msra.mxu0 0.0
    %4439 = vmatprep.mubr.f32.mxu0 0.0
    %4440 = vmatmul.mubr.f32.gmra.mrb[0].mxu0 %v3662
    %v4441 = vpop.f32.mrb[0].mxu0
    %v4442 = vadd.f32 0.0, %v4441
    %v4443 = vpop.f32.mrb[0].mxu0
    %v4444 = vadd.f32 0.0, %v4443
    %4445 = vdwg.mxu0
    %4446 = vmatprep.subr.mxu0 %v4099
    %4447 = vmatpush1.msra.mxu0 %v4098
    %4448 = vmatprep.subr.mxu0 %v4111
    %4449 = vmatpush1.msra.mxu0 %v4110
    %4450 = vmatprep.subr.mxu0 %v4123
    %4451 = vmatpush1.msra.mxu0 %v4122
    %4452 = vmatprep.subr.mxu0 %v4135
    %4453 = vmatpush1.msra.mxu0 %v4134
    %4454 = vmatprep.subr.mxu0 %v4147
    %4455 = vmatpush1.msra.mxu0 %v4146
    %4456 = vmatprep.subr.mxu0 %v4159
    %4457 = vmatpush1.msra.mxu0 %v4158
    %4458 = vmatprep.subr.mxu0 0.0
    %4459 = vmatpush1.msra.mxu0 0.0
    %4460 = vmatprep.subr.mxu0 0.0
    %4461 = vmatpush1.msra.mxu0 0.0
    %4462 = vmatprep.subr.mxu0 0.0
    %4463 = vmatpush1.msra.mxu0 0.0
    %4464 = vmatprep.subr.mxu0 0.0
    %4465 = vmatpush1.msra.mxu0 0.0
    %4466 = vmatprep.subr.mxu0 0.0
    %4467 = vmatpush1.msra.mxu0 0.0
    %4468 = vmatprep.subr.mxu0 0.0
    %4469 = vmatpush1.msra.mxu0 0.0
    %4470 = vmatprep.subr.mxu0 0.0
    %4471 = vmatpush1.msra.mxu0 0.0
    %4472 = vmatprep.subr.mxu0 0.0
    %4473 = vmatpush1.msra.mxu0 0.0
    %4474 = vmatprep.subr.mxu0 0.0
    %4475 = vmatpush1.msra.mxu0 0.0
    %4476 = vmatprep.subr.mxu0 0.0
    %4477 = vmatpush1.msra.mxu0 0.0
    %4478 = vmatprep.subr.mxu0 0.0
    %4479 = vmatpush1.msra.mxu0 0.0
    %4480 = vmatprep.subr.mxu0 0.0
    %4481 = vmatpush1.msra.mxu0 0.0
    %4482 = vmatprep.subr.mxu0 0.0
    %4483 = vmatpush1.msra.mxu0 0.0
    %4484 = vmatprep.subr.mxu0 0.0
    %4485 = vmatpush1.msra.mxu0 0.0
    %4486 = vmatprep.subr.mxu0 0.0
    %4487 = vmatpush1.msra.mxu0 0.0
    %4488 = vmatprep.subr.mxu0 0.0
    %4489 = vmatpush1.msra.mxu0 0.0
    %4490 = vmatprep.subr.mxu0 0.0
    %4491 = vmatpush1.msra.mxu0 0.0
    %4492 = vmatprep.subr.mxu0 0.0
    %4493 = vmatpush1.msra.mxu0 0.0
    %4494 = vmatprep.subr.mxu0 0.0
    %4495 = vmatpush1.msra.mxu0 0.0
    %4496 = vmatprep.subr.mxu0 0.0
    %4497 = vmatpush1.msra.mxu0 0.0
    %4498 = vmatprep.subr.mxu0 0.0
    %4499 = vmatpush1.msra.mxu0 0.0
    %4500 = vmatprep.subr.mxu0 0.0
    %4501 = vmatpush1.msra.mxu0 0.0
    %4502 = vmatprep.subr.mxu0 0.0
    %4503 = vmatpush1.msra.mxu0 0.0
    %4504 = vmatprep.subr.mxu0 0.0
    %4505 = vmatpush1.msra.mxu0 0.0
    %4506 = vmatprep.subr.mxu0 0.0
    %4507 = vmatpush1.msra.mxu0 0.0
    %4508 = vmatprep.subr.mxu0 0.0
    %4509 = vmatpush1.msra.mxu0 0.0
    %4510 = vmatprep.mubr.f32.mxu0 0.0
    %4511 = vmatmul.mubr.f32.gmra.mrb[0].mxu0 %v3662
    %v4512 = vpop.f32.mrb[0].mxu0
    %v4513 = vadd.f32 0.0, %v4512
    %v4514 = vpop.f32.mrb[0].mxu0
    %v4515 = vadd.f32 0.0, %v4514
    %4516 = vdwg.mxu0
    %4517 = vmatprep.subr.mxu0 %v4101
    %4518 = vmatpush1.msra.mxu0 %v4100
    %4519 = vmatprep.subr.mxu0 %v4113
    %4520 = vmatpush1.msra.mxu0 %v4112
    %4521 = vmatprep.subr.mxu0 %v4125
    %4522 = vmatpush1.msra.mxu0 %v4124
    %4523 = vmatprep.subr.mxu0 %v4137
    %4524 = vmatpush1.msra.mxu0 %v4136
    %4525 = vmatprep.subr.mxu0 %v4149
    %4526 = vmatpush1.msra.mxu0 %v4148
    %4527 = vmatprep.subr.mxu0 %v4161
    %4528 = vmatpush1.msra.mxu0 %v4160
    %4529 = vmatprep.subr.mxu0 0.0
    %4530 = vmatpush1.msra.mxu0 0.0
    %4531 = vmatprep.subr.mxu0 0.0
    %4532 = vmatpush1.msra.mxu0 0.0
    %4533 = vmatprep.subr.mxu0 0.0
    %4534 = vmatpush1.msra.mxu0 0.0
    %4535 = vmatprep.subr.mxu0 0.0
    %4536 = vmatpush1.msra.mxu0 0.0
    %4537 = vmatprep.subr.mxu0 0.0
    %4538 = vmatpush1.msra.mxu0 0.0
    %4539 = vmatprep.subr.mxu0 0.0
    %4540 = vmatpush1.msra.mxu0 0.0
    %4541 = vmatprep.subr.mxu0 0.0
    %4542 = vmatpush1.msra.mxu0 0.0
    %4543 = vmatprep.subr.mxu0 0.0
    %4544 = vmatpush1.msra.mxu0 0.0
    %4545 = vmatprep.subr.mxu0 0.0
    %4546 = vmatpush1.msra.mxu0 0.0
    %4547 = vmatprep.subr.mxu0 0.0
    %4548 = vmatpush1.msra.mxu0 0.0
    %4549 = vmatprep.subr.mxu0 0.0
    %4550 = vmatpush1.msra.mxu0 0.0
    %4551 = vmatprep.subr.mxu0 0.0
    %4552 = vmatpush1.msra.mxu0 0.0
    %4553 = vmatprep.subr.mxu0 0.0
    %4554 = vmatpush1.msra.mxu0 0.0
    %4555 = vmatprep.subr.mxu0 0.0
    %4556 = vmatpush1.msra.mxu0 0.0
    %4557 = vmatprep.subr.mxu0 0.0
    %4558 = vmatpush1.msra.mxu0 0.0
    %4559 = vmatprep.subr.mxu0 0.0
    %4560 = vmatpush1.msra.mxu0 0.0
    %4561 = vmatprep.subr.mxu0 0.0
    %4562 = vmatpush1.msra.mxu0 0.0
    %4563 = vmatprep.subr.mxu0 0.0
    %4564 = vmatpush1.msra.mxu0 0.0
    %4565 = vmatprep.subr.mxu0 0.0
    %4566 = vmatpush1.msra.mxu0 0.0
    %4567 = vmatprep.subr.mxu0 0.0
    %4568 = vmatpush1.msra.mxu0 0.0
    %4569 = vmatprep.subr.mxu0 0.0
    %4570 = vmatpush1.msra.mxu0 0.0
    %4571 = vmatprep.subr.mxu0 0.0
    %4572 = vmatpush1.msra.mxu0 0.0
    %4573 = vmatprep.subr.mxu0 0.0
    %4574 = vmatpush1.msra.mxu0 0.0
    %4575 = vmatprep.subr.mxu0 0.0
    %4576 = vmatpush1.msra.mxu0 0.0
    %4577 = vmatprep.subr.mxu0 0.0
    %4578 = vmatpush1.msra.mxu0 0.0
    %4579 = vmatprep.subr.mxu0 0.0
    %4580 = vmatpush1.msra.mxu0 0.0
    %4581 = vmatprep.mubr.f32.mxu0 0.0
    %4582 = vmatmul.mubr.f32.gmra.mrb[0].mxu0 %v3662
    %v4583 = vpop.f32.mrb[0].mxu0
    %v4584 = vadd.f32 0.0, %v4583
    %v4585 = vpop.f32.mrb[0].mxu0
    %v4586 = vadd.f32 0.0, %v4585
    %4587 = vdwg.mxu0
    %v4588 = vmul.f32 %v3731, %v3731
    %v4589 = vmul.f32 %v3733, %v3733
    %v4590 = vmul.f32 %v3802, %v3802
    %v4591 = vmul.f32 %v3804, %v3804
    %v4592 = vmul.f32 %v3873, %v3873
    %v4593 = vmul.f32 %v3875, %v3875
    %v4594 = vmul.f32 %v3944, %v3944
    %v4595 = vmul.f32 %v3946, %v3946
    %v4596 = vmul.f32 %v4015, %v4015
    %v4597 = vmul.f32 %v4017, %v4017
    %v4598 = vmul.f32 %v4086, %v4086
    %v4599 = vmul.f32 %v4088, %v4088
    %v4600 = vsub.f32 %v4229, %v4588
    %v4601 = vsub.f32 %v4231, %v4589
    %v4602 = vsub.f32 %v4300, %v4590
    %v4603 = vsub.f32 %v4302, %v4591
    %v4604 = vsub.f32 %v4371, %v4592
    %v4605 = vsub.f32 %v4373, %v4593
    %v4606 = vsub.f32 %v4442, %v4594
    %v4607 = vsub.f32 %v4444, %v4595
    %v4608 = vsub.f32 %v4513, %v4596
    %v4609 = vsub.f32 %v4515, %v4597
    %v4610 = vsub.f32 %v4584, %v4598
    %v4611 = vsub.f32 %v4586, %v4599
    %v4612 = vmul.f32 %v4600, 1.0666667
    %v4613 = vmul.f32 %v4601, 1.0666667
    %v4614 = vmul.f32 %v4602, 1.0666667
    %v4615 = vmul.f32 %v4603, 1.0666667
    %v4616 = vmul.f32 %v4604, 1.0666667
    %v4617 = vmul.f32 %v4605, 1.0666667
    %v4618 = vmul.f32 %v4606, 1.0666667
    %v4619 = vmul.f32 %v4607, 1.0666667
    %v4620 = vmul.f32 %v4608, 1.0666667
    %v4621 = vmul.f32 %v4609, 1.0666667
    %v4622 = vmul.f32 %v4610, 1.0666667
    %v4623 = vmul.f32 %v4611, 1.0666667
    %v4624 = vmax.f32 %v4612, 0.0
    %v4625 = vmax.f32 %v4613, 0.0
    %v4626 = vmax.f32 %v4614, 0.0
    %v4627 = vmax.f32 %v4615, 0.0
    %v4628 = vmax.f32 %v4616, 0.0
    %v4629 = vmax.f32 %v4617, 0.0
    %v4630 = vmax.f32 %v4618, 0.0
    %v4631 = vmax.f32 %v4619, 0.0
    %v4632 = vmax.f32 %v4620, 0.0
    %v4633 = vmax.f32 %v4621, 0.0
    %v4634 = vmax.f32 %v4622, 0.0
    %v4635 = vmax.f32 %v4623, 0.0
    %v4636 = vrsqrt.pop %v4624
    %v4637 = vmul.f32 %v4624, %v4636
    %vm4638 = vcmp.eq.f32.partialorder %v4624, inf
    %v4639 = vsel %vm4638, %v4624, %v4637
    %vm4640 = vcmp.eq.f32.partialorder %v4624, 0.0
    %v4641 = vand.u32 %v4624, 2147483648
    %v4642 = vsel %vm4640, %v4641, %v4639
    %v4643 = vrsqrt.pop %v4625
    %v4644 = vmul.f32 %v4625, %v4643
    %vm4645 = vcmp.eq.f32.partialorder %v4625, inf
    %v4646 = vsel %vm4645, %v4625, %v4644
    %vm4647 = vcmp.eq.f32.partialorder %v4625, 0.0
    %v4648 = vand.u32 %v4625, 2147483648
    %v4649 = vsel %vm4647, %v4648, %v4646
    %v4650 = vrsqrt.pop %v4626
    %v4651 = vmul.f32 %v4626, %v4650
    %vm4652 = vcmp.eq.f32.partialorder %v4626, inf
    %v4653 = vsel %vm4652, %v4626, %v4651
    %vm4654 = vcmp.eq.f32.partialorder %v4626, 0.0
    %v4655 = vand.u32 %v4626, 2147483648
    %v4656 = vsel %vm4654, %v4655, %v4653
    %v4657 = vrsqrt.pop %v4627
    %v4658 = vmul.f32 %v4627, %v4657
    %vm4659 = vcmp.eq.f32.partialorder %v4627, inf
    %v4660 = vsel %vm4659, %v4627, %v4658
    %vm4661 = vcmp.eq.f32.partialorder %v4627, 0.0
    %v4662 = vand.u32 %v4627, 2147483648
    %v4663 = vsel %vm4661, %v4662, %v4660
    %v4664 = vrsqrt.pop %v4628
    %v4665 = vmul.f32 %v4628, %v4664
    %vm4666 = vcmp.eq.f32.partialorder %v4628, inf
    %v4667 = vsel %vm4666, %v4628, %v4665
    %vm4668 = vcmp.eq.f32.partialorder %v4628, 0.0
    %v4669 = vand.u32 %v4628, 2147483648
    %v4670 = vsel %vm4668, %v4669, %v4667
    %v4671 = vrsqrt.pop %v4629
    %v4672 = vmul.f32 %v4629, %v4671
    %vm4673 = vcmp.eq.f32.partialorder %v4629, inf
    %v4674 = vsel %vm4673, %v4629, %v4672
    %vm4675 = vcmp.eq.f32.partialorder %v4629, 0.0
    %v4676 = vand.u32 %v4629, 2147483648
    %v4677 = vsel %vm4675, %v4676, %v4674
    %v4678 = vrsqrt.pop %v4630
    %v4679 = vmul.f32 %v4630, %v4678
    %vm4680 = vcmp.eq.f32.partialorder %v4630, inf
    %v4681 = vsel %vm4680, %v4630, %v4679
    %vm4682 = vcmp.eq.f32.partialorder %v4630, 0.0
    %v4683 = vand.u32 %v4630, 2147483648
    %v4684 = vsel %vm4682, %v4683, %v4681
    %v4685 = vrsqrt.pop %v4631
    %v4686 = vmul.f32 %v4631, %v4685
    %vm4687 = vcmp.eq.f32.partialorder %v4631, inf
    %v4688 = vsel %vm4687, %v4631, %v4686
    %vm4689 = vcmp.eq.f32.partialorder %v4631, 0.0
    %v4690 = vand.u32 %v4631, 2147483648
    %v4691 = vsel %vm4689, %v4690, %v4688
    %v4692 = vrsqrt.pop %v4632
    %v4693 = vmul.f32 %v4632, %v4692
    %vm4694 = vcmp.eq.f32.partialorder %v4632, inf
    %v4695 = vsel %vm4694, %v4632, %v4693
    %vm4696 = vcmp.eq.f32.partialorder %v4632, 0.0
    %v4697 = vand.u32 %v4632, 2147483648
    %v4698 = vsel %vm4696, %v4697, %v4695
    %v4699 = vrsqrt.pop %v4633
    %v4700 = vmul.f32 %v4633, %v4699
    %vm4701 = vcmp.eq.f32.partialorder %v4633, inf
    %v4702 = vsel %vm4701, %v4633, %v4700
    %vm4703 = vcmp.eq.f32.partialorder %v4633, 0.0
    %v4704 = vand.u32 %v4633, 2147483648
    %v4705 = vsel %vm4703, %v4704, %v4702
    %v4706 = vrsqrt.pop %v4634
    %v4707 = vmul.f32 %v4634, %v4706
    %vm4708 = vcmp.eq.f32.partialorder %v4634, inf
    %v4709 = vsel %vm4708, %v4634, %v4707
    %vm4710 = vcmp.eq.f32.partialorder %v4634, 0.0
    %v4711 = vand.u32 %v4634, 2147483648
    %v4712 = vsel %vm4710, %v4711, %v4709
    %v4713 = vrsqrt.pop %v4635
    %v4714 = vmul.f32 %v4635, %v4713
    %vm4715 = vcmp.eq.f32.partialorder %v4635, inf
    %v4716 = vsel %vm4715, %v4635, %v4714
    %vm4717 = vcmp.eq.f32.partialorder %v4635, 0.0
    %v4718 = vand.u32 %v4635, 2147483648
    %v4719 = vsel %vm4717, %v4718, %v4716
    %s4720 = smul.u32 2, 2
    %s4721 = smul.u32 %s4720, 192
    %s4722 = smul.u32 %s4721, 4
    %s4723 = sshll.u32 %s4722, 4
    %4724 = dma.done [#allocation3], %s4723
    %v4725 = vld [vmem:[#allocation2] sm:$0xff]
    %v4726 = vld [vmem:[#allocation2 + $0x8] sm:$0xff]
    %v4727 = vld [vmem:[#allocation2 + $0x10] sm:$0xff]
    %v4728 = vld [vmem:[#allocation2 + $0x18] sm:$0xff]
    %v4729 = vld [vmem:[#allocation2 + $0x20] sm:$0xff]
    %v4730 = vld [vmem:[#allocation2 + $0x28] sm:$0xff]
    %v4731 = vld [vmem:[#allocation2 + $0x30] sm:$0xff]
    %v4732 = vld [vmem:[#allocation2 + $0x38] sm:$0xff]
    %v4733 = vld [vmem:[#allocation2 + $0x40] sm:$0xff]
    %v4734 = vld [vmem:[#allocation2 + $0x48] sm:$0xff]
    %v4735 = vld [vmem:[#allocation2 + $0x50] sm:$0xff]
    %v4736 = vld [vmem:[#allocation2 + $0x58] sm:$0xff]
    %v4737 = vld [vmem:[#allocation2 + $0x60] sm:$0xff]
    %v4738 = vld [vmem:[#allocation2 + $0x68] sm:$0xff]
    %v4739 = vld [vmem:[#allocation2 + $0x70] sm:$0xff]
    %v4740 = vld [vmem:[#allocation2 + $0x78] sm:$0xff]
    %v4741 = vld [vmem:[#allocation2 + $0x80] sm:$0xff]
    %v4742 = vld [vmem:[#allocation2 + $0x88] sm:$0xff]
    %v4743 = vld [vmem:[#allocation2 + $0x90] sm:$0xff]
    %v4744 = vld [vmem:[#allocation2 + $0x98] sm:$0xff]
    %v4745 = vld [vmem:[#allocation2 + $0xa0] sm:$0xff]
    %v4746 = vld [vmem:[#allocation2 + $0xa8] sm:$0xff]
    %v4747 = vld [vmem:[#allocation2 + $0xb0] sm:$0xff]
    %v4748 = vld [vmem:[#allocation2 + $0xb8] sm:$0xff]
    %v4749 = vld [vmem:[#allocation2 + $0xc0] sm:$0xff]
    %v4750 = vld [vmem:[#allocation2 + $0xc8] sm:$0xff]
    %v4751 = vld [vmem:[#allocation2 + $0xd0] sm:$0xff]
    %v4752 = vld [vmem:[#allocation2 + $0xd8] sm:$0xff]
    %v4753 = vld [vmem:[#allocation2 + $0xe0] sm:$0xff]
    %v4754 = vld [vmem:[#allocation2 + $0xe8] sm:$0xff]
    %v4755 = vld [vmem:[#allocation2 + $0xf0] sm:$0xff]
    %v4756 = vld [vmem:[#allocation2 + $0xf8] sm:$0xff]
    %v4757 = vld [vmem:[#allocation2 + $0x100] sm:$0xff]
    %v4758 = vld [vmem:[#allocation2 + $0x108] sm:$0xff]
    %v4759 = vld [vmem:[#allocation2 + $0x110] sm:$0xff]
    %v4760 = vld [vmem:[#allocation2 + $0x118] sm:$0xff]
    %v4761 = vld [vmem:[#allocation2 + $0x120] sm:$0xff]
    %v4762 = vld [vmem:[#allocation2 + $0x128] sm:$0xff]
    %v4763 = vld [vmem:[#allocation2 + $0x130] sm:$0xff]
    %v4764 = vld [vmem:[#allocation2 + $0x138] sm:$0xff]
    %v4765 = vld [vmem:[#allocation2 + $0x140] sm:$0xff]
    %v4766 = vld [vmem:[#allocation2 + $0x148] sm:$0xff]
    %v4767 = vld [vmem:[#allocation2 + $0x150] sm:$0xff]
    %v4768 = vld [vmem:[#allocation2 + $0x158] sm:$0xff]
    %v4769 = vld [vmem:[#allocation2 + $0x160] sm:$0xff]
    %v4770 = vld [vmem:[#allocation2 + $0x168] sm:$0xff]
    %v4771 = vld [vmem:[#allocation2 + $0x170] sm:$0xff]
    %v4772 = vld [vmem:[#allocation2 + $0x178] sm:$0xff]
    %v4773 = vld [vmem:[#allocation2 + $0x180] sm:$0xff]
    %v4774 = vld [vmem:[#allocation2 + $0x188] sm:$0xff]
    %v4775 = vld [vmem:[#allocation2 + $0x190] sm:$0xff]
    %v4776 = vld [vmem:[#allocation2 + $0x198] sm:$0xff]
    %v4777 = vld [vmem:[#allocation2 + $0x1a0] sm:$0xff]
    %v4778 = vld [vmem:[#allocation2 + $0x1a8] sm:$0xff]
    %v4779 = vld [vmem:[#allocation2 + $0x1b0] sm:$0xff]
    %v4780 = vld [vmem:[#allocation2 + $0x1b8] sm:$0xff]
    %v4781 = vld [vmem:[#allocation2 + $0x1c0] sm:$0xff]
    %v4782 = vld [vmem:[#allocation2 + $0x1c8] sm:$0xff]
    %v4783 = vld [vmem:[#allocation2 + $0x1d0] sm:$0xff]
    %v4784 = vld [vmem:[#allocation2 + $0x1d8] sm:$0xff]
    %v4785 = vld [vmem:[#allocation2 + $0x1e0] sm:$0xff]
    %v4786 = vld [vmem:[#allocation2 + $0x1e8] sm:$0xff]
    %v4787 = vld [vmem:[#allocation2 + $0x1f0] sm:$0xff]
    %v4788 = vld [vmem:[#allocation2 + $0x1f8] sm:$0xff]
    %v4789 = vld [vmem:[#allocation2 + $0x200] sm:$0xff]
    %v4790 = vld [vmem:[#allocation2 + $0x208] sm:$0xff]
    %v4791 = vld [vmem:[#allocation2 + $0x210] sm:$0xff]
    %v4792 = vld [vmem:[#allocation2 + $0x218] sm:$0xff]
    %v4793 = vld [vmem:[#allocation2 + $0x220] sm:$0xff]
    %v4794 = vld [vmem:[#allocation2 + $0x228] sm:$0xff]
    %v4795 = vld [vmem:[#allocation2 + $0x230] sm:$0xff]
    %v4796 = vld [vmem:[#allocation2 + $0x238] sm:$0xff]
    %v4797 = vld [vmem:[#allocation2 + $0x240] sm:$0xff]
    %v4798 = vld [vmem:[#allocation2 + $0x248] sm:$0xff]
    %v4799 = vld [vmem:[#allocation2 + $0x250] sm:$0xff]
    %v4800 = vld [vmem:[#allocation2 + $0x258] sm:$0xff]
    %v4801 = vld [vmem:[#allocation2 + $0x260] sm:$0xff]
    %v4802 = vld [vmem:[#allocation2 + $0x268] sm:$0xff]
    %v4803 = vld [vmem:[#allocation2 + $0x270] sm:$0xff]
    %v4804 = vld [vmem:[#allocation2 + $0x278] sm:$0xff]
    %v4805 = vld [vmem:[#allocation2 + $0x280] sm:$0xff]
    %v4806 = vld [vmem:[#allocation2 + $0x288] sm:$0xff]
    %v4807 = vld [vmem:[#allocation2 + $0x290] sm:$0xff]
    %v4808 = vld [vmem:[#allocation2 + $0x298] sm:$0xff]
    %v4809 = vld [vmem:[#allocation2 + $0x2a0] sm:$0xff]
    %v4810 = vld [vmem:[#allocation2 + $0x2a8] sm:$0xff]
    %v4811 = vld [vmem:[#allocation2 + $0x2b0] sm:$0xff]
    %v4812 = vld [vmem:[#allocation2 + $0x2b8] sm:$0xff]
    %v4813 = vld [vmem:[#allocation2 + $0x2c0] sm:$0xff]
    %v4814 = vld [vmem:[#allocation2 + $0x2c8] sm:$0xff]
    %v4815 = vld [vmem:[#allocation2 + $0x2d0] sm:$0xff]
    %v4816 = vld [vmem:[#allocation2 + $0x2d8] sm:$0xff]
    %v4817 = vld [vmem:[#allocation2 + $0x2e0] sm:$0xff]
    %v4818 = vld [vmem:[#allocation2 + $0x2e8] sm:$0xff]
    %v4819 = vld [vmem:[#allocation2 + $0x2f0] sm:$0xff]
    %v4820 = vld [vmem:[#allocation2 + $0x2f8] sm:$0xff]
    %v4821 = vld [vmem:[#allocation2 + $0x300] sm:$0xff]
    %v4822 = vld [vmem:[#allocation2 + $0x308] sm:$0xff]
    %v4823 = vld [vmem:[#allocation2 + $0x310] sm:$0xff]
    %v4824 = vld [vmem:[#allocation2 + $0x318] sm:$0xff]
    %v4825 = vld [vmem:[#allocation2 + $0x320] sm:$0xff]
    %v4826 = vld [vmem:[#allocation2 + $0x328] sm:$0xff]
    %v4827 = vld [vmem:[#allocation2 + $0x330] sm:$0xff]
    %v4828 = vld [vmem:[#allocation2 + $0x338] sm:$0xff]
    %v4829 = vld [vmem:[#allocation2 + $0x340] sm:$0xff]
    %v4830 = vld [vmem:[#allocation2 + $0x348] sm:$0xff]
    %v4831 = vld [vmem:[#allocation2 + $0x350] sm:$0xff]
    %v4832 = vld [vmem:[#allocation2 + $0x358] sm:$0xff]
    %v4833 = vld [vmem:[#allocation2 + $0x360] sm:$0xff]
    %v4834 = vld [vmem:[#allocation2 + $0x368] sm:$0xff]
    %v4835 = vld [vmem:[#allocation2 + $0x370] sm:$0xff]
    %v4836 = vld [vmem:[#allocation2 + $0x378] sm:$0xff]
    %v4837 = vld [vmem:[#allocation2 + $0x380] sm:$0xff]
    %v4838 = vld [vmem:[#allocation2 + $0x388] sm:$0xff]
    %v4839 = vld [vmem:[#allocation2 + $0x390] sm:$0xff]
    %v4840 = vld [vmem:[#allocation2 + $0x398] sm:$0xff]
    %v4841 = vld [vmem:[#allocation2 + $0x3a0] sm:$0xff]
    %v4842 = vld [vmem:[#allocation2 + $0x3a8] sm:$0xff]
    %v4843 = vld [vmem:[#allocation2 + $0x3b0] sm:$0xff]
    %v4844 = vld [vmem:[#allocation2 + $0x3b8] sm:$0xff]
    %v4845 = vld [vmem:[#allocation2 + $0x3c0] sm:$0xff]
    %v4846 = vld [vmem:[#allocation2 + $0x3c8] sm:$0xff]
    %v4847 = vld [vmem:[#allocation2 + $0x3d0] sm:$0xff]
    %v4848 = vld [vmem:[#allocation2 + $0x3d8] sm:$0xff]
    %v4849 = vld [vmem:[#allocation2 + $0x3e0] sm:$0xff]
    %v4850 = vld [vmem:[#allocation2 + $0x3e8] sm:$0xff]
    %v4851 = vld [vmem:[#allocation2 + $0x3f0] sm:$0xff]
    %v4852 = vld [vmem:[#allocation2 + $0x3f8] sm:$0xff]
    %v4853 = vld [vmem:[#allocation2 + $0x400] sm:$0xff]
    %v4854 = vld [vmem:[#allocation2 + $0x408] sm:$0xff]
    %v4855 = vld [vmem:[#allocation2 + $0x410] sm:$0xff]
    %v4856 = vld [vmem:[#allocation2 + $0x418] sm:$0xff]
    %v4857 = vld [vmem:[#allocation2 + $0x420] sm:$0xff]
    %v4858 = vld [vmem:[#allocation2 + $0x428] sm:$0xff]
    %v4859 = vld [vmem:[#allocation2 + $0x430] sm:$0xff]
    %v4860 = vld [vmem:[#allocation2 + $0x438] sm:$0xff]
    %v4861 = vld [vmem:[#allocation2 + $0x440] sm:$0xff]
    %v4862 = vld [vmem:[#allocation2 + $0x448] sm:$0xff]
    %v4863 = vld [vmem:[#allocation2 + $0x450] sm:$0xff]
    %v4864 = vld [vmem:[#allocation2 + $0x458] sm:$0xff]
    %v4865 = vld [vmem:[#allocation2 + $0x460] sm:$0xff]
    %v4866 = vld [vmem:[#allocation2 + $0x468] sm:$0xff]
    %v4867 = vld [vmem:[#allocation2 + $0x470] sm:$0xff]
    %v4868 = vld [vmem:[#allocation2 + $0x478] sm:$0xff]
    %v4869 = vld [vmem:[#allocation2 + $0x480] sm:$0xff]
    %v4870 = vld [vmem:[#allocation2 + $0x488] sm:$0xff]
    %v4871 = vld [vmem:[#allocation2 + $0x490] sm:$0xff]
    %v4872 = vld [vmem:[#allocation2 + $0x498] sm:$0xff]
    %v4873 = vld [vmem:[#allocation2 + $0x4a0] sm:$0xff]
    %v4874 = vld [vmem:[#allocation2 + $0x4a8] sm:$0xff]
    %v4875 = vld [vmem:[#allocation2 + $0x4b0] sm:$0xff]
    %v4876 = vld [vmem:[#allocation2 + $0x4b8] sm:$0xff]
    %v4877 = vld [vmem:[#allocation2 + $0x4c0] sm:$0xff]
    %v4878 = vld [vmem:[#allocation2 + $0x4c8] sm:$0xff]
    %v4879 = vld [vmem:[#allocation2 + $0x4d0] sm:$0xff]
    %v4880 = vld [vmem:[#allocation2 + $0x4d8] sm:$0xff]
    %v4881 = vld [vmem:[#allocation2 + $0x4e0] sm:$0xff]
    %v4882 = vld [vmem:[#allocation2 + $0x4e8] sm:$0xff]
    %v4883 = vld [vmem:[#allocation2 + $0x4f0] sm:$0xff]
    %v4884 = vld [vmem:[#allocation2 + $0x4f8] sm:$0xff]
    %v4885 = vld [vmem:[#allocation2 + $0x500] sm:$0xff]
    %v4886 = vld [vmem:[#allocation2 + $0x508] sm:$0xff]
    %v4887 = vld [vmem:[#allocation2 + $0x510] sm:$0xff]
    %v4888 = vld [vmem:[#allocation2 + $0x518] sm:$0xff]
    %v4889 = vld [vmem:[#allocation2 + $0x520] sm:$0xff]
    %v4890 = vld [vmem:[#allocation2 + $0x528] sm:$0xff]
    %v4891 = vld [vmem:[#allocation2 + $0x530] sm:$0xff]
    %v4892 = vld [vmem:[#allocation2 + $0x538] sm:$0xff]
    %v4893 = vld [vmem:[#allocation2 + $0x540] sm:$0xff]
    %v4894 = vld [vmem:[#allocation2 + $0x548] sm:$0xff]
    %v4895 = vld [vmem:[#allocation2 + $0x550] sm:$0xff]
    %v4896 = vld [vmem:[#allocation2 + $0x558] sm:$0xff]
    %v4897 = vld [vmem:[#allocation2 + $0x560] sm:$0xff]
    %v4898 = vld [vmem:[#allocation2 + $0x568] sm:$0xff]
    %v4899 = vld [vmem:[#allocation2 + $0x570] sm:$0xff]
    %v4900 = vld [vmem:[#allocation2 + $0x578] sm:$0xff]
    %v4901 = vld [vmem:[#allocation2 + $0x580] sm:$0xff]
    %v4902 = vld [vmem:[#allocation2 + $0x588] sm:$0xff]
    %v4903 = vld [vmem:[#allocation2 + $0x590] sm:$0xff]
    %v4904 = vld [vmem:[#allocation2 + $0x598] sm:$0xff]
    %v4905 = vld [vmem:[#allocation2 + $0x5a0] sm:$0xff]
    %v4906 = vld [vmem:[#allocation2 + $0x5a8] sm:$0xff]
    %v4907 = vld [vmem:[#allocation2 + $0x5b0] sm:$0xff]
    %v4908 = vld [vmem:[#allocation2 + $0x5b8] sm:$0xff]
    %v4909 = vld [vmem:[#allocation2 + $0x5c0] sm:$0xff]
    %v4910 = vld [vmem:[#allocation2 + $0x5c8] sm:$0xff]
    %v4911 = vld [vmem:[#allocation2 + $0x5d0] sm:$0xff]
    %v4912 = vld [vmem:[#allocation2 + $0x5d8] sm:$0xff]
    %v4913 = vld [vmem:[#allocation2 + $0x5e0] sm:$0xff]
    %v4914 = vld [vmem:[#allocation2 + $0x5e8] sm:$0xff]
    %v4915 = vld [vmem:[#allocation2 + $0x5f0] sm:$0xff]
    %v4916 = vld [vmem:[#allocation2 + $0x5f8] sm:$0xff]
    %v4917 = vunpack.c.l.s8.bf16 %v4725
    %v4918 = vunpack.c.l.s8.bf16 %v4726
    %v4919 = vunpack.c.l.s8.bf16 %v4727
    %v4920 = vunpack.c.l.s8.bf16 %v4728
    %v4921 = vunpack.c.h.s8.bf16 %v4725
    %v4922 = vunpack.c.h.s8.bf16 %v4726
    %v4923 = vunpack.c.h.s8.bf16 %v4727
    %v4924 = vunpack.c.h.s8.bf16 %v4728
    %v4925 = vunpack.c.l.s8.bf16 %v4729
    %v4926 = vunpack.c.l.s8.bf16 %v4730
    %v4927 = vunpack.c.l.s8.bf16 %v4731
    %v4928 = vunpack.c.l.s8.bf16 %v4732
    %v4929 = vunpack.c.h.s8.bf16 %v4729
    %v4930 = vunpack.c.h.s8.bf16 %v4730
    %v4931 = vunpack.c.h.s8.bf16 %v4731
    %v4932 = vunpack.c.h.s8.bf16 %v4732
    %v4933 = vunpack.c.l.s8.bf16 %v4733
    %v4934 = vunpack.c.l.s8.bf16 %v4734
    %v4935 = vunpack.c.l.s8.bf16 %v4735
    %v4936 = vunpack.c.l.s8.bf16 %v4736
    %v4937 = vunpack.c.h.s8.bf16 %v4733
    %v4938 = vunpack.c.h.s8.bf16 %v4734
    %v4939 = vunpack.c.h.s8.bf16 %v4735
    %v4940 = vunpack.c.h.s8.bf16 %v4736
    %v4941 = vunpack.c.l.s8.bf16 %v4737
    %v4942 = vunpack.c.l.s8.bf16 %v4738
    %v4943 = vunpack.c.l.s8.bf16 %v4739
    %v4944 = vunpack.c.l.s8.bf16 %v4740
    %v4945 = vunpack.c.h.s8.bf16 %v4737
    %v4946 = vunpack.c.h.s8.bf16 %v4738
    %v4947 = vunpack.c.h.s8.bf16 %v4739
    %v4948 = vunpack.c.h.s8.bf16 %v4740
    %v4949 = vunpack.c.l.s8.bf16 %v4741
    %v4950 = vunpack.c.l.s8.bf16 %v4742
    %v4951 = vunpack.c.l.s8.bf16 %v4743
    %v4952 = vunpack.c.l.s8.bf16 %v4744
    %v4953 = vunpack.c.h.s8.bf16 %v4741
    %v4954 = vunpack.c.h.s8.bf16 %v4742
    %v4955 = vunpack.c.h.s8.bf16 %v4743
    %v4956 = vunpack.c.h.s8.bf16 %v4744
    %v4957 = vunpack.c.l.s8.bf16 %v4745
    %v4958 = vunpack.c.l.s8.bf16 %v4746
    %v4959 = vunpack.c.l.s8.bf16 %v4747
    %v4960 = vunpack.c.l.s8.bf16 %v4748
    %v4961 = vunpack.c.h.s8.bf16 %v4745
    %v4962 = vunpack.c.h.s8.bf16 %v4746
    %v4963 = vunpack.c.h.s8.bf16 %v4747
    %v4964 = vunpack.c.h.s8.bf16 %v4748
    %v4965 = vunpack.c.l.s8.bf16 %v4749
    %v4966 = vunpack.c.l.s8.bf16 %v4750
    %v4967 = vunpack.c.l.s8.bf16 %v4751
    %v4968 = vunpack.c.l.s8.bf16 %v4752
    %v4969 = vunpack.c.h.s8.bf16 %v4749
    %v4970 = vunpack.c.h.s8.bf16 %v4750
    %v4971 = vunpack.c.h.s8.bf16 %v4751
    %v4972 = vunpack.c.h.s8.bf16 %v4752
    %v4973 = vunpack.c.l.s8.bf16 %v4753
    %v4974 = vunpack.c.l.s8.bf16 %v4754
    %v4975 = vunpack.c.l.s8.bf16 %v4755
    %v4976 = vunpack.c.l.s8.bf16 %v4756
    %v4977 = vunpack.c.h.s8.bf16 %v4753
    %v4978 = vunpack.c.h.s8.bf16 %v4754
    %v4979 = vunpack.c.h.s8.bf16 %v4755
    %v4980 = vunpack.c.h.s8.bf16 %v4756
    %v4981 = vunpack.c.l.s8.bf16 %v4757
    %v4982 = vunpack.c.l.s8.bf16 %v4758
    %v4983 = vunpack.c.l.s8.bf16 %v4759
    %v4984 = vunpack.c.l.s8.bf16 %v4760
    %v4985 = vunpack.c.h.s8.bf16 %v4757
    %v4986 = vunpack.c.h.s8.bf16 %v4758
    %v4987 = vunpack.c.h.s8.bf16 %v4759
    %v4988 = vunpack.c.h.s8.bf16 %v4760
    %v4989 = vunpack.c.l.s8.bf16 %v4761
    %v4990 = vunpack.c.l.s8.bf16 %v4762
    %v4991 = vunpack.c.l.s8.bf16 %v4763
    %v4992 = vunpack.c.l.s8.bf16 %v4764
    %v4993 = vunpack.c.h.s8.bf16 %v4761
    %v4994 = vunpack.c.h.s8.bf16 %v4762
    %v4995 = vunpack.c.h.s8.bf16 %v4763
    %v4996 = vunpack.c.h.s8.bf16 %v4764
    %v4997 = vunpack.c.l.s8.bf16 %v4765
    %v4998 = vunpack.c.l.s8.bf16 %v4766
    %v4999 = vunpack.c.l.s8.bf16 %v4767
    %v5000 = vunpack.c.l.s8.bf16 %v4768
    %v5001 = vunpack.c.h.s8.bf16 %v4765
    %v5002 = vunpack.c.h.s8.bf16 %v4766
    %v5003 = vunpack.c.h.s8.bf16 %v4767
    %v5004 = vunpack.c.h.s8.bf16 %v4768
    %v5005 = vunpack.c.l.s8.bf16 %v4769
    %v5006 = vunpack.c.l.s8.bf16 %v4770
    %v5007 = vunpack.c.l.s8.bf16 %v4771
    %v5008 = vunpack.c.l.s8.bf16 %v4772
    %v5009 = vunpack.c.h.s8.bf16 %v4769
    %v5010 = vunpack.c.h.s8.bf16 %v4770
    %v5011 = vunpack.c.h.s8.bf16 %v4771
    %v5012 = vunpack.c.h.s8.bf16 %v4772
    %v5013 = vunpack.c.l.s8.bf16 %v4773
    %v5014 = vunpack.c.l.s8.bf16 %v4774
    %v5015 = vunpack.c.l.s8.bf16 %v4775
    %v5016 = vunpack.c.l.s8.bf16 %v4776
    %v5017 = vunpack.c.h.s8.bf16 %v4773
    %v5018 = vunpack.c.h.s8.bf16 %v4774
    %v5019 = vunpack.c.h.s8.bf16 %v4775
    %v5020 = vunpack.c.h.s8.bf16 %v4776
    %v5021 = vunpack.c.l.s8.bf16 %v4777
    %v5022 = vunpack.c.l.s8.bf16 %v4778
    %v5023 = vunpack.c.l.s8.bf16 %v4779
    %v5024 = vunpack.c.l.s8.bf16 %v4780
    %v5025 = vunpack.c.h.s8.bf16 %v4777
    %v5026 = vunpack.c.h.s8.bf16 %v4778
    %v5027 = vunpack.c.h.s8.bf16 %v4779
    %v5028 = vunpack.c.h.s8.bf16 %v4780
    %v5029 = vunpack.c.l.s8.bf16 %v4781
    %v5030 = vunpack.c.l.s8.bf16 %v4782
    %v5031 = vunpack.c.l.s8.bf16 %v4783
    %v5032 = vunpack.c.l.s8.bf16 %v4784
    %v5033 = vunpack.c.h.s8.bf16 %v4781
    %v5034 = vunpack.c.h.s8.bf16 %v4782
    %v5035 = vunpack.c.h.s8.bf16 %v4783
    %v5036 = vunpack.c.h.s8.bf16 %v4784
    %v5037 = vunpack.c.l.s8.bf16 %v4785
    %v5038 = vunpack.c.l.s8.bf16 %v4786
    %v5039 = vunpack.c.l.s8.bf16 %v4787
    %v5040 = vunpack.c.l.s8.bf16 %v4788
    %v5041 = vunpack.c.h.s8.bf16 %v4785
    %v5042 = vunpack.c.h.s8.bf16 %v4786
    %v5043 = vunpack.c.h.s8.bf16 %v4787
    %v5044 = vunpack.c.h.s8.bf16 %v4788
    %v5045 = vunpack.c.l.s8.bf16 %v4789
    %v5046 = vunpack.c.l.s8.bf16 %v4790
    %v5047 = vunpack.c.l.s8.bf16 %v4791
    %v5048 = vunpack.c.l.s8.bf16 %v4792
    %v5049 = vunpack.c.h.s8.bf16 %v4789
    %v5050 = vunpack.c.h.s8.bf16 %v4790
    %v5051 = vunpack.c.h.s8.bf16 %v4791
    %v5052 = vunpack.c.h.s8.bf16 %v4792
    %v5053 = vunpack.c.l.s8.bf16 %v4793
    %v5054 = vunpack.c.l.s8.bf16 %v4794
    %v5055 = vunpack.c.l.s8.bf16 %v4795
    %v5056 = vunpack.c.l.s8.bf16 %v4796
    %v5057 = vunpack.c.h.s8.bf16 %v4793
    %v5058 = vunpack.c.h.s8.bf16 %v4794
    %v5059 = vunpack.c.h.s8.bf16 %v4795
    %v5060 = vunpack.c.h.s8.bf16 %v4796
    %v5061 = vunpack.c.l.s8.bf16 %v4797
    %v5062 = vunpack.c.l.s8.bf16 %v4798
    %v5063 = vunpack.c.l.s8.bf16 %v4799
    %v5064 = vunpack.c.l.s8.bf16 %v4800
    %v5065 = vunpack.c.h.s8.bf16 %v4797
    %v5066 = vunpack.c.h.s8.bf16 %v4798
    %v5067 = vunpack.c.h.s8.bf16 %v4799
    %v5068 = vunpack.c.h.s8.bf16 %v4800
    %v5069 = vunpack.c.l.s8.bf16 %v4801
    %v5070 = vunpack.c.l.s8.bf16 %v4802
    %v5071 = vunpack.c.l.s8.bf16 %v4803
    %v5072 = vunpack.c.l.s8.bf16 %v4804
    %v5073 = vunpack.c.h.s8.bf16 %v4801
    %v5074 = vunpack.c.h.s8.bf16 %v4802
    %v5075 = vunpack.c.h.s8.bf16 %v4803
    %v5076 = vunpack.c.h.s8.bf16 %v4804
    %v5077 = vunpack.c.l.s8.bf16 %v4805
    %v5078 = vunpack.c.l.s8.bf16 %v4806
    %v5079 = vunpack.c.l.s8.bf16 %v4807
    %v5080 = vunpack.c.l.s8.bf16 %v4808
    %v5081 = vunpack.c.h.s8.bf16 %v4805
    %v5082 = vunpack.c.h.s8.bf16 %v4806
    %v5083 = vunpack.c.h.s8.bf16 %v4807
    %v5084 = vunpack.c.h.s8.bf16 %v4808
    %v5085 = vunpack.c.l.s8.bf16 %v4809
    %v5086 = vunpack.c.l.s8.bf16 %v4810
    %v5087 = vunpack.c.l.s8.bf16 %v4811
    %v5088 = vunpack.c.l.s8.bf16 %v4812
    %v5089 = vunpack.c.h.s8.bf16 %v4809
    %v5090 = vunpack.c.h.s8.bf16 %v4810
    %v5091 = vunpack.c.h.s8.bf16 %v4811
    %v5092 = vunpack.c.h.s8.bf16 %v4812
    %v5093 = vunpack.c.l.s8.bf16 %v4813
    %v5094 = vunpack.c.l.s8.bf16 %v4814
    %v5095 = vunpack.c.l.s8.bf16 %v4815
    %v5096 = vunpack.c.l.s8.bf16 %v4816
    %v5097 = vunpack.c.h.s8.bf16 %v4813
    %v5098 = vunpack.c.h.s8.bf16 %v4814
    %v5099 = vunpack.c.h.s8.bf16 %v4815
    %v5100 = vunpack.c.h.s8.bf16 %v4816
    %v5101 = vunpack.c.l.s8.bf16 %v4817
    %v5102 = vunpack.c.l.s8.bf16 %v4818
    %v5103 = vunpack.c.l.s8.bf16 %v4819
    %v5104 = vunpack.c.l.s8.bf16 %v4820
    %v5105 = vunpack.c.h.s8.bf16 %v4817
    %v5106 = vunpack.c.h.s8.bf16 %v4818
    %v5107 = vunpack.c.h.s8.bf16 %v4819
    %v5108 = vunpack.c.h.s8.bf16 %v4820
    %v5109 = vunpack.c.l.s8.bf16 %v4821
    %v5110 = vunpack.c.l.s8.bf16 %v4822
    %v5111 = vunpack.c.l.s8.bf16 %v4823
    %v5112 = vunpack.c.l.s8.bf16 %v4824
    %v5113 = vunpack.c.h.s8.bf16 %v4821
    %v5114 = vunpack.c.h.s8.bf16 %v4822
    %v5115 = vunpack.c.h.s8.bf16 %v4823
    %v5116 = vunpack.c.h.s8.bf16 %v4824
    %v5117 = vunpack.c.l.s8.bf16 %v4825
    %v5118 = vunpack.c.l.s8.bf16 %v4826
    %v5119 = vunpack.c.l.s8.bf16 %v4827
    %v5120 = vunpack.c.l.s8.bf16 %v4828
    %v5121 = vunpack.c.h.s8.bf16 %v4825
    %v5122 = vunpack.c.h.s8.bf16 %v4826
    %v5123 = vunpack.c.h.s8.bf16 %v4827
    %v5124 = vunpack.c.h.s8.bf16 %v4828
    %v5125 = vunpack.c.l.s8.bf16 %v4829
    %v5126 = vunpack.c.l.s8.bf16 %v4830
    %v5127 = vunpack.c.l.s8.bf16 %v4831
    %v5128 = vunpack.c.l.s8.bf16 %v4832
    %v5129 = vunpack.c.h.s8.bf16 %v4829
    %v5130 = vunpack.c.h.s8.bf16 %v4830
    %v5131 = vunpack.c.h.s8.bf16 %v4831
    %v5132 = vunpack.c.h.s8.bf16 %v4832
    %v5133 = vunpack.c.l.s8.bf16 %v4833
    %v5134 = vunpack.c.l.s8.bf16 %v4834
    %v5135 = vunpack.c.l.s8.bf16 %v4835
    %v5136 = vunpack.c.l.s8.bf16 %v4836
    %v5137 = vunpack.c.h.s8.bf16 %v4833
    %v5138 = vunpack.c.h.s8.bf16 %v4834
    %v5139 = vunpack.c.h.s8.bf16 %v4835
    %v5140 = vunpack.c.h.s8.bf16 %v4836
    %v5141 = vunpack.c.l.s8.bf16 %v4837
    %v5142 = vunpack.c.l.s8.bf16 %v4838
    %v5143 = vunpack.c.l.s8.bf16 %v4839
    %v5144 = vunpack.c.l.s8.bf16 %v4840
    %v5145 = vunpack.c.h.s8.bf16 %v4837
    %v5146 = vunpack.c.h.s8.bf16 %v4838
    %v5147 = vunpack.c.h.s8.bf16 %v4839
    %v5148 = vunpack.c.h.s8.bf16 %v4840
    %v5149 = vunpack.c.l.s8.bf16 %v4841
    %v5150 = vunpack.c.l.s8.bf16 %v4842
    %v5151 = vunpack.c.l.s8.bf16 %v4843
    %v5152 = vunpack.c.l.s8.bf16 %v4844
    %v5153 = vunpack.c.h.s8.bf16 %v4841
    %v5154 = vunpack.c.h.s8.bf16 %v4842
    %v5155 = vunpack.c.h.s8.bf16 %v4843
    %v5156 = vunpack.c.h.s8.bf16 %v4844
    %v5157 = vunpack.c.l.s8.bf16 %v4845
    %v5158 = vunpack.c.l.s8.bf16 %v4846
    %v5159 = vunpack.c.l.s8.bf16 %v4847
    %v5160 = vunpack.c.l.s8.bf16 %v4848
    %v5161 = vunpack.c.h.s8.bf16 %v4845
    %v5162 = vunpack.c.h.s8.bf16 %v4846
    %v5163 = vunpack.c.h.s8.bf16 %v4847
    %v5164 = vunpack.c.h.s8.bf16 %v4848
    %v5165 = vunpack.c.l.s8.bf16 %v4849
    %v5166 = vunpack.c.l.s8.bf16 %v4850
    %v5167 = vunpack.c.l.s8.bf16 %v4851
    %v5168 = vunpack.c.l.s8.bf16 %v4852
    %v5169 = vunpack.c.h.s8.bf16 %v4849
    %v5170 = vunpack.c.h.s8.bf16 %v4850
    %v5171 = vunpack.c.h.s8.bf16 %v4851
    %v5172 = vunpack.c.h.s8.bf16 %v4852
    %v5173 = vunpack.c.l.s8.bf16 %v4853
    %v5174 = vunpack.c.l.s8.bf16 %v4854
    %v5175 = vunpack.c.l.s8.bf16 %v4855
    %v5176 = vunpack.c.l.s8.bf16 %v4856
    %v5177 = vunpack.c.h.s8.bf16 %v4853
    %v5178 = vunpack.c.h.s8.bf16 %v4854
    %v5179 = vunpack.c.h.s8.bf16 %v4855
    %v5180 = vunpack.c.h.s8.bf16 %v4856
    %v5181 = vunpack.c.l.s8.bf16 %v4857
    %v5182 = vunpack.c.l.s8.bf16 %v4858
    %v5183 = vunpack.c.l.s8.bf16 %v4859
    %v5184 = vunpack.c.l.s8.bf16 %v4860
    %v5185 = vunpack.c.h.s8.bf16 %v4857
    %v5186 = vunpack.c.h.s8.bf16 %v4858
    %v5187 = vunpack.c.h.s8.bf16 %v4859
    %v5188 = vunpack.c.h.s8.bf16 %v4860
    %v5189 = vunpack.c.l.s8.bf16 %v4861
    %v5190 = vunpack.c.l.s8.bf16 %v4862
    %v5191 = vunpack.c.l.s8.bf16 %v4863
    %v5192 = vunpack.c.l.s8.bf16 %v4864
    %v5193 = vunpack.c.h.s8.bf16 %v4861
    %v5194 = vunpack.c.h.s8.bf16 %v4862
    %v5195 = vunpack.c.h.s8.bf16 %v4863
    %v5196 = vunpack.c.h.s8.bf16 %v4864
    %v5197 = vunpack.c.l.s8.bf16 %v4865
    %v5198 = vunpack.c.l.s8.bf16 %v4866
    %v5199 = vunpack.c.l.s8.bf16 %v4867
    %v5200 = vunpack.c.l.s8.bf16 %v4868
    %v5201 = vunpack.c.h.s8.bf16 %v4865
    %v5202 = vunpack.c.h.s8.bf16 %v4866
    %v5203 = vunpack.c.h.s8.bf16 %v4867
    %v5204 = vunpack.c.h.s8.bf16 %v4868
    %v5205 = vunpack.c.l.s8.bf16 %v4869
    %v5206 = vunpack.c.l.s8.bf16 %v4870
    %v5207 = vunpack.c.l.s8.bf16 %v4871
    %v5208 = vunpack.c.l.s8.bf16 %v4872
    %v5209 = vunpack.c.h.s8.bf16 %v4869
    %v5210 = vunpack.c.h.s8.bf16 %v4870
    %v5211 = vunpack.c.h.s8.bf16 %v4871
    %v5212 = vunpack.c.h.s8.bf16 %v4872
    %v5213 = vunpack.c.l.s8.bf16 %v4873
    %v5214 = vunpack.c.l.s8.bf16 %v4874
    %v5215 = vunpack.c.l.s8.bf16 %v4875
    %v5216 = vunpack.c.l.s8.bf16 %v4876
    %v5217 = vunpack.c.h.s8.bf16 %v4873
    %v5218 = vunpack.c.h.s8.bf16 %v4874
    %v5219 = vunpack.c.h.s8.bf16 %v4875
    %v5220 = vunpack.c.h.s8.bf16 %v4876
    %v5221 = vunpack.c.l.s8.bf16 %v4877
    %v5222 = vunpack.c.l.s8.bf16 %v4878
    %v5223 = vunpack.c.l.s8.bf16 %v4879
    %v5224 = vunpack.c.l.s8.bf16 %v4880
    %v5225 = vunpack.c.h.s8.bf16 %v4877
    %v5226 = vunpack.c.h.s8.bf16 %v4878
    %v5227 = vunpack.c.h.s8.bf16 %v4879
    %v5228 = vunpack.c.h.s8.bf16 %v4880
    %v5229 = vunpack.c.l.s8.bf16 %v4881
    %v5230 = vunpack.c.l.s8.bf16 %v4882
    %v5231 = vunpack.c.l.s8.bf16 %v4883
    %v5232 = vunpack.c.l.s8.bf16 %v4884
    %v5233 = vunpack.c.h.s8.bf16 %v4881
    %v5234 = vunpack.c.h.s8.bf16 %v4882
    %v5235 = vunpack.c.h.s8.bf16 %v4883
    %v5236 = vunpack.c.h.s8.bf16 %v4884
    %v5237 = vunpack.c.l.s8.bf16 %v4885
    %v5238 = vunpack.c.l.s8.bf16 %v4886
    %v5239 = vunpack.c.l.s8.bf16 %v4887
    %v5240 = vunpack.c.l.s8.bf16 %v4888
    %v5241 = vunpack.c.h.s8.bf16 %v4885
    %v5242 = vunpack.c.h.s8.bf16 %v4886
    %v5243 = vunpack.c.h.s8.bf16 %v4887
    %v5244 = vunpack.c.h.s8.bf16 %v4888
    %v5245 = vunpack.c.l.s8.bf16 %v4889
    %v5246 = vunpack.c.l.s8.bf16 %v4890
    %v5247 = vunpack.c.l.s8.bf16 %v4891
    %v5248 = vunpack.c.l.s8.bf16 %v4892
    %v5249 = vunpack.c.h.s8.bf16 %v4889
    %v5250 = vunpack.c.h.s8.bf16 %v4890
    %v5251 = vunpack.c.h.s8.bf16 %v4891
    %v5252 = vunpack.c.h.s8.bf16 %v4892
    %v5253 = vunpack.c.l.s8.bf16 %v4893
    %v5254 = vunpack.c.l.s8.bf16 %v4894
    %v5255 = vunpack.c.l.s8.bf16 %v4895
    %v5256 = vunpack.c.l.s8.bf16 %v4896
    %v5257 = vunpack.c.h.s8.bf16 %v4893
    %v5258 = vunpack.c.h.s8.bf16 %v4894
    %v5259 = vunpack.c.h.s8.bf16 %v4895
    %v5260 = vunpack.c.h.s8.bf16 %v4896
    %v5261 = vunpack.c.l.s8.bf16 %v4897
    %v5262 = vunpack.c.l.s8.bf16 %v4898
    %v5263 = vunpack.c.l.s8.bf16 %v4899
    %v5264 = vunpack.c.l.s8.bf16 %v4900
    %v5265 = vunpack.c.h.s8.bf16 %v4897
    %v5266 = vunpack.c.h.s8.bf16 %v4898
    %v5267 = vunpack.c.h.s8.bf16 %v4899
    %v5268 = vunpack.c.h.s8.bf16 %v4900
    %v5269 = vunpack.c.l.s8.bf16 %v4901
    %v5270 = vunpack.c.l.s8.bf16 %v4902
    %v5271 = vunpack.c.l.s8.bf16 %v4903
    %v5272 = vunpack.c.l.s8.bf16 %v4904
    %v5273 = vunpack.c.h.s8.bf16 %v4901
    %v5274 = vunpack.c.h.s8.bf16 %v4902
    %v5275 = vunpack.c.h.s8.bf16 %v4903
    %v5276 = vunpack.c.h.s8.bf16 %v4904
    %v5277 = vunpack.c.l.s8.bf16 %v4905
    %v5278 = vunpack.c.l.s8.bf16 %v4906
    %v5279 = vunpack.c.l.s8.bf16 %v4907
    %v5280 = vunpack.c.l.s8.bf16 %v4908
    %v5281 = vunpack.c.h.s8.bf16 %v4905
    %v5282 = vunpack.c.h.s8.bf16 %v4906
    %v5283 = vunpack.c.h.s8.bf16 %v4907
    %v5284 = vunpack.c.h.s8.bf16 %v4908
    %v5285 = vunpack.c.l.s8.bf16 %v4909
    %v5286 = vunpack.c.l.s8.bf16 %v4910
    %v5287 = vunpack.c.l.s8.bf16 %v4911
    %v5288 = vunpack.c.l.s8.bf16 %v4912
    %v5289 = vunpack.c.h.s8.bf16 %v4909
    %v5290 = vunpack.c.h.s8.bf16 %v4910
    %v5291 = vunpack.c.h.s8.bf16 %v4911
    %v5292 = vunpack.c.h.s8.bf16 %v4912
    %v5293 = vunpack.c.l.s8.bf16 %v4913
    %v5294 = vunpack.c.l.s8.bf16 %v4914
    %v5295 = vunpack.c.l.s8.bf16 %v4915
    %v5296 = vunpack.c.l.s8.bf16 %v4916
    %v5297 = vunpack.c.h.s8.bf16 %v4913
    %v5298 = vunpack.c.h.s8.bf16 %v4914
    %v5299 = vunpack.c.h.s8.bf16 %v4915
    %v5300 = vunpack.c.h.s8.bf16 %v4916
    %v5301 = vpack.c.bf16 %v3731, %v3731
    %v5302 = vpack.c.bf16 %v3733, %v3733
    %v5303 = vpack.c.bf16 %v3802, %v3802
    %v5304 = vpack.c.bf16 %v3804, %v3804
    %v5305 = vpack.c.bf16 %v3873, %v3873
    %v5306 = vpack.c.bf16 %v3875, %v3875
    %v5307 = vpack.c.bf16 %v3944, %v3944
    %v5308 = vpack.c.bf16 %v3946, %v3946
    %v5309 = vpack.c.bf16 %v4015, %v4015
    %v5310 = vpack.c.bf16 %v4017, %v4017
    %v5311 = vpack.c.bf16 %v4086, %v4086
    %v5312 = vpack.c.bf16 %v4088, %v4088
    %s5313 = scalar_lea.vmem [#allocation2], 1536
    %v5314 = vld [vmem:[%s5313] sm:$0xff]
    %v5315 = vld [vmem:[%s5313 + $0x8] sm:$0xff]
    %v5316 = vld [vmem:[%s5313 + $0x10] sm:$0xff]
    %v5317 = vld [vmem:[%s5313 + $0x18] sm:$0xff]
    %v5318 = vld [vmem:[%s5313 + $0x20] sm:$0xff]
    %v5319 = vld [vmem:[%s5313 + $0x28] sm:$0xff]
    %v5320 = vld [vmem:[%s5313 + $0x30] sm:$0xff]
    %v5321 = vld [vmem:[%s5313 + $0x38] sm:$0xff]
    %v5322 = vld [vmem:[%s5313 + $0x40] sm:$0xff]
    %v5323 = vld [vmem:[%s5313 + $0x48] sm:$0xff]
    %v5324 = vld [vmem:[%s5313 + $0x50] sm:$0xff]
    %v5325 = vld [vmem:[%s5313 + $0x58] sm:$0xff]
    %v5326 = vld [vmem:[%s5313 + $0x60] sm:$0xff]
    %v5327 = vld [vmem:[%s5313 + $0x68] sm:$0xff]
    %v5328 = vld [vmem:[%s5313 + $0x70] sm:$0xff]
    %v5329 = vld [vmem:[%s5313 + $0x78] sm:$0xff]
    %v5330 = vld [vmem:[%s5313 + $0x80] sm:$0xff]
    %v5331 = vld [vmem:[%s5313 + $0x88] sm:$0xff]
    %v5332 = vld [vmem:[%s5313 + $0x90] sm:$0xff]
    %v5333 = vld [vmem:[%s5313 + $0x98] sm:$0xff]
    %v5334 = vld [vmem:[%s5313 + $0xa0] sm:$0xff]
    %v5335 = vld [vmem:[%s5313 + $0xa8] sm:$0xff]
    %v5336 = vld [vmem:[%s5313 + $0xb0] sm:$0xff]
    %v5337 = vld [vmem:[%s5313 + $0xb8] sm:$0xff]
    %v5338 = vld [vmem:[%s5313 + $0xc0] sm:$0xff]
    %v5339 = vld [vmem:[%s5313 + $0xc8] sm:$0xff]
    %v5340 = vld [vmem:[%s5313 + $0xd0] sm:$0xff]
    %v5341 = vld [vmem:[%s5313 + $0xd8] sm:$0xff]
    %v5342 = vld [vmem:[%s5313 + $0xe0] sm:$0xff]
    %v5343 = vld [vmem:[%s5313 + $0xe8] sm:$0xff]
    %v5344 = vld [vmem:[%s5313 + $0xf0] sm:$0xff]
    %v5345 = vld [vmem:[%s5313 + $0xf8] sm:$0xff]
    %v5346 = vld [vmem:[%s5313 + $0x100] sm:$0xff]
    %v5347 = vld [vmem:[%s5313 + $0x108] sm:$0xff]
    %v5348 = vld [vmem:[%s5313 + $0x110] sm:$0xff]
    %v5349 = vld [vmem:[%s5313 + $0x118] sm:$0xff]
    %v5350 = vld [vmem:[%s5313 + $0x120] sm:$0xff]
    %v5351 = vld [vmem:[%s5313 + $0x128] sm:$0xff]
    %v5352 = vld [vmem:[%s5313 + $0x130] sm:$0xff]
    %v5353 = vld [vmem:[%s5313 + $0x138] sm:$0xff]
    %v5354 = vld [vmem:[%s5313 + $0x140] sm:$0xff]
    %v5355 = vld [vmem:[%s5313 + $0x148] sm:$0xff]
    %v5356 = vld [vmem:[%s5313 + $0x150] sm:$0xff]
    %v5357 = vld [vmem:[%s5313 + $0x158] sm:$0xff]
    %v5358 = vld [vmem:[%s5313 + $0x160] sm:$0xff]
    %v5359 = vld [vmem:[%s5313 + $0x168] sm:$0xff]
    %v5360 = vld [vmem:[%s5313 + $0x170] sm:$0xff]
    %v5361 = vld [vmem:[%s5313 + $0x178] sm:$0xff]
    %v5362 = vld [vmem:[%s5313 + $0x180] sm:$0xff]
    %v5363 = vld [vmem:[%s5313 + $0x188] sm:$0xff]
    %v5364 = vld [vmem:[%s5313 + $0x190] sm:$0xff]
    %v5365 = vld [vmem:[%s5313 + $0x198] sm:$0xff]
    %v5366 = vld [vmem:[%s5313 + $0x1a0] sm:$0xff]
    %v5367 = vld [vmem:[%s5313 + $0x1a8] sm:$0xff]
    %v5368 = vld [vmem:[%s5313 + $0x1b0] sm:$0xff]
    %v5369 = vld [vmem:[%s5313 + $0x1b8] sm:$0xff]
    %v5370 = vld [vmem:[%s5313 + $0x1c0] sm:$0xff]
    %v5371 = vld [vmem:[%s5313 + $0x1c8] sm:$0xff]
    %v5372 = vld [vmem:[%s5313 + $0x1d0] sm:$0xff]
    %v5373 = vld [vmem:[%s5313 + $0x1d8] sm:$0xff]
    %v5374 = vld [vmem:[%s5313 + $0x1e0] sm:$0xff]
    %v5375 = vld [vmem:[%s5313 + $0x1e8] sm:$0xff]
    %v5376 = vld [vmem:[%s5313 + $0x1f0] sm:$0xff]
    %v5377 = vld [vmem:[%s5313 + $0x1f8] sm:$0xff]
    %v5378 = vld [vmem:[%s5313 + $0x200] sm:$0xff]
    %v5379 = vld [vmem:[%s5313 + $0x208] sm:$0xff]
    %v5380 = vld [vmem:[%s5313 + $0x210] sm:$0xff]
    %v5381 = vld [vmem:[%s5313 + $0x218] sm:$0xff]
    %v5382 = vld [vmem:[%s5313 + $0x220] sm:$0xff]
    %v5383 = vld [vmem:[%s5313 + $0x228] sm:$0xff]
    %v5384 = vld [vmem:[%s5313 + $0x230] sm:$0xff]
    %v5385 = vld [vmem:[%s5313 + $0x238] sm:$0xff]
    %v5386 = vld [vmem:[%s5313 + $0x240] sm:$0xff]
    %v5387 = vld [vmem:[%s5313 + $0x248] sm:$0xff]
    %v5388 = vld [vmem:[%s5313 + $0x250] sm:$0xff]
    %v5389 = vld [vmem:[%s5313 + $0x258] sm:$0xff]
    %v5390 = vld [vmem:[%s5313 + $0x260] sm:$0xff]
    %v5391 = vld [vmem:[%s5313 + $0x268] sm:$0xff]
    %v5392 = vld [vmem:[%s5313 + $0x270] sm:$0xff]
    %v5393 = vld [vmem:[%s5313 + $0x278] sm:$0xff]
    %v5394 = vld [vmem:[%s5313 + $0x280] sm:$0xff]
    %v5395 = vld [vmem:[%s5313 + $0x288] sm:$0xff]
    %v5396 = vld [vmem:[%s5313 + $0x290] sm:$0xff]
    %v5397 = vld [vmem:[%s5313 + $0x298] sm:$0xff]
    %v5398 = vld [vmem:[%s5313 + $0x2a0] sm:$0xff]
    %v5399 = vld [vmem:[%s5313 + $0x2a8] sm:$0xff]
    %v5400 = vld [vmem:[%s5313 + $0x2b0] sm:$0xff]
    %v5401 = vld [vmem:[%s5313 + $0x2b8] sm:$0xff]
    %v5402 = vld [vmem:[%s5313 + $0x2c0] sm:$0xff]
    %v5403 = vld [vmem:[%s5313 + $0x2c8] sm:$0xff]
    %v5404 = vld [vmem:[%s5313 + $0x2d0] sm:$0xff]
    %v5405 = vld [vmem:[%s5313 + $0x2d8] sm:$0xff]
    %v5406 = vld [vmem:[%s5313 + $0x2e0] sm:$0xff]
    %v5407 = vld [vmem:[%s5313 + $0x2e8] sm:$0xff]
    %v5408 = vld [vmem:[%s5313 + $0x2f0] sm:$0xff]
    %v5409 = vld [vmem:[%s5313 + $0x2f8] sm:$0xff]
    %v5410 = vld [vmem:[%s5313 + $0x300] sm:$0xff]
    %v5411 = vld [vmem:[%s5313 + $0x308] sm:$0xff]
    %v5412 = vld [vmem:[%s5313 + $0x310] sm:$0xff]
    %v5413 = vld [vmem:[%s5313 + $0x318] sm:$0xff]
    %v5414 = vld [vmem:[%s5313 + $0x320] sm:$0xff]
    %v5415 = vld [vmem:[%s5313 + $0x328] sm:$0xff]
    %v5416 = vld [vmem:[%s5313 + $0x330] sm:$0xff]
    %v5417 = vld [vmem:[%s5313 + $0x338] sm:$0xff]
    %v5418 = vld [vmem:[%s5313 + $0x340] sm:$0xff]
    %v5419 = vld [vmem:[%s5313 + $0x348] sm:$0xff]
    %v5420 = vld [vmem:[%s5313 + $0x350] sm:$0xff]
    %v5421 = vld [vmem:[%s5313 + $0x358] sm:$0xff]
    %v5422 = vld [vmem:[%s5313 + $0x360] sm:$0xff]
    %v5423 = vld [vmem:[%s5313 + $0x368] sm:$0xff]
    %v5424 = vld [vmem:[%s5313 + $0x370] sm:$0xff]
    %v5425 = vld [vmem:[%s5313 + $0x378] sm:$0xff]
    %v5426 = vld [vmem:[%s5313 + $0x380] sm:$0xff]
    %v5427 = vld [vmem:[%s5313 + $0x388] sm:$0xff]
    %v5428 = vld [vmem:[%s5313 + $0x390] sm:$0xff]
    %v5429 = vld [vmem:[%s5313 + $0x398] sm:$0xff]
    %v5430 = vld [vmem:[%s5313 + $0x3a0] sm:$0xff]
    %v5431 = vld [vmem:[%s5313 + $0x3a8] sm:$0xff]
    %v5432 = vld [vmem:[%s5313 + $0x3b0] sm:$0xff]
    %v5433 = vld [vmem:[%s5313 + $0x3b8] sm:$0xff]
    %v5434 = vld [vmem:[%s5313 + $0x3c0] sm:$0xff]
    %v5435 = vld [vmem:[%s5313 + $0x3c8] sm:$0xff]
    %v5436 = vld [vmem:[%s5313 + $0x3d0] sm:$0xff]
    %v5437 = vld [vmem:[%s5313 + $0x3d8] sm:$0xff]
    %v5438 = vld [vmem:[%s5313 + $0x3e0] sm:$0xff]
    %v5439 = vld [vmem:[%s5313 + $0x3e8] sm:$0xff]
    %v5440 = vld [vmem:[%s5313 + $0x3f0] sm:$0xff]
    %v5441 = vld [vmem:[%s5313 + $0x3f8] sm:$0xff]
    %v5442 = vld [vmem:[%s5313 + $0x400] sm:$0xff]
    %v5443 = vld [vmem:[%s5313 + $0x408] sm:$0xff]
    %v5444 = vld [vmem:[%s5313 + $0x410] sm:$0xff]
    %v5445 = vld [vmem:[%s5313 + $0x418] sm:$0xff]
    %v5446 = vld [vmem:[%s5313 + $0x420] sm:$0xff]
    %v5447 = vld [vmem:[%s5313 + $0x428] sm:$0xff]
    %v5448 = vld [vmem:[%s5313 + $0x430] sm:$0xff]
    %v5449 = vld [vmem:[%s5313 + $0x438] sm:$0xff]
    %v5450 = vld [vmem:[%s5313 + $0x440] sm:$0xff]
    %v5451 = vld [vmem:[%s5313 + $0x448] sm:$0xff]
    %v5452 = vld [vmem:[%s5313 + $0x450] sm:$0xff]
    %v5453 = vld [vmem:[%s5313 + $0x458] sm:$0xff]
    %v5454 = vld [vmem:[%s5313 + $0x460] sm:$0xff]
    %v5455 = vld [vmem:[%s5313 + $0x468] sm:$0xff]
    %v5456 = vld [vmem:[%s5313 + $0x470] sm:$0xff]
    %v5457 = vld [vmem:[%s5313 + $0x478] sm:$0xff]
    %v5458 = vld [vmem:[%s5313 + $0x480] sm:$0xff]
    %v5459 = vld [vmem:[%s5313 + $0x488] sm:$0xff]
    %v5460 = vld [vmem:[%s5313 + $0x490] sm:$0xff]
    %v5461 = vld [vmem:[%s5313 + $0x498] sm:$0xff]
    %v5462 = vld [vmem:[%s5313 + $0x4a0] sm:$0xff]
    %v5463 = vld [vmem:[%s5313 + $0x4a8] sm:$0xff]
    %v5464 = vld [vmem:[%s5313 + $0x4b0] sm:$0xff]
    %v5465 = vld [vmem:[%s5313 + $0x4b8] sm:$0xff]
    %v5466 = vld [vmem:[%s5313 + $0x4c0] sm:$0xff]
    %v5467 = vld [vmem:[%s5313 + $0x4c8] sm:$0xff]
    %v5468 = vld [vmem:[%s5313 + $0x4d0] sm:$0xff]
    %v5469 = vld [vmem:[%s5313 + $0x4d8] sm:$0xff]
    %v5470 = vld [vmem:[%s5313 + $0x4e0] sm:$0xff]
    %v5471 = vld [vmem:[%s5313 + $0x4e8] sm:$0xff]
    %v5472 = vld [vmem:[%s5313 + $0x4f0] sm:$0xff]
    %v5473 = vld [vmem:[%s5313 + $0x4f8] sm:$0xff]
    %v5474 = vld [vmem:[%s5313 + $0x500] sm:$0xff]
    %v5475 = vld [vmem:[%s5313 + $0x508] sm:$0xff]
    %v5476 = vld [vmem:[%s5313 + $0x510] sm:$0xff]
    %v5477 = vld [vmem:[%s5313 + $0x518] sm:$0xff]
    %v5478 = vld [vmem:[%s5313 + $0x520] sm:$0xff]
    %v5479 = vld [vmem:[%s5313 + $0x528] sm:$0xff]
    %v5480 = vld [vmem:[%s5313 + $0x530] sm:$0xff]
    %v5481 = vld [vmem:[%s5313 + $0x538] sm:$0xff]
    %v5482 = vld [vmem:[%s5313 + $0x540] sm:$0xff]
    %v5483 = vld [vmem:[%s5313 + $0x548] sm:$0xff]
    %v5484 = vld [vmem:[%s5313 + $0x550] sm:$0xff]
    %v5485 = vld [vmem:[%s5313 + $0x558] sm:$0xff]
    %v5486 = vld [vmem:[%s5313 + $0x560] sm:$0xff]
    %v5487 = vld [vmem:[%s5313 + $0x568] sm:$0xff]
    %v5488 = vld [vmem:[%s5313 + $0x570] sm:$0xff]
    %v5489 = vld [vmem:[%s5313 + $0x578] sm:$0xff]
    %v5490 = vld [vmem:[%s5313 + $0x580] sm:$0xff]
    %v5491 = vld [vmem:[%s5313 + $0x588] sm:$0xff]
    %v5492 = vld [vmem:[%s5313 + $0x590] sm:$0xff]
    %v5493 = vld [vmem:[%s5313 + $0x598] sm:$0xff]
    %v5494 = vld [vmem:[%s5313 + $0x5a0] sm:$0xff]
    %v5495 = vld [vmem:[%s5313 + $0x5a8] sm:$0xff]
    %v5496 = vld [vmem:[%s5313 + $0x5b0] sm:$0xff]
    %v5497 = vld [vmem:[%s5313 + $0x5b8] sm:$0xff]
    %v5498 = vld [vmem:[%s5313 + $0x5c0] sm:$0xff]
    %v5499 = vld [vmem:[%s5313 + $0x5c8] sm:$0xff]
    %v5500 = vld [vmem:[%s5313 + $0x5d0] sm:$0xff]
    %v5501 = vld [vmem:[%s5313 + $0x5d8] sm:$0xff]
    %v5502 = vld [vmem:[%s5313 + $0x5e0] sm:$0xff]
    %v5503 = vld [vmem:[%s5313 + $0x5e8] sm:$0xff]
    %v5504 = vld [vmem:[%s5313 + $0x5f0] sm:$0xff]
    %v5505 = vld [vmem:[%s5313 + $0x5f8] sm:$0xff]
    %v5506 = vunpack.c.l.s8.bf16 %v5314
    %v5507 = vunpack.c.l.s8.bf16 %v5315
    %v5508 = vunpack.c.l.s8.bf16 %v5316
    %v5509 = vunpack.c.l.s8.bf16 %v5317
    %v5510 = vunpack.c.h.s8.bf16 %v5314
    %v5511 = vunpack.c.h.s8.bf16 %v5315
    %v5512 = vunpack.c.h.s8.bf16 %v5316
    %v5513 = vunpack.c.h.s8.bf16 %v5317
    %v5514 = vunpack.c.l.s8.bf16 %v5318
    %v5515 = vunpack.c.l.s8.bf16 %v5319
    %v5516 = vunpack.c.l.s8.bf16 %v5320
    %v5517 = vunpack.c.l.s8.bf16 %v5321
    %v5518 = vunpack.c.h.s8.bf16 %v5318
    %v5519 = vunpack.c.h.s8.bf16 %v5319
    %v5520 = vunpack.c.h.s8.bf16 %v5320
    %v5521 = vunpack.c.h.s8.bf16 %v5321
    %v5522 = vunpack.c.l.s8.bf16 %v5322
    %v5523 = vunpack.c.l.s8.bf16 %v5323
    %v5524 = vunpack.c.l.s8.bf16 %v5324
    %v5525 = vunpack.c.l.s8.bf16 %v5325
    %v5526 = vunpack.c.h.s8.bf16 %v5322
    %v5527 = vunpack.c.h.s8.bf16 %v5323
    %v5528 = vunpack.c.h.s8.bf16 %v5324
    %v5529 = vunpack.c.h.s8.bf16 %v5325
    %v5530 = vunpack.c.l.s8.bf16 %v5326
    %v5531 = vunpack.c.l.s8.bf16 %v5327
    %v5532 = vunpack.c.l.s8.bf16 %v5328
    %v5533 = vunpack.c.l.s8.bf16 %v5329
    %v5534 = vunpack.c.h.s8.bf16 %v5326
    %v5535 = vunpack.c.h.s8.bf16 %v5327
    %v5536 = vunpack.c.h.s8.bf16 %v5328
    %v5537 = vunpack.c.h.s8.bf16 %v5329
    %v5538 = vunpack.c.l.s8.bf16 %v5330
    %v5539 = vunpack.c.l.s8.bf16 %v5331
    %v5540 = vunpack.c.l.s8.bf16 %v5332
    %v5541 = vunpack.c.l.s8.bf16 %v5333
    %v5542 = vunpack.c.h.s8.bf16 %v5330
    %v5543 = vunpack.c.h.s8.bf16 %v5331
    %v5544 = vunpack.c.h.s8.bf16 %v5332
    %v5545 = vunpack.c.h.s8.bf16 %v5333
    %v5546 = vunpack.c.l.s8.bf16 %v5334
    %v5547 = vunpack.c.l.s8.bf16 %v5335
    %v5548 = vunpack.c.l.s8.bf16 %v5336
    %v5549 = vunpack.c.l.s8.bf16 %v5337
    %v5550 = vunpack.c.h.s8.bf16 %v5334
    %v5551 = vunpack.c.h.s8.bf16 %v5335
    %v5552 = vunpack.c.h.s8.bf16 %v5336
    %v5553 = vunpack.c.h.s8.bf16 %v5337
    %v5554 = vunpack.c.l.s8.bf16 %v5338
    %v5555 = vunpack.c.l.s8.bf16 %v5339
    %v5556 = vunpack.c.l.s8.bf16 %v5340
    %v5557 = vunpack.c.l.s8.bf16 %v5341
    %v5558 = vunpack.c.h.s8.bf16 %v5338
    %v5559 = vunpack.c.h.s8.bf16 %v5339
    %v5560 = vunpack.c.h.s8.bf16 %v5340
    %v5561 = vunpack.c.h.s8.bf16 %v5341
    %v5562 = vunpack.c.l.s8.bf16 %v5342
    %v5563 = vunpack.c.l.s8.bf16 %v5343
    %v5564 = vunpack.c.l.s8.bf16 %v5344
    %v5565 = vunpack.c.l.s8.bf16 %v5345
    %v5566 = vunpack.c.h.s8.bf16 %v5342
    %v5567 = vunpack.c.h.s8.bf16 %v5343
    %v5568 = vunpack.c.h.s8.bf16 %v5344
    %v5569 = vunpack.c.h.s8.bf16 %v5345
    %v5570 = vunpack.c.l.s8.bf16 %v5346
    %v5571 = vunpack.c.l.s8.bf16 %v5347
    %v5572 = vunpack.c.l.s8.bf16 %v5348
    %v5573 = vunpack.c.l.s8.bf16 %v5349
    %v5574 = vunpack.c.h.s8.bf16 %v5346
    %v5575 = vunpack.c.h.s8.bf16 %v5347
    %v5576 = vunpack.c.h.s8.bf16 %v5348
    %v5577 = vunpack.c.h.s8.bf16 %v5349
    %v5578 = vunpack.c.l.s8.bf16 %v5350
    %v5579 = vunpack.c.l.s8.bf16 %v5351
    %v5580 = vunpack.c.l.s8.bf16 %v5352
    %v5581 = vunpack.c.l.s8.bf16 %v5353
    %v5582 = vunpack.c.h.s8.bf16 %v5350
    %v5583 = vunpack.c.h.s8.bf16 %v5351
    %v5584 = vunpack.c.h.s8.bf16 %v5352
    %v5585 = vunpack.c.h.s8.bf16 %v5353
    %v5586 = vunpack.c.l.s8.bf16 %v5354
    %v5587 = vunpack.c.l.s8.bf16 %v5355
    %v5588 = vunpack.c.l.s8.bf16 %v5356
    %v5589 = vunpack.c.l.s8.bf16 %v5357
    %v5590 = vunpack.c.h.s8.bf16 %v5354
    %v5591 = vunpack.c.h.s8.bf16 %v5355
    %v5592 = vunpack.c.h.s8.bf16 %v5356
    %v5593 = vunpack.c.h.s8.bf16 %v5357
    %v5594 = vunpack.c.l.s8.bf16 %v5358
    %v5595 = vunpack.c.l.s8.bf16 %v5359
    %v5596 = vunpack.c.l.s8.bf16 %v5360
    %v5597 = vunpack.c.l.s8.bf16 %v5361
    %v5598 = vunpack.c.h.s8.bf16 %v5358
    %v5599 = vunpack.c.h.s8.bf16 %v5359
    %v5600 = vunpack.c.h.s8.bf16 %v5360
    %v5601 = vunpack.c.h.s8.bf16 %v5361
    %v5602 = vunpack.c.l.s8.bf16 %v5362
    %v5603 = vunpack.c.l.s8.bf16 %v5363
    %v5604 = vunpack.c.l.s8.bf16 %v5364
    %v5605 = vunpack.c.l.s8.bf16 %v5365
    %v5606 = vunpack.c.h.s8.bf16 %v5362
    %v5607 = vunpack.c.h.s8.bf16 %v5363
    %v5608 = vunpack.c.h.s8.bf16 %v5364
    %v5609 = vunpack.c.h.s8.bf16 %v5365
    %v5610 = vunpack.c.l.s8.bf16 %v5366
    %v5611 = vunpack.c.l.s8.bf16 %v5367
    %v5612 = vunpack.c.l.s8.bf16 %v5368
    %v5613 = vunpack.c.l.s8.bf16 %v5369
    %v5614 = vunpack.c.h.s8.bf16 %v5366
    %v5615 = vunpack.c.h.s8.bf16 %v5367
    %v5616 = vunpack.c.h.s8.bf16 %v5368
    %v5617 = vunpack.c.h.s8.bf16 %v5369
    %v5618 = vunpack.c.l.s8.bf16 %v5370
    %v5619 = vunpack.c.l.s8.bf16 %v5371
    %v5620 = vunpack.c.l.s8.bf16 %v5372
    %v5621 = vunpack.c.l.s8.bf16 %v5373
    %v5622 = vunpack.c.h.s8.bf16 %v5370
    %v5623 = vunpack.c.h.s8.bf16 %v5371
    %v5624 = vunpack.c.h.s8.bf16 %v5372
    %v5625 = vunpack.c.h.s8.bf16 %v5373
    %v5626 = vunpack.c.l.s8.bf16 %v5374
    %v5627 = vunpack.c.l.s8.bf16 %v5375
    %v5628 = vunpack.c.l.s8.bf16 %v5376
    %v5629 = vunpack.c.l.s8.bf16 %v5377
    %v5630 = vunpack.c.h.s8.bf16 %v5374
    %v5631 = vunpack.c.h.s8.bf16 %v5375
    %v5632 = vunpack.c.h.s8.bf16 %v5376
    %v5633 = vunpack.c.h.s8.bf16 %v5377
    %v5634 = vunpack.c.l.s8.bf16 %v5378
    %v5635 = vunpack.c.l.s8.bf16 %v5379
    %v5636 = vunpack.c.l.s8.bf16 %v5380
    %v5637 = vunpack.c.l.s8.bf16 %v5381
    %v5638 = vunpack.c.h.s8.bf16 %v5378
    %v5639 = vunpack.c.h.s8.bf16 %v5379
    %v5640 = vunpack.c.h.s8.bf16 %v5380
    %v5641 = vunpack.c.h.s8.bf16 %v5381
    %v5642 = vunpack.c.l.s8.bf16 %v5382
    %v5643 = vunpack.c.l.s8.bf16 %v5383
    %v5644 = vunpack.c.l.s8.bf16 %v5384
    %v5645 = vunpack.c.l.s8.bf16 %v5385
    %v5646 = vunpack.c.h.s8.bf16 %v5382
    %v5647 = vunpack.c.h.s8.bf16 %v5383
    %v5648 = vunpack.c.h.s8.bf16 %v5384
    %v5649 = vunpack.c.h.s8.bf16 %v5385
    %v5650 = vunpack.c.l.s8.bf16 %v5386
    %v5651 = vunpack.c.l.s8.bf16 %v5387
    %v5652 = vunpack.c.l.s8.bf16 %v5388
    %v5653 = vunpack.c.l.s8.bf16 %v5389
    %v5654 = vunpack.c.h.s8.bf16 %v5386
    %v5655 = vunpack.c.h.s8.bf16 %v5387
    %v5656 = vunpack.c.h.s8.bf16 %v5388
    %v5657 = vunpack.c.h.s8.bf16 %v5389
    %v5658 = vunpack.c.l.s8.bf16 %v5390
    %v5659 = vunpack.c.l.s8.bf16 %v5391
    %v5660 = vunpack.c.l.s8.bf16 %v5392
    %v5661 = vunpack.c.l.s8.bf16 %v5393
    %v5662 = vunpack.c.h.s8.bf16 %v5390
    %v5663 = vunpack.c.h.s8.bf16 %v5391
    %v5664 = vunpack.c.h.s8.bf16 %v5392
    %v5665 = vunpack.c.h.s8.bf16 %v5393
    %v5666 = vunpack.c.l.s8.bf16 %v5394
    %v5667 = vunpack.c.l.s8.bf16 %v5395
    %v5668 = vunpack.c.l.s8.bf16 %v5396
    %v5669 = vunpack.c.l.s8.bf16 %v5397
    %v5670 = vunpack.c.h.s8.bf16 %v5394
    %v5671 = vunpack.c.h.s8.bf16 %v5395
    %v5672 = vunpack.c.h.s8.bf16 %v5396
    %v5673 = vunpack.c.h.s8.bf16 %v5397
    %v5674 = vunpack.c.l.s8.bf16 %v5398
    %v5675 = vunpack.c.l.s8.bf16 %v5399
    %v5676 = vunpack.c.l.s8.bf16 %v5400
    %v5677 = vunpack.c.l.s8.bf16 %v5401
    %v5678 = vunpack.c.h.s8.bf16 %v5398
    %v5679 = vunpack.c.h.s8.bf16 %v5399
    %v5680 = vunpack.c.h.s8.bf16 %v5400
    %v5681 = vunpack.c.h.s8.bf16 %v5401
    %v5682 = vunpack.c.l.s8.bf16 %v5402
    %v5683 = vunpack.c.l.s8.bf16 %v5403
    %v5684 = vunpack.c.l.s8.bf16 %v5404
    %v5685 = vunpack.c.l.s8.bf16 %v5405
    %v5686 = vunpack.c.h.s8.bf16 %v5402
    %v5687 = vunpack.c.h.s8.bf16 %v5403
    %v5688 = vunpack.c.h.s8.bf16 %v5404
    %v5689 = vunpack.c.h.s8.bf16 %v5405
    %v5690 = vunpack.c.l.s8.bf16 %v5406
    %v5691 = vunpack.c.l.s8.bf16 %v5407
    %v5692 = vunpack.c.l.s8.bf16 %v5408
    %v5693 = vunpack.c.l.s8.bf16 %v5409
    %v5694 = vunpack.c.h.s8.bf16 %v5406
    %v5695 = vunpack.c.h.s8.bf16 %v5407
    %v5696 = vunpack.c.h.s8.bf16 %v5408
    %v5697 = vunpack.c.h.s8.bf16 %v5409
    %v5698 = vunpack.c.l.s8.bf16 %v5410
    %v5699 = vunpack.c.l.s8.bf16 %v5411
    %v5700 = vunpack.c.l.s8.bf16 %v5412
    %v5701 = vunpack.c.l.s8.bf16 %v5413
    %v5702 = vunpack.c.h.s8.bf16 %v5410
    %v5703 = vunpack.c.h.s8.bf16 %v5411
    %v5704 = vunpack.c.h.s8.bf16 %v5412
    %v5705 = vunpack.c.h.s8.bf16 %v5413
    %v5706 = vunpack.c.l.s8.bf16 %v5414
    %v5707 = vunpack.c.l.s8.bf16 %v5415
    %v5708 = vunpack.c.l.s8.bf16 %v5416
    %v5709 = vunpack.c.l.s8.bf16 %v5417
    %v5710 = vunpack.c.h.s8.bf16 %v5414
    %v5711 = vunpack.c.h.s8.bf16 %v5415
    %v5712 = vunpack.c.h.s8.bf16 %v5416
    %v5713 = vunpack.c.h.s8.bf16 %v5417
    %v5714 = vunpack.c.l.s8.bf16 %v5418
    %v5715 = vunpack.c.l.s8.bf16 %v5419
    %v5716 = vunpack.c.l.s8.bf16 %v5420
    %v5717 = vunpack.c.l.s8.bf16 %v5421
    %v5718 = vunpack.c.h.s8.bf16 %v5418
    %v5719 = vunpack.c.h.s8.bf16 %v5419
    %v5720 = vunpack.c.h.s8.bf16 %v5420
    %v5721 = vunpack.c.h.s8.bf16 %v5421
    %v5722 = vunpack.c.l.s8.bf16 %v5422
    %v5723 = vunpack.c.l.s8.bf16 %v5423
    %v5724 = vunpack.c.l.s8.bf16 %v5424
    %v5725 = vunpack.c.l.s8.bf16 %v5425
    %v5726 = vunpack.c.h.s8.bf16 %v5422
    %v5727 = vunpack.c.h.s8.bf16 %v5423
    %v5728 = vunpack.c.h.s8.bf16 %v5424
    %v5729 = vunpack.c.h.s8.bf16 %v5425
    %v5730 = vunpack.c.l.s8.bf16 %v5426
    %v5731 = vunpack.c.l.s8.bf16 %v5427
    %v5732 = vunpack.c.l.s8.bf16 %v5428
    %v5733 = vunpack.c.l.s8.bf16 %v5429
    %v5734 = vunpack.c.h.s8.bf16 %v5426
    %v5735 = vunpack.c.h.s8.bf16 %v5427
    %v5736 = vunpack.c.h.s8.bf16 %v5428
    %v5737 = vunpack.c.h.s8.bf16 %v5429
    %v5738 = vunpack.c.l.s8.bf16 %v5430
    %v5739 = vunpack.c.l.s8.bf16 %v5431
    %v5740 = vunpack.c.l.s8.bf16 %v5432
    %v5741 = vunpack.c.l.s8.bf16 %v5433
    %v5742 = vunpack.c.h.s8.bf16 %v5430
    %v5743 = vunpack.c.h.s8.bf16 %v5431
    %v5744 = vunpack.c.h.s8.bf16 %v5432
    %v5745 = vunpack.c.h.s8.bf16 %v5433
    %v5746 = vunpack.c.l.s8.bf16 %v5434
    %v5747 = vunpack.c.l.s8.bf16 %v5435
    %v5748 = vunpack.c.l.s8.bf16 %v5436
    %v5749 = vunpack.c.l.s8.bf16 %v5437
    %v5750 = vunpack.c.h.s8.bf16 %v5434
    %v5751 = vunpack.c.h.s8.bf16 %v5435
    %v5752 = vunpack.c.h.s8.bf16 %v5436
    %v5753 = vunpack.c.h.s8.bf16 %v5437
    %v5754 = vunpack.c.l.s8.bf16 %v5438
    %v5755 = vunpack.c.l.s8.bf16 %v5439
    %v5756 = vunpack.c.l.s8.bf16 %v5440
    %v5757 = vunpack.c.l.s8.bf16 %v5441
    %v5758 = vunpack.c.h.s8.bf16 %v5438
    %v5759 = vunpack.c.h.s8.bf16 %v5439
    %v5760 = vunpack.c.h.s8.bf16 %v5440
    %v5761 = vunpack.c.h.s8.bf16 %v5441
    %v5762 = vunpack.c.l.s8.bf16 %v5442
    %v5763 = vunpack.c.l.s8.bf16 %v5443
    %v5764 = vunpack.c.l.s8.bf16 %v5444
    %v5765 = vunpack.c.l.s8.bf16 %v5445
    %v5766 = vunpack.c.h.s8.bf16 %v5442
    %v5767 = vunpack.c.h.s8.bf16 %v5443
    %v5768 = vunpack.c.h.s8.bf16 %v5444
    %v5769 = vunpack.c.h.s8.bf16 %v5445
    %v5770 = vunpack.c.l.s8.bf16 %v5446
    %v5771 = vunpack.c.l.s8.bf16 %v5447
    %v5772 = vunpack.c.l.s8.bf16 %v5448
    %v5773 = vunpack.c.l.s8.bf16 %v5449
    %v5774 = vunpack.c.h.s8.bf16 %v5446
    %v5775 = vunpack.c.h.s8.bf16 %v5447
    %v5776 = vunpack.c.h.s8.bf16 %v5448
    %v5777 = vunpack.c.h.s8.bf16 %v5449
    %v5778 = vunpack.c.l.s8.bf16 %v5450
    %v5779 = vunpack.c.l.s8.bf16 %v5451
    %v5780 = vunpack.c.l.s8.bf16 %v5452
    %v5781 = vunpack.c.l.s8.bf16 %v5453
    %v5782 = vunpack.c.h.s8.bf16 %v5450
    %v5783 = vunpack.c.h.s8.bf16 %v5451
    %v5784 = vunpack.c.h.s8.bf16 %v5452
    %v5785 = vunpack.c.h.s8.bf16 %v5453
    %v5786 = vunpack.c.l.s8.bf16 %v5454
    %v5787 = vunpack.c.l.s8.bf16 %v5455
    %v5788 = vunpack.c.l.s8.bf16 %v5456
    %v5789 = vunpack.c.l.s8.bf16 %v5457
    %v5790 = vunpack.c.h.s8.bf16 %v5454
    %v5791 = vunpack.c.h.s8.bf16 %v5455
    %v5792 = vunpack.c.h.s8.bf16 %v5456
    %v5793 = vunpack.c.h.s8.bf16 %v5457
    %v5794 = vunpack.c.l.s8.bf16 %v5458
    %v5795 = vunpack.c.l.s8.bf16 %v5459
    %v5796 = vunpack.c.l.s8.bf16 %v5460
    %v5797 = vunpack.c.l.s8.bf16 %v5461
    %v5798 = vunpack.c.h.s8.bf16 %v5458
    %v5799 = vunpack.c.h.s8.bf16 %v5459
    %v5800 = vunpack.c.h.s8.bf16 %v5460
    %v5801 = vunpack.c.h.s8.bf16 %v5461
    %v5802 = vunpack.c.l.s8.bf16 %v5462
    %v5803 = vunpack.c.l.s8.bf16 %v5463
    %v5804 = vunpack.c.l.s8.bf16 %v5464
    %v5805 = vunpack.c.l.s8.bf16 %v5465
    %v5806 = vunpack.c.h.s8.bf16 %v5462
    %v5807 = vunpack.c.h.s8.bf16 %v5463
    %v5808 = vunpack.c.h.s8.bf16 %v5464
    %v5809 = vunpack.c.h.s8.bf16 %v5465
    %v5810 = vunpack.c.l.s8.bf16 %v5466
    %v5811 = vunpack.c.l.s8.bf16 %v5467
    %v5812 = vunpack.c.l.s8.bf16 %v5468
    %v5813 = vunpack.c.l.s8.bf16 %v5469
    %v5814 = vunpack.c.h.s8.bf16 %v5466
    %v5815 = vunpack.c.h.s8.bf16 %v5467
    %v5816 = vunpack.c.h.s8.bf16 %v5468
    %v5817 = vunpack.c.h.s8.bf16 %v5469
    %v5818 = vunpack.c.l.s8.bf16 %v5470
    %v5819 = vunpack.c.l.s8.bf16 %v5471
    %v5820 = vunpack.c.l.s8.bf16 %v5472
    %v5821 = vunpack.c.l.s8.bf16 %v5473
    %v5822 = vunpack.c.h.s8.bf16 %v5470
    %v5823 = vunpack.c.h.s8.bf16 %v5471
    %v5824 = vunpack.c.h.s8.bf16 %v5472
    %v5825 = vunpack.c.h.s8.bf16 %v5473
    %v5826 = vunpack.c.l.s8.bf16 %v5474
    %v5827 = vunpack.c.l.s8.bf16 %v5475
    %v5828 = vunpack.c.l.s8.bf16 %v5476
    %v5829 = vunpack.c.l.s8.bf16 %v5477
    %v5830 = vunpack.c.h.s8.bf16 %v5474
    %v5831 = vunpack.c.h.s8.bf16 %v5475
    %v5832 = vunpack.c.h.s8.bf16 %v5476
    %v5833 = vunpack.c.h.s8.bf16 %v5477
    %v5834 = vunpack.c.l.s8.bf16 %v5478
    %v5835 = vunpack.c.l.s8.bf16 %v5479
    %v5836 = vunpack.c.l.s8.bf16 %v5480
    %v5837 = vunpack.c.l.s8.bf16 %v5481
    %v5838 = vunpack.c.h.s8.bf16 %v5478
    %v5839 = vunpack.c.h.s8.bf16 %v5479
    %v5840 = vunpack.c.h.s8.bf16 %v5480
    %v5841 = vunpack.c.h.s8.bf16 %v5481
    %v5842 = vunpack.c.l.s8.bf16 %v5482
    %v5843 = vunpack.c.l.s8.bf16 %v5483
    %v5844 = vunpack.c.l.s8.bf16 %v5484
    %v5845 = vunpack.c.l.s8.bf16 %v5485
    %v5846 = vunpack.c.h.s8.bf16 %v5482
    %v5847 = vunpack.c.h.s8.bf16 %v5483
    %v5848 = vunpack.c.h.s8.bf16 %v5484
    %v5849 = vunpack.c.h.s8.bf16 %v5485
    %v5850 = vunpack.c.l.s8.bf16 %v5486
    %v5851 = vunpack.c.l.s8.bf16 %v5487
    %v5852 = vunpack.c.l.s8.bf16 %v5488
    %v5853 = vunpack.c.l.s8.bf16 %v5489
    %v5854 = vunpack.c.h.s8.bf16 %v5486
    %v5855 = vunpack.c.h.s8.bf16 %v5487
    %v5856 = vunpack.c.h.s8.bf16 %v5488
    %v5857 = vunpack.c.h.s8.bf16 %v5489
    %v5858 = vunpack.c.l.s8.bf16 %v5490
    %v5859 = vunpack.c.l.s8.bf16 %v5491
    %v5860 = vunpack.c.l.s8.bf16 %v5492
    %v5861 = vunpack.c.l.s8.bf16 %v5493
    %v5862 = vunpack.c.h.s8.bf16 %v5490
    %v5863 = vunpack.c.h.s8.bf16 %v5491
    %v5864 = vunpack.c.h.s8.bf16 %v5492
    %v5865 = vunpack.c.h.s8.bf16 %v5493
    %v5866 = vunpack.c.l.s8.bf16 %v5494
    %v5867 = vunpack.c.l.s8.bf16 %v5495
    %v5868 = vunpack.c.l.s8.bf16 %v5496
    %v5869 = vunpack.c.l.s8.bf16 %v5497
    %v5870 = vunpack.c.h.s8.bf16 %v5494
    %v5871 = vunpack.c.h.s8.bf16 %v5495
    %v5872 = vunpack.c.h.s8.bf16 %v5496
    %v5873 = vunpack.c.h.s8.bf16 %v5497
    %v5874 = vunpack.c.l.s8.bf16 %v5498
    %v5875 = vunpack.c.l.s8.bf16 %v5499
    %v5876 = vunpack.c.l.s8.bf16 %v5500
    %v5877 = vunpack.c.l.s8.bf16 %v5501
    %v5878 = vunpack.c.h.s8.bf16 %v5498
    %v5879 = vunpack.c.h.s8.bf16 %v5499
    %v5880 = vunpack.c.h.s8.bf16 %v5500
    %v5881 = vunpack.c.h.s8.bf16 %v5501
    %v5882 = vunpack.c.l.s8.bf16 %v5502
    %v5883 = vunpack.c.l.s8.bf16 %v5503
    %v5884 = vunpack.c.l.s8.bf16 %v5504
    %v5885 = vunpack.c.l.s8.bf16 %v5505
    %v5886 = vunpack.c.h.s8.bf16 %v5502
    %v5887 = vunpack.c.h.s8.bf16 %v5503
    %v5888 = vunpack.c.h.s8.bf16 %v5504
    %v5889 = vunpack.c.h.s8.bf16 %v5505
    %v5890 = vpack.c.bf16 %v4642, %v4642
    %v5891 = vpack.c.bf16 %v4649, %v4649
    %v5892 = vpack.c.bf16 %v4656, %v4656
    %v5893 = vpack.c.bf16 %v4663, %v4663
    %v5894 = vpack.c.bf16 %v4670, %v4670
    %v5895 = vpack.c.bf16 %v4677, %v4677
    %v5896 = vpack.c.bf16 %v4684, %v4684
    %v5897 = vpack.c.bf16 %v4691, %v4691
    %v5898 = vpack.c.bf16 %v4698, %v4698
    %v5899 = vpack.c.bf16 %v4705, %v4705
    %v5900 = vpack.c.bf16 %v4712, %v4712
    %v5901 = vpack.c.bf16 %v4719, %v4719
    %5902 = vmatprep.subr.bf16.mxu0 %v5507
    %5903 = vmatpush1.bf16.msra.mxu0 %v5506
    %5904 = vmatprep.subr.bf16.mxu0 %v5511
    %5905 = vmatpush1.bf16.msra.mxu0 %v5510
    %5906 = vmatprep.subr.bf16.mxu0 %v5515
    %5907 = vmatpush1.bf16.msra.mxu0 %v5514
    %5908 = vmatprep.subr.bf16.mxu0 %v5519
    %5909 = vmatpush1.bf16.msra.mxu0 %v5518
    %5910 = vmatprep.subr.bf16.mxu0 %v5523
    %5911 = vmatpush1.bf16.msra.mxu0 %v5522
    %5912 = vmatprep.subr.bf16.mxu0 %v5527
    %5913 = vmatpush1.bf16.msra.mxu0 %v5526
    %5914 = vmatprep.subr.bf16.mxu0 %v5531
    %5915 = vmatpush1.bf16.msra.mxu0 %v5530
    %5916 = vmatprep.subr.bf16.mxu0 %v5535
    %5917 = vmatpush1.bf16.msra.mxu0 %v5534
    %5918 = vmatprep.subr.bf16.mxu0 %v5539
    %5919 = vmatpush1.bf16.msra.mxu0 %v5538
    %5920 = vmatprep.subr.bf16.mxu0 %v5543
    %5921 = vmatpush1.bf16.msra.mxu0 %v5542
    %5922 = vmatprep.subr.bf16.mxu0 %v5547
    %5923 = vmatpush1.bf16.msra.mxu0 %v5546
    %5924 = vmatprep.subr.bf16.mxu0 %v5551
    %5925 = vmatpush1.bf16.msra.mxu0 %v5550
    %5926 = vmatprep.subr.bf16.mxu0 %v5555
    %5927 = vmatpush1.bf16.msra.mxu0 %v5554
    %5928 = vmatprep.subr.bf16.mxu0 %v5559
    %5929 = vmatpush1.bf16.msra.mxu0 %v5558
    %5930 = vmatprep.subr.bf16.mxu0 %v5563
    %5931 = vmatpush1.bf16.msra.mxu0 %v5562
    %5932 = vmatprep.subr.bf16.mxu0 %v5567
    %5933 = vmatpush1.bf16.msra.mxu0 %v5566
    %5934 = vmatprep.mubr.bf16.mxu0 %v5891
    %5935 = vmatmul.mubr.bf16.gmra.mrb[0].mxu0 %v5890
    %v5936 = vpop.f32.mrb[0].mxu0
    %v5937 = vadd.f32 0.0, %v5936
    %v5938 = vpop.f32.mrb[0].mxu0
    %v5939 = vadd.f32 0.0, %v5938
    %v5940 = vpop.f32.mrb[0].mxu0
    %v5941 = vpop.f32.mrb[0].mxu0
    %5942 = vdwg.mxu0
    %5943 = vmatprep.subr.bf16.mxu0 %v5571
    %5944 = vmatpush1.bf16.msra.mxu0 %v5570
    %5945 = vmatprep.subr.bf16.mxu0 %v5575
    %5946 = vmatpush1.bf16.msra.mxu0 %v5574
    %5947 = vmatprep.subr.bf16.mxu0 %v5579
    %5948 = vmatpush1.bf16.msra.mxu0 %v5578
    %5949 = vmatprep.subr.bf16.mxu0 %v5583
    %5950 = vmatpush1.bf16.msra.mxu0 %v5582
    %5951 = vmatprep.subr.bf16.mxu0 %v5587
    %5952 = vmatpush1.bf16.msra.mxu0 %v5586
    %5953 = vmatprep.subr.bf16.mxu0 %v5591
    %5954 = vmatpush1.bf16.msra.mxu0 %v5590
    %5955 = vmatprep.subr.bf16.mxu0 %v5595
    %5956 = vmatpush1.bf16.msra.mxu0 %v5594
    %5957 = vmatprep.subr.bf16.mxu0 %v5599
    %5958 = vmatpush1.bf16.msra.mxu0 %v5598
    %5959 = vmatprep.subr.bf16.mxu0 %v5603
    %5960 = vmatpush1.bf16.msra.mxu0 %v5602
    %5961 = vmatprep.subr.bf16.mxu0 %v5607
    %5962 = vmatpush1.bf16.msra.mxu0 %v5606
    %5963 = vmatprep.subr.bf16.mxu0 %v5611
    %5964 = vmatpush1.bf16.msra.mxu0 %v5610
    %5965 = vmatprep.subr.bf16.mxu0 %v5615
    %5966 = vmatpush1.bf16.msra.mxu0 %v5614
    %5967 = vmatprep.subr.bf16.mxu0 %v5619
    %5968 = vmatpush1.bf16.msra.mxu0 %v5618
    %5969 = vmatprep.subr.bf16.mxu0 %v5623
    %5970 = vmatpush1.bf16.msra.mxu0 %v5622
    %5971 = vmatprep.subr.bf16.mxu0 %v5627
    %5972 = vmatpush1.bf16.msra.mxu0 %v5626
    %5973 = vmatprep.subr.bf16.mxu0 %v5631
    %5974 = vmatpush1.bf16.msra.mxu0 %v5630
    %5975 = vmatprep.mubr.bf16.mxu0 %v5893
    %5976 = vmatmul.mubr.bf16.gmra.mrb[0].mxu0 %v5892
    %v5977 = vpop.f32.mrb[0].mxu0
    %v5978 = vadd.f32 %v5937, %v5977
    %v5979 = vpop.f32.mrb[0].mxu0
    %v5980 = vadd.f32 %v5939, %v5979
    %v5981 = vpop.f32.mrb[0].mxu0
    %v5982 = vpop.f32.mrb[0].mxu0
    %5983 = vdwg.mxu0
    %5984 = vmatprep.subr.bf16.mxu0 %v5635
    %5985 = vmatpush1.bf16.msra.mxu0 %v5634
    %5986 = vmatprep.subr.bf16.mxu0 %v5639
    %5987 = vmatpush1.bf16.msra.mxu0 %v5638
    %5988 = vmatprep.subr.bf16.mxu0 %v5643
    %5989 = vmatpush1.bf16.msra.mxu0 %v5642
    %5990 = vmatprep.subr.bf16.mxu0 %v5647
    %5991 = vmatpush1.bf16.msra.mxu0 %v5646
    %5992 = vmatprep.subr.bf16.mxu0 %v5651
    %5993 = vmatpush1.bf16.msra.mxu0 %v5650
    %5994 = vmatprep.subr.bf16.mxu0 %v5655
    %5995 = vmatpush1.bf16.msra.mxu0 %v5654
    %5996 = vmatprep.subr.bf16.mxu0 %v5659
    %5997 = vmatpush1.bf16.msra.mxu0 %v5658
    %5998 = vmatprep.subr.bf16.mxu0 %v5663
    %5999 = vmatpush1.bf16.msra.mxu0 %v5662
    %6000 = vmatprep.subr.bf16.mxu0 %v5667
    %6001 = vmatpush1.bf16.msra.mxu0 %v5666
    %6002 = vmatprep.subr.bf16.mxu0 %v5671
    %6003 = vmatpush1.bf16.msra.mxu0 %v5670
    %6004 = vmatprep.subr.bf16.mxu0 %v5675
    %6005 = vmatpush1.bf16.msra.mxu0 %v5674
    %6006 = vmatprep.subr.bf16.mxu0 %v5679
    %6007 = vmatpush1.bf16.msra.mxu0 %v5678
    %6008 = vmatprep.subr.bf16.mxu0 %v5683
    %6009 = vmatpush1.bf16.msra.mxu0 %v5682
    %6010 = vmatprep.subr.bf16.mxu0 %v5687
    %6011 = vmatpush1.bf16.msra.mxu0 %v5686
    %6012 = vmatprep.subr.bf16.mxu0 %v5691
    %6013 = vmatpush1.bf16.msra.mxu0 %v5690
    %6014 = vmatprep.subr.bf16.mxu0 %v5695
    %6015 = vmatpush1.bf16.msra.mxu0 %v5694
    %6016 = vmatprep.mubr.bf16.mxu0 %v5895
    %6017 = vmatmul.mubr.bf16.gmra.mrb[0].mxu0 %v5894
    %v6018 = vpop.f32.mrb[0].mxu0
    %v6019 = vadd.f32 %v5978, %v6018
    %v6020 = vpop.f32.mrb[0].mxu0
    %v6021 = vadd.f32 %v5980, %v6020
    %v6022 = vpop.f32.mrb[0].mxu0
    %v6023 = vpop.f32.mrb[0].mxu0
    %6024 = vdwg.mxu0
    %6025 = vmatprep.subr.bf16.mxu0 %v5699
    %6026 = vmatpush1.bf16.msra.mxu0 %v5698
    %6027 = vmatprep.subr.bf16.mxu0 %v5703
    %6028 = vmatpush1.bf16.msra.mxu0 %v5702
    %6029 = vmatprep.subr.bf16.mxu0 %v5707
    %6030 = vmatpush1.bf16.msra.mxu0 %v5706
    %6031 = vmatprep.subr.bf16.mxu0 %v5711
    %6032 = vmatpush1.bf16.msra.mxu0 %v5710
    %6033 = vmatprep.subr.bf16.mxu0 %v5715
    %6034 = vmatpush1.bf16.msra.mxu0 %v5714
    %6035 = vmatprep.subr.bf16.mxu0 %v5719
    %6036 = vmatpush1.bf16.msra.mxu0 %v5718
    %6037 = vmatprep.subr.bf16.mxu0 %v5723
    %6038 = vmatpush1.bf16.msra.mxu0 %v5722
    %6039 = vmatprep.subr.bf16.mxu0 %v5727
    %6040 = vmatpush1.bf16.msra.mxu0 %v5726
    %6041 = vmatprep.subr.bf16.mxu0 %v5731
    %6042 = vmatpush1.bf16.msra.mxu0 %v5730
    %6043 = vmatprep.subr.bf16.mxu0 %v5735
    %6044 = vmatpush1.bf16.msra.mxu0 %v5734
    %6045 = vmatprep.subr.bf16.mxu0 %v5739
    %6046 = vmatpush1.bf16.msra.mxu0 %v5738
    %6047 = vmatprep.subr.bf16.mxu0 %v5743
    %6048 = vmatpush1.bf16.msra.mxu0 %v5742
    %6049 = vmatprep.subr.bf16.mxu0 %v5747
    %6050 = vmatpush1.bf16.msra.mxu0 %v5746
    %6051 = vmatprep.subr.bf16.mxu0 %v5751
    %6052 = vmatpush1.bf16.msra.mxu0 %v5750
    %6053 = vmatprep.subr.bf16.mxu0 %v5755
    %6054 = vmatpush1.bf16.msra.mxu0 %v5754
    %6055 = vmatprep.subr.bf16.mxu0 %v5759
    %6056 = vmatpush1.bf16.msra.mxu0 %v5758
    %6057 = vmatprep.mubr.bf16.mxu0 %v5897
    %6058 = vmatmul.mubr.bf16.gmra.mrb[0].mxu0 %v5896
    %v6059 = vpop.f32.mrb[0].mxu0
    %v6060 = vadd.f32 %v6019, %v6059
    %v6061 = vpop.f32.mrb[0].mxu0
    %v6062 = vadd.f32 %v6021, %v6061
    %v6063 = vpop.f32.mrb[0].mxu0
    %v6064 = vpop.f32.mrb[0].mxu0
    %6065 = vdwg.mxu0
    %6066 = vmatprep.subr.bf16.mxu0 %v5763
    %6067 = vmatpush1.bf16.msra.mxu0 %v5762
    %6068 = vmatprep.subr.bf16.mxu0 %v5767
    %6069 = vmatpush1.bf16.msra.mxu0 %v5766
    %6070 = vmatprep.subr.bf16.mxu0 %v5771
    %6071 = vmatpush1.bf16.msra.mxu0 %v5770
    %6072 = vmatprep.subr.bf16.mxu0 %v5775
    %6073 = vmatpush1.bf16.msra.mxu0 %v5774
    %6074 = vmatprep.subr.bf16.mxu0 %v5779
    %6075 = vmatpush1.bf16.msra.mxu0 %v5778
    %6076 = vmatprep.subr.bf16.mxu0 %v5783
    %6077 = vmatpush1.bf16.msra.mxu0 %v5782
    %6078 = vmatprep.subr.bf16.mxu0 %v5787
    %6079 = vmatpush1.bf16.msra.mxu0 %v5786
    %6080 = vmatprep.subr.bf16.mxu0 %v5791
    %6081 = vmatpush1.bf16.msra.mxu0 %v5790
    %6082 = vmatprep.subr.bf16.mxu0 %v5795
    %6083 = vmatpush1.bf16.msra.mxu0 %v5794
    %6084 = vmatprep.subr.bf16.mxu0 %v5799
    %6085 = vmatpush1.bf16.msra.mxu0 %v5798
    %6086 = vmatprep.subr.bf16.mxu0 %v5803
    %6087 = vmatpush1.bf16.msra.mxu0 %v5802
    %6088 = vmatprep.subr.bf16.mxu0 %v5807
    %6089 = vmatpush1.bf16.msra.mxu0 %v5806
    %6090 = vmatprep.subr.bf16.mxu0 %v5811
    %6091 = vmatpush1.bf16.msra.mxu0 %v5810
    %6092 = vmatprep.subr.bf16.mxu0 %v5815
    %6093 = vmatpush1.bf16.msra.mxu0 %v5814
    %6094 = vmatprep.subr.bf16.mxu0 %v5819
    %6095 = vmatpush1.bf16.msra.mxu0 %v5818
    %6096 = vmatprep.subr.bf16.mxu0 %v5823
    %6097 = vmatpush1.bf16.msra.mxu0 %v5822
    %6098 = vmatprep.mubr.bf16.mxu0 %v5899
    %6099 = vmatmul.mubr.bf16.gmra.mrb[0].mxu0 %v5898
    %v6100 = vpop.f32.mrb[0].mxu0
    %v6101 = vadd.f32 %v6060, %v6100
    %v6102 = vpop.f32.mrb[0].mxu0
    %v6103 = vadd.f32 %v6062, %v6102
    %v6104 = vpop.f32.mrb[0].mxu0
    %v6105 = vpop.f32.mrb[0].mxu0
    %6106 = vdwg.mxu0
    %6107 = vmatprep.subr.bf16.mxu0 %v5827
    %6108 = vmatpush1.bf16.msra.mxu0 %v5826
    %6109 = vmatprep.subr.bf16.mxu0 %v5831
    %6110 = vmatpush1.bf16.msra.mxu0 %v5830
    %6111 = vmatprep.subr.bf16.mxu0 %v5835
    %6112 = vmatpush1.bf16.msra.mxu0 %v5834
    %6113 = vmatprep.subr.bf16.mxu0 %v5839
    %6114 = vmatpush1.bf16.msra.mxu0 %v5838
    %6115 = vmatprep.subr.bf16.mxu0 %v5843
    %6116 = vmatpush1.bf16.msra.mxu0 %v5842
    %6117 = vmatprep.subr.bf16.mxu0 %v5847
    %6118 = vmatpush1.bf16.msra.mxu0 %v5846
    %6119 = vmatprep.subr.bf16.mxu0 %v5851
    %6120 = vmatpush1.bf16.msra.mxu0 %v5850
    %6121 = vmatprep.subr.bf16.mxu0 %v5855
    %6122 = vmatpush1.bf16.msra.mxu0 %v5854
    %6123 = vmatprep.subr.bf16.mxu0 %v5859
    %6124 = vmatpush1.bf16.msra.mxu0 %v5858
    %6125 = vmatprep.subr.bf16.mxu0 %v5863
    %6126 = vmatpush1.bf16.msra.mxu0 %v5862
    %6127 = vmatprep.subr.bf16.mxu0 %v5867
    %6128 = vmatpush1.bf16.msra.mxu0 %v5866
    %6129 = vmatprep.subr.bf16.mxu0 %v5871
    %6130 = vmatpush1.bf16.msra.mxu0 %v5870
    %6131 = vmatprep.subr.bf16.mxu0 %v5875
    %6132 = vmatpush1.bf16.msra.mxu0 %v5874
    %6133 = vmatprep.subr.bf16.mxu0 %v5879
    %6134 = vmatpush1.bf16.msra.mxu0 %v5878
    %6135 = vmatprep.subr.bf16.mxu0 %v5883
    %6136 = vmatpush1.bf16.msra.mxu0 %v5882
    %6137 = vmatprep.subr.bf16.mxu0 %v5887
    %6138 = vmatpush1.bf16.msra.mxu0 %v5886
    %6139 = vmatprep.mubr.bf16.mxu0 %v5901
    %6140 = vmatmul.mubr.bf16.gmra.mrb[0].mxu0 %v5900
    %v6141 = vpop.f32.mrb[0].mxu0
    %v6142 = vadd.f32 %v6101, %v6141
    %v6143 = vpop.f32.mrb[0].mxu0
    %v6144 = vadd.f32 %v6103, %v6143
    %v6145 = vpop.f32.mrb[0].mxu0
    %v6146 = vpop.f32.mrb[0].mxu0
    %6147 = vdwg.mxu0
    %6148 = vmatprep.subr.bf16.mxu0 %v5509
    %6149 = vmatpush1.bf16.msra.mxu0 %v5508
    %6150 = vmatprep.subr.bf16.mxu0 %v5513
    %6151 = vmatpush1.bf16.msra.mxu0 %v5512
    %6152 = vmatprep.subr.bf16.mxu0 %v5517
    %6153 = vmatpush1.bf16.msra.mxu0 %v5516
    %6154 = vmatprep.subr.bf16.mxu0 %v5521
    %6155 = vmatpush1.bf16.msra.mxu0 %v5520
    %6156 = vmatprep.subr.bf16.mxu0 %v5525
    %6157 = vmatpush1.bf16.msra.mxu0 %v5524
    %6158 = vmatprep.subr.bf16.mxu0 %v5529
    %6159 = vmatpush1.bf16.msra.mxu0 %v5528
    %6160 = vmatprep.subr.bf16.mxu0 %v5533
    %6161 = vmatpush1.bf16.msra.mxu0 %v5532
    %6162 = vmatprep.subr.bf16.mxu0 %v5537
    %6163 = vmatpush1.bf16.msra.mxu0 %v5536
    %6164 = vmatprep.subr.bf16.mxu0 %v5541
    %6165 = vmatpush1.bf16.msra.mxu0 %v5540
    %6166 = vmatprep.subr.bf16.mxu0 %v5545
    %6167 = vmatpush1.bf16.msra.mxu0 %v5544
    %6168 = vmatprep.subr.bf16.mxu0 %v5549
    %6169 = vmatpush1.bf16.msra.mxu0 %v5548
    %6170 = vmatprep.subr.bf16.mxu0 %v5553
    %6171 = vmatpush1.bf16.msra.mxu0 %v5552
    %6172 = vmatprep.subr.bf16.mxu0 %v5557
    %6173 = vmatpush1.bf16.msra.mxu0 %v5556
    %6174 = vmatprep.subr.bf16.mxu0 %v5561
    %6175 = vmatpush1.bf16.msra.mxu0 %v5560
    %6176 = vmatprep.subr.bf16.mxu0 %v5565
    %6177 = vmatpush1.bf16.msra.mxu0 %v5564
    %6178 = vmatprep.subr.bf16.mxu0 %v5569
    %6179 = vmatpush1.bf16.msra.mxu0 %v5568
    %6180 = vmatprep.mubr.bf16.mxu0 %v5891
    %6181 = vmatmul.mubr.bf16.gmra.mrb[0].mxu0 %v5890
    %v6182 = vpop.f32.mrb[0].mxu0
    %v6183 = vadd.f32 0.0, %v6182
    %v6184 = vpop.f32.mrb[0].mxu0
    %v6185 = vadd.f32 0.0, %v6184
    %v6186 = vpop.f32.mrb[0].mxu0
    %v6187 = vpop.f32.mrb[0].mxu0
    %6188 = vdwg.mxu0
    %6189 = vmatprep.subr.bf16.mxu0 %v5573
    %6190 = vmatpush1.bf16.msra.mxu0 %v5572
    %6191 = vmatprep.subr.bf16.mxu0 %v5577
    %6192 = vmatpush1.bf16.msra.mxu0 %v5576
    %6193 = vmatprep.subr.bf16.mxu0 %v5581
    %6194 = vmatpush1.bf16.msra.mxu0 %v5580
    %6195 = vmatprep.subr.bf16.mxu0 %v5585
    %6196 = vmatpush1.bf16.msra.mxu0 %v5584
    %6197 = vmatprep.subr.bf16.mxu0 %v5589
    %6198 = vmatpush1.bf16.msra.mxu0 %v5588
    %6199 = vmatprep.subr.bf16.mxu0 %v5593
    %6200 = vmatpush1.bf16.msra.mxu0 %v5592
    %6201 = vmatprep.subr.bf16.mxu0 %v5597
    %6202 = vmatpush1.bf16.msra.mxu0 %v5596
    %6203 = vmatprep.subr.bf16.mxu0 %v5601
    %6204 = vmatpush1.bf16.msra.mxu0 %v5600
    %6205 = vmatprep.subr.bf16.mxu0 %v5605
    %6206 = vmatpush1.bf16.msra.mxu0 %v5604
    %6207 = vmatprep.subr.bf16.mxu0 %v5609
    %6208 = vmatpush1.bf16.msra.mxu0 %v5608
    %6209 = vmatprep.subr.bf16.mxu0 %v5613
    %6210 = vmatpush1.bf16.msra.mxu0 %v5612
    %6211 = vmatprep.subr.bf16.mxu0 %v5617
    %6212 = vmatpush1.bf16.msra.mxu0 %v5616
    %6213 = vmatprep.subr.bf16.mxu0 %v5621
    %6214 = vmatpush1.bf16.msra.mxu0 %v5620
    %6215 = vmatprep.subr.bf16.mxu0 %v5625
    %6216 = vmatpush1.bf16.msra.mxu0 %v5624
    %6217 = vmatprep.subr.bf16.mxu0 %v5629
    %6218 = vmatpush1.bf16.msra.mxu0 %v5628
    %6219 = vmatprep.subr.bf16.mxu0 %v5633
    %6220 = vmatpush1.bf16.msra.mxu0 %v5632
    %6221 = vmatprep.mubr.bf16.mxu0 %v5893
    %6222 = vmatmul.mubr.bf16.gmra.mrb[0].mxu0 %v5892
    %v6223 = vpop.f32.mrb[0].mxu0
    %v6224 = vadd.f32 %v6183, %v6223
    %v6225 = vpop.f32.mrb[0].mxu0
    %v6226 = vadd.f32 %v6185, %v6225
    %v6227 = vpop.f32.mrb[0].mxu0
    %v6228 = vpop.f32.mrb[0].mxu0
    %6229 = vdwg.mxu0
    %6230 = vmatprep.subr.bf16.mxu0 %v5637
    %6231 = vmatpush1.bf16.msra.mxu0 %v5636
    %6232 = vmatprep.subr.bf16.mxu0 %v5641
    %6233 = vmatpush1.bf16.msra.mxu0 %v5640
    %6234 = vmatprep.subr.bf16.mxu0 %v5645
    %6235 = vmatpush1.bf16.msra.mxu0 %v5644
    %6236 = vmatprep.subr.bf16.mxu0 %v5649
    %6237 = vmatpush1.bf16.msra.mxu0 %v5648
    %6238 = vmatprep.subr.bf16.mxu0 %v5653
    %6239 = vmatpush1.bf16.msra.mxu0 %v5652
    %6240 = vmatprep.subr.bf16.mxu0 %v5657
    %6241 = vmatpush1.bf16.msra.mxu0 %v5656
    %6242 = vmatprep.subr.bf16.mxu0 %v5661
    %6243 = vmatpush1.bf16.msra.mxu0 %v5660
    %6244 = vmatprep.subr.bf16.mxu0 %v5665
    %6245 = vmatpush1.bf16.msra.mxu0 %v5664
    %6246 = vmatprep.subr.bf16.mxu0 %v5669
    %6247 = vmatpush1.bf16.msra.mxu0 %v5668
    %6248 = vmatprep.subr.bf16.mxu0 %v5673
    %6249 = vmatpush1.bf16.msra.mxu0 %v5672
    %6250 = vmatprep.subr.bf16.mxu0 %v5677
    %6251 = vmatpush1.bf16.msra.mxu0 %v5676
    %6252 = vmatprep.subr.bf16.mxu0 %v5681
    %6253 = vmatpush1.bf16.msra.mxu0 %v5680
    %6254 = vmatprep.subr.bf16.mxu0 %v5685
    %6255 = vmatpush1.bf16.msra.mxu0 %v5684
    %6256 = vmatprep.subr.bf16.mxu0 %v5689
    %6257 = vmatpush1.bf16.msra.mxu0 %v5688
    %6258 = vmatprep.subr.bf16.mxu0 %v5693
    %6259 = vmatpush1.bf16.msra.mxu0 %v5692
    %6260 = vmatprep.subr.bf16.mxu0 %v5697
    %6261 = vmatpush1.bf16.msra.mxu0 %v5696
    %6262 = vmatprep.mubr.bf16.mxu0 %v5895
    %6263 = vmatmul.mubr.bf16.gmra.mrb[0].mxu0 %v5894
    %v6264 = vpop.f32.mrb[0].mxu0
    %v6265 = vadd.f32 %v6224, %v6264
    %v6266 = vpop.f32.mrb[0].mxu0
    %v6267 = vadd.f32 %v6226, %v6266
    %v6268 = vpop.f32.mrb[0].mxu0
    %v6269 = vpop.f32.mrb[0].mxu0
    %6270 = vdwg.mxu0
    %6271 = vmatprep.subr.bf16.mxu0 %v5701
    %6272 = vmatpush1.bf16.msra.mxu0 %v5700
    %6273 = vmatprep.subr.bf16.mxu0 %v5705
    %6274 = vmatpush1.bf16.msra.mxu0 %v5704
    %6275 = vmatprep.subr.bf16.mxu0 %v5709
    %6276 = vmatpush1.bf16.msra.mxu0 %v5708
    %6277 = vmatprep.subr.bf16.mxu0 %v5713
    %6278 = vmatpush1.bf16.msra.mxu0 %v5712
    %6279 = vmatprep.subr.bf16.mxu0 %v5717
    %6280 = vmatpush1.bf16.msra.mxu0 %v5716
    %6281 = vmatprep.subr.bf16.mxu0 %v5721
    %6282 = vmatpush1.bf16.msra.mxu0 %v5720
    %6283 = vmatprep.subr.bf16.mxu0 %v5725
    %6284 = vmatpush1.bf16.msra.mxu0 %v5724
    %6285 = vmatprep.subr.bf16.mxu0 %v5729
    %6286 = vmatpush1.bf16.msra.mxu0 %v5728
    %6287 = vmatprep.subr.bf16.mxu0 %v5733
    %6288 = vmatpush1.bf16.msra.mxu0 %v5732
    %6289 = vmatprep.subr.bf16.mxu0 %v5737
    %6290 = vmatpush1.bf16.msra.mxu0 %v5736
    %6291 = vmatprep.subr.bf16.mxu0 %v5741
    %6292 = vmatpush1.bf16.msra.mxu0 %v5740
    %6293 = vmatprep.subr.bf16.mxu0 %v5745
    %6294 = vmatpush1.bf16.msra.mxu0 %v5744
    %6295 = vmatprep.subr.bf16.mxu0 %v5749
    %6296 = vmatpush1.bf16.msra.mxu0 %v5748
    %6297 = vmatprep.subr.bf16.mxu0 %v5753
    %6298 = vmatpush1.bf16.msra.mxu0 %v5752
    %6299 = vmatprep.subr.bf16.mxu0 %v5757
    %6300 = vmatpush1.bf16.msra.mxu0 %v5756
    %6301 = vmatprep.subr.bf16.mxu0 %v5761
    %6302 = vmatpush1.bf16.msra.mxu0 %v5760
    %6303 = vmatprep.mubr.bf16.mxu0 %v5897
    %6304 = vmatmul.mubr.bf16.gmra.mrb[0].mxu0 %v5896
    %v6305 = vpop.f32.mrb[0].mxu0
    %v6306 = vadd.f32 %v6265, %v6305
    %v6307 = vpop.f32.mrb[0].mxu0
    %v6308 = vadd.f32 %v6267, %v6307
    %v6309 = vpop.f32.mrb[0].mxu0
    %v6310 = vpop.f32.mrb[0].mxu0
    %6311 = vdwg.mxu0
    %6312 = vmatprep.subr.bf16.mxu0 %v5765
    %6313 = vmatpush1.bf16.msra.mxu0 %v5764
    %6314 = vmatprep.subr.bf16.mxu0 %v5769
    %6315 = vmatpush1.bf16.msra.mxu0 %v5768
    %6316 = vmatprep.subr.bf16.mxu0 %v5773
    %6317 = vmatpush1.bf16.msra.mxu0 %v5772
    %6318 = vmatprep.subr.bf16.mxu0 %v5777
    %6319 = vmatpush1.bf16.msra.mxu0 %v5776
    %6320 = vmatprep.subr.bf16.mxu0 %v5781
    %6321 = vmatpush1.bf16.msra.mxu0 %v5780
    %6322 = vmatprep.subr.bf16.mxu0 %v5785
    %6323 = vmatpush1.bf16.msra.mxu0 %v5784
    %6324 = vmatprep.subr.bf16.mxu0 %v5789
    %6325 = vmatpush1.bf16.msra.mxu0 %v5788
    %6326 = vmatprep.subr.bf16.mxu0 %v5793
    %6327 = vmatpush1.bf16.msra.mxu0 %v5792
    %6328 = vmatprep.subr.bf16.mxu0 %v5797
    %6329 = vmatpush1.bf16.msra.mxu0 %v5796
    %6330 = vmatprep.subr.bf16.mxu0 %v5801
    %6331 = vmatpush1.bf16.msra.mxu0 %v5800
    %6332 = vmatprep.subr.bf16.mxu0 %v5805
    %6333 = vmatpush1.bf16.msra.mxu0 %v5804
    %6334 = vmatprep.subr.bf16.mxu0 %v5809
    %6335 = vmatpush1.bf16.msra.mxu0 %v5808
    %6336 = vmatprep.subr.bf16.mxu0 %v5813
    %6337 = vmatpush1.bf16.msra.mxu0 %v5812
    %6338 = vmatprep.subr.bf16.mxu0 %v5817
    %6339 = vmatpush1.bf16.msra.mxu0 %v5816
    %6340 = vmatprep.subr.bf16.mxu0 %v5821
    %6341 = vmatpush1.bf16.msra.mxu0 %v5820
    %6342 = vmatprep.subr.bf16.mxu0 %v5825
    %6343 = vmatpush1.bf16.msra.mxu0 %v5824
    %6344 = vmatprep.mubr.bf16.mxu0 %v5899
    %6345 = vmatmul.mubr.bf16.gmra.mrb[0].mxu0 %v5898
    %v6346 = vpop.f32.mrb[0].mxu0
    %v6347 = vadd.f32 %v6306, %v6346
    %v6348 = vpop.f32.mrb[0].mxu0
    %v6349 = vadd.f32 %v6308, %v6348
    %v6350 = vpop.f32.mrb[0].mxu0
    %v6351 = vpop.f32.mrb[0].mxu0
    %6352 = vdwg.mxu0
    %6353 = vmatprep.subr.bf16.mxu0 %v5829
    %6354 = vmatpush1.bf16.msra.mxu0 %v5828
    %6355 = vmatprep.subr.bf16.mxu0 %v5833
    %6356 = vmatpush1.bf16.msra.mxu0 %v5832
    %6357 = vmatprep.subr.bf16.mxu0 %v5837
    %6358 = vmatpush1.bf16.msra.mxu0 %v5836
    %6359 = vmatprep.subr.bf16.mxu0 %v5841
    %6360 = vmatpush1.bf16.msra.mxu0 %v5840
    %6361 = vmatprep.subr.bf16.mxu0 %v5845
    %6362 = vmatpush1.bf16.msra.mxu0 %v5844
    %6363 = vmatprep.subr.bf16.mxu0 %v5849
    %6364 = vmatpush1.bf16.msra.mxu0 %v5848
    %6365 = vmatprep.subr.bf16.mxu0 %v5853
    %6366 = vmatpush1.bf16.msra.mxu0 %v5852
    %6367 = vmatprep.subr.bf16.mxu0 %v5857
    %6368 = vmatpush1.bf16.msra.mxu0 %v5856
    %6369 = vmatprep.subr.bf16.mxu0 %v5861
    %6370 = vmatpush1.bf16.msra.mxu0 %v5860
    %6371 = vmatprep.subr.bf16.mxu0 %v5865
    %6372 = vmatpush1.bf16.msra.mxu0 %v5864
    %6373 = vmatprep.subr.bf16.mxu0 %v5869
    %6374 = vmatpush1.bf16.msra.mxu0 %v5868
    %6375 = vmatprep.subr.bf16.mxu0 %v5873
    %6376 = vmatpush1.bf16.msra.mxu0 %v5872
    %6377 = vmatprep.subr.bf16.mxu0 %v5877
    %6378 = vmatpush1.bf16.msra.mxu0 %v5876
    %6379 = vmatprep.subr.bf16.mxu0 %v5881
    %6380 = vmatpush1.bf16.msra.mxu0 %v5880
    %6381 = vmatprep.subr.bf16.mxu0 %v5885
    %6382 = vmatpush1.bf16.msra.mxu0 %v5884
    %6383 = vmatprep.subr.bf16.mxu0 %v5889
    %6384 = vmatpush1.bf16.msra.mxu0 %v5888
    %6385 = vmatprep.mubr.bf16.mxu0 %v5901
    %6386 = vmatmul.mubr.bf16.gmra.mrb[0].mxu0 %v5900
    %v6387 = vpop.f32.mrb[0].mxu0
    %v6388 = vadd.f32 %v6347, %v6387
    %v6389 = vpop.f32.mrb[0].mxu0
    %v6390 = vadd.f32 %v6349, %v6389
    %v6391 = vpop.f32.mrb[0].mxu0
    %v6392 = vpop.f32.mrb[0].mxu0
    %6393 = vdwg.mxu0
    %6394 = vmatprep.subr.bf16.mxu0 %v4918
    %6395 = vmatpush1.bf16.msra.mxu0 %v4917
    %6396 = vmatprep.subr.bf16.mxu0 %v4922
    %6397 = vmatpush1.bf16.msra.mxu0 %v4921
    %6398 = vmatprep.subr.bf16.mxu0 %v4926
    %6399 = vmatpush1.bf16.msra.mxu0 %v4925
    %6400 = vmatprep.subr.bf16.mxu0 %v4930
    %6401 = vmatpush1.bf16.msra.mxu0 %v4929
    %6402 = vmatprep.subr.bf16.mxu0 %v4934
    %6403 = vmatpush1.bf16.msra.mxu0 %v4933
    %6404 = vmatprep.subr.bf16.mxu0 %v4938
    %6405 = vmatpush1.bf16.msra.mxu0 %v4937
    %6406 = vmatprep.subr.bf16.mxu0 %v4942
    %6407 = vmatpush1.bf16.msra.mxu0 %v4941
    %6408 = vmatprep.subr.bf16.mxu0 %v4946
    %6409 = vmatpush1.bf16.msra.mxu0 %v4945
    %6410 = vmatprep.subr.bf16.mxu0 %v4950
    %6411 = vmatpush1.bf16.msra.mxu0 %v4949
    %6412 = vmatprep.subr.bf16.mxu0 %v4954
    %6413 = vmatpush1.bf16.msra.mxu0 %v4953
    %6414 = vmatprep.subr.bf16.mxu0 %v4958
    %6415 = vmatpush1.bf16.msra.mxu0 %v4957
    %6416 = vmatprep.subr.bf16.mxu0 %v4962
    %6417 = vmatpush1.bf16.msra.mxu0 %v4961
    %6418 = vmatprep.subr.bf16.mxu0 %v4966
    %6419 = vmatpush1.bf16.msra.mxu0 %v4965
    %6420 = vmatprep.subr.bf16.mxu0 %v4970
    %6421 = vmatpush1.bf16.msra.mxu0 %v4969
    %6422 = vmatprep.subr.bf16.mxu0 %v4974
    %6423 = vmatpush1.bf16.msra.mxu0 %v4973
    %6424 = vmatprep.subr.bf16.mxu0 %v4978
    %6425 = vmatpush1.bf16.msra.mxu0 %v4977
    %6426 = vmatprep.mubr.bf16.mxu0 %v5302
    %6427 = vmatmul.mubr.bf16.gmra.mrb[0].mxu0 %v5301
    %v6428 = vpop.f32.mrb[0].mxu0
    %v6429 = vadd.f32 %v6142, %v6428
    %v6430 = vpop.f32.mrb[0].mxu0
    %v6431 = vadd.f32 %v6144, %v6430
    %v6432 = vpop.f32.mrb[0].mxu0
    %v6433 = vpop.f32.mrb[0].mxu0
    %6434 = vdwg.mxu0
    %6435 = vmatprep.subr.bf16.mxu0 %v4982
    %6436 = vmatpush1.bf16.msra.mxu0 %v4981
    %6437 = vmatprep.subr.bf16.mxu0 %v4986
    %6438 = vmatpush1.bf16.msra.mxu0 %v4985
    %6439 = vmatprep.subr.bf16.mxu0 %v4990
    %6440 = vmatpush1.bf16.msra.mxu0 %v4989
    %6441 = vmatprep.subr.bf16.mxu0 %v4994
    %6442 = vmatpush1.bf16.msra.mxu0 %v4993
    %6443 = vmatprep.subr.bf16.mxu0 %v4998
    %6444 = vmatpush1.bf16.msra.mxu0 %v4997
    %6445 = vmatprep.subr.bf16.mxu0 %v5002
    %6446 = vmatpush1.bf16.msra.mxu0 %v5001
    %6447 = vmatprep.subr.bf16.mxu0 %v5006
    %6448 = vmatpush1.bf16.msra.mxu0 %v5005
    %6449 = vmatprep.subr.bf16.mxu0 %v5010
    %6450 = vmatpush1.bf16.msra.mxu0 %v5009
    %6451 = vmatprep.subr.bf16.mxu0 %v5014
    %6452 = vmatpush1.bf16.msra.mxu0 %v5013
    %6453 = vmatprep.subr.bf16.mxu0 %v5018
    %6454 = vmatpush1.bf16.msra.mxu0 %v5017
    %6455 = vmatprep.subr.bf16.mxu0 %v5022
    %6456 = vmatpush1.bf16.msra.mxu0 %v5021
    %6457 = vmatprep.subr.bf16.mxu0 %v5026
    %6458 = vmatpush1.bf16.msra.mxu0 %v5025
    %6459 = vmatprep.subr.bf16.mxu0 %v5030
    %6460 = vmatpush1.bf16.msra.mxu0 %v5029
    %6461 = vmatprep.subr.bf16.mxu0 %v5034
    %6462 = vmatpush1.bf16.msra.mxu0 %v5033
    %6463 = vmatprep.subr.bf16.mxu0 %v5038
    %6464 = vmatpush1.bf16.msra.mxu0 %v5037
    %6465 = vmatprep.subr.bf16.mxu0 %v5042
    %6466 = vmatpush1.bf16.msra.mxu0 %v5041
    %6467 = vmatprep.mubr.bf16.mxu0 %v5304
    %6468 = vmatmul.mubr.bf16.gmra.mrb[0].mxu0 %v5303
    %v6469 = vpop.f32.mrb[0].mxu0
    %v6470 = vadd.f32 %v6429, %v6469
    %v6471 = vpop.f32.mrb[0].mxu0
    %v6472 = vadd.f32 %v6431, %v6471
    %v6473 = vpop.f32.mrb[0].mxu0
    %v6474 = vpop.f32.mrb[0].mxu0
    %6475 = vdwg.mxu0
    %6476 = vmatprep.subr.bf16.mxu0 %v5046
    %6477 = vmatpush1.bf16.msra.mxu0 %v5045
    %6478 = vmatprep.subr.bf16.mxu0 %v5050
    %6479 = vmatpush1.bf16.msra.mxu0 %v5049
    %6480 = vmatprep.subr.bf16.mxu0 %v5054
    %6481 = vmatpush1.bf16.msra.mxu0 %v5053
    %6482 = vmatprep.subr.bf16.mxu0 %v5058
    %6483 = vmatpush1.bf16.msra.mxu0 %v5057
    %6484 = vmatprep.subr.bf16.mxu0 %v5062
    %6485 = vmatpush1.bf16.msra.mxu0 %v5061
    %6486 = vmatprep.subr.bf16.mxu0 %v5066
    %6487 = vmatpush1.bf16.msra.mxu0 %v5065
    %6488 = vmatprep.subr.bf16.mxu0 %v5070
    %6489 = vmatpush1.bf16.msra.mxu0 %v5069
    %6490 = vmatprep.subr.bf16.mxu0 %v5074
    %6491 = vmatpush1.bf16.msra.mxu0 %v5073
    %6492 = vmatprep.subr.bf16.mxu0 %v5078
    %6493 = vmatpush1.bf16.msra.mxu0 %v5077
    %6494 = vmatprep.subr.bf16.mxu0 %v5082
    %6495 = vmatpush1.bf16.msra.mxu0 %v5081
    %6496 = vmatprep.subr.bf16.mxu0 %v5086
    %6497 = vmatpush1.bf16.msra.mxu0 %v5085
    %6498 = vmatprep.subr.bf16.mxu0 %v5090
    %6499 = vmatpush1.bf16.msra.mxu0 %v5089
    %6500 = vmatprep.subr.bf16.mxu0 %v5094
    %6501 = vmatpush1.bf16.msra.mxu0 %v5093
    %6502 = vmatprep.subr.bf16.mxu0 %v5098
    %6503 = vmatpush1.bf16.msra.mxu0 %v5097
    %6504 = vmatprep.subr.bf16.mxu0 %v5102
    %6505 = vmatpush1.bf16.msra.mxu0 %v5101
    %6506 = vmatprep.subr.bf16.mxu0 %v5106
    %6507 = vmatpush1.bf16.msra.mxu0 %v5105
    %6508 = vmatprep.mubr.bf16.mxu0 %v5306
    %6509 = vmatmul.mubr.bf16.gmra.mrb[0].mxu0 %v5305
    %v6510 = vpop.f32.mrb[0].mxu0
    %v6511 = vadd.f32 %v6470, %v6510
    %v6512 = vpop.f32.mrb[0].mxu0
    %v6513 = vadd.f32 %v6472, %v6512
    %v6514 = vpop.f32.mrb[0].mxu0
    %v6515 = vpop.f32.mrb[0].mxu0
    %6516 = vdwg.mxu0
    %6517 = vmatprep.subr.bf16.mxu0 %v5110
    %6518 = vmatpush1.bf16.msra.mxu0 %v5109
    %6519 = vmatprep.subr.bf16.mxu0 %v5114
    %6520 = vmatpush1.bf16.msra.mxu0 %v5113
    %6521 = vmatprep.subr.bf16.mxu0 %v5118
    %6522 = vmatpush1.bf16.msra.mxu0 %v5117
    %6523 = vmatprep.subr.bf16.mxu0 %v5122
    %6524 = vmatpush1.bf16.msra.mxu0 %v5121
    %6525 = vmatprep.subr.bf16.mxu0 %v5126
    %6526 = vmatpush1.bf16.msra.mxu0 %v5125
    %6527 = vmatprep.subr.bf16.mxu0 %v5130
    %6528 = vmatpush1.bf16.msra.mxu0 %v5129
    %6529 = vmatprep.subr.bf16.mxu0 %v5134
    %6530 = vmatpush1.bf16.msra.mxu0 %v5133
    %6531 = vmatprep.subr.bf16.mxu0 %v5138
    %6532 = vmatpush1.bf16.msra.mxu0 %v5137
    %6533 = vmatprep.subr.bf16.mxu0 %v5142
    %6534 = vmatpush1.bf16.msra.mxu0 %v5141
    %6535 = vmatprep.subr.bf16.mxu0 %v5146
    %6536 = vmatpush1.bf16.msra.mxu0 %v5145
    %6537 = vmatprep.subr.bf16.mxu0 %v5150
    %6538 = vmatpush1.bf16.msra.mxu0 %v5149
    %6539 = vmatprep.subr.bf16.mxu0 %v5154
    %6540 = vmatpush1.bf16.msra.mxu0 %v5153
    %6541 = vmatprep.subr.bf16.mxu0 %v5158
    %6542 = vmatpush1.bf16.msra.mxu0 %v5157
    %6543 = vmatprep.subr.bf16.mxu0 %v5162
    %6544 = vmatpush1.bf16.msra.mxu0 %v5161
    %6545 = vmatprep.subr.bf16.mxu0 %v5166
    %6546 = vmatpush1.bf16.msra.mxu0 %v5165
    %6547 = vmatprep.subr.bf16.mxu0 %v5170
    %6548 = vmatpush1.bf16.msra.mxu0 %v5169
    %6549 = vmatprep.mubr.bf16.mxu0 %v5308
    %6550 = vmatmul.mubr.bf16.gmra.mrb[0].mxu0 %v5307
    %v6551 = vpop.f32.mrb[0].mxu0
    %v6552 = vadd.f32 %v6511, %v6551
    %v6553 = vpop.f32.mrb[0].mxu0
    %v6554 = vadd.f32 %v6513, %v6553
    %v6555 = vpop.f32.mrb[0].mxu0
    %v6556 = vpop.f32.mrb[0].mxu0
    %6557 = vdwg.mxu0
    %6558 = vmatprep.subr.bf16.mxu0 %v5174
    %6559 = vmatpush1.bf16.msra.mxu0 %v5173
    %6560 = vmatprep.subr.bf16.mxu0 %v5178
    %6561 = vmatpush1.bf16.msra.mxu0 %v5177
    %6562 = vmatprep.subr.bf16.mxu0 %v5182
    %6563 = vmatpush1.bf16.msra.mxu0 %v5181
    %6564 = vmatprep.subr.bf16.mxu0 %v5186
    %6565 = vmatpush1.bf16.msra.mxu0 %v5185
    %6566 = vmatprep.subr.bf16.mxu0 %v5190
    %6567 = vmatpush1.bf16.msra.mxu0 %v5189
    %6568 = vmatprep.subr.bf16.mxu0 %v5194
    %6569 = vmatpush1.bf16.msra.mxu0 %v5193
    %6570 = vmatprep.subr.bf16.mxu0 %v5198
    %6571 = vmatpush1.bf16.msra.mxu0 %v5197
    %6572 = vmatprep.subr.bf16.mxu0 %v5202
    %6573 = vmatpush1.bf16.msra.mxu0 %v5201
    %6574 = vmatprep.subr.bf16.mxu0 %v5206
    %6575 = vmatpush1.bf16.msra.mxu0 %v5205
    %6576 = vmatprep.subr.bf16.mxu0 %v5210
    %6577 = vmatpush1.bf16.msra.mxu0 %v5209
    %6578 = vmatprep.subr.bf16.mxu0 %v5214
    %6579 = vmatpush1.bf16.msra.mxu0 %v5213
    %6580 = vmatprep.subr.bf16.mxu0 %v5218
    %6581 = vmatpush1.bf16.msra.mxu0 %v5217
    %6582 = vmatprep.subr.bf16.mxu0 %v5222
    %6583 = vmatpush1.bf16.msra.mxu0 %v5221
    %6584 = vmatprep.subr.bf16.mxu0 %v5226
    %6585 = vmatpush1.bf16.msra.mxu0 %v5225
    %6586 = vmatprep.subr.bf16.mxu0 %v5230
    %6587 = vmatpush1.bf16.msra.mxu0 %v5229
    %6588 = vmatprep.subr.bf16.mxu0 %v5234
    %6589 = vmatpush1.bf16.msra.mxu0 %v5233
    %6590 = vmatprep.mubr.bf16.mxu0 %v5310
    %6591 = vmatmul.mubr.bf16.gmra.mrb[0].mxu0 %v5309
    %v6592 = vpop.f32.mrb[0].mxu0
    %v6593 = vadd.f32 %v6552, %v6592
    %v6594 = vpop.f32.mrb[0].mxu0
    %v6595 = vadd.f32 %v6554, %v6594
    %v6596 = vpop.f32.mrb[0].mxu0
    %v6597 = vpop.f32.mrb[0].mxu0
    %6598 = vdwg.mxu0
    %6599 = vmatprep.subr.bf16.mxu0 %v5238
    %6600 = vmatpush1.bf16.msra.mxu0 %v5237
    %6601 = vmatprep.subr.bf16.mxu0 %v5242
    %6602 = vmatpush1.bf16.msra.mxu0 %v5241
    %6603 = vmatprep.subr.bf16.mxu0 %v5246
    %6604 = vmatpush1.bf16.msra.mxu0 %v5245
    %6605 = vmatprep.subr.bf16.mxu0 %v5250
    %6606 = vmatpush1.bf16.msra.mxu0 %v5249
    %6607 = vmatprep.subr.bf16.mxu0 %v5254
    %6608 = vmatpush1.bf16.msra.mxu0 %v5253
    %6609 = vmatprep.subr.bf16.mxu0 %v5258
    %6610 = vmatpush1.bf16.msra.mxu0 %v5257
    %6611 = vmatprep.subr.bf16.mxu0 %v5262
    %6612 = vmatpush1.bf16.msra.mxu0 %v5261
    %6613 = vmatprep.subr.bf16.mxu0 %v5266
    %6614 = vmatpush1.bf16.msra.mxu0 %v5265
    %6615 = vmatprep.subr.bf16.mxu0 %v5270
    %6616 = vmatpush1.bf16.msra.mxu0 %v5269
    %6617 = vmatprep.subr.bf16.mxu0 %v5274
    %6618 = vmatpush1.bf16.msra.mxu0 %v5273
    %6619 = vmatprep.subr.bf16.mxu0 %v5278
    %6620 = vmatpush1.bf16.msra.mxu0 %v5277
    %6621 = vmatprep.subr.bf16.mxu0 %v5282
    %6622 = vmatpush1.bf16.msra.mxu0 %v5281
    %6623 = vmatprep.subr.bf16.mxu0 %v5286
    %6624 = vmatpush1.bf16.msra.mxu0 %v5285
    %6625 = vmatprep.subr.bf16.mxu0 %v5290
    %6626 = vmatpush1.bf16.msra.mxu0 %v5289
    %6627 = vmatprep.subr.bf16.mxu0 %v5294
    %6628 = vmatpush1.bf16.msra.mxu0 %v5293
    %6629 = vmatprep.subr.bf16.mxu0 %v5298
    %6630 = vmatpush1.bf16.msra.mxu0 %v5297
    %6631 = vmatprep.mubr.bf16.mxu0 %v5312
    %6632 = vmatmul.mubr.bf16.gmra.mrb[0].mxu0 %v5311
    %v6633 = vpop.f32.mrb[0].mxu0
    %v6634 = vadd.f32 %v6593, %v6633
    %v6635 = vpop.f32.mrb[0].mxu0
    %v6636 = vadd.f32 %v6595, %v6635
    %v6637 = vpop.f32.mrb[0].mxu0
    %v6638 = vpop.f32.mrb[0].mxu0
    %6639 = vdwg.mxu0
    %6640 = vmatprep.subr.bf16.mxu0 %v4920
    %6641 = vmatpush1.bf16.msra.mxu0 %v4919
    %6642 = vmatprep.subr.bf16.mxu0 %v4924
    %6643 = vmatpush1.bf16.msra.mxu0 %v4923
    %6644 = vmatprep.subr.bf16.mxu0 %v4928
    %6645 = vmatpush1.bf16.msra.mxu0 %v4927
    %6646 = vmatprep.subr.bf16.mxu0 %v4932
    %6647 = vmatpush1.bf16.msra.mxu0 %v4931
    %6648 = vmatprep.subr.bf16.mxu0 %v4936
    %6649 = vmatpush1.bf16.msra.mxu0 %v4935
    %6650 = vmatprep.subr.bf16.mxu0 %v4940
    %6651 = vmatpush1.bf16.msra.mxu0 %v4939
    %6652 = vmatprep.subr.bf16.mxu0 %v4944
    %6653 = vmatpush1.bf16.msra.mxu0 %v4943
    %6654 = vmatprep.subr.bf16.mxu0 %v4948
    %6655 = vmatpush1.bf16.msra.mxu0 %v4947
    %6656 = vmatprep.subr.bf16.mxu0 %v4952
    %6657 = vmatpush1.bf16.msra.mxu0 %v4951
    %6658 = vmatprep.subr.bf16.mxu0 %v4956
    %6659 = vmatpush1.bf16.msra.mxu0 %v4955
    %6660 = vmatprep.subr.bf16.mxu0 %v4960
    %6661 = vmatpush1.bf16.msra.mxu0 %v4959
    %6662 = vmatprep.subr.bf16.mxu0 %v4964
    %6663 = vmatpush1.bf16.msra.mxu0 %v4963
    %6664 = vmatprep.subr.bf16.mxu0 %v4968
    %6665 = vmatpush1.bf16.msra.mxu0 %v4967
    %6666 = vmatprep.subr.bf16.mxu0 %v4972
    %6667 = vmatpush1.bf16.msra.mxu0 %v4971
    %6668 = vmatprep.subr.bf16.mxu0 %v4976
    %6669 = vmatpush1.bf16.msra.mxu0 %v4975
    %6670 = vmatprep.subr.bf16.mxu0 %v4980
    %6671 = vmatpush1.bf16.msra.mxu0 %v4979
    %6672 = vmatprep.mubr.bf16.mxu0 %v5302
    %6673 = vmatmul.mubr.bf16.gmra.mrb[0].mxu0 %v5301
    %v6674 = vpop.f32.mrb[0].mxu0
    %v6675 = vadd.f32 %v6388, %v6674
    %v6676 = vpop.f32.mrb[0].mxu0
    %v6677 = vadd.f32 %v6390, %v6676
    %v6678 = vpop.f32.mrb[0].mxu0
    %v6679 = vpop.f32.mrb[0].mxu0
    %6680 = vdwg.mxu0
    %6681 = vmatprep.subr.bf16.mxu0 %v4984
    %6682 = vmatpush1.bf16.msra.mxu0 %v4983
    %6683 = vmatprep.subr.bf16.mxu0 %v4988
    %6684 = vmatpush1.bf16.msra.mxu0 %v4987
    %6685 = vmatprep.subr.bf16.mxu0 %v4992
    %6686 = vmatpush1.bf16.msra.mxu0 %v4991
    %6687 = vmatprep.subr.bf16.mxu0 %v4996
    %6688 = vmatpush1.bf16.msra.mxu0 %v4995
    %6689 = vmatprep.subr.bf16.mxu0 %v5000
    %6690 = vmatpush1.bf16.msra.mxu0 %v4999
    %6691 = vmatprep.subr.bf16.mxu0 %v5004
    %6692 = vmatpush1.bf16.msra.mxu0 %v5003
    %6693 = vmatprep.subr.bf16.mxu0 %v5008
    %6694 = vmatpush1.bf16.msra.mxu0 %v5007
    %6695 = vmatprep.subr.bf16.mxu0 %v5012
    %6696 = vmatpush1.bf16.msra.mxu0 %v5011
    %6697 = vmatprep.subr.bf16.mxu0 %v5016
    %6698 = vmatpush1.bf16.msra.mxu0 %v5015
    %6699 = vmatprep.subr.bf16.mxu0 %v5020
    %6700 = vmatpush1.bf16.msra.mxu0 %v5019
    %6701 = vmatprep.subr.bf16.mxu0 %v5024
    %6702 = vmatpush1.bf16.msra.mxu0 %v5023
    %6703 = vmatprep.subr.bf16.mxu0 %v5028
    %6704 = vmatpush1.bf16.msra.mxu0 %v5027
    %6705 = vmatprep.subr.bf16.mxu0 %v5032
    %6706 = vmatpush1.bf16.msra.mxu0 %v5031
    %6707 = vmatprep.subr.bf16.mxu0 %v5036
    %6708 = vmatpush1.bf16.msra.mxu0 %v5035
    %6709 = vmatprep.subr.bf16.mxu0 %v5040
    %6710 = vmatpush1.bf16.msra.mxu0 %v5039
    %6711 = vmatprep.subr.bf16.mxu0 %v5044
    %6712 = vmatpush1.bf16.msra.mxu0 %v5043
    %6713 = vmatprep.mubr.bf16.mxu0 %v5304
    %6714 = vmatmul.mubr.bf16.gmra.mrb[0].mxu0 %v5303
    %v6715 = vpop.f32.mrb[0].mxu0
    %v6716 = vadd.f32 %v6675, %v6715
    %v6717 = vpop.f32.mrb[0].mxu0
    %v6718 = vadd.f32 %v6677, %v6717
    %v6719 = vpop.f32.mrb[0].mxu0
    %v6720 = vpop.f32.mrb[0].mxu0
    %6721 = vdwg.mxu0
    %6722 = vmatprep.subr.bf16.mxu0 %v5048
    %6723 = vmatpush1.bf16.msra.mxu0 %v5047
    %6724 = vmatprep.subr.bf16.mxu0 %v5052
    %6725 = vmatpush1.bf16.msra.mxu0 %v5051
    %6726 = vmatprep.subr.bf16.mxu0 %v5056
    %6727 = vmatpush1.bf16.msra.mxu0 %v5055
    %6728 = vmatprep.subr.bf16.mxu0 %v5060
    %6729 = vmatpush1.bf16.msra.mxu0 %v5059
    %6730 = vmatprep.subr.bf16.mxu0 %v5064
    %6731 = vmatpush1.bf16.msra.mxu0 %v5063
    %6732 = vmatprep.subr.bf16.mxu0 %v5068
    %6733 = vmatpush1.bf16.msra.mxu0 %v5067
    %6734 = vmatprep.subr.bf16.mxu0 %v5072
    %6735 = vmatpush1.bf16.msra.mxu0 %v5071
    %6736 = vmatprep.subr.bf16.mxu0 %v5076
    %6737 = vmatpush1.bf16.msra.mxu0 %v5075
    %6738 = vmatprep.subr.bf16.mxu0 %v5080
    %6739 = vmatpush1.bf16.msra.mxu0 %v5079
    %6740 = vmatprep.subr.bf16.mxu0 %v5084
    %6741 = vmatpush1.bf16.msra.mxu0 %v5083
    %6742 = vmatprep.subr.bf16.mxu0 %v5088
    %6743 = vmatpush1.bf16.msra.mxu0 %v5087
    %6744 = vmatprep.subr.bf16.mxu0 %v5092
    %6745 = vmatpush1.bf16.msra.mxu0 %v5091
    %6746 = vmatprep.subr.bf16.mxu0 %v5096
    %6747 = vmatpush1.bf16.msra.mxu0 %v5095
    %6748 = vmatprep.subr.bf16.mxu0 %v5100
    %6749 = vmatpush1.bf16.msra.mxu0 %v5099
    %6750 = vmatprep.subr.bf16.mxu0 %v5104
    %6751 = vmatpush1.bf16.msra.mxu0 %v5103
    %6752 = vmatprep.subr.bf16.mxu0 %v5108
    %6753 = vmatpush1.bf16.msra.mxu0 %v5107
    %6754 = vmatprep.mubr.bf16.mxu0 %v5306
    %6755 = vmatmul.mubr.bf16.gmra.mrb[0].mxu0 %v5305
    %v6756 = vpop.f32.mrb[0].mxu0
    %v6757 = vadd.f32 %v6716, %v6756
    %v6758 = vpop.f32.mrb[0].mxu0
    %v6759 = vadd.f32 %v6718, %v6758
    %v6760 = vpop.f32.mrb[0].mxu0
    %v6761 = vpop.f32.mrb[0].mxu0
    %6762 = vdwg.mxu0
    %6763 = vmatprep.subr.bf16.mxu0 %v5112
    %6764 = vmatpush1.bf16.msra.mxu0 %v5111
    %6765 = vmatprep.subr.bf16.mxu0 %v5116
    %6766 = vmatpush1.bf16.msra.mxu0 %v5115
    %6767 = vmatprep.subr.bf16.mxu0 %v5120
    %6768 = vmatpush1.bf16.msra.mxu0 %v5119
    %6769 = vmatprep.subr.bf16.mxu0 %v5124
    %6770 = vmatpush1.bf16.msra.mxu0 %v5123
    %6771 = vmatprep.subr.bf16.mxu0 %v5128
    %6772 = vmatpush1.bf16.msra.mxu0 %v5127
    %6773 = vmatprep.subr.bf16.mxu0 %v5132
    %6774 = vmatpush1.bf16.msra.mxu0 %v5131
    %6775 = vmatprep.subr.bf16.mxu0 %v5136
    %6776 = vmatpush1.bf16.msra.mxu0 %v5135
    %6777 = vmatprep.subr.bf16.mxu0 %v5140
    %6778 = vmatpush1.bf16.msra.mxu0 %v5139
    %6779 = vmatprep.subr.bf16.mxu0 %v5144
    %6780 = vmatpush1.bf16.msra.mxu0 %v5143
    %6781 = vmatprep.subr.bf16.mxu0 %v5148
    %6782 = vmatpush1.bf16.msra.mxu0 %v5147
    %6783 = vmatprep.subr.bf16.mxu0 %v5152
    %6784 = vmatpush1.bf16.msra.mxu0 %v5151
    %6785 = vmatprep.subr.bf16.mxu0 %v5156
    %6786 = vmatpush1.bf16.msra.mxu0 %v5155
    %6787 = vmatprep.subr.bf16.mxu0 %v5160
    %6788 = vmatpush1.bf16.msra.mxu0 %v5159
    %6789 = vmatprep.subr.bf16.mxu0 %v5164
    %6790 = vmatpush1.bf16.msra.mxu0 %v5163
    %6791 = vmatprep.subr.bf16.mxu0 %v5168
    %6792 = vmatpush1.bf16.msra.mxu0 %v5167
    %6793 = vmatprep.subr.bf16.mxu0 %v5172
    %6794 = vmatpush1.bf16.msra.mxu0 %v5171
    %6795 = vmatprep.mubr.bf16.mxu0 %v5308
    %6796 = vmatmul.mubr.bf16.gmra.mrb[0].mxu0 %v5307
    %v6797 = vpop.f32.mrb[0].mxu0
    %v6798 = vadd.f32 %v6757, %v6797
    %v6799 = vpop.f32.mrb[0].mxu0
    %v6800 = vadd.f32 %v6759, %v6799
    %v6801 = vpop.f32.mrb[0].mxu0
    %v6802 = vpop.f32.mrb[0].mxu0
    %6803 = vdwg.mxu0
    %6804 = vmatprep.subr.bf16.mxu0 %v5176
    %6805 = vmatpush1.bf16.msra.mxu0 %v5175
    %6806 = vmatprep.subr.bf16.mxu0 %v5180
    %6807 = vmatpush1.bf16.msra.mxu0 %v5179
    %6808 = vmatprep.subr.bf16.mxu0 %v5184
    %6809 = vmatpush1.bf16.msra.mxu0 %v5183
    %6810 = vmatprep.subr.bf16.mxu0 %v5188
    %6811 = vmatpush1.bf16.msra.mxu0 %v5187
    %6812 = vmatprep.subr.bf16.mxu0 %v5192
    %6813 = vmatpush1.bf16.msra.mxu0 %v5191
    %6814 = vmatprep.subr.bf16.mxu0 %v5196
    %6815 = vmatpush1.bf16.msra.mxu0 %v5195
    %6816 = vmatprep.subr.bf16.mxu0 %v5200
    %6817 = vmatpush1.bf16.msra.mxu0 %v5199
    %6818 = vmatprep.subr.bf16.mxu0 %v5204
    %6819 = vmatpush1.bf16.msra.mxu0 %v5203
    %6820 = vmatprep.subr.bf16.mxu0 %v5208
    %6821 = vmatpush1.bf16.msra.mxu0 %v5207
    %6822 = vmatprep.subr.bf16.mxu0 %v5212
    %6823 = vmatpush1.bf16.msra.mxu0 %v5211
    %6824 = vmatprep.subr.bf16.mxu0 %v5216
    %6825 = vmatpush1.bf16.msra.mxu0 %v5215
    %6826 = vmatprep.subr.bf16.mxu0 %v5220
    %6827 = vmatpush1.bf16.msra.mxu0 %v5219
    %6828 = vmatprep.subr.bf16.mxu0 %v5224
    %6829 = vmatpush1.bf16.msra.mxu0 %v5223
    %6830 = vmatprep.subr.bf16.mxu0 %v5228
    %6831 = vmatpush1.bf16.msra.mxu0 %v5227
    %6832 = vmatprep.subr.bf16.mxu0 %v5232
    %6833 = vmatpush1.bf16.msra.mxu0 %v5231
    %6834 = vmatprep.subr.bf16.mxu0 %v5236
    %6835 = vmatpush1.bf16.msra.mxu0 %v5235
    %6836 = vmatprep.mubr.bf16.mxu0 %v5310
    %6837 = vmatmul.mubr.bf16.gmra.mrb[0].mxu0 %v5309
    %v6838 = vpop.f32.mrb[0].mxu0
    %v6839 = vadd.f32 %v6798, %v6838
    %v6840 = vpop.f32.mrb[0].mxu0
    %v6841 = vadd.f32 %v6800, %v6840
    %v6842 = vpop.f32.mrb[0].mxu0
    %v6843 = vpop.f32.mrb[0].mxu0
    %6844 = vdwg.mxu0
    %6845 = vmatprep.subr.bf16.mxu0 %v5240
    %6846 = vmatpush1.bf16.msra.mxu0 %v5239
    %6847 = vmatprep.subr.bf16.mxu0 %v5244
    %6848 = vmatpush1.bf16.msra.mxu0 %v5243
    %6849 = vmatprep.subr.bf16.mxu0 %v5248
    %6850 = vmatpush1.bf16.msra.mxu0 %v5247
    %6851 = vmatprep.subr.bf16.mxu0 %v5252
    %6852 = vmatpush1.bf16.msra.mxu0 %v5251
    %6853 = vmatprep.subr.bf16.mxu0 %v5256
    %6854 = vmatpush1.bf16.msra.mxu0 %v5255
    %6855 = vmatprep.subr.bf16.mxu0 %v5260
    %6856 = vmatpush1.bf16.msra.mxu0 %v5259
    %6857 = vmatprep.subr.bf16.mxu0 %v5264
    %6858 = vmatpush1.bf16.msra.mxu0 %v5263
    %6859 = vmatprep.subr.bf16.mxu0 %v5268
    %6860 = vmatpush1.bf16.msra.mxu0 %v5267
    %6861 = vmatprep.subr.bf16.mxu0 %v5272
    %6862 = vmatpush1.bf16.msra.mxu0 %v5271
    %6863 = vmatprep.subr.bf16.mxu0 %v5276
    %6864 = vmatpush1.bf16.msra.mxu0 %v5275
    %6865 = vmatprep.subr.bf16.mxu0 %v5280
    %6866 = vmatpush1.bf16.msra.mxu0 %v5279
    %6867 = vmatprep.subr.bf16.mxu0 %v5284
    %6868 = vmatpush1.bf16.msra.mxu0 %v5283
    %6869 = vmatprep.subr.bf16.mxu0 %v5288
    %6870 = vmatpush1.bf16.msra.mxu0 %v5287
    %6871 = vmatprep.subr.bf16.mxu0 %v5292
    %6872 = vmatpush1.bf16.msra.mxu0 %v5291
    %6873 = vmatprep.subr.bf16.mxu0 %v5296
    %6874 = vmatpush1.bf16.msra.mxu0 %v5295
    %6875 = vmatprep.subr.bf16.mxu0 %v5300
    %6876 = vmatpush1.bf16.msra.mxu0 %v5299
    %6877 = vmatprep.mubr.bf16.mxu0 %v5312
    %6878 = vmatmul.mubr.bf16.gmra.mrb[0].mxu0 %v5311
    %v6879 = vpop.f32.mrb[0].mxu0
    %v6880 = vadd.f32 %v6839, %v6879
    %v6881 = vpop.f32.mrb[0].mxu0
    %v6882 = vadd.f32 %v6841, %v6881
    %v6883 = vpop.f32.mrb[0].mxu0
    %v6884 = vpop.f32.mrb[0].mxu0
    %6885 = vdwg.mxu0
    %v6886 = vld [vmem:[#allocation22] sm:$0xf]
    %v6888 = vlaneseq
    %v6889 = vshrl.u32 %v6888, 7
    %v6890 = vsub.s32 0, %v6889
    %v6891 = vrot.slane %v6886, %v6890
    %v6892 = vlaneseq
    %v6893 = vshrl.u32 %v6892, 7
    %v6894 = vsub.s32 1, %v6893
    %v6895 = vrot.slane %v6886, %v6894
    %v6896 = vlaneseq
    %v6897 = vshrl.u32 %v6896, 7
    %v6898 = vsub.s32 2, %v6897
    %v6899 = vrot.slane %v6886, %v6898
    %v6900 = vlaneseq
    %v6901 = vshrl.u32 %v6900, 7
    %v6902 = vsub.s32 3, %v6901
    %v6903 = vrot.slane %v6886, %v6902
    %v6908 = vmul.f32 %v6634, %v6891
    %v6909 = vmul.f32 %v6636, %v6895
    %v6910 = vmul.f32 %v6880, %v6899
    %v6911 = vmul.f32 %v6882, %v6903
    %v6912 = vld [vmem:[#allocation24] sm:$0xf]
    %v6914 = vlaneseq
    %v6915 = vshrl.u32 %v6914, 7
    %v6916 = vsub.s32 0, %v6915
    %v6917 = vrot.slane %v6912, %v6916
    %v6918 = vlaneseq
    %v6919 = vshrl.u32 %v6918, 7
    %v6920 = vsub.s32 1, %v6919
    %v6921 = vrot.slane %v6912, %v6920
    %v6922 = vlaneseq
    %v6923 = vshrl.u32 %v6922, 7
    %v6924 = vsub.s32 2, %v6923
    %v6925 = vrot.slane %v6912, %v6924
    %v6926 = vlaneseq
    %v6927 = vshrl.u32 %v6926, 7
    %v6928 = vsub.s32 3, %v6927
    %v6929 = vrot.slane %v6912, %v6928
    %v6934 = vadd.f32 %v6908, %v6917
    %v6935 = vadd.f32 %v6909, %v6921
    %v6936 = vadd.f32 %v6910, %v6925
    %v6937 = vadd.f32 %v6911, %v6929
    %v6938 = vmax.f32 %v6934, 0.0
    %v6939 = vmax.f32 %v6935, 0.0
    %v6940 = vmax.f32 %v6936, 0.0
    %v6941 = vmax.f32 %v6937, 0.0
    %v6942 = vld [vmem:[%s15] sm:$0xff]
    %v6943 = vld [vmem:[%s15 + $0x8] sm:$0xff]
    %v6944 = vld [vmem:[%s15 + $0x10] sm:$0xff]
    %v6945 = vld [vmem:[%s15 + $0x18] sm:$0xff]
    %v6946 = vld [vmem:[%s15 + $0x20] sm:$0xff]
    %v6947 = vld [vmem:[%s15 + $0x28] sm:$0xff]
    %v6948 = vld [vmem:[%s15 + $0x30] sm:$0xff]
    %v6949 = vld [vmem:[%s15 + $0x38] sm:$0xff]
    %v6950 = vld [vmem:[%s15 + $0x40] sm:$0xff]
    %v6951 = vld [vmem:[%s15 + $0x48] sm:$0xff]
    %v6952 = vld [vmem:[%s15 + $0x50] sm:$0xff]
    %v6953 = vld [vmem:[%s15 + $0x58] sm:$0xff]
    %v6954 = vld [vmem:[%s15 + $0x60] sm:$0xff]
    %v6955 = vld [vmem:[%s15 + $0x68] sm:$0xff]
    %v6956 = vld [vmem:[%s15 + $0x70] sm:$0xff]
    %v6957 = vld [vmem:[%s15 + $0x78] sm:$0xff]
    %v6958 = vld [vmem:[%s15 + $0x80] sm:$0xff]
    %v6959 = vld [vmem:[%s15 + $0x88] sm:$0xff]
    %v6960 = vld [vmem:[%s15 + $0x90] sm:$0xff]
    %v6961 = vld [vmem:[%s15 + $0x98] sm:$0xff]
    %v6962 = vld [vmem:[%s15 + $0xa0] sm:$0xff]
    %v6963 = vld [vmem:[%s15 + $0xa8] sm:$0xff]
    %v6964 = vld [vmem:[%s15 + $0xb0] sm:$0xff]
    %v6965 = vld [vmem:[%s15 + $0xb8] sm:$0xff]
    %v6966 = vld [vmem:[%s15 + $0xc0] sm:$0xff]
    %v6967 = vld [vmem:[%s15 + $0xc8] sm:$0xff]
    %v6968 = vld [vmem:[%s15 + $0xd0] sm:$0xff]
    %v6969 = vld [vmem:[%s15 + $0xd8] sm:$0xff]
    %v6970 = vld [vmem:[%s15 + $0xe0] sm:$0xff]
    %v6971 = vld [vmem:[%s15 + $0xe8] sm:$0xff]
    %v6972 = vld [vmem:[%s15 + $0xf0] sm:$0xff]
    %v6973 = vld [vmem:[%s15 + $0xf8] sm:$0xff]
    %v6974 = vld [vmem:[%s15 + $0x100] sm:$0xff]
    %v6975 = vld [vmem:[%s15 + $0x108] sm:$0xff]
    %v6976 = vld [vmem:[%s15 + $0x110] sm:$0xff]
    %v6977 = vld [vmem:[%s15 + $0x118] sm:$0xff]
    %v6978 = vld [vmem:[%s15 + $0x120] sm:$0xff]
    %v6979 = vld [vmem:[%s15 + $0x128] sm:$0xff]
    %v6980 = vld [vmem:[%s15 + $0x130] sm:$0xff]
    %v6981 = vld [vmem:[%s15 + $0x138] sm:$0xff]
    %v6982 = vld [vmem:[%s15 + $0x140] sm:$0xff]
    %v6983 = vld [vmem:[%s15 + $0x148] sm:$0xff]
    %v6984 = vld [vmem:[%s15 + $0x150] sm:$0xff]
    %v6985 = vld [vmem:[%s15 + $0x158] sm:$0xff]
    %v6986 = vld [vmem:[%s15 + $0x160] sm:$0xff]
    %v6987 = vld [vmem:[%s15 + $0x168] sm:$0xff]
    %v6988 = vld [vmem:[%s15 + $0x170] sm:$0xff]
    %v6989 = vld [vmem:[%s15 + $0x178] sm:$0xff]
    %v6990 = vld [vmem:[%s15 + $0x180] sm:$0xff]
    %v6991 = vld [vmem:[%s15 + $0x188] sm:$0xff]
    %v6992 = vld [vmem:[%s15 + $0x190] sm:$0xff]
    %v6993 = vld [vmem:[%s15 + $0x198] sm:$0xff]
    %v6994 = vld [vmem:[%s15 + $0x1a0] sm:$0xff]
    %v6995 = vld [vmem:[%s15 + $0x1a8] sm:$0xff]
    %v6996 = vld [vmem:[%s15 + $0x1b0] sm:$0xff]
    %v6997 = vld [vmem:[%s15 + $0x1b8] sm:$0xff]
    %v6998 = vld [vmem:[%s15 + $0x1c0] sm:$0xff]
    %v6999 = vld [vmem:[%s15 + $0x1c8] sm:$0xff]
    %v7000 = vld [vmem:[%s15 + $0x1d0] sm:$0xff]
    %v7001 = vld [vmem:[%s15 + $0x1d8] sm:$0xff]
    %v7002 = vld [vmem:[%s15 + $0x1e0] sm:$0xff]
    %v7003 = vld [vmem:[%s15 + $0x1e8] sm:$0xff]
    %v7004 = vld [vmem:[%s15 + $0x1f0] sm:$0xff]
    %v7005 = vld [vmem:[%s15 + $0x1f8] sm:$0xff]
    %v7006 = vld [vmem:[#allocation25] sm:$0x1]
    %v7008 = vlaneseq
    %v7009 = vshrl.u32 %v7008, 7
    %v7010 = vsub.s32 0, %v7009
    %v7011 = vrot.slane %v7006, %v7010
    %7013 = vmatprep.subr.mxu0 0.0
    %7014 = vmatpush1.msra.mxu0 %v6942
    %7015 = vmatprep.subr.mxu0 0.0
    %7016 = vmatpush1.msra.mxu0 %v6943
    %7017 = vmatprep.subr.mxu0 0.0
    %7018 = vmatpush1.msra.mxu0 %v6944
    %7019 = vmatprep.subr.mxu0 0.0
    %7020 = vmatpush1.msra.mxu0 %v6945
    %7021 = vmatprep.subr.mxu0 0.0
    %7022 = vmatpush1.msra.mxu0 %v6946
    %7023 = vmatprep.subr.mxu0 0.0
    %7024 = vmatpush1.msra.mxu0 %v6947
    %7025 = vmatprep.subr.mxu0 0.0
    %7026 = vmatpush1.msra.mxu0 %v6948
    %7027 = vmatprep.subr.mxu0 0.0
    %7028 = vmatpush1.msra.mxu0 %v6949
    %7029 = vmatprep.subr.mxu0 0.0
    %7030 = vmatpush1.msra.mxu0 %v6950
    %7031 = vmatprep.subr.mxu0 0.0
    %7032 = vmatpush1.msra.mxu0 %v6951
    %7033 = vmatprep.subr.mxu0 0.0
    %7034 = vmatpush1.msra.mxu0 %v6952
    %7035 = vmatprep.subr.mxu0 0.0
    %7036 = vmatpush1.msra.mxu0 %v6953
    %7037 = vmatprep.subr.mxu0 0.0
    %7038 = vmatpush1.msra.mxu0 %v6954
    %7039 = vmatprep.subr.mxu0 0.0
    %7040 = vmatpush1.msra.mxu0 %v6955
    %7041 = vmatprep.subr.mxu0 0.0
    %7042 = vmatpush1.msra.mxu0 %v6956
    %7043 = vmatprep.subr.mxu0 0.0
    %7044 = vmatpush1.msra.mxu0 %v6957
    %7045 = vmatprep.subr.mxu0 0.0
    %7046 = vmatpush1.msra.mxu0 %v6958
    %7047 = vmatprep.subr.mxu0 0.0
    %7048 = vmatpush1.msra.mxu0 %v6959
    %7049 = vmatprep.subr.mxu0 0.0
    %7050 = vmatpush1.msra.mxu0 %v6960
    %7051 = vmatprep.subr.mxu0 0.0
    %7052 = vmatpush1.msra.mxu0 %v6961
    %7053 = vmatprep.subr.mxu0 0.0
    %7054 = vmatpush1.msra.mxu0 %v6962
    %7055 = vmatprep.subr.mxu0 0.0
    %7056 = vmatpush1.msra.mxu0 %v6963
    %7057 = vmatprep.subr.mxu0 0.0
    %7058 = vmatpush1.msra.mxu0 %v6964
    %7059 = vmatprep.subr.mxu0 0.0
    %7060 = vmatpush1.msra.mxu0 %v6965
    %7061 = vmatprep.subr.mxu0 0.0
    %7062 = vmatpush1.msra.mxu0 %v6966
    %7063 = vmatprep.subr.mxu0 0.0
    %7064 = vmatpush1.msra.mxu0 %v6967
    %7065 = vmatprep.subr.mxu0 0.0
    %7066 = vmatpush1.msra.mxu0 %v6968
    %7067 = vmatprep.subr.mxu0 0.0
    %7068 = vmatpush1.msra.mxu0 %v6969
    %7069 = vmatprep.subr.mxu0 0.0
    %7070 = vmatpush1.msra.mxu0 %v6970
    %7071 = vmatprep.subr.mxu0 0.0
    %7072 = vmatpush1.msra.mxu0 %v6971
    %7073 = vmatprep.subr.mxu0 0.0
    %7074 = vmatpush1.msra.mxu0 %v6972
    %7075 = vmatprep.subr.mxu0 0.0
    %7076 = vmatpush1.msra.mxu0 %v6973
    %7077 = vmatprep.mubr.f32.mxu0 %v6939
    %7078 = vmatmul.mubr.f32.gmra.mrb[0].mxu0 %v6938
    %v7079 = vpop.f32.mrb[0].mxu0
    %v7080 = vadd.f32 %v7011, %v7079
    %v7081 = vpop.f32.mrb[0].mxu0
    %7082 = vdwg.mxu0
    %7083 = vmatprep.subr.mxu0 0.0
    %7084 = vmatpush1.msra.mxu0 %v6974
    %7085 = vmatprep.subr.mxu0 0.0
    %7086 = vmatpush1.msra.mxu0 %v6975
    %7087 = vmatprep.subr.mxu0 0.0
    %7088 = vmatpush1.msra.mxu0 %v6976
    %7089 = vmatprep.subr.mxu0 0.0
    %7090 = vmatpush1.msra.mxu0 %v6977
    %7091 = vmatprep.subr.mxu0 0.0
    %7092 = vmatpush1.msra.mxu0 %v6978
    %7093 = vmatprep.subr.mxu0 0.0
    %7094 = vmatpush1.msra.mxu0 %v6979
    %7095 = vmatprep.subr.mxu0 0.0
    %7096 = vmatpush1.msra.mxu0 %v6980
    %7097 = vmatprep.subr.mxu0 0.0
    %7098 = vmatpush1.msra.mxu0 %v6981
    %7099 = vmatprep.subr.mxu0 0.0
    %7100 = vmatpush1.msra.mxu0 %v6982
    %7101 = vmatprep.subr.mxu0 0.0
    %7102 = vmatpush1.msra.mxu0 %v6983
    %7103 = vmatprep.subr.mxu0 0.0
    %7104 = vmatpush1.msra.mxu0 %v6984
    %7105 = vmatprep.subr.mxu0 0.0
    %7106 = vmatpush1.msra.mxu0 %v6985
    %7107 = vmatprep.subr.mxu0 0.0
    %7108 = vmatpush1.msra.mxu0 %v6986
    %7109 = vmatprep.subr.mxu0 0.0
    %7110 = vmatpush1.msra.mxu0 %v6987
    %7111 = vmatprep.subr.mxu0 0.0
    %7112 = vmatpush1.msra.mxu0 %v6988
    %7113 = vmatprep.subr.mxu0 0.0
    %7114 = vmatpush1.msra.mxu0 %v6989
    %7115 = vmatprep.subr.mxu0 0.0
    %7116 = vmatpush1.msra.mxu0 %v6990
    %7117 = vmatprep.subr.mxu0 0.0
    %7118 = vmatpush1.msra.mxu0 %v6991
    %7119 = vmatprep.subr.mxu0 0.0
    %7120 = vmatpush1.msra.mxu0 %v6992
    %7121 = vmatprep.subr.mxu0 0.0
    %7122 = vmatpush1.msra.mxu0 %v6993
    %7123 = vmatprep.subr.mxu0 0.0
    %7124 = vmatpush1.msra.mxu0 %v6994
    %7125 = vmatprep.subr.mxu0 0.0
    %7126 = vmatpush1.msra.mxu0 %v6995
    %7127 = vmatprep.subr.mxu0 0.0
    %7128 = vmatpush1.msra.mxu0 %v6996
    %7129 = vmatprep.subr.mxu0 0.0
    %7130 = vmatpush1.msra.mxu0 %v6997
    %7131 = vmatprep.subr.mxu0 0.0
    %7132 = vmatpush1.msra.mxu0 %v6998
    %7133 = vmatprep.subr.mxu0 0.0
    %7134 = vmatpush1.msra.mxu0 %v6999
    %7135 = vmatprep.subr.mxu0 0.0
    %7136 = vmatpush1.msra.mxu0 %v7000
    %7137 = vmatprep.subr.mxu0 0.0
    %7138 = vmatpush1.msra.mxu0 %v7001
    %7139 = vmatprep.subr.mxu0 0.0
    %7140 = vmatpush1.msra.mxu0 %v7002
    %7141 = vmatprep.subr.mxu0 0.0
    %7142 = vmatpush1.msra.mxu0 %v7003
    %7143 = vmatprep.subr.mxu0 0.0
    %7144 = vmatpush1.msra.mxu0 %v7004
    %7145 = vmatprep.subr.mxu0 0.0
    %7146 = vmatpush1.msra.mxu0 %v7005
    %7147 = vmatprep.mubr.f32.mxu0 %v6941
    %7148 = vmatmul.mubr.f32.gmra.mrb[0].mxu0 %v6940
    %v7149 = vpop.f32.mrb[0].mxu0
    %v7150 = vadd.f32 %v7080, %v7149
    %v7151 = vpop.f32.mrb[0].mxu0
    %7152 = vdwg.mxu0
    %v7153 = vmax.f32 %v7150, 0.0
    %v7154 = vld [vmem:[%s17] sm:$0xff]
    %v7155 = vld [vmem:[%s17 + $0x8] sm:$0xff]
    %v7156 = vld [vmem:[%s17 + $0x10] sm:$0xff]
    %v7157 = vld [vmem:[%s17 + $0x18] sm:$0xff]
    %v7158 = vld [vmem:[#allocation27] sm:$0x1]
    %v7160 = vlaneseq
    %v7161 = vshrl.u32 %v7160, 7
    %v7162 = vsub.s32 0, %v7161
    %v7163 = vrot.slane %v7158, %v7162
    %v7166 = vsel %vm1037, %v7153, 0
    %7168 = vmatprep.subr.mxu0 0.0
    %7169 = vmatpush1.msra.mxu0 %v7154
    %7170 = vmatprep.subr.mxu0 0.0
    %7171 = vmatpush1.msra.mxu0 %v7155
    %7172 = vmatprep.subr.mxu0 0.0
    %7173 = vmatpush1.msra.mxu0 %v7156
    %7174 = vmatprep.subr.mxu0 0.0
    %7175 = vmatpush1.msra.mxu0 %v7157
    %7176 = vmatprep.subr.mxu0 0.0
    %7177 = vmatpush1.msra.mxu0 0.0
    %7178 = vmatprep.subr.mxu0 0.0
    %7179 = vmatpush1.msra.mxu0 0.0
    %7180 = vmatprep.subr.mxu0 0.0
    %7181 = vmatpush1.msra.mxu0 0.0
    %7182 = vmatprep.subr.mxu0 0.0
    %7183 = vmatpush1.msra.mxu0 0.0
    %7184 = vmatprep.subr.mxu0 0.0
    %7185 = vmatpush1.msra.mxu0 0.0
    %7186 = vmatprep.subr.mxu0 0.0
    %7187 = vmatpush1.msra.mxu0 0.0
    %7188 = vmatprep.subr.mxu0 0.0
    %7189 = vmatpush1.msra.mxu0 0.0
    %7190 = vmatprep.subr.mxu0 0.0
    %7191 = vmatpush1.msra.mxu0 0.0
    %7192 = vmatprep.subr.mxu0 0.0
    %7193 = vmatpush1.msra.mxu0 0.0
    %7194 = vmatprep.subr.mxu0 0.0
    %7195 = vmatpush1.msra.mxu0 0.0
    %7196 = vmatprep.subr.mxu0 0.0
    %7197 = vmatpush1.msra.mxu0 0.0
    %7198 = vmatprep.subr.mxu0 0.0
    %7199 = vmatpush1.msra.mxu0 0.0
    %7200 = vmatprep.subr.mxu0 0.0
    %7201 = vmatpush1.msra.mxu0 0.0
    %7202 = vmatprep.subr.mxu0 0.0
    %7203 = vmatpush1.msra.mxu0 0.0
    %7204 = vmatprep.subr.mxu0 0.0
    %7205 = vmatpush1.msra.mxu0 0.0
    %7206 = vmatprep.subr.mxu0 0.0
    %7207 = vmatpush1.msra.mxu0 0.0
    %7208 = vmatprep.subr.mxu0 0.0
    %7209 = vmatpush1.msra.mxu0 0.0
    %7210 = vmatprep.subr.mxu0 0.0
    %7211 = vmatpush1.msra.mxu0 0.0
    %7212 = vmatprep.subr.mxu0 0.0
    %7213 = vmatpush1.msra.mxu0 0.0
    %7214 = vmatprep.subr.mxu0 0.0
    %7215 = vmatpush1.msra.mxu0 0.0
    %7216 = vmatprep.subr.mxu0 0.0
    %7217 = vmatpush1.msra.mxu0 0.0
    %7218 = vmatprep.subr.mxu0 0.0
    %7219 = vmatpush1.msra.mxu0 0.0
    %7220 = vmatprep.subr.mxu0 0.0
    %7221 = vmatpush1.msra.mxu0 0.0
    %7222 = vmatprep.subr.mxu0 0.0
    %7223 = vmatpush1.msra.mxu0 0.0
    %7224 = vmatprep.subr.mxu0 0.0
    %7225 = vmatpush1.msra.mxu0 0.0
    %7226 = vmatprep.subr.mxu0 0.0
    %7227 = vmatpush1.msra.mxu0 0.0
    %7228 = vmatprep.subr.mxu0 0.0
    %7229 = vmatpush1.msra.mxu0 0.0
    %7230 = vmatprep.subr.mxu0 0.0
    %7231 = vmatpush1.msra.mxu0 0.0
    %7232 = vmatprep.mubr.f32.mxu0 0.0
    %7233 = vmatmul.mubr.f32.gmra.mrb[0].mxu0 %v7166
    %v7234 = vpop.f32.mrb[0].mxu0
    %v7235 = vadd.f32 %v7163, %v7234
    %v7236 = vpop.f32.mrb[0].mxu0
    %7237 = vdwg.mxu0
    %vm7238 = vcmask 254976
    %7239 = vst.msk [vmem:[#allocation28] sm:$0x3] %vm7238, %v7153
    %vm7240 = vcmask 58368
    %7241 = vst.msk [vmem:[#allocation29] sm:$0x3] %vm7240, %v7235
    // Predicated region
    $region138: #{x_vector_forward.1} parent=1 // pred_check
      _
    $region139: #{x_vector_forward.1} parent=1 // pred_check_branch
      %7243 = sbr.rel (0) target = $region141
    $region140: #{x_vector_forward.1} parent=1 // pred_region
      %s7245 = ssub.s32 32, 32
      %7246 = vsyncadd [#allocation6], %s7245
      %s7248 = sshll.u32 [#allocation28], 4
      %s7249 = int_to_ptr.vmem [resolvable:$true] %s7248
      %7251 = dma.vmem_to_hbm [thread:$0]  %s7249, 32, %s19, [#allocation6]
    $region141: #{x_vector_forward.1} parent=1 // pred_fallthru
      _
    // Predicated region
    $region142: #{x_vector_forward.1} parent=1 // pred_check
      _
    $region143: #{x_vector_forward.1} parent=1 // pred_check_branch
      %7253 = sbr.rel (0) target = $region145
    $region144: #{x_vector_forward.1} parent=1 // pred_region
      %s7255 = ssub.s32 32, 32
      %7256 = vsyncadd [#allocation30], %s7255
      %s7258 = sshll.u32 [#allocation29], 4
      %s7259 = int_to_ptr.vmem [resolvable:$true] %s7258
      %7261 = dma.vmem_to_hbm [thread:$0]  %s7259, 32, %s20, [#allocation30]
    $region145: #{x_vector_forward.1} parent=1 // pred_fallthru
      _
    // Predicated region
    $region146: #{x_vector_forward.1} parent=1 // pred_check
      _
    $region147: #{x_vector_forward.1} parent=1 // pred_check_branch
      %7263 = sbr.rel (0) target = $region149
    $region148: #{x_vector_forward.1} parent=1 // pred_region
      %7264 = dma.done [#allocation6], 32
    $region149: #{x_vector_forward.1} parent=1 // pred_fallthru
      _
    // Predicated region
    $region150: #{x_vector_forward.1} parent=1 // pred_check
      _
    $region151: #{x_vector_forward.1} parent=1 // pred_check_branch
      %7266 = sbr.rel (0) target = $region153
    $region152: #{x_vector_forward.1} parent=1 // pred_region
      %7267 = dma.done [#allocation30], 32
    $region153: #{x_vector_forward.1} parent=1 // pred_fallthru
      _
    %7268 = vsyncpa [#allocation5], 1
    %7269 = vsyncpa [#allocation8], 1
    %7270 = vsyncpa [#allocation11], 1
    %7271 = vsyncpa [#allocation14], 1
    %7272 = vsyncpa [#allocation17], 1
    %7273 = vsyncpa [#allocation20], 1
    %7274 = vsyncpa [#allocation23], 1
    %7275 = vsyncpa [#allocation26], 1
    %7276 = vsyncpa [#allocation6], 1
    %7277 = vsyncpa [#allocation30], 1
  %7278 = vsyncmov [#allocation3]
  %s7279 = vpop.sfrf %7278
  %p7280 = scmp.eq.s32.totalorder %s7279, 0
  %p7281 = pneg %p7280
  %7283 = shalt.err (%p7281)

</llo_original>
